<compile_context>
chip_gen: v6e
topology: v6e:2x2x1
jax: 0.10.0
libtpu: 0.0.40
codegen_flags: <defaults>
</compile_context>

<pallas_src>
import functools

import jax
import jax.numpy as jnp
from jax import lax
from jax.experimental import pallas as pl
from jax.experimental.pallas import tpu as pltpu

# bf16 MXU operands (f32 accumulation) on TPU; f32 fallback elsewhere (the CPU
# dot thunk does not support BF16 x BF16 = F32).
_ON_TPU = jax.default_backend() == "tpu"
MXU_DTYPE = jnp.bfloat16 if _ON_TPU else jnp.float32

T_CHUNK = 8      # timesteps per grid step; sweep up (16-64) for long sequences
LANE = 128
SUBLANE = 8


def _round_up(x, m):
    return (x + m - 1) // m * m


def _pack_gates_T(w, h, h_pad):
    """PyTorch-layout weight (4H, IN) -> transposed, per-gate lane-padded (IN, 4*Hp).

    Gate k (i, f, g, o) occupies columns [k*Hp, k*Hp + H); the rest is zero, so
    padded hidden units never contribute to real gates."""
    in_dim = w.shape[1]
    out = jnp.zeros((in_dim, 4 * h_pad), w.dtype)
    for k in range(4):
        out = out.at[:, k * h_pad:k * h_pad + h].set(w[k * h:(k + 1) * h, :].T)
    return out


def _sigmoid_via_tanh(x):
    # sigmoid(x) == 0.5 * tanh(0.5 * x) + 0.5 : one EUP op, mul/add in spare VALU slots.
    return 0.5 * jnp.tanh(0.5 * x) + 0.5


def _lstm_kernel(emb_ref, wih_ref, whh_ref, bias_ref, h0_ref, c0_ref,
                 out_ref, hN_ref, cN_ref, h_scr, c_scr, *, seq_len):
    """One grid step = t_chunk timesteps of the LSTM recurrence.

    emb_ref : (t_chunk, Bp, E)   MXU dtype   embedded tokens (time-major)
    wih_ref : (E, 4Hp)           MXU dtype   resident input-projection weights
    whh_ref : (Hp, 4Hp)          MXU dtype   resident recurrent weights
    bias_ref: (Bp, 4Hp)          f32         pre-broadcast b_ih + b_hh
    h0/c0   : (Bp, Hp)           f32         initial state (resident)
    out_ref : (t_chunk, Bp, Hp)  f32         time-major hidden outputs
    hN/cN   : (Bp, Hp)           f32         final state (written at last chunk)
    h/c_scr : (Bp, Hp)           f32         recurrent carry across chunks
    """
    chunk = pl.program_id(0)
    nchunks = pl.num_programs(0)
    t_chunk = emb_ref.shape[0]
    hp = h_scr.shape[-1]

    @pl.when(chunk == 0)
    def _():
        h_scr[...] = h0_ref[...]
        c_scr[...] = c0_ref[...]

    def step(tt, carry, guard):
        h, c = carry
        # Fused input projection: independent of the recurrence, so the LLO
        # scheduler overlaps it with the previous step's gate math.
        gates = (jnp.dot(emb_ref[tt], wih_ref[...],
                         preferred_element_type=jnp.float32)
                 + jnp.dot(h.astype(whh_ref.dtype), whh_ref[...],
                           preferred_element_type=jnp.float32)
                 + bias_ref[...])
        i_g = _sigmoid_via_tanh(gates[:, 0 * hp:1 * hp])
        f_g = _sigmoid_via_tanh(gates[:, 1 * hp:2 * hp])
        g_g = jnp.tanh(gates[:, 2 * hp:3 * hp])
        o_g = _sigmoid_via_tanh(gates[:, 3 * hp:4 * hp])

        c_new = f_g * c + i_g * g_g
        h_new = o_g * jnp.tanh(c_new)

        if guard:
            # Freeze state on padded tail steps so hN/cN stay correct.
            valid = (chunk * t_chunk + tt) < seq_len
            c_new = jnp.where(valid, c_new, c)
            h_new = jnp.where(valid, h_new, h)

        # Dense (Bp, Hp) lane-aligned store (dynamic leading-axis index).
        out_ref[tt] = h_new.astype(out_ref.dtype)
        return (h_new, c_new)

    def run_chunk(guard):
        h, c = lax.fori_loop(
            0, t_chunk,
            lambda tt, carry: step(tt, carry, guard),
            (h_scr[...], c_scr[...]),
            unroll=True)
        h_scr[...] = h
        c_scr[...] = c

    if seq_len is None:
        run_chunk(False)
    else:
        # Only the last chunk can contain padded tail steps: steady-state chunks
        # skip the two per-step selects entirely.
        @pl.when(chunk != nchunks - 1)
        def _():
            run_chunk(False)

        @pl.when(chunk == nchunks - 1)
        def _():
            run_chunk(True)

    @pl.when(chunk == nchunks - 1)
    def _():
        hN_ref[...] = h_scr[...]
        cN_ref[...] = c_scr[...]


def encoder_rnn_forward(inp_q, input_mask, params, h0, c0, *, t_chunk=T_CHUNK):
    """inp_q: (B, S) int32, input_mask: (B, S) float32.
    Returns (outputs (B, S, H), (h_n (1, B, H), c_n (1, B, H)))."""
    emb_w = params["embedding"]          # (V, E), row 0 = padding row
    w_ih = params["w_ih"]                # (4H, E)   PyTorch weight_ih_l0
    w_hh = params["w_hh"]                # (4H, H)   PyTorch weight_hh_l0
    bias = params["bias"]                # (4H,)     b_ih + b_hh

    B, S = inp_q.shape
    H = h0.shape[-1]

    Hp = _round_up(H, LANE)                          # lane-dense hidden size
    Bp = _round_up(max(B, SUBLANE), SUBLANE)         # full sublanes
    Sp = _round_up(S, t_chunk)                       # whole chunks

    # Per-gate lane-padded, transposed weights / bias (resident in VMEM).
    w_ih_T = _pack_gates_T(w_ih, H, Hp).astype(MXU_DTYPE)            # (E, 4Hp)
    w_hh_T = _pack_gates_T(w_hh, H, Hp)                              # (H, 4Hp)
    w_hh_T = jnp.pad(w_hh_T, ((0, Hp - H), (0, 0))).astype(MXU_DTYPE)  # (Hp, 4Hp)
    bias_p = _pack_gates_T(bias[:, None], H, Hp)                     # (1, 4Hp) f32
    bias_bc = jnp.broadcast_to(bias_p, (Bp, 4 * Hp))                 # pre-broadcast

    # Embedding lookup emitted directly time-major (no separate transpose pass);
    # eval-mode embedding dropout = identity.  Streamed in MXU dtype.
    emb_tm = jnp.take(emb_w, inp_q.T, axis=0)                        # (S, B, E)
    emb_tm = jnp.pad(emb_tm, ((0, Sp - S), (0, Bp - B), (0, 0))).astype(MXU_DTYPE)

    h0p = jnp.pad(h0, ((0, Bp - B), (0, Hp - H)))
    c0p = jnp.pad(c0, ((0, Bp - B), (0, Hp - H)))

    E = emb_w.shape[-1]
    kernel = functools.partial(_lstm_kernel, seq_len=(S if Sp != S else None))

    out_tm, h_n, c_n = pl.pallas_call(
        kernel,
        out_shape=(
            jax.ShapeDtypeStruct((Sp, Bp, Hp), jnp.float32),
            jax.ShapeDtypeStruct((Bp, Hp), jnp.float32),
            jax.ShapeDtypeStruct((Bp, Hp), jnp.float32),
        ),
        grid_spec=pltpu.PrefetchScalarGridSpec(
            num_scalar_prefetch=0,
            grid=(Sp // t_chunk,),
            in_specs=[
                pl.BlockSpec((t_chunk, Bp, E), lambda s: (s, 0, 0)),   # embedded chunk
                pl.BlockSpec((E, 4 * Hp), lambda s: (0, 0)),           # W_ih^T (resident)
                pl.BlockSpec((Hp, 4 * Hp), lambda s: (0, 0)),          # W_hh^T (resident)
                pl.BlockSpec((Bp, 4 * Hp), lambda s: (0, 0)),          # bias (resident)
                pl.BlockSpec((Bp, Hp), lambda s: (0, 0)),              # h0
                pl.BlockSpec((Bp, Hp), lambda s: (0, 0)),              # c0
            ],
            out_specs=[
                pl.BlockSpec((t_chunk, Bp, Hp), lambda s: (s, 0, 0)),  # outputs (time-major)
                pl.BlockSpec((Bp, Hp), lambda s: (0, 0)),              # h_n
                pl.BlockSpec((Bp, Hp), lambda s: (0, 0)),              # c_n
            ],
            scratch_shapes=[
                pltpu.VMEM((Bp, Hp), jnp.float32),   # h carry
                pltpu.VMEM((Bp, Hp), jnp.float32),   # c carry
            ],
        ),
        compiler_params=pltpu.CompilerParams(
            dimension_semantics=("arbitrary",),       # sequential recurrence
            vmem_limit_bytes=32 * 1024 * 1024,        # headroom on v7x (64 MiB VMEM)
        ),
    )(emb_tm, w_ih_T, w_hh_T, bias_bc, h0p, c0p)

    # Un-pad + single batch_first transpose + output mask (fused by XLA).
    outputs = jnp.transpose(out_tm[:S, :B, :H], (1, 0, 2)) * input_mask[..., None]
    hidden = (h_n[:B, :H][None], c_n[:B, :H][None])            # (n_layers=1, B, H)
    return outputs, hidden


def _reference_forward(inp_q, input_mask, params, h0, c0):
    """Pure-JAX reference with the same dtype policy (MXU_DTYPE matmul operands,
    f32 accumulation/state); eval mode, input_lengths=None."""
    emb_w = params["embedding"]
    w_ih, w_hh, bias = params["w_ih"], params["w_hh"], params["bias"]
    H = h0.shape[-1]

    x = jnp.take(emb_w, inp_q, axis=0)                          # (B, S, E)
    w_ih_T = jnp.transpose(w_ih).astype(MXU_DTYPE)              # (E, 4H)
    w_hh_T = jnp.transpose(w_hh).astype(MXU_DTYPE)              # (H, 4H)

    def step(carry, x_t):
        h, c = carry
        gates = (jnp.dot(x_t.astype(MXU_DTYPE), w_ih_T,
                         preferred_element_type=jnp.float32)
                 + jnp.dot(h.astype(MXU_DTYPE), w_hh_T,
                           preferred_element_type=jnp.float32)
                 + bias[None, :])
        i = jax.nn.sigmoid(gates[:, 0 * H:1 * H])
        f = jax.nn.sigmoid(gates[:, 1 * H:2 * H])
        g = jnp.tanh(gates[:, 2 * H:3 * H])
        o = jax.nn.sigmoid(gates[:, 3 * H:4 * H])
        c = f * c + i * g
        h = o * jnp.tanh(c)
        return (h, c), h

    (h_n, c_n), outs = lax.scan(step, (h0, c0), jnp.transpose(x, (1, 0, 2)))
    outs = jnp.transpose(outs, (1, 0, 2)) * input_mask[..., None]
    return outs, (h_n[None], c_n[None])


if __name__ == "__main__":
    # Small, deterministic configuration (S not a multiple of T_CHUNK so the
    # last-chunk tail-freeze path is also exercised).
    B, S = 2, 12
    VOCAB, EMB, HID = 50, 16, 32

    key = jax.random.PRNGKey(0)
    k_emb, k_wih, k_whh, k_bih, k_bhh, k_tok, k_h0, k_c0 = jax.random.split(key, 8)

    bound = float(HID) ** -0.5
    emb_w = jax.random.normal(k_emb, (VOCAB, EMB), jnp.float32)
    emb_w = emb_w.at[0].set(0.0)  # nn.Embedding(padding_idx=0)
    w_ih = jax.random.uniform(k_wih, (4 * HID, EMB), jnp.float32, -bound, bound)
    w_hh = jax.random.uniform(k_whh, (4 * HID, HID), jnp.float32, -bound, bound)
    b_ih = jax.random.uniform(k_bih, (4 * HID,), jnp.float32, -bound, bound)
    b_hh = jax.random.uniform(k_bhh, (4 * HID,), jnp.float32, -bound, bound)

    params = {
        "embedding": emb_w,
        "w_ih": w_ih,                # PyTorch layout (4H, E), gate order i,f,g,o
        "w_hh": w_hh,                # PyTorch layout (4H, H)
        "bias": b_ih + b_hh,         # (4H,)
    }

    # Token ids (0 is padding) and a matching mask.
    inp_q = jax.random.randint(k_tok, (B, S), 0, VOCAB, jnp.int32)
    input_mask = (inp_q != 0).astype(jnp.float32)

    # init_weights: torch.rand -> uniform [0, 1)
    h0 = jax.random.uniform(k_h0, (B, HID), jnp.float32)
    c0 = jax.random.uniform(k_c0, (B, HID), jnp.float32)

    outputs, (h_n, c_n) = encoder_rnn_forward(inp_q, input_mask, params, h0, c0)
    jax.block_until_ready((outputs, h_n, c_n))

    # Sanity check against a pure-JAX reference with the same dtype policy.
    ref_out, (ref_h, ref_c) = _reference_forward(inp_q, input_mask, params, h0, c0)
    tol = 1e-3 if MXU_DTYPE == jnp.float32 else 2e-2   # bf16 operand rounding drift
    assert outputs.shape == (B, S, HID)
    assert jnp.allclose(outputs, ref_out, atol=tol, rtol=tol)
    assert jnp.allclose(h_n, ref_h, atol=tol, rtol=tol)
    assert jnp.allclose(c_n, ref_c, atol=tol, rtol=tol)

    print("KERNEL_OK")
</pallas_src>

<mosaic_0001>
module attributes {stable_mosaic.version = 11 : i64} {
  func.func @_lstm_kernel(%arg0: i32, %arg1: memref<8x8x16xf32, #tpu.memory_space<vmem>>, %arg2: memref<16x512xf32, #tpu.memory_space<vmem>>, %arg3: memref<128x512xf32, #tpu.memory_space<vmem>>, %arg4: memref<8x512xf32, #tpu.memory_space<vmem>>, %arg5: memref<8x128xf32, #tpu.memory_space<vmem>>, %arg6: memref<8x128xf32, #tpu.memory_space<vmem>>, %arg7: memref<8x8x128xf32, #tpu.memory_space<vmem>>, %arg8: memref<8x128xf32, #tpu.memory_space<vmem>>, %arg9: memref<8x128xf32, #tpu.memory_space<vmem>>, %arg10: memref<8x128xf32, #tpu.memory_space<vmem>>, %arg11: memref<8x128xf32, #tpu.memory_space<vmem>>) attributes {dimension_semantics = [#tpu.dimension_semantics<arbitrary>], iteration_bounds = array<i64: 2>, scalar_prefetch = 0 : i64, scratch_operands = 2 : i64, tpu.core_type = #tpu.core_type<tc>, window_params = [{transform_indices = @transform_0, window_bounds = array<i64: 8, 8, 16>}, {pipeline_mode = #tpu.pipeline_mode<synchronous>, transform_indices = @transform_1, window_bounds = array<i64: 16, 512>}, {pipeline_mode = #tpu.pipeline_mode<synchronous>, transform_indices = @transform_2, window_bounds = array<i64: 128, 512>}, {pipeline_mode = #tpu.pipeline_mode<synchronous>, transform_indices = @transform_3, window_bounds = array<i64: 8, 512>}, {pipeline_mode = #tpu.pipeline_mode<synchronous>, transform_indices = @transform_4, window_bounds = array<i64: 8, 128>}, {pipeline_mode = #tpu.pipeline_mode<synchronous>, transform_indices = @transform_5, window_bounds = array<i64: 8, 128>}, {transform_indices = @transform_6, window_bounds = array<i64: 8, 8, 128>}, {pipeline_mode = #tpu.pipeline_mode<synchronous>, transform_indices = @transform_7, window_bounds = array<i64: 8, 128>}, {pipeline_mode = #tpu.pipeline_mode<synchronous>, transform_indices = @transform_8, window_bounds = array<i64: 8, 128>}]} {
    %c0_i32 = arith.constant 0 : i32
    %0 = arith.cmpi eq, %arg0, %c0_i32 : i32
    %1 = arith.extui %0 : i1 to i32
    %c0_i32_0 = arith.constant 0 : i32
    %2 = arith.cmpi ne, %1, %c0_i32_0 : i32
    scf.if %2 {
      %c0 = arith.constant 0 : index
      %c0_6 = arith.constant 0 : index
      %12 = vector.load %arg5[%c0, %c0_6] : memref<8x128xf32, #tpu.memory_space<vmem>>, vector<8x128xf32>
      %c0_7 = arith.constant 0 : index
      %c0_8 = arith.constant 0 : index
      %13 = vector.load %arg10[%c0_7, %c0_8] : memref<8x128xf32, #tpu.memory_space<vmem>>, vector<8x128xf32>
      tpu.vector_store %arg10[%c0_7, %c0_8], %12 {strides = array<i32>} : memref<8x128xf32, #tpu.memory_space<vmem>>, vector<8x128xf32>,
      %c0_9 = arith.constant 0 : index
      %c0_10 = arith.constant 0 : index
      %14 = vector.load %arg6[%c0_9, %c0_10] : memref<8x128xf32, #tpu.memory_space<vmem>>, vector<8x128xf32>
      %c0_11 = arith.constant 0 : index
      %c0_12 = arith.constant 0 : index
      %15 = vector.load %arg11[%c0_11, %c0_12] : memref<8x128xf32, #tpu.memory_space<vmem>>, vector<8x128xf32>
      tpu.vector_store %arg11[%c0_11, %c0_12], %14 {strides = array<i32>} : memref<8x128xf32, #tpu.memory_space<vmem>>, vector<8x128xf32>,
    } else {
    }
    %c1_i32 = arith.constant 1 : i32
    %3 = arith.cmpi ne, %arg0, %c1_i32 : i32
    %4 = arith.extui %3 : i1 to i32
    %c0_i32_1 = arith.constant 0 : i32
    %5 = arith.cmpi ne, %4, %c0_i32_1 : i32
    scf.if %5 {
      %c0 = arith.constant 0 : index
      %c0_6 = arith.constant 0 : index
      %12 = vector.load %arg10[%c0, %c0_6] : memref<8x128xf32, #tpu.memory_space<vmem>>, vector<8x128xf32>
      %c0_7 = arith.constant 0 : index
      %c0_8 = arith.constant 0 : index
      %13 = vector.load %arg11[%c0_7, %c0_8] : memref<8x128xf32, #tpu.memory_space<vmem>>, vector<8x128xf32>
      %c0_i32_9 = arith.constant 0 : i32
      %14 = arith.index_cast %c0_i32_9 : i32 to index
      %c0_10 = arith.constant 0 : index
      %c0_11 = arith.constant 0 : index
      %15 = vector.load %arg1[%14, %c0_10, %c0_11] : memref<8x8x16xf32, #tpu.memory_space<vmem>>, vector<1x8x16xf32>
      %16 = vector.shape_cast %15 : vector<1x8x16xf32> to vector<8x16xf32>
      %c0_12 = arith.constant 0 : index
      %c0_13 = arith.constant 0 : index
      %17 = vector.load %arg2[%c0_12, %c0_13] : memref<16x512xf32, #tpu.memory_space<vmem>>, vector<16x512xf32>
      %cst = arith.constant dense<0.000000e+00> : vector<8x512xf32>
      %18 = tpu.matmul %16, %17, %cst {dimension_numbers = #tpu.dot_dimension_numbers<[1], [0], [0], [1], [0, 0, 1, 1], [], []>} : vector<8x16xf32>, vector<16x512xf32>, vector<8x512xf32> -> vector<8x512xf32>
      %c0_14 = arith.constant 0 : index
      %c0_15 = arith.constant 0 : index
      %19 = vector.load %arg3[%c0_14, %c0_15] : memref<128x512xf32, #tpu.memory_space<vmem>>, vector<128x512xf32>
      %cst_16 = arith.constant dense<0.000000e+00> : vector<8x512xf32>
      %20 = tpu.matmul %12, %19, %cst_16 {dimension_numbers = #tpu.dot_dimension_numbers<[1], [0], [0], [1], [0, 0, 1, 1], [], []>} : vector<8x128xf32>, vector<128x512xf32>, vector<8x512xf32> -> vector<8x512xf32>
      %21 = arith.addf %18, %20 : vector<8x512xf32>
      %c0_17 = arith.constant 0 : index
      %c0_18 = arith.constant 0 : index
      %22 = vector.load %arg4[%c0_17, %c0_18] : memref<8x512xf32, #tpu.memory_space<vmem>>, vector<8x512xf32>
      %23 = arith.addf %21, %22 : vector<8x512xf32>
      %24 = vector.extract_strided_slice %23 {offsets = [0, 0], sizes = [8, 128], strides = [1, 1]} : vector<8x512xf32> to vector<8x128xf32>
      %cst_19 = arith.constant 5.000000e-01 : f32
      %25 = vector.broadcast %cst_19 : f32 to vector<8x128xf32>
      %26 = arith.mulf %25, %24 : vector<8x128xf32>
      %27 = math.tanh %26 : vector<8x128xf32>
      %cst_20 = arith.constant 5.000000e-01 : f32
      %28 = vector.broadcast %cst_20 : f32 to vector<8x128xf32>
      %29 = arith.mulf %28, %27 : vector<8x128xf32>
      %cst_21 = arith.constant 5.000000e-01 : f32
      %30 = vector.broadcast %cst_21 : f32 to vector<8x128xf32>
      %31 = arith.addf %29, %30 : vector<8x128xf32>
      %32 = vector.extract_strided_slice %23 {offsets = [0, 128], sizes = [8, 128], strides = [1, 1]} : vector<8x512xf32> to vector<8x128xf32>
      %cst_22 = arith.constant 5.000000e-01 : f32
      %33 = vector.broadcast %cst_22 : f32 to vector<8x128xf32>
      %34 = arith.mulf %33, %32 : vector<8x128xf32>
      %35 = math.tanh %34 : vector<8x128xf32>
      %cst_23 = arith.constant 5.000000e-01 : f32
      %36 = vector.broadcast %cst_23 : f32 to vector<8x128xf32>
      %37 = arith.mulf %36, %35 : vector<8x128xf32>
      %cst_24 = arith.constant 5.000000e-01 : f32
      %38 = vector.broadcast %cst_24 : f32 to vector<8x128xf32>
      %39 = arith.addf %37, %38 : vector<8x128xf32>
      %40 = vector.extract_strided_slice %23 {offsets = [0, 256], sizes = [8, 128], strides = [1, 1]} : vector<8x512xf32> to vector<8x128xf32>
      %41 = math.tanh %40 : vector<8x128xf32>
      %42 = vector.extract_strided_slice %23 {offsets = [0, 384], sizes = [8, 128], strides = [1, 1]} : vector<8x512xf32> to vector<8x128xf32>
      %cst_25 = arith.constant 5.000000e-01 : f32
      %43 = vector.broadcast %cst_25 : f32 to vector<8x128xf32>
      %44 = arith.mulf %43, %42 : vector<8x128xf32>
      %45 = math.tanh %44 : vector<8x128xf32>
      %cst_26 = arith.constant 5.000000e-01 : f32
      %46 = vector.broadcast %cst_26 : f32 to vector<8x128xf32>
      %47 = arith.mulf %46, %45 : vector<8x128xf32>
      %cst_27 = arith.constant 5.000000e-01 : f32
      %48 = vector.broadcast %cst_27 : f32 to vector<8x128xf32>
      %49 = arith.addf %47, %48 : vector<8x128xf32>
      %50 = arith.mulf %39, %13 : vector<8x128xf32>
      %51 = arith.mulf %31, %41 : vector<8x128xf32>
      %52 = arith.addf %50, %51 : vector<8x128xf32>
      %53 = math.tanh %52 : vector<8x128xf32>
      %54 = arith.mulf %49, %53 : vector<8x128xf32>
      %55 = arith.index_cast %c0_i32_9 : i32 to index
      %c0_28 = arith.constant 0 : index
      %c0_29 = arith.constant 0 : index
      %56 = vector.load %arg7[%55, %c0_28, %c0_29] : memref<8x8x128xf32, #tpu.memory_space<vmem>>, vector<1x8x128xf32>
      %57 = vector.shape_cast %56 : vector<1x8x128xf32> to vector<8x128xf32>
      %58 = vector.shape_cast %54 : vector<8x128xf32> to vector<1x8x128xf32>
      tpu.vector_store %arg7[%55, %c0_28, %c0_29], %58 {strides = array<i32>} : memref<8x8x128xf32, #tpu.memory_space<vmem>>, vector<1x8x128xf32>,
      %c1_i32_30 = arith.constant 1 : i32
      %59 = arith.index_cast %c1_i32_30 : i32 to index
      %c0_31 = arith.constant 0 : index
      %c0_32 = arith.constant 0 : index
      %60 = vector.load %arg1[%59, %c0_31, %c0_32] : memref<8x8x16xf32, #tpu.memory_space<vmem>>, vector<1x8x16xf32>
      %61 = vector.shape_cast %60 : vector<1x8x16xf32> to vector<8x16xf32>
      %c0_33 = arith.constant 0 : index
      %c0_34 = arith.constant 0 : index
      %62 = vector.load %arg2[%c0_33, %c0_34] : memref<16x512xf32, #tpu.memory_space<vmem>>, vector<16x512xf32>
      %cst_35 = arith.constant dense<0.000000e+00> : vector<8x512xf32>
      %63 = tpu.matmul %61, %62, %cst_35 {dimension_numbers = #tpu.dot_dimension_numbers<[1], [0], [0], [1], [0, 0, 1, 1], [], []>} : vector<8x16xf32>, vector<16x512xf32>, vector<8x512xf32> -> vector<8x512xf32>
      %c0_36 = arith.constant 0 : index
      %c0_37 = arith.constant 0 : index
      %64 = vector.load %arg3[%c0_36, %c0_37] : memref<128x512xf32, #tpu.memory_space<vmem>>, vector<128x512xf32>
      %cst_38 = arith.constant dense<0.000000e+00> : vector<8x512xf32>
      %65 = tpu.matmul %54, %64, %cst_38 {dimension_numbers = #tpu.dot_dimension_numbers<[1], [0], [0], [1], [0, 0, 1, 1], [], []>} : vector<8x128xf32>, vector<128x512xf32>, vector<8x512xf32> -> vector<8x512xf32>
      %66 = arith.addf %63, %65 : vector<8x512xf32>
      %c0_39 = arith.constant 0 : index
      %c0_40 = arith.constant 0 : index
      %67 = vector.load %arg4[%c0_39, %c0_40] : memref<8x512xf32, #tpu.memory_space<vmem>>, vector<8x512xf32>
      %68 = arith.addf %66, %67 : vector<8x512xf32>
      %69 = vector.extract_strided_slice %68 {offsets = [0, 0], sizes = [8, 128], strides = [1, 1]} : vector<8x512xf32> to vector<8x128xf32>
      %cst_41 = arith.constant 5.000000e-01 : f32
      %70 = vector.broadcast %cst_41 : f32 to vector<8x128xf32>
      %71 = arith.mulf %70, %69 : vector<8x128xf32>
      %72 = math.tanh %71 : vector<8x128xf32>
      %cst_42 = arith.constant 5.000000e-01 : f32
      %73 = vector.broadcast %cst_42 : f32 to vector<8x128xf32>
      %74 = arith.mulf %73, %72 : vector<8x128xf32>
      %cst_43 = arith.constant 5.000000e-01 : f32
      %75 = vector.broadcast %cst_43 : f32 to vector<8x128xf32>
      %76 = arith.addf %74, %75 : vector<8x128xf32>
      %77 = vector.extract_strided_slice %68 {offsets = [0, 128], sizes = [8, 128], strides = [1, 1]} : vector<8x512xf32> to vector<8x128xf32>
      %cst_44 = arith.constant 5.000000e-01 : f32
      %78 = vector.broadcast %cst_44 : f32 to vector<8x128xf32>
      %79 = arith.mulf %78, %77 : vector<8x128xf32>
      %80 = math.tanh %79 : vector<8x128xf32>
      %cst_45 = arith.constant 5.000000e-01 : f32
      %81 = vector.broadcast %cst_45 : f32 to vector<8x128xf32>
      %82 = arith.mulf %81, %80 : vector<8x128xf32>
      %cst_46 = arith.constant 5.000000e-01 : f32
      %83 = vector.broadcast %cst_46 : f32 to vector<8x128xf32>
      %84 = arith.addf %82, %83 : vector<8x128xf32>
      %85 = vector.extract_strided_slice %68 {offsets = [0, 256], sizes = [8, 128], strides = [1, 1]} : vector<8x512xf32> to vector<8x128xf32>
      %86 = math.tanh %85 : vector<8x128xf32>
      %87 = vector.extract_strided_slice %68 {offsets = [0, 384], sizes = [8, 128], strides = [1, 1]} : vector<8x512xf32> to vector<8x128xf32>
      %cst_47 = arith.constant 5.000000e-01 : f32
      %88 = vector.broadcast %cst_47 : f32 to vector<8x128xf32>
      %89 = arith.mulf %88, %87 : vector<8x128xf32>
      %90 = math.tanh %89 : vector<8x128xf32>
      %cst_48 = arith.constant 5.000000e-01 : f32
      %91 = vector.broadcast %cst_48 : f32 to vector<8x128xf32>
      %92 = arith.mulf %91, %90 : vector<8x128xf32>
      %cst_49 = arith.constant 5.000000e-01 : f32
      %93 = vector.broadcast %cst_49 : f32 to vector<8x128xf32>
      %94 = arith.addf %92, %93 : vector<8x128xf32>
      %95 = arith.mulf %84, %52 : vector<8x128xf32>
      %96 = arith.mulf %76, %86 : vector<8x128xf32>
      %97 = arith.addf %95, %96 : vector<8x128xf32>
      %98 = math.tanh %97 : vector<8x128xf32>
      %99 = arith.mulf %94, %98 : vector<8x128xf32>
      %100 = arith.index_cast %c1_i32_30 : i32 to index
      %c0_50 = arith.constant 0 : index
      %c0_51 = arith.constant 0 : index
      %101 = vector.load %arg7[%100, %c0_50, %c0_51] : memref<8x8x128xf32, #tpu.memory_space<vmem>>, vector<1x8x128xf32>
      %102 = vector.shape_cast %101 : vector<1x8x128xf32> to vector<8x128xf32>
      %103 = vector.shape_cast %99 : vector<8x128xf32> to vector<1x8x128xf32>
      tpu.vector_store %arg7[%100, %c0_50, %c0_51], %103 {strides = array<i32>} : memref<8x8x128xf32, #tpu.memory_space<vmem>>, vector<1x8x128xf32>,
      %c2_i32 = arith.constant 2 : i32
      %104 = arith.index_cast %c2_i32 : i32 to index
      %c0_52 = arith.constant 0 : index
      %c0_53 = arith.constant 0 : index
      %105 = vector.load %arg1[%104, %c0_52, %c0_53] : memref<8x8x16xf32, #tpu.memory_space<vmem>>, vector<1x8x16xf32>
      %106 = vector.shape_cast %105 : vector<1x8x16xf32> to vector<8x16xf32>
      %c0_54 = arith.constant 0 : index
      %c0_55 = arith.constant 0 : index
      %107 = vector.load %arg2[%c0_54, %c0_55] : memref<16x512xf32, #tpu.memory_space<vmem>>, vector<16x512xf32>
      %cst_56 = arith.constant dense<0.000000e+00> : vector<8x512xf32>
      %108 = tpu.matmul %106, %107, %cst_56 {dimension_numbers = #tpu.dot_dimension_numbers<[1], [0], [0], [1], [0, 0, 1, 1], [], []>} : vector<8x16xf32>, vector<16x512xf32>, vector<8x512xf32> -> vector<8x512xf32>
      %c0_57 = arith.constant 0 : index
      %c0_58 = arith.constant 0 : index
      %109 = vector.load %arg3[%c0_57, %c0_58] : memref<128x512xf32, #tpu.memory_space<vmem>>, vector<128x512xf32>
      %cst_59 = arith.constant dense<0.000000e+00> : vector<8x512xf32>
      %110 = tpu.matmul %99, %109, %cst_59 {dimension_numbers = #tpu.dot_dimension_numbers<[1], [0], [0], [1], [0, 0, 1, 1], [], []>} : vector<8x128xf32>, vector<128x512xf32>, vector<8x512xf32> -> vector<8x512xf32>
      %111 = arith.addf %108, %110 : vector<8x512xf32>
      %c0_60 = arith.constant 0 : index
      %c0_61 = arith.constant 0 : index
      %112 = vector.load %arg4[%c0_60, %c0_61] : memref<8x512xf32, #tpu.memory_space<vmem>>, vector<8x512xf32>
      %113 = arith.addf %111, %112 : vector<8x512xf32>
      %114 = vector.extract_strided_slice %113 {offsets = [0, 0], sizes = [8, 128], strides = [1, 1]} : vector<8x512xf32> to vector<8x128xf32>
      %cst_62 = arith.constant 5.000000e-01 : f32
      %115 = vector.broadcast %cst_62 : f32 to vector<8x128xf32>
      %116 = arith.mulf %115, %114 : vector<8x128xf32>
      %117 = math.tanh %116 : vector<8x128xf32>
      %cst_63 = arith.constant 5.000000e-01 : f32
      %118 = vector.broadcast %cst_63 : f32 to vector<8x128xf32>
      %119 = arith.mulf %118, %117 : vector<8x128xf32>
      %cst_64 = arith.constant 5.000000e-01 : f32
      %120 = vector.broadcast %cst_64 : f32 to vector<8x128xf32>
      %121 = arith.addf %119, %120 : vector<8x128xf32>
      %122 = vector.extract_strided_slice %113 {offsets = [0, 128], sizes = [8, 128], strides = [1, 1]} : vector<8x512xf32> to vector<8x128xf32>
      %cst_65 = arith.constant 5.000000e-01 : f32
      %123 = vector.broadcast %cst_65 : f32 to vector<8x128xf32>
      %124 = arith.mulf %123, %122 : vector<8x128xf32>
      %125 = math.tanh %124 : vector<8x128xf32>
      %cst_66 = arith.constant 5.000000e-01 : f32
      %126 = vector.broadcast %cst_66 : f32 to vector<8x128xf32>
      %127 = arith.mulf %126, %125 : vector<8x128xf32>
      %cst_67 = arith.constant 5.000000e-01 : f32
      %128 = vector.broadcast %cst_67 : f32 to vector<8x128xf32>
      %129 = arith.addf %127, %128 : vector<8x128xf32>
      %130 = vector.extract_strided_slice %113 {offsets = [0, 256], sizes = [8, 128], strides = [1, 1]} : vector<8x512xf32> to vector<8x128xf32>
      %131 = math.tanh %130 : vector<8x128xf32>
      %132 = vector.extract_strided_slice %113 {offsets = [0, 384], sizes = [8, 128], strides = [1, 1]} : vector<8x512xf32> to vector<8x128xf32>
      %cst_68 = arith.constant 5.000000e-01 : f32
      %133 = vector.broadcast %cst_68 : f32 to vector<8x128xf32>
      %134 = arith.mulf %133, %132 : vector<8x128xf32>
      %135 = math.tanh %134 : vector<8x128xf32>
      %cst_69 = arith.constant 5.000000e-01 : f32
      %136 = vector.broadcast %cst_69 : f32 to vector<8x128xf32>
      %137 = arith.mulf %136, %135 : vector<8x128xf32>
      %cst_70 = arith.constant 5.000000e-01 : f32
      %138 = vector.broadcast %cst_70 : f32 to vector<8x128xf32>
      %139 = arith.addf %137, %138 : vector<8x128xf32>
      %140 = arith.mulf %129, %97 : vector<8x128xf32>
      %141 = arith.mulf %121, %131 : vector<8x128xf32>
      %142 = arith.addf %140, %141 : vector<8x128xf32>
      %143 = math.tanh %142 : vector<8x128xf32>
      %144 = arith.mulf %139, %143 : vector<8x128xf32>
      %145 = arith.index_cast %c2_i32 : i32 to index
      %c0_71 = arith.constant 0 : index
      %c0_72 = arith.constant 0 : index
      %146 = vector.load %arg7[%145, %c0_71, %c0_72] : memref<8x8x128xf32, #tpu.memory_space<vmem>>, vector<1x8x128xf32>
      %147 = vector.shape_cast %146 : vector<1x8x128xf32> to vector<8x128xf32>
      %148 = vector.shape_cast %144 : vector<8x128xf32> to vector<1x8x128xf32>
      tpu.vector_store %arg7[%145, %c0_71, %c0_72], %148 {strides = array<i32>} : memref<8x8x128xf32, #tpu.memory_space<vmem>>, vector<1x8x128xf32>,
      %c3_i32 = arith.constant 3 : i32
      %149 = arith.index_cast %c3_i32 : i32 to index
      %c0_73 = arith.constant 0 : index
      %c0_74 = arith.constant 0 : index
      %150 = vector.load %arg1[%149, %c0_73, %c0_74] : memref<8x8x16xf32, #tpu.memory_space<vmem>>, vector<1x8x16xf32>
      %151 = vector.shape_cast %150 : vector<1x8x16xf32> to vector<8x16xf32>
      %c0_75 = arith.constant 0 : index
      %c0_76 = arith.constant 0 : index
      %152 = vector.load %arg2[%c0_75, %c0_76] : memref<16x512xf32, #tpu.memory_space<vmem>>, vector<16x512xf32>
      %cst_77 = arith.constant dense<0.000000e+00> : vector<8x512xf32>
      %153 = tpu.matmul %151, %152, %cst_77 {dimension_numbers = #tpu.dot_dimension_numbers<[1], [0], [0], [1], [0, 0, 1, 1], [], []>} : vector<8x16xf32>, vector<16x512xf32>, vector<8x512xf32> -> vector<8x512xf32>
      %c0_78 = arith.constant 0 : index
      %c0_79 = arith.constant 0 : index
      %154 = vector.load %arg3[%c0_78, %c0_79] : memref<128x512xf32, #tpu.memory_space<vmem>>, vector<128x512xf32>
      %cst_80 = arith.constant dense<0.000000e+00> : vector<8x512xf32>
      %155 = tpu.matmul %144, %154, %cst_80 {dimension_numbers = #tpu.dot_dimension_numbers<[1], [0], [0], [1], [0, 0, 1, 1], [], []>} : vector<8x128xf32>, vector<128x512xf32>, vector<8x512xf32> -> vector<8x512xf32>
      %156 = arith.addf %153, %155 : vector<8x512xf32>
      %c0_81 = arith.constant 0 : index
      %c0_82 = arith.constant 0 : index
      %157 = vector.load %arg4[%c0_81, %c0_82] : memref<8x512xf32, #tpu.memory_space<vmem>>, vector<8x512xf32>
      %158 = arith.addf %156, %157 : vector<8x512xf32>
      %159 = vector.extract_strided_slice %158 {offsets = [0, 0], sizes = [8, 128], strides = [1, 1]} : vector<8x512xf32> to vector<8x128xf32>
      %cst_83 = arith.constant 5.000000e-01 : f32
      %160 = vector.broadcast %cst_83 : f32 to vector<8x128xf32>
      %161 = arith.mulf %160, %159 : vector<8x128xf32>
      %162 = math.tanh %161 : vector<8x128xf32>
      %cst_84 = arith.constant 5.000000e-01 : f32
      %163 = vector.broadcast %cst_84 : f32 to vector<8x128xf32>
      %164 = arith.mulf %163, %162 : vector<8x128xf32>
      %cst_85 = arith.constant 5.000000e-01 : f32
      %165 = vector.broadcast %cst_85 : f32 to vector<8x128xf32>
      %166 = arith.addf %164, %165 : vector<8x128xf32>
      %167 = vector.extract_strided_slice %158 {offsets = [0, 128], sizes = [8, 128], strides = [1, 1]} : vector<8x512xf32> to vector<8x128xf32>
      %cst_86 = arith.constant 5.000000e-01 : f32
      %168 = vector.broadcast %cst_86 : f32 to vector<8x128xf32>
      %169 = arith.mulf %168, %167 : vector<8x128xf32>
      %170 = math.tanh %169 : vector<8x128xf32>
      %cst_87 = arith.constant 5.000000e-01 : f32
      %171 = vector.broadcast %cst_87 : f32 to vector<8x128xf32>
      %172 = arith.mulf %171, %170 : vector<8x128xf32>
      %cst_88 = arith.constant 5.000000e-01 : f32
      %173 = vector.broadcast %cst_88 : f32 to vector<8x128xf32>
      %174 = arith.addf %172, %173 : vector<8x128xf32>
      %175 = vector.extract_strided_slice %158 {offsets = [0, 256], sizes = [8, 128], strides = [1, 1]} : vector<8x512xf32> to vector<8x128xf32>
      %176 = math.tanh %175 : vector<8x128xf32>
      %177 = vector.extract_strided_slice %158 {offsets = [0, 384], sizes = [8, 128], strides = [1, 1]} : vector<8x512xf32> to vector<8x128xf32>
      %cst_89 = arith.constant 5.000000e-01 : f32
      %178 = vector.broadcast %cst_89 : f32 to vector<8x128xf32>
      %179 = arith.mulf %178, %177 : vector<8x128xf32>
      %180 = math.tanh %179 : vector<8x128xf32>
      %cst_90 = arith.constant 5.000000e-01 : f32
      %181 = vector.broadcast %cst_90 : f32 to vector<8x128xf32>
      %182 = arith.mulf %181, %180 : vector<8x128xf32>
      %cst_91 = arith.constant 5.000000e-01 : f32
      %183 = vector.broadcast %cst_91 : f32 to vector<8x128xf32>
      %184 = arith.addf %182, %183 : vector<8x128xf32>
      %185 = arith.mulf %174, %142 : vector<8x128xf32>
      %186 = arith.mulf %166, %176 : vector<8x128xf32>
      %187 = arith.addf %185, %186 : vector<8x128xf32>
      %188 = math.tanh %187 : vector<8x128xf32>
      %189 = arith.mulf %184, %188 : vector<8x128xf32>
      %190 = arith.index_cast %c3_i32 : i32 to index
      %c0_92 = arith.constant 0 : index
      %c0_93 = arith.constant 0 : index
      %191 = vector.load %arg7[%190, %c0_92, %c0_93] : memref<8x8x128xf32, #tpu.memory_space<vmem>>, vector<1x8x128xf32>
      %192 = vector.shape_cast %191 : vector<1x8x128xf32> to vector<8x128xf32>
      %193 = vector.shape_cast %189 : vector<8x128xf32> to vector<1x8x128xf32>
      tpu.vector_store %arg7[%190, %c0_92, %c0_93], %193 {strides = array<i32>} : memref<8x8x128xf32, #tpu.memory_space<vmem>>, vector<1x8x128xf32>,
      %c4_i32 = arith.constant 4 : i32
      %194 = arith.index_cast %c4_i32 : i32 to index
      %c0_94 = arith.constant 0 : index
      %c0_95 = arith.constant 0 : index
      %195 = vector.load %arg1[%194, %c0_94, %c0_95] : memref<8x8x16xf32, #tpu.memory_space<vmem>>, vector<1x8x16xf32>
      %196 = vector.shape_cast %195 : vector<1x8x16xf32> to vector<8x16xf32>
      %c0_96 = arith.constant 0 : index
      %c0_97 = arith.constant 0 : index
      %197 = vector.load %arg2[%c0_96, %c0_97] : memref<16x512xf32, #tpu.memory_space<vmem>>, vector<16x512xf32>
      %cst_98 = arith.constant dense<0.000000e+00> : vector<8x512xf32>
      %198 = tpu.matmul %196, %197, %cst_98 {dimension_numbers = #tpu.dot_dimension_numbers<[1], [0], [0], [1], [0, 0, 1, 1], [], []>} : vector<8x16xf32>, vector<16x512xf32>, vector<8x512xf32> -> vector<8x512xf32>
      %c0_99 = arith.constant 0 : index
      %c0_100 = arith.constant 0 : index
      %199 = vector.load %arg3[%c0_99, %c0_100] : memref<128x512xf32, #tpu.memory_space<vmem>>, vector<128x512xf32>
      %cst_101 = arith.constant dense<0.000000e+00> : vector<8x512xf32>
      %200 = tpu.matmul %189, %199, %cst_101 {dimension_numbers = #tpu.dot_dimension_numbers<[1], [0], [0], [1], [0, 0, 1, 1], [], []>} : vector<8x128xf32>, vector<128x512xf32>, vector<8x512xf32> -> vector<8x512xf32>
      %201 = arith.addf %198, %200 : vector<8x512xf32>
      %c0_102 = arith.constant 0 : index
      %c0_103 = arith.constant 0 : index
      %202 = vector.load %arg4[%c0_102, %c0_103] : memref<8x512xf32, #tpu.memory_space<vmem>>, vector<8x512xf32>
      %203 = arith.addf %201, %202 : vector<8x512xf32>
      %204 = vector.extract_strided_slice %203 {offsets = [0, 0], sizes = [8, 128], strides = [1, 1]} : vector<8x512xf32> to vector<8x128xf32>
      %cst_104 = arith.constant 5.000000e-01 : f32
      %205 = vector.broadcast %cst_104 : f32 to vector<8x128xf32>
      %206 = arith.mulf %205, %204 : vector<8x128xf32>
      %207 = math.tanh %206 : vector<8x128xf32>
      %cst_105 = arith.constant 5.000000e-01 : f32
      %208 = vector.broadcast %cst_105 : f32 to vector<8x128xf32>
      %209 = arith.mulf %208, %207 : vector<8x128xf32>
      %cst_106 = arith.constant 5.000000e-01 : f32
      %210 = vector.broadcast %cst_106 : f32 to vector<8x128xf32>
      %211 = arith.addf %209, %210 : vector<8x128xf32>
      %212 = vector.extract_strided_slice %203 {offsets = [0, 128], sizes = [8, 128], strides = [1, 1]} : vector<8x512xf32> to vector<8x128xf32>
      %cst_107 = arith.constant 5.000000e-01 : f32
      %213 = vector.broadcast %cst_107 : f32 to vector<8x128xf32>
      %214 = arith.mulf %213, %212 : vector<8x128xf32>
      %215 = math.tanh %214 : vector<8x128xf32>
      %cst_108 = arith.constant 5.000000e-01 : f32
      %216 = vector.broadcast %cst_108 : f32 to vector<8x128xf32>
      %217 = arith.mulf %216, %215 : vector<8x128xf32>
      %cst_109 = arith.constant 5.000000e-01 : f32
      %218 = vector.broadcast %cst_109 : f32 to vector<8x128xf32>
      %219 = arith.addf %217, %218 : vector<8x128xf32>
      %220 = vector.extract_strided_slice %203 {offsets = [0, 256], sizes = [8, 128], strides = [1, 1]} : vector<8x512xf32> to vector<8x128xf32>
      %221 = math.tanh %220 : vector<8x128xf32>
      %222 = vector.extract_strided_slice %203 {offsets = [0, 384], sizes = [8, 128], strides = [1, 1]} : vector<8x512xf32> to vector<8x128xf32>
      %cst_110 = arith.constant 5.000000e-01 : f32
      %223 = vector.broadcast %cst_110 : f32 to vector<8x128xf32>
      %224 = arith.mulf %223, %222 : vector<8x128xf32>
      %225 = math.tanh %224 : vector<8x128xf32>
      %cst_111 = arith.constant 5.000000e-01 : f32
      %226 = vector.broadcast %cst_111 : f32 to vector<8x128xf32>
      %227 = arith.mulf %226, %225 : vector<8x128xf32>
      %cst_112 = arith.constant 5.000000e-01 : f32
      %228 = vector.broadcast %cst_112 : f32 to vector<8x128xf32>
      %229 = arith.addf %227, %228 : vector<8x128xf32>
      %230 = arith.mulf %219, %187 : vector<8x128xf32>
      %231 = arith.mulf %211, %221 : vector<8x128xf32>
      %232 = arith.addf %230, %231 : vector<8x128xf32>
      %233 = math.tanh %232 : vector<8x128xf32>
      %234 = arith.mulf %229, %233 : vector<8x128xf32>
      %235 = arith.index_cast %c4_i32 : i32 to index
      %c0_113 = arith.constant 0 : index
      %c0_114 = arith.constant 0 : index
      %236 = vector.load %arg7[%235, %c0_113, %c0_114] : memref<8x8x128xf32, #tpu.memory_space<vmem>>, vector<1x8x128xf32>
      %237 = vector.shape_cast %236 : vector<1x8x128xf32> to vector<8x128xf32>
      %238 = vector.shape_cast %234 : vector<8x128xf32> to vector<1x8x128xf32>
      tpu.vector_store %arg7[%235, %c0_113, %c0_114], %238 {strides = array<i32>} : memref<8x8x128xf32, #tpu.memory_space<vmem>>, vector<1x8x128xf32>,
      %c5_i32 = arith.constant 5 : i32
      %239 = arith.index_cast %c5_i32 : i32 to index
      %c0_115 = arith.constant 0 : index
      %c0_116 = arith.constant 0 : index
      %240 = vector.load %arg1[%239, %c0_115, %c0_116] : memref<8x8x16xf32, #tpu.memory_space<vmem>>, vector<1x8x16xf32>
      %241 = vector.shape_cast %240 : vector<1x8x16xf32> to vector<8x16xf32>
      %c0_117 = arith.constant 0 : index
      %c0_118 = arith.constant 0 : index
      %242 = vector.load %arg2[%c0_117, %c0_118] : memref<16x512xf32, #tpu.memory_space<vmem>>, vector<16x512xf32>
      %cst_119 = arith.constant dense<0.000000e+00> : vector<8x512xf32>
      %243 = tpu.matmul %241, %242, %cst_119 {dimension_numbers = #tpu.dot_dimension_numbers<[1], [0], [0], [1], [0, 0, 1, 1], [], []>} : vector<8x16xf32>, vector<16x512xf32>, vector<8x512xf32> -> vector<8x512xf32>
      %c0_120 = arith.constant 0 : index
      %c0_121 = arith.constant 0 : index
      %244 = vector.load %arg3[%c0_120, %c0_121] : memref<128x512xf32, #tpu.memory_space<vmem>>, vector<128x512xf32>
      %cst_122 = arith.constant dense<0.000000e+00> : vector<8x512xf32>
      %245 = tpu.matmul %234, %244, %cst_122 {dimension_numbers = #tpu.dot_dimension_numbers<[1], [0], [0], [1], [0, 0, 1, 1], [], []>} : vector<8x128xf32>, vector<128x512xf32>, vector<8x512xf32> -> vector<8x512xf32>
      %246 = arith.addf %243, %245 : vector<8x512xf32>
      %c0_123 = arith.constant 0 : index
      %c0_124 = arith.constant 0 : index
      %247 = vector.load %arg4[%c0_123, %c0_124] : memref<8x512xf32, #tpu.memory_space<vmem>>, vector<8x512xf32>
      %248 = arith.addf %246, %247 : vector<8x512xf32>
      %249 = vector.extract_strided_slice %248 {offsets = [0, 0], sizes = [8, 128], strides = [1, 1]} : vector<8x512xf32> to vector<8x128xf32>
      %cst_125 = arith.constant 5.000000e-01 : f32
      %250 = vector.broadcast %cst_125 : f32 to vector<8x128xf32>
      %251 = arith.mulf %250, %249 : vector<8x128xf32>
      %252 = math.tanh %251 : vector<8x128xf32>
      %cst_126 = arith.constant 5.000000e-01 : f32
      %253 = vector.broadcast %cst_126 : f32 to vector<8x128xf32>
      %254 = arith.mulf %253, %252 : vector<8x128xf32>
      %cst_127 = arith.constant 5.000000e-01 : f32
      %255 = vector.broadcast %cst_127 : f32 to vector<8x128xf32>
      %256 = arith.addf %254, %255 : vector<8x128xf32>
      %257 = vector.extract_strided_slice %248 {offsets = [0, 128], sizes = [8, 128], strides = [1, 1]} : vector<8x512xf32> to vector<8x128xf32>
      %cst_128 = arith.constant 5.000000e-01 : f32
      %258 = vector.broadcast %cst_128 : f32 to vector<8x128xf32>
      %259 = arith.mulf %258, %257 : vector<8x128xf32>
      %260 = math.tanh %259 : vector<8x128xf32>
      %cst_129 = arith.constant 5.000000e-01 : f32
      %261 = vector.broadcast %cst_129 : f32 to vector<8x128xf32>
      %262 = arith.mulf %261, %260 : vector<8x128xf32>
      %cst_130 = arith.constant 5.000000e-01 : f32
      %263 = vector.broadcast %cst_130 : f32 to vector<8x128xf32>
      %264 = arith.addf %262, %263 : vector<8x128xf32>
      %265 = vector.extract_strided_slice %248 {offsets = [0, 256], sizes = [8, 128], strides = [1, 1]} : vector<8x512xf32> to vector<8x128xf32>
      %266 = math.tanh %265 : vector<8x128xf32>
      %267 = vector.extract_strided_slice %248 {offsets = [0, 384], sizes = [8, 128], strides = [1, 1]} : vector<8x512xf32> to vector<8x128xf32>
      %cst_131 = arith.constant 5.000000e-01 : f32
      %268 = vector.broadcast %cst_131 : f32 to vector<8x128xf32>
      %269 = arith.mulf %268, %267 : vector<8x128xf32>
      %270 = math.tanh %269 : vector<8x128xf32>
      %cst_132 = arith.constant 5.000000e-01 : f32
      %271 = vector.broadcast %cst_132 : f32 to vector<8x128xf32>
      %272 = arith.mulf %271, %270 : vector<8x128xf32>
      %cst_133 = arith.constant 5.000000e-01 : f32
      %273 = vector.broadcast %cst_133 : f32 to vector<8x128xf32>
      %274 = arith.addf %272, %273 : vector<8x128xf32>
      %275 = arith.mulf %264, %232 : vector<8x128xf32>
      %276 = arith.mulf %256, %266 : vector<8x128xf32>
      %277 = arith.addf %275, %276 : vector<8x128xf32>
      %278 = math.tanh %277 : vector<8x128xf32>
      %279 = arith.mulf %274, %278 : vector<8x128xf32>
      %280 = arith.index_cast %c5_i32 : i32 to index
      %c0_134 = arith.constant 0 : index
      %c0_135 = arith.constant 0 : index
      %281 = vector.load %arg7[%280, %c0_134, %c0_135] : memref<8x8x128xf32, #tpu.memory_space<vmem>>, vector<1x8x128xf32>
      %282 = vector.shape_cast %281 : vector<1x8x128xf32> to vector<8x128xf32>
      %283 = vector.shape_cast %279 : vector<8x128xf32> to vector<1x8x128xf32>
      tpu.vector_store %arg7[%280, %c0_134, %c0_135], %283 {strides = array<i32>} : memref<8x8x128xf32, #tpu.memory_space<vmem>>, vector<1x8x128xf32>,
      %c6_i32 = arith.constant 6 : i32
      %284 = arith.index_cast %c6_i32 : i32 to index
      %c0_136 = arith.constant 0 : index
      %c0_137 = arith.constant 0 : index
      %285 = vector.load %arg1[%284, %c0_136, %c0_137] : memref<8x8x16xf32, #tpu.memory_space<vmem>>, vector<1x8x16xf32>
      %286 = vector.shape_cast %285 : vector<1x8x16xf32> to vector<8x16xf32>
      %c0_138 = arith.constant 0 : index
      %c0_139 = arith.constant 0 : index
      %287 = vector.load %arg2[%c0_138, %c0_139] : memref<16x512xf32, #tpu.memory_space<vmem>>, vector<16x512xf32>
      %cst_140 = arith.constant dense<0.000000e+00> : vector<8x512xf32>
      %288 = tpu.matmul %286, %287, %cst_140 {dimension_numbers = #tpu.dot_dimension_numbers<[1], [0], [0], [1], [0, 0, 1, 1], [], []>} : vector<8x16xf32>, vector<16x512xf32>, vector<8x512xf32> -> vector<8x512xf32>
      %c0_141 = arith.constant 0 : index
      %c0_142 = arith.constant 0 : index
      %289 = vector.load %arg3[%c0_141, %c0_142] : memref<128x512xf32, #tpu.memory_space<vmem>>, vector<128x512xf32>
      %cst_143 = arith.constant dense<0.000000e+00> : vector<8x512xf32>
      %290 = tpu.matmul %279, %289, %cst_143 {dimension_numbers = #tpu.dot_dimension_numbers<[1], [0], [0], [1], [0, 0, 1, 1], [], []>} : vector<8x128xf32>, vector<128x512xf32>, vector<8x512xf32> -> vector<8x512xf32>
      %291 = arith.addf %288, %290 : vector<8x512xf32>
      %c0_144 = arith.constant 0 : index
      %c0_145 = arith.constant 0 : index
      %292 = vector.load %arg4[%c0_144, %c0_145] : memref<8x512xf32, #tpu.memory_space<vmem>>, vector<8x512xf32>
      %293 = arith.addf %291, %292 : vector<8x512xf32>
      %294 = vector.extract_strided_slice %293 {offsets = [0, 0], sizes = [8, 128], strides = [1, 1]} : vector<8x512xf32> to vector<8x128xf32>
      %cst_146 = arith.constant 5.000000e-01 : f32
      %295 = vector.broadcast %cst_146 : f32 to vector<8x128xf32>
      %296 = arith.mulf %295, %294 : vector<8x128xf32>
      %297 = math.tanh %296 : vector<8x128xf32>
      %cst_147 = arith.constant 5.000000e-01 : f32
      %298 = vector.broadcast %cst_147 : f32 to vector<8x128xf32>
      %299 = arith.mulf %298, %297 : vector<8x128xf32>
      %cst_148 = arith.constant 5.000000e-01 : f32
      %300 = vector.broadcast %cst_148 : f32 to vector<8x128xf32>
      %301 = arith.addf %299, %300 : vector<8x128xf32>
      %302 = vector.extract_strided_slice %293 {offsets = [0, 128], sizes = [8, 128], strides = [1, 1]} : vector<8x512xf32> to vector<8x128xf32>
      %cst_149 = arith.constant 5.000000e-01 : f32
      %303 = vector.broadcast %cst_149 : f32 to vector<8x128xf32>
      %304 = arith.mulf %303, %302 : vector<8x128xf32>
      %305 = math.tanh %304 : vector<8x128xf32>
      %cst_150 = arith.constant 5.000000e-01 : f32
      %306 = vector.broadcast %cst_150 : f32 to vector<8x128xf32>
      %307 = arith.mulf %306, %305 : vector<8x128xf32>
      %cst_151 = arith.constant 5.000000e-01 : f32
      %308 = vector.broadcast %cst_151 : f32 to vector<8x128xf32>
      %309 = arith.addf %307, %308 : vector<8x128xf32>
      %310 = vector.extract_strided_slice %293 {offsets = [0, 256], sizes = [8, 128], strides = [1, 1]} : vector<8x512xf32> to vector<8x128xf32>
      %311 = math.tanh %310 : vector<8x128xf32>
      %312 = vector.extract_strided_slice %293 {offsets = [0, 384], sizes = [8, 128], strides = [1, 1]} : vector<8x512xf32> to vector<8x128xf32>
      %cst_152 = arith.constant 5.000000e-01 : f32
      %313 = vector.broadcast %cst_152 : f32 to vector<8x128xf32>
      %314 = arith.mulf %313, %312 : vector<8x128xf32>
      %315 = math.tanh %314 : vector<8x128xf32>
      %cst_153 = arith.constant 5.000000e-01 : f32
      %316 = vector.broadcast %cst_153 : f32 to vector<8x128xf32>
      %317 = arith.mulf %316, %315 : vector<8x128xf32>
      %cst_154 = arith.constant 5.000000e-01 : f32
      %318 = vector.broadcast %cst_154 : f32 to vector<8x128xf32>
      %319 = arith.addf %317, %318 : vector<8x128xf32>
      %320 = arith.mulf %309, %277 : vector<8x128xf32>
      %321 = arith.mulf %301, %311 : vector<8x128xf32>
      %322 = arith.addf %320, %321 : vector<8x128xf32>
      %323 = math.tanh %322 : vector<8x128xf32>
      %324 = arith.mulf %319, %323 : vector<8x128xf32>
      %325 = arith.index_cast %c6_i32 : i32 to index
      %c0_155 = arith.constant 0 : index
      %c0_156 = arith.constant 0 : index
      %326 = vector.load %arg7[%325, %c0_155, %c0_156] : memref<8x8x128xf32, #tpu.memory_space<vmem>>, vector<1x8x128xf32>
      %327 = vector.shape_cast %326 : vector<1x8x128xf32> to vector<8x128xf32>
      %328 = vector.shape_cast %324 : vector<8x128xf32> to vector<1x8x128xf32>
      tpu.vector_store %arg7[%325, %c0_155, %c0_156], %328 {strides = array<i32>} : memref<8x8x128xf32, #tpu.memory_space<vmem>>, vector<1x8x128xf32>,
      %c7_i32 = arith.constant 7 : i32
      %329 = arith.index_cast %c7_i32 : i32 to index
      %c0_157 = arith.constant 0 : index
      %c0_158 = arith.constant 0 : index
      %330 = vector.load %arg1[%329, %c0_157, %c0_158] : memref<8x8x16xf32, #tpu.memory_space<vmem>>, vector<1x8x16xf32>
      %331 = vector.shape_cast %330 : vector<1x8x16xf32> to vector<8x16xf32>
      %c0_159 = arith.constant 0 : index
      %c0_160 = arith.constant 0 : index
      %332 = vector.load %arg2[%c0_159, %c0_160] : memref<16x512xf32, #tpu.memory_space<vmem>>, vector<16x512xf32>
      %cst_161 = arith.constant dense<0.000000e+00> : vector<8x512xf32>
      %333 = tpu.matmul %331, %332, %cst_161 {dimension_numbers = #tpu.dot_dimension_numbers<[1], [0], [0], [1], [0, 0, 1, 1], [], []>} : vector<8x16xf32>, vector<16x512xf32>, vector<8x512xf32> -> vector<8x512xf32>
      %c0_162 = arith.constant 0 : index
      %c0_163 = arith.constant 0 : index
      %334 = vector.load %arg3[%c0_162, %c0_163] : memref<128x512xf32, #tpu.memory_space<vmem>>, vector<128x512xf32>
      %cst_164 = arith.constant dense<0.000000e+00> : vector<8x512xf32>
      %335 = tpu.matmul %324, %334, %cst_164 {dimension_numbers = #tpu.dot_dimension_numbers<[1], [0], [0], [1], [0, 0, 1, 1], [], []>} : vector<8x128xf32>, vector<128x512xf32>, vector<8x512xf32> -> vector<8x512xf32>
      %336 = arith.addf %333, %335 : vector<8x512xf32>
      %c0_165 = arith.constant 0 : index
      %c0_166 = arith.constant 0 : index
      %337 = vector.load %arg4[%c0_165, %c0_166] : memref<8x512xf32, #tpu.memory_space<vmem>>, vector<8x512xf32>
      %338 = arith.addf %336, %337 : vector<8x512xf32>
      %339 = vector.extract_strided_slice %338 {offsets = [0, 0], sizes = [8, 128], strides = [1, 1]} : vector<8x512xf32> to vector<8x128xf32>
      %cst_167 = arith.constant 5.000000e-01 : f32
      %340 = vector.broadcast %cst_167 : f32 to vector<8x128xf32>
      %341 = arith.mulf %340, %339 : vector<8x128xf32>
      %342 = math.tanh %341 : vector<8x128xf32>
      %cst_168 = arith.constant 5.000000e-01 : f32
      %343 = vector.broadcast %cst_168 : f32 to vector<8x128xf32>
      %344 = arith.mulf %343, %342 : vector<8x128xf32>
      %cst_169 = arith.constant 5.000000e-01 : f32
      %345 = vector.broadcast %cst_169 : f32 to vector<8x128xf32>
      %346 = arith.addf %344, %345 : vector<8x128xf32>
      %347 = vector.extract_strided_slice %338 {offsets = [0, 128], sizes = [8, 128], strides = [1, 1]} : vector<8x512xf32> to vector<8x128xf32>
      %cst_170 = arith.constant 5.000000e-01 : f32
      %348 = vector.broadcast %cst_170 : f32 to vector<8x128xf32>
      %349 = arith.mulf %348, %347 : vector<8x128xf32>
      %350 = math.tanh %349 : vector<8x128xf32>
      %cst_171 = arith.constant 5.000000e-01 : f32
      %351 = vector.broadcast %cst_171 : f32 to vector<8x128xf32>
      %352 = arith.mulf %351, %350 : vector<8x128xf32>
      %cst_172 = arith.constant 5.000000e-01 : f32
      %353 = vector.broadcast %cst_172 : f32 to vector<8x128xf32>
      %354 = arith.addf %352, %353 : vector<8x128xf32>
      %355 = vector.extract_strided_slice %338 {offsets = [0, 256], sizes = [8, 128], strides = [1, 1]} : vector<8x512xf32> to vector<8x128xf32>
      %356 = math.tanh %355 : vector<8x128xf32>
      %357 = vector.extract_strided_slice %338 {offsets = [0, 384], sizes = [8, 128], strides = [1, 1]} : vector<8x512xf32> to vector<8x128xf32>
      %cst_173 = arith.constant 5.000000e-01 : f32
      %358 = vector.broadcast %cst_173 : f32 to vector<8x128xf32>
      %359 = arith.mulf %358, %357 : vector<8x128xf32>
      %360 = math.tanh %359 : vector<8x128xf32>
      %cst_174 = arith.constant 5.000000e-01 : f32
      %361 = vector.broadcast %cst_174 : f32 to vector<8x128xf32>
      %362 = arith.mulf %361, %360 : vector<8x128xf32>
      %cst_175 = arith.constant 5.000000e-01 : f32
      %363 = vector.broadcast %cst_175 : f32 to vector<8x128xf32>
      %364 = arith.addf %362, %363 : vector<8x128xf32>
      %365 = arith.mulf %354, %322 : vector<8x128xf32>
      %366 = arith.mulf %346, %356 : vector<8x128xf32>
      %367 = arith.addf %365, %366 : vector<8x128xf32>
      %368 = math.tanh %367 : vector<8x128xf32>
      %369 = arith.mulf %364, %368 : vector<8x128xf32>
      %370 = arith.index_cast %c7_i32 : i32 to index
      %c0_176 = arith.constant 0 : index
      %c0_177 = arith.constant 0 : index
      %371 = vector.load %arg7[%370, %c0_176, %c0_177] : memref<8x8x128xf32, #tpu.memory_space<vmem>>, vector<1x8x128xf32>
      %372 = vector.shape_cast %371 : vector<1x8x128xf32> to vector<8x128xf32>
      %373 = vector.shape_cast %369 : vector<8x128xf32> to vector<1x8x128xf32>
      tpu.vector_store %arg7[%370, %c0_176, %c0_177], %373 {strides = array<i32>} : memref<8x8x128xf32, #tpu.memory_space<vmem>>, vector<1x8x128xf32>,
      %c8_i32 = arith.constant 8 : i32
      %c0_178 = arith.constant 0 : index
      %c0_179 = arith.constant 0 : index
      %374 = vector.load %arg10[%c0_178, %c0_179] : memref<8x128xf32, #tpu.memory_space<vmem>>, vector<8x128xf32>
      tpu.vector_store %arg10[%c0_178, %c0_179], %369 {strides = array<i32>} : memref<8x128xf32, #tpu.memory_space<vmem>>, vector<8x128xf32>,
      %c0_180 = arith.constant 0 : index
      %c0_181 = arith.constant 0 : index
      %375 = vector.load %arg11[%c0_180, %c0_181] : memref<8x128xf32, #tpu.memory_space<vmem>>, vector<8x128xf32>
      tpu.vector_store %arg11[%c0_180, %c0_181], %367 {strides = array<i32>} : memref<8x128xf32, #tpu.memory_space<vmem>>, vector<8x128xf32>,
    } else {
    }
    %c1_i32_2 = arith.constant 1 : i32
    %6 = arith.cmpi eq, %arg0, %c1_i32_2 : i32
    %7 = arith.extui %6 : i1 to i32
    %c0_i32_3 = arith.constant 0 : i32
    %8 = arith.cmpi ne, %7, %c0_i32_3 : i32
    scf.if %8 {
      %c0 = arith.constant 0 : index
      %c0_6 = arith.constant 0 : index
      %12 = vector.load %arg10[%c0, %c0_6] : memref<8x128xf32, #tpu.memory_space<vmem>>, vector<8x128xf32>
      %c0_7 = arith.constant 0 : index
      %c0_8 = arith.constant 0 : index
      %13 = vector.load %arg11[%c0_7, %c0_8] : memref<8x128xf32, #tpu.memory_space<vmem>>, vector<8x128xf32>
      %c0_i32_9 = arith.constant 0 : i32
      %14 = arith.index_cast %c0_i32_9 : i32 to index
      %c0_10 = arith.constant 0 : index
      %c0_11 = arith.constant 0 : index
      %15 = vector.load %arg1[%14, %c0_10, %c0_11] : memref<8x8x16xf32, #tpu.memory_space<vmem>>, vector<1x8x16xf32>
      %16 = vector.shape_cast %15 : vector<1x8x16xf32> to vector<8x16xf32>
      %c0_12 = arith.constant 0 : index
      %c0_13 = arith.constant 0 : index
      %17 = vector.load %arg2[%c0_12, %c0_13] : memref<16x512xf32, #tpu.memory_space<vmem>>, vector<16x512xf32>
      %cst = arith.constant dense<0.000000e+00> : vector<8x512xf32>
      %18 = tpu.matmul %16, %17, %cst {dimension_numbers = #tpu.dot_dimension_numbers<[1], [0], [0], [1], [0, 0, 1, 1], [], []>} : vector<8x16xf32>, vector<16x512xf32>, vector<8x512xf32> -> vector<8x512xf32>
      %c0_14 = arith.constant 0 : index
      %c0_15 = arith.constant 0 : index
      %19 = vector.load %arg3[%c0_14, %c0_15] : memref<128x512xf32, #tpu.memory_space<vmem>>, vector<128x512xf32>
      %cst_16 = arith.constant dense<0.000000e+00> : vector<8x512xf32>
      %20 = tpu.matmul %12, %19, %cst_16 {dimension_numbers = #tpu.dot_dimension_numbers<[1], [0], [0], [1], [0, 0, 1, 1], [], []>} : vector<8x128xf32>, vector<128x512xf32>, vector<8x512xf32> -> vector<8x512xf32>
      %21 = arith.addf %18, %20 : vector<8x512xf32>
      %c0_17 = arith.constant 0 : index
      %c0_18 = arith.constant 0 : index
      %22 = vector.load %arg4[%c0_17, %c0_18] : memref<8x512xf32, #tpu.memory_space<vmem>>, vector<8x512xf32>
      %23 = arith.addf %21, %22 : vector<8x512xf32>
      %24 = vector.extract_strided_slice %23 {offsets = [0, 0], sizes = [8, 128], strides = [1, 1]} : vector<8x512xf32> to vector<8x128xf32>
      %cst_19 = arith.constant 5.000000e-01 : f32
      %25 = vector.broadcast %cst_19 : f32 to vector<8x128xf32>
      %26 = arith.mulf %25, %24 : vector<8x128xf32>
      %27 = math.tanh %26 : vector<8x128xf32>
      %cst_20 = arith.constant 5.000000e-01 : f32
      %28 = vector.broadcast %cst_20 : f32 to vector<8x128xf32>
      %29 = arith.mulf %28, %27 : vector<8x128xf32>
      %cst_21 = arith.constant 5.000000e-01 : f32
      %30 = vector.broadcast %cst_21 : f32 to vector<8x128xf32>
      %31 = arith.addf %29, %30 : vector<8x128xf32>
      %32 = vector.extract_strided_slice %23 {offsets = [0, 128], sizes = [8, 128], strides = [1, 1]} : vector<8x512xf32> to vector<8x128xf32>
      %cst_22 = arith.constant 5.000000e-01 : f32
      %33 = vector.broadcast %cst_22 : f32 to vector<8x128xf32>
      %34 = arith.mulf %33, %32 : vector<8x128xf32>
      %35 = math.tanh %34 : vector<8x128xf32>
      %cst_23 = arith.constant 5.000000e-01 : f32
      %36 = vector.broadcast %cst_23 : f32 to vector<8x128xf32>
      %37 = arith.mulf %36, %35 : vector<8x128xf32>
      %cst_24 = arith.constant 5.000000e-01 : f32
      %38 = vector.broadcast %cst_24 : f32 to vector<8x128xf32>
      %39 = arith.addf %37, %38 : vector<8x128xf32>
      %40 = vector.extract_strided_slice %23 {offsets = [0, 256], sizes = [8, 128], strides = [1, 1]} : vector<8x512xf32> to vector<8x128xf32>
      %41 = math.tanh %40 : vector<8x128xf32>
      %42 = vector.extract_strided_slice %23 {offsets = [0, 384], sizes = [8, 128], strides = [1, 1]} : vector<8x512xf32> to vector<8x128xf32>
      %cst_25 = arith.constant 5.000000e-01 : f32
      %43 = vector.broadcast %cst_25 : f32 to vector<8x128xf32>
      %44 = arith.mulf %43, %42 : vector<8x128xf32>
      %45 = math.tanh %44 : vector<8x128xf32>
      %cst_26 = arith.constant 5.000000e-01 : f32
      %46 = vector.broadcast %cst_26 : f32 to vector<8x128xf32>
      %47 = arith.mulf %46, %45 : vector<8x128xf32>
      %cst_27 = arith.constant 5.000000e-01 : f32
      %48 = vector.broadcast %cst_27 : f32 to vector<8x128xf32>
      %49 = arith.addf %47, %48 : vector<8x128xf32>
      %50 = arith.mulf %39, %13 : vector<8x128xf32>
      %51 = arith.mulf %31, %41 : vector<8x128xf32>
      %52 = arith.addf %50, %51 : vector<8x128xf32>
      %53 = math.tanh %52 : vector<8x128xf32>
      %54 = arith.mulf %49, %53 : vector<8x128xf32>
      %c8_i32 = arith.constant 8 : i32
      %55 = arith.muli %arg0, %c8_i32 : i32
      %56 = arith.addi %55, %c0_i32_9 : i32
      %c12_i32 = arith.constant 12 : i32
      %57 = arith.cmpi slt, %56, %c12_i32 : i32
      %58 = arith.select %57, %52, %13 : vector<8x128xf32>
      %59 = arith.select %57, %54, %12 : vector<8x128xf32>
      %60 = arith.index_cast %c0_i32_9 : i32 to index
      %c0_28 = arith.constant 0 : index
      %c0_29 = arith.constant 0 : index
      %61 = vector.load %arg7[%60, %c0_28, %c0_29] : memref<8x8x128xf32, #tpu.memory_space<vmem>>, vector<1x8x128xf32>
      %62 = vector.shape_cast %61 : vector<1x8x128xf32> to vector<8x128xf32>
      %63 = vector.shape_cast %59 : vector<8x128xf32> to vector<1x8x128xf32>
      tpu.vector_store %arg7[%60, %c0_28, %c0_29], %63 {strides = array<i32>} : memref<8x8x128xf32, #tpu.memory_space<vmem>>, vector<1x8x128xf32>,
      %c1_i32_30 = arith.constant 1 : i32
      %64 = arith.index_cast %c1_i32_30 : i32 to index
      %c0_31 = arith.constant 0 : index
      %c0_32 = arith.constant 0 : index
      %65 = vector.load %arg1[%64, %c0_31, %c0_32] : memref<8x8x16xf32, #tpu.memory_space<vmem>>, vector<1x8x16xf32>
      %66 = vector.shape_cast %65 : vector<1x8x16xf32> to vector<8x16xf32>
      %c0_33 = arith.constant 0 : index
      %c0_34 = arith.constant 0 : index
      %67 = vector.load %arg2[%c0_33, %c0_34] : memref<16x512xf32, #tpu.memory_space<vmem>>, vector<16x512xf32>
      %cst_35 = arith.constant dense<0.000000e+00> : vector<8x512xf32>
      %68 = tpu.matmul %66, %67, %cst_35 {dimension_numbers = #tpu.dot_dimension_numbers<[1], [0], [0], [1], [0, 0, 1, 1], [], []>} : vector<8x16xf32>, vector<16x512xf32>, vector<8x512xf32> -> vector<8x512xf32>
      %c0_36 = arith.constant 0 : index
      %c0_37 = arith.constant 0 : index
      %69 = vector.load %arg3[%c0_36, %c0_37] : memref<128x512xf32, #tpu.memory_space<vmem>>, vector<128x512xf32>
      %cst_38 = arith.constant dense<0.000000e+00> : vector<8x512xf32>
      %70 = tpu.matmul %59, %69, %cst_38 {dimension_numbers = #tpu.dot_dimension_numbers<[1], [0], [0], [1], [0, 0, 1, 1], [], []>} : vector<8x128xf32>, vector<128x512xf32>, vector<8x512xf32> -> vector<8x512xf32>
      %71 = arith.addf %68, %70 : vector<8x512xf32>
      %c0_39 = arith.constant 0 : index
      %c0_40 = arith.constant 0 : index
      %72 = vector.load %arg4[%c0_39, %c0_40] : memref<8x512xf32, #tpu.memory_space<vmem>>, vector<8x512xf32>
      %73 = arith.addf %71, %72 : vector<8x512xf32>
      %74 = vector.extract_strided_slice %73 {offsets = [0, 0], sizes = [8, 128], strides = [1, 1]} : vector<8x512xf32> to vector<8x128xf32>
      %cst_41 = arith.constant 5.000000e-01 : f32
      %75 = vector.broadcast %cst_41 : f32 to vector<8x128xf32>
      %76 = arith.mulf %75, %74 : vector<8x128xf32>
      %77 = math.tanh %76 : vector<8x128xf32>
      %cst_42 = arith.constant 5.000000e-01 : f32
      %78 = vector.broadcast %cst_42 : f32 to vector<8x128xf32>
      %79 = arith.mulf %78, %77 : vector<8x128xf32>
      %cst_43 = arith.constant 5.000000e-01 : f32
      %80 = vector.broadcast %cst_43 : f32 to vector<8x128xf32>
      %81 = arith.addf %79, %80 : vector<8x128xf32>
      %82 = vector.extract_strided_slice %73 {offsets = [0, 128], sizes = [8, 128], strides = [1, 1]} : vector<8x512xf32> to vector<8x128xf32>
      %cst_44 = arith.constant 5.000000e-01 : f32
      %83 = vector.broadcast %cst_44 : f32 to vector<8x128xf32>
      %84 = arith.mulf %83, %82 : vector<8x128xf32>
      %85 = math.tanh %84 : vector<8x128xf32>
      %cst_45 = arith.constant 5.000000e-01 : f32
      %86 = vector.broadcast %cst_45 : f32 to vector<8x128xf32>
      %87 = arith.mulf %86, %85 : vector<8x128xf32>
      %cst_46 = arith.constant 5.000000e-01 : f32
      %88 = vector.broadcast %cst_46 : f32 to vector<8x128xf32>
      %89 = arith.addf %87, %88 : vector<8x128xf32>
      %90 = vector.extract_strided_slice %73 {offsets = [0, 256], sizes = [8, 128], strides = [1, 1]} : vector<8x512xf32> to vector<8x128xf32>
      %91 = math.tanh %90 : vector<8x128xf32>
      %92 = vector.extract_strided_slice %73 {offsets = [0, 384], sizes = [8, 128], strides = [1, 1]} : vector<8x512xf32> to vector<8x128xf32>
      %cst_47 = arith.constant 5.000000e-01 : f32
      %93 = vector.broadcast %cst_47 : f32 to vector<8x128xf32>
      %94 = arith.mulf %93, %92 : vector<8x128xf32>
      %95 = math.tanh %94 : vector<8x128xf32>
      %cst_48 = arith.constant 5.000000e-01 : f32
      %96 = vector.broadcast %cst_48 : f32 to vector<8x128xf32>
      %97 = arith.mulf %96, %95 : vector<8x128xf32>
      %cst_49 = arith.constant 5.000000e-01 : f32
      %98 = vector.broadcast %cst_49 : f32 to vector<8x128xf32>
      %99 = arith.addf %97, %98 : vector<8x128xf32>
      %100 = arith.mulf %89, %58 : vector<8x128xf32>
      %101 = arith.mulf %81, %91 : vector<8x128xf32>
      %102 = arith.addf %100, %101 : vector<8x128xf32>
      %103 = math.tanh %102 : vector<8x128xf32>
      %104 = arith.mulf %99, %103 : vector<8x128xf32>
      %c8_i32_50 = arith.constant 8 : i32
      %105 = arith.muli %arg0, %c8_i32_50 : i32
      %106 = arith.addi %105, %c1_i32_30 : i32
      %c12_i32_51 = arith.constant 12 : i32
      %107 = arith.cmpi slt, %106, %c12_i32_51 : i32
      %108 = arith.select %107, %102, %58 : vector<8x128xf32>
      %109 = arith.select %107, %104, %59 : vector<8x128xf32>
      %110 = arith.index_cast %c1_i32_30 : i32 to index
      %c0_52 = arith.constant 0 : index
      %c0_53 = arith.constant 0 : index
      %111 = vector.load %arg7[%110, %c0_52, %c0_53] : memref<8x8x128xf32, #tpu.memory_space<vmem>>, vector<1x8x128xf32>
      %112 = vector.shape_cast %111 : vector<1x8x128xf32> to vector<8x128xf32>
      %113 = vector.shape_cast %109 : vector<8x128xf32> to vector<1x8x128xf32>
      tpu.vector_store %arg7[%110, %c0_52, %c0_53], %113 {strides = array<i32>} : memref<8x8x128xf32, #tpu.memory_space<vmem>>, vector<1x8x128xf32>,
      %c2_i32 = arith.constant 2 : i32
      %114 = arith.index_cast %c2_i32 : i32 to index
      %c0_54 = arith.constant 0 : index
      %c0_55 = arith.constant 0 : index
      %115 = vector.load %arg1[%114, %c0_54, %c0_55] : memref<8x8x16xf32, #tpu.memory_space<vmem>>, vector<1x8x16xf32>
      %116 = vector.shape_cast %115 : vector<1x8x16xf32> to vector<8x16xf32>
      %c0_56 = arith.constant 0 : index
      %c0_57 = arith.constant 0 : index
      %117 = vector.load %arg2[%c0_56, %c0_57] : memref<16x512xf32, #tpu.memory_space<vmem>>, vector<16x512xf32>
      %cst_58 = arith.constant dense<0.000000e+00> : vector<8x512xf32>
      %118 = tpu.matmul %116, %117, %cst_58 {dimension_numbers = #tpu.dot_dimension_numbers<[1], [0], [0], [1], [0, 0, 1, 1], [], []>} : vector<8x16xf32>, vector<16x512xf32>, vector<8x512xf32> -> vector<8x512xf32>
      %c0_59 = arith.constant 0 : index
      %c0_60 = arith.constant 0 : index
      %119 = vector.load %arg3[%c0_59, %c0_60] : memref<128x512xf32, #tpu.memory_space<vmem>>, vector<128x512xf32>
      %cst_61 = arith.constant dense<0.000000e+00> : vector<8x512xf32>
      %120 = tpu.matmul %109, %119, %cst_61 {dimension_numbers = #tpu.dot_dimension_numbers<[1], [0], [0], [1], [0, 0, 1, 1], [], []>} : vector<8x128xf32>, vector<128x512xf32>, vector<8x512xf32> -> vector<8x512xf32>
      %121 = arith.addf %118, %120 : vector<8x512xf32>
      %c0_62 = arith.constant 0 : index
      %c0_63 = arith.constant 0 : index
      %122 = vector.load %arg4[%c0_62, %c0_63] : memref<8x512xf32, #tpu.memory_space<vmem>>, vector<8x512xf32>
      %123 = arith.addf %121, %122 : vector<8x512xf32>
      %124 = vector.extract_strided_slice %123 {offsets = [0, 0], sizes = [8, 128], strides = [1, 1]} : vector<8x512xf32> to vector<8x128xf32>
      %cst_64 = arith.constant 5.000000e-01 : f32
      %125 = vector.broadcast %cst_64 : f32 to vector<8x128xf32>
      %126 = arith.mulf %125, %124 : vector<8x128xf32>
      %127 = math.tanh %126 : vector<8x128xf32>
      %cst_65 = arith.constant 5.000000e-01 : f32
      %128 = vector.broadcast %cst_65 : f32 to vector<8x128xf32>
      %129 = arith.mulf %128, %127 : vector<8x128xf32>
      %cst_66 = arith.constant 5.000000e-01 : f32
      %130 = vector.broadcast %cst_66 : f32 to vector<8x128xf32>
      %131 = arith.addf %129, %130 : vector<8x128xf32>
      %132 = vector.extract_strided_slice %123 {offsets = [0, 128], sizes = [8, 128], strides = [1, 1]} : vector<8x512xf32> to vector<8x128xf32>
      %cst_67 = arith.constant 5.000000e-01 : f32
      %133 = vector.broadcast %cst_67 : f32 to vector<8x128xf32>
      %134 = arith.mulf %133, %132 : vector<8x128xf32>
      %135 = math.tanh %134 : vector<8x128xf32>
      %cst_68 = arith.constant 5.000000e-01 : f32
      %136 = vector.broadcast %cst_68 : f32 to vector<8x128xf32>
      %137 = arith.mulf %136, %135 : vector<8x128xf32>
      %cst_69 = arith.constant 5.000000e-01 : f32
      %138 = vector.broadcast %cst_69 : f32 to vector<8x128xf32>
      %139 = arith.addf %137, %138 : vector<8x128xf32>
      %140 = vector.extract_strided_slice %123 {offsets = [0, 256], sizes = [8, 128], strides = [1, 1]} : vector<8x512xf32> to vector<8x128xf32>
      %141 = math.tanh %140 : vector<8x128xf32>
      %142 = vector.extract_strided_slice %123 {offsets = [0, 384], sizes = [8, 128], strides = [1, 1]} : vector<8x512xf32> to vector<8x128xf32>
      %cst_70 = arith.constant 5.000000e-01 : f32
      %143 = vector.broadcast %cst_70 : f32 to vector<8x128xf32>
      %144 = arith.mulf %143, %142 : vector<8x128xf32>
      %145 = math.tanh %144 : vector<8x128xf32>
      %cst_71 = arith.constant 5.000000e-01 : f32
      %146 = vector.broadcast %cst_71 : f32 to vector<8x128xf32>
      %147 = arith.mulf %146, %145 : vector<8x128xf32>
      %cst_72 = arith.constant 5.000000e-01 : f32
      %148 = vector.broadcast %cst_72 : f32 to vector<8x128xf32>
      %149 = arith.addf %147, %148 : vector<8x128xf32>
      %150 = arith.mulf %139, %108 : vector<8x128xf32>
      %151 = arith.mulf %131, %141 : vector<8x128xf32>
      %152 = arith.addf %150, %151 : vector<8x128xf32>
      %153 = math.tanh %152 : vector<8x128xf32>
      %154 = arith.mulf %149, %153 : vector<8x128xf32>
      %c8_i32_73 = arith.constant 8 : i32
      %155 = arith.muli %arg0, %c8_i32_73 : i32
      %156 = arith.addi %155, %c2_i32 : i32
      %c12_i32_74 = arith.constant 12 : i32
      %157 = arith.cmpi slt, %156, %c12_i32_74 : i32
      %158 = arith.select %157, %152, %108 : vector<8x128xf32>
      %159 = arith.select %157, %154, %109 : vector<8x128xf32>
      %160 = arith.index_cast %c2_i32 : i32 to index
      %c0_75 = arith.constant 0 : index
      %c0_76 = arith.constant 0 : index
      %161 = vector.load %arg7[%160, %c0_75, %c0_76] : memref<8x8x128xf32, #tpu.memory_space<vmem>>, vector<1x8x128xf32>
      %162 = vector.shape_cast %161 : vector<1x8x128xf32> to vector<8x128xf32>
      %163 = vector.shape_cast %159 : vector<8x128xf32> to vector<1x8x128xf32>
      tpu.vector_store %arg7[%160, %c0_75, %c0_76], %163 {strides = array<i32>} : memref<8x8x128xf32, #tpu.memory_space<vmem>>, vector<1x8x128xf32>,
      %c3_i32 = arith.constant 3 : i32
      %164 = arith.index_cast %c3_i32 : i32 to index
      %c0_77 = arith.constant 0 : index
      %c0_78 = arith.constant 0 : index
      %165 = vector.load %arg1[%164, %c0_77, %c0_78] : memref<8x8x16xf32, #tpu.memory_space<vmem>>, vector<1x8x16xf32>
      %166 = vector.shape_cast %165 : vector<1x8x16xf32> to vector<8x16xf32>
      %c0_79 = arith.constant 0 : index
      %c0_80 = arith.constant 0 : index
      %167 = vector.load %arg2[%c0_79, %c0_80] : memref<16x512xf32, #tpu.memory_space<vmem>>, vector<16x512xf32>
      %cst_81 = arith.constant dense<0.000000e+00> : vector<8x512xf32>
      %168 = tpu.matmul %166, %167, %cst_81 {dimension_numbers = #tpu.dot_dimension_numbers<[1], [0], [0], [1], [0, 0, 1, 1], [], []>} : vector<8x16xf32>, vector<16x512xf32>, vector<8x512xf32> -> vector<8x512xf32>
      %c0_82 = arith.constant 0 : index
      %c0_83 = arith.constant 0 : index
      %169 = vector.load %arg3[%c0_82, %c0_83] : memref<128x512xf32, #tpu.memory_space<vmem>>, vector<128x512xf32>
      %cst_84 = arith.constant dense<0.000000e+00> : vector<8x512xf32>
      %170 = tpu.matmul %159, %169, %cst_84 {dimension_numbers = #tpu.dot_dimension_numbers<[1], [0], [0], [1], [0, 0, 1, 1], [], []>} : vector<8x128xf32>, vector<128x512xf32>, vector<8x512xf32> -> vector<8x512xf32>
      %171 = arith.addf %168, %170 : vector<8x512xf32>
      %c0_85 = arith.constant 0 : index
      %c0_86 = arith.constant 0 : index
      %172 = vector.load %arg4[%c0_85, %c0_86] : memref<8x512xf32, #tpu.memory_space<vmem>>, vector<8x512xf32>
      %173 = arith.addf %171, %172 : vector<8x512xf32>
      %174 = vector.extract_strided_slice %173 {offsets = [0, 0], sizes = [8, 128], strides = [1, 1]} : vector<8x512xf32> to vector<8x128xf32>
      %cst_87 = arith.constant 5.000000e-01 : f32
      %175 = vector.broadcast %cst_87 : f32 to vector<8x128xf32>
      %176 = arith.mulf %175, %174 : vector<8x128xf32>
      %177 = math.tanh %176 : vector<8x128xf32>
      %cst_88 = arith.constant 5.000000e-01 : f32
      %178 = vector.broadcast %cst_88 : f32 to vector<8x128xf32>
      %179 = arith.mulf %178, %177 : vector<8x128xf32>
      %cst_89 = arith.constant 5.000000e-01 : f32
      %180 = vector.broadcast %cst_89 : f32 to vector<8x128xf32>
      %181 = arith.addf %179, %180 : vector<8x128xf32>
      %182 = vector.extract_strided_slice %173 {offsets = [0, 128], sizes = [8, 128], strides = [1, 1]} : vector<8x512xf32> to vector<8x128xf32>
      %cst_90 = arith.constant 5.000000e-01 : f32
      %183 = vector.broadcast %cst_90 : f32 to vector<8x128xf32>
      %184 = arith.mulf %183, %182 : vector<8x128xf32>
      %185 = math.tanh %184 : vector<8x128xf32>
      %cst_91 = arith.constant 5.000000e-01 : f32
      %186 = vector.broadcast %cst_91 : f32 to vector<8x128xf32>
      %187 = arith.mulf %186, %185 : vector<8x128xf32>
      %cst_92 = arith.constant 5.000000e-01 : f32
      %188 = vector.broadcast %cst_92 : f32 to vector<8x128xf32>
      %189 = arith.addf %187, %188 : vector<8x128xf32>
      %190 = vector.extract_strided_slice %173 {offsets = [0, 256], sizes = [8, 128], strides = [1, 1]} : vector<8x512xf32> to vector<8x128xf32>
      %191 = math.tanh %190 : vector<8x128xf32>
      %192 = vector.extract_strided_slice %173 {offsets = [0, 384], sizes = [8, 128], strides = [1, 1]} : vector<8x512xf32> to vector<8x128xf32>
      %cst_93 = arith.constant 5.000000e-01 : f32
      %193 = vector.broadcast %cst_93 : f32 to vector<8x128xf32>
      %194 = arith.mulf %193, %192 : vector<8x128xf32>
      %195 = math.tanh %194 : vector<8x128xf32>
      %cst_94 = arith.constant 5.000000e-01 : f32
      %196 = vector.broadcast %cst_94 : f32 to vector<8x128xf32>
      %197 = arith.mulf %196, %195 : vector<8x128xf32>
      %cst_95 = arith.constant 5.000000e-01 : f32
      %198 = vector.broadcast %cst_95 : f32 to vector<8x128xf32>
      %199 = arith.addf %197, %198 : vector<8x128xf32>
      %200 = arith.mulf %189, %158 : vector<8x128xf32>
      %201 = arith.mulf %181, %191 : vector<8x128xf32>
      %202 = arith.addf %200, %201 : vector<8x128xf32>
      %203 = math.tanh %202 : vector<8x128xf32>
      %204 = arith.mulf %199, %203 : vector<8x128xf32>
      %c8_i32_96 = arith.constant 8 : i32
      %205 = arith.muli %arg0, %c8_i32_96 : i32
      %206 = arith.addi %205, %c3_i32 : i32
      %c12_i32_97 = arith.constant 12 : i32
      %207 = arith.cmpi slt, %206, %c12_i32_97 : i32
      %208 = arith.select %207, %202, %158 : vector<8x128xf32>
      %209 = arith.select %207, %204, %159 : vector<8x128xf32>
      %210 = arith.index_cast %c3_i32 : i32 to index
      %c0_98 = arith.constant 0 : index
      %c0_99 = arith.constant 0 : index
      %211 = vector.load %arg7[%210, %c0_98, %c0_99] : memref<8x8x128xf32, #tpu.memory_space<vmem>>, vector<1x8x128xf32>
      %212 = vector.shape_cast %211 : vector<1x8x128xf32> to vector<8x128xf32>
      %213 = vector.shape_cast %209 : vector<8x128xf32> to vector<1x8x128xf32>
      tpu.vector_store %arg7[%210, %c0_98, %c0_99], %213 {strides = array<i32>} : memref<8x8x128xf32, #tpu.memory_space<vmem>>, vector<1x8x128xf32>,
      %c4_i32 = arith.constant 4 : i32
      %214 = arith.index_cast %c4_i32 : i32 to index
      %c0_100 = arith.constant 0 : index
      %c0_101 = arith.constant 0 : index
      %215 = vector.load %arg1[%214, %c0_100, %c0_101] : memref<8x8x16xf32, #tpu.memory_space<vmem>>, vector<1x8x16xf32>
      %216 = vector.shape_cast %215 : vector<1x8x16xf32> to vector<8x16xf32>
      %c0_102 = arith.constant 0 : index
      %c0_103 = arith.constant 0 : index
      %217 = vector.load %arg2[%c0_102, %c0_103] : memref<16x512xf32, #tpu.memory_space<vmem>>, vector<16x512xf32>
      %cst_104 = arith.constant dense<0.000000e+00> : vector<8x512xf32>
      %218 = tpu.matmul %216, %217, %cst_104 {dimension_numbers = #tpu.dot_dimension_numbers<[1], [0], [0], [1], [0, 0, 1, 1], [], []>} : vector<8x16xf32>, vector<16x512xf32>, vector<8x512xf32> -> vector<8x512xf32>
      %c0_105 = arith.constant 0 : index
      %c0_106 = arith.constant 0 : index
      %219 = vector.load %arg3[%c0_105, %c0_106] : memref<128x512xf32, #tpu.memory_space<vmem>>, vector<128x512xf32>
      %cst_107 = arith.constant dense<0.000000e+00> : vector<8x512xf32>
      %220 = tpu.matmul %209, %219, %cst_107 {dimension_numbers = #tpu.dot_dimension_numbers<[1], [0], [0], [1], [0, 0, 1, 1], [], []>} : vector<8x128xf32>, vector<128x512xf32>, vector<8x512xf32> -> vector<8x512xf32>
      %221 = arith.addf %218, %220 : vector<8x512xf32>
      %c0_108 = arith.constant 0 : index
      %c0_109 = arith.constant 0 : index
      %222 = vector.load %arg4[%c0_108, %c0_109] : memref<8x512xf32, #tpu.memory_space<vmem>>, vector<8x512xf32>
      %223 = arith.addf %221, %222 : vector<8x512xf32>
      %224 = vector.extract_strided_slice %223 {offsets = [0, 0], sizes = [8, 128], strides = [1, 1]} : vector<8x512xf32> to vector<8x128xf32>
      %cst_110 = arith.constant 5.000000e-01 : f32
      %225 = vector.broadcast %cst_110 : f32 to vector<8x128xf32>
      %226 = arith.mulf %225, %224 : vector<8x128xf32>
      %227 = math.tanh %226 : vector<8x128xf32>
      %cst_111 = arith.constant 5.000000e-01 : f32
      %228 = vector.broadcast %cst_111 : f32 to vector<8x128xf32>
      %229 = arith.mulf %228, %227 : vector<8x128xf32>
      %cst_112 = arith.constant 5.000000e-01 : f32
      %230 = vector.broadcast %cst_112 : f32 to vector<8x128xf32>
      %231 = arith.addf %229, %230 : vector<8x128xf32>
      %232 = vector.extract_strided_slice %223 {offsets = [0, 128], sizes = [8, 128], strides = [1, 1]} : vector<8x512xf32> to vector<8x128xf32>
      %cst_113 = arith.constant 5.000000e-01 : f32
      %233 = vector.broadcast %cst_113 : f32 to vector<8x128xf32>
      %234 = arith.mulf %233, %232 : vector<8x128xf32>
      %235 = math.tanh %234 : vector<8x128xf32>
      %cst_114 = arith.constant 5.000000e-01 : f32
      %236 = vector.broadcast %cst_114 : f32 to vector<8x128xf32>
      %237 = arith.mulf %236, %235 : vector<8x128xf32>
      %cst_115 = arith.constant 5.000000e-01 : f32
      %238 = vector.broadcast %cst_115 : f32 to vector<8x128xf32>
      %239 = arith.addf %237, %238 : vector<8x128xf32>
      %240 = vector.extract_strided_slice %223 {offsets = [0, 256], sizes = [8, 128], strides = [1, 1]} : vector<8x512xf32> to vector<8x128xf32>
      %241 = math.tanh %240 : vector<8x128xf32>
      %242 = vector.extract_strided_slice %223 {offsets = [0, 384], sizes = [8, 128], strides = [1, 1]} : vector<8x512xf32> to vector<8x128xf32>
      %cst_116 = arith.constant 5.000000e-01 : f32
      %243 = vector.broadcast %cst_116 : f32 to vector<8x128xf32>
      %244 = arith.mulf %243, %242 : vector<8x128xf32>
      %245 = math.tanh %244 : vector<8x128xf32>
      %cst_117 = arith.constant 5.000000e-01 : f32
      %246 = vector.broadcast %cst_117 : f32 to vector<8x128xf32>
      %247 = arith.mulf %246, %245 : vector<8x128xf32>
      %cst_118 = arith.constant 5.000000e-01 : f32
      %248 = vector.broadcast %cst_118 : f32 to vector<8x128xf32>
      %249 = arith.addf %247, %248 : vector<8x128xf32>
      %250 = arith.mulf %239, %208 : vector<8x128xf32>
      %251 = arith.mulf %231, %241 : vector<8x128xf32>
      %252 = arith.addf %250, %251 : vector<8x128xf32>
      %253 = math.tanh %252 : vector<8x128xf32>
      %254 = arith.mulf %249, %253 : vector<8x128xf32>
      %c8_i32_119 = arith.constant 8 : i32
      %255 = arith.muli %arg0, %c8_i32_119 : i32
      %256 = arith.addi %255, %c4_i32 : i32
      %c12_i32_120 = arith.constant 12 : i32
      %257 = arith.cmpi slt, %256, %c12_i32_120 : i32
      %258 = arith.select %257, %252, %208 : vector<8x128xf32>
      %259 = arith.select %257, %254, %209 : vector<8x128xf32>
      %260 = arith.index_cast %c4_i32 : i32 to index
      %c0_121 = arith.constant 0 : index
      %c0_122 = arith.constant 0 : index
      %261 = vector.load %arg7[%260, %c0_121, %c0_122] : memref<8x8x128xf32, #tpu.memory_space<vmem>>, vector<1x8x128xf32>
      %262 = vector.shape_cast %261 : vector<1x8x128xf32> to vector<8x128xf32>
      %263 = vector.shape_cast %259 : vector<8x128xf32> to vector<1x8x128xf32>
      tpu.vector_store %arg7[%260, %c0_121, %c0_122], %263 {strides = array<i32>} : memref<8x8x128xf32, #tpu.memory_space<vmem>>, vector<1x8x128xf32>,
      %c5_i32 = arith.constant 5 : i32
      %264 = arith.index_cast %c5_i32 : i32 to index
      %c0_123 = arith.constant 0 : index
      %c0_124 = arith.constant 0 : index
      %265 = vector.load %arg1[%264, %c0_123, %c0_124] : memref<8x8x16xf32, #tpu.memory_space<vmem>>, vector<1x8x16xf32>
      %266 = vector.shape_cast %265 : vector<1x8x16xf32> to vector<8x16xf32>
      %c0_125 = arith.constant 0 : index
      %c0_126 = arith.constant 0 : index
      %267 = vector.load %arg2[%c0_125, %c0_126] : memref<16x512xf32, #tpu.memory_space<vmem>>, vector<16x512xf32>
      %cst_127 = arith.constant dense<0.000000e+00> : vector<8x512xf32>
      %268 = tpu.matmul %266, %267, %cst_127 {dimension_numbers = #tpu.dot_dimension_numbers<[1], [0], [0], [1], [0, 0, 1, 1], [], []>} : vector<8x16xf32>, vector<16x512xf32>, vector<8x512xf32> -> vector<8x512xf32>
      %c0_128 = arith.constant 0 : index
      %c0_129 = arith.constant 0 : index
      %269 = vector.load %arg3[%c0_128, %c0_129] : memref<128x512xf32, #tpu.memory_space<vmem>>, vector<128x512xf32>
      %cst_130 = arith.constant dense<0.000000e+00> : vector<8x512xf32>
      %270 = tpu.matmul %259, %269, %cst_130 {dimension_numbers = #tpu.dot_dimension_numbers<[1], [0], [0], [1], [0, 0, 1, 1], [], []>} : vector<8x128xf32>, vector<128x512xf32>, vector<8x512xf32> -> vector<8x512xf32>
      %271 = arith.addf %268, %270 : vector<8x512xf32>
      %c0_131 = arith.constant 0 : index
      %c0_132 = arith.constant 0 : index
      %272 = vector.load %arg4[%c0_131, %c0_132] : memref<8x512xf32, #tpu.memory_space<vmem>>, vector<8x512xf32>
      %273 = arith.addf %271, %272 : vector<8x512xf32>
      %274 = vector.extract_strided_slice %273 {offsets = [0, 0], sizes = [8, 128], strides = [1, 1]} : vector<8x512xf32> to vector<8x128xf32>
      %cst_133 = arith.constant 5.000000e-01 : f32
      %275 = vector.broadcast %cst_133 : f32 to vector<8x128xf32>
      %276 = arith.mulf %275, %274 : vector<8x128xf32>
      %277 = math.tanh %276 : vector<8x128xf32>
      %cst_134 = arith.constant 5.000000e-01 : f32
      %278 = vector.broadcast %cst_134 : f32 to vector<8x128xf32>
      %279 = arith.mulf %278, %277 : vector<8x128xf32>
      %cst_135 = arith.constant 5.000000e-01 : f32
      %280 = vector.broadcast %cst_135 : f32 to vector<8x128xf32>
      %281 = arith.addf %279, %280 : vector<8x128xf32>
      %282 = vector.extract_strided_slice %273 {offsets = [0, 128], sizes = [8, 128], strides = [1, 1]} : vector<8x512xf32> to vector<8x128xf32>
      %cst_136 = arith.constant 5.000000e-01 : f32
      %283 = vector.broadcast %cst_136 : f32 to vector<8x128xf32>
      %284 = arith.mulf %283, %282 : vector<8x128xf32>
      %285 = math.tanh %284 : vector<8x128xf32>
      %cst_137 = arith.constant 5.000000e-01 : f32
      %286 = vector.broadcast %cst_137 : f32 to vector<8x128xf32>
      %287 = arith.mulf %286, %285 : vector<8x128xf32>
      %cst_138 = arith.constant 5.000000e-01 : f32
      %288 = vector.broadcast %cst_138 : f32 to vector<8x128xf32>
      %289 = arith.addf %287, %288 : vector<8x128xf32>
      %290 = vector.extract_strided_slice %273 {offsets = [0, 256], sizes = [8, 128], strides = [1, 1]} : vector<8x512xf32> to vector<8x128xf32>
      %291 = math.tanh %290 : vector<8x128xf32>
      %292 = vector.extract_strided_slice %273 {offsets = [0, 384], sizes = [8, 128], strides = [1, 1]} : vector<8x512xf32> to vector<8x128xf32>
      %cst_139 = arith.constant 5.000000e-01 : f32
      %293 = vector.broadcast %cst_139 : f32 to vector<8x128xf32>
      %294 = arith.mulf %293, %292 : vector<8x128xf32>
      %295 = math.tanh %294 : vector<8x128xf32>
      %cst_140 = arith.constant 5.000000e-01 : f32
      %296 = vector.broadcast %cst_140 : f32 to vector<8x128xf32>
      %297 = arith.mulf %296, %295 : vector<8x128xf32>
      %cst_141 = arith.constant 5.000000e-01 : f32
      %298 = vector.broadcast %cst_141 : f32 to vector<8x128xf32>
      %299 = arith.addf %297, %298 : vector<8x128xf32>
      %300 = arith.mulf %289, %258 : vector<8x128xf32>
      %301 = arith.mulf %281, %291 : vector<8x128xf32>
      %302 = arith.addf %300, %301 : vector<8x128xf32>
      %303 = math.tanh %302 : vector<8x128xf32>
      %304 = arith.mulf %299, %303 : vector<8x128xf32>
      %c8_i32_142 = arith.constant 8 : i32
      %305 = arith.muli %arg0, %c8_i32_142 : i32
      %306 = arith.addi %305, %c5_i32 : i32
      %c12_i32_143 = arith.constant 12 : i32
      %307 = arith.cmpi slt, %306, %c12_i32_143 : i32
      %308 = arith.select %307, %302, %258 : vector<8x128xf32>
      %309 = arith.select %307, %304, %259 : vector<8x128xf32>
      %310 = arith.index_cast %c5_i32 : i32 to index
      %c0_144 = arith.constant 0 : index
      %c0_145 = arith.constant 0 : index
      %311 = vector.load %arg7[%310, %c0_144, %c0_145] : memref<8x8x128xf32, #tpu.memory_space<vmem>>, vector<1x8x128xf32>
      %312 = vector.shape_cast %311 : vector<1x8x128xf32> to vector<8x128xf32>
      %313 = vector.shape_cast %309 : vector<8x128xf32> to vector<1x8x128xf32>
      tpu.vector_store %arg7[%310, %c0_144, %c0_145], %313 {strides = array<i32>} : memref<8x8x128xf32, #tpu.memory_space<vmem>>, vector<1x8x128xf32>,
      %c6_i32 = arith.constant 6 : i32
      %314 = arith.index_cast %c6_i32 : i32 to index
      %c0_146 = arith.constant 0 : index
      %c0_147 = arith.constant 0 : index
      %315 = vector.load %arg1[%314, %c0_146, %c0_147] : memref<8x8x16xf32, #tpu.memory_space<vmem>>, vector<1x8x16xf32>
      %316 = vector.shape_cast %315 : vector<1x8x16xf32> to vector<8x16xf32>
      %c0_148 = arith.constant 0 : index
      %c0_149 = arith.constant 0 : index
      %317 = vector.load %arg2[%c0_148, %c0_149] : memref<16x512xf32, #tpu.memory_space<vmem>>, vector<16x512xf32>
      %cst_150 = arith.constant dense<0.000000e+00> : vector<8x512xf32>
      %318 = tpu.matmul %316, %317, %cst_150 {dimension_numbers = #tpu.dot_dimension_numbers<[1], [0], [0], [1], [0, 0, 1, 1], [], []>} : vector<8x16xf32>, vector<16x512xf32>, vector<8x512xf32> -> vector<8x512xf32>
      %c0_151 = arith.constant 0 : index
      %c0_152 = arith.constant 0 : index
      %319 = vector.load %arg3[%c0_151, %c0_152] : memref<128x512xf32, #tpu.memory_space<vmem>>, vector<128x512xf32>
      %cst_153 = arith.constant dense<0.000000e+00> : vector<8x512xf32>
      %320 = tpu.matmul %309, %319, %cst_153 {dimension_numbers = #tpu.dot_dimension_numbers<[1], [0], [0], [1], [0, 0, 1, 1], [], []>} : vector<8x128xf32>, vector<128x512xf32>, vector<8x512xf32> -> vector<8x512xf32>
      %321 = arith.addf %318, %320 : vector<8x512xf32>
      %c0_154 = arith.constant 0 : index
      %c0_155 = arith.constant 0 : index
      %322 = vector.load %arg4[%c0_154, %c0_155] : memref<8x512xf32, #tpu.memory_space<vmem>>, vector<8x512xf32>
      %323 = arith.addf %321, %322 : vector<8x512xf32>
      %324 = vector.extract_strided_slice %323 {offsets = [0, 0], sizes = [8, 128], strides = [1, 1]} : vector<8x512xf32> to vector<8x128xf32>
      %cst_156 = arith.constant 5.000000e-01 : f32
      %325 = vector.broadcast %cst_156 : f32 to vector<8x128xf32>
      %326 = arith.mulf %325, %324 : vector<8x128xf32>
      %327 = math.tanh %326 : vector<8x128xf32>
      %cst_157 = arith.constant 5.000000e-01 : f32
      %328 = vector.broadcast %cst_157 : f32 to vector<8x128xf32>
      %329 = arith.mulf %328, %327 : vector<8x128xf32>
      %cst_158 = arith.constant 5.000000e-01 : f32
      %330 = vector.broadcast %cst_158 : f32 to vector<8x128xf32>
      %331 = arith.addf %329, %330 : vector<8x128xf32>
      %332 = vector.extract_strided_slice %323 {offsets = [0, 128], sizes = [8, 128], strides = [1, 1]} : vector<8x512xf32> to vector<8x128xf32>
      %cst_159 = arith.constant 5.000000e-01 : f32
      %333 = vector.broadcast %cst_159 : f32 to vector<8x128xf32>
      %334 = arith.mulf %333, %332 : vector<8x128xf32>
      %335 = math.tanh %334 : vector<8x128xf32>
      %cst_160 = arith.constant 5.000000e-01 : f32
      %336 = vector.broadcast %cst_160 : f32 to vector<8x128xf32>
      %337 = arith.mulf %336, %335 : vector<8x128xf32>
      %cst_161 = arith.constant 5.000000e-01 : f32
      %338 = vector.broadcast %cst_161 : f32 to vector<8x128xf32>
      %339 = arith.addf %337, %338 : vector<8x128xf32>
      %340 = vector.extract_strided_slice %323 {offsets = [0, 256], sizes = [8, 128], strides = [1, 1]} : vector<8x512xf32> to vector<8x128xf32>
      %341 = math.tanh %340 : vector<8x128xf32>
      %342 = vector.extract_strided_slice %323 {offsets = [0, 384], sizes = [8, 128], strides = [1, 1]} : vector<8x512xf32> to vector<8x128xf32>
      %cst_162 = arith.constant 5.000000e-01 : f32
      %343 = vector.broadcast %cst_162 : f32 to vector<8x128xf32>
      %344 = arith.mulf %343, %342 : vector<8x128xf32>
      %345 = math.tanh %344 : vector<8x128xf32>
      %cst_163 = arith.constant 5.000000e-01 : f32
      %346 = vector.broadcast %cst_163 : f32 to vector<8x128xf32>
      %347 = arith.mulf %346, %345 : vector<8x128xf32>
      %cst_164 = arith.constant 5.000000e-01 : f32
      %348 = vector.broadcast %cst_164 : f32 to vector<8x128xf32>
      %349 = arith.addf %347, %348 : vector<8x128xf32>
      %350 = arith.mulf %339, %308 : vector<8x128xf32>
      %351 = arith.mulf %331, %341 : vector<8x128xf32>
      %352 = arith.addf %350, %351 : vector<8x128xf32>
      %353 = math.tanh %352 : vector<8x128xf32>
      %354 = arith.mulf %349, %353 : vector<8x128xf32>
      %c8_i32_165 = arith.constant 8 : i32
      %355 = arith.muli %arg0, %c8_i32_165 : i32
      %356 = arith.addi %355, %c6_i32 : i32
      %c12_i32_166 = arith.constant 12 : i32
      %357 = arith.cmpi slt, %356, %c12_i32_166 : i32
      %358 = arith.select %357, %352, %308 : vector<8x128xf32>
      %359 = arith.select %357, %354, %309 : vector<8x128xf32>
      %360 = arith.index_cast %c6_i32 : i32 to index
      %c0_167 = arith.constant 0 : index
      %c0_168 = arith.constant 0 : index
      %361 = vector.load %arg7[%360, %c0_167, %c0_168] : memref<8x8x128xf32, #tpu.memory_space<vmem>>, vector<1x8x128xf32>
      %362 = vector.shape_cast %361 : vector<1x8x128xf32> to vector<8x128xf32>
      %363 = vector.shape_cast %359 : vector<8x128xf32> to vector<1x8x128xf32>
      tpu.vector_store %arg7[%360, %c0_167, %c0_168], %363 {strides = array<i32>} : memref<8x8x128xf32, #tpu.memory_space<vmem>>, vector<1x8x128xf32>,
      %c7_i32 = arith.constant 7 : i32
      %364 = arith.index_cast %c7_i32 : i32 to index
      %c0_169 = arith.constant 0 : index
      %c0_170 = arith.constant 0 : index
      %365 = vector.load %arg1[%364, %c0_169, %c0_170] : memref<8x8x16xf32, #tpu.memory_space<vmem>>, vector<1x8x16xf32>
      %366 = vector.shape_cast %365 : vector<1x8x16xf32> to vector<8x16xf32>
      %c0_171 = arith.constant 0 : index
      %c0_172 = arith.constant 0 : index
      %367 = vector.load %arg2[%c0_171, %c0_172] : memref<16x512xf32, #tpu.memory_space<vmem>>, vector<16x512xf32>
      %cst_173 = arith.constant dense<0.000000e+00> : vector<8x512xf32>
      %368 = tpu.matmul %366, %367, %cst_173 {dimension_numbers = #tpu.dot_dimension_numbers<[1], [0], [0], [1], [0, 0, 1, 1], [], []>} : vector<8x16xf32>, vector<16x512xf32>, vector<8x512xf32> -> vector<8x512xf32>
      %c0_174 = arith.constant 0 : index
      %c0_175 = arith.constant 0 : index
      %369 = vector.load %arg3[%c0_174, %c0_175] : memref<128x512xf32, #tpu.memory_space<vmem>>, vector<128x512xf32>
      %cst_176 = arith.constant dense<0.000000e+00> : vector<8x512xf32>
      %370 = tpu.matmul %359, %369, %cst_176 {dimension_numbers = #tpu.dot_dimension_numbers<[1], [0], [0], [1], [0, 0, 1, 1], [], []>} : vector<8x128xf32>, vector<128x512xf32>, vector<8x512xf32> -> vector<8x512xf32>
      %371 = arith.addf %368, %370 : vector<8x512xf32>
      %c0_177 = arith.constant 0 : index
      %c0_178 = arith.constant 0 : index
      %372 = vector.load %arg4[%c0_177, %c0_178] : memref<8x512xf32, #tpu.memory_space<vmem>>, vector<8x512xf32>
      %373 = arith.addf %371, %372 : vector<8x512xf32>
      %374 = vector.extract_strided_slice %373 {offsets = [0, 0], sizes = [8, 128], strides = [1, 1]} : vector<8x512xf32> to vector<8x128xf32>
      %cst_179 = arith.constant 5.000000e-01 : f32
      %375 = vector.broadcast %cst_179 : f32 to vector<8x128xf32>
      %376 = arith.mulf %375, %374 : vector<8x128xf32>
      %377 = math.tanh %376 : vector<8x128xf32>
      %cst_180 = arith.constant 5.000000e-01 : f32
      %378 = vector.broadcast %cst_180 : f32 to vector<8x128xf32>
      %379 = arith.mulf %378, %377 : vector<8x128xf32>
      %cst_181 = arith.constant 5.000000e-01 : f32
      %380 = vector.broadcast %cst_181 : f32 to vector<8x128xf32>
      %381 = arith.addf %379, %380 : vector<8x128xf32>
      %382 = vector.extract_strided_slice %373 {offsets = [0, 128], sizes = [8, 128], strides = [1, 1]} : vector<8x512xf32> to vector<8x128xf32>
      %cst_182 = arith.constant 5.000000e-01 : f32
      %383 = vector.broadcast %cst_182 : f32 to vector<8x128xf32>
      %384 = arith.mulf %383, %382 : vector<8x128xf32>
      %385 = math.tanh %384 : vector<8x128xf32>
      %cst_183 = arith.constant 5.000000e-01 : f32
      %386 = vector.broadcast %cst_183 : f32 to vector<8x128xf32>
      %387 = arith.mulf %386, %385 : vector<8x128xf32>
      %cst_184 = arith.constant 5.000000e-01 : f32
      %388 = vector.broadcast %cst_184 : f32 to vector<8x128xf32>
      %389 = arith.addf %387, %388 : vector<8x128xf32>
      %390 = vector.extract_strided_slice %373 {offsets = [0, 256], sizes = [8, 128], strides = [1, 1]} : vector<8x512xf32> to vector<8x128xf32>
      %391 = math.tanh %390 : vector<8x128xf32>
      %392 = vector.extract_strided_slice %373 {offsets = [0, 384], sizes = [8, 128], strides = [1, 1]} : vector<8x512xf32> to vector<8x128xf32>
      %cst_185 = arith.constant 5.000000e-01 : f32
      %393 = vector.broadcast %cst_185 : f32 to vector<8x128xf32>
      %394 = arith.mulf %393, %392 : vector<8x128xf32>
      %395 = math.tanh %394 : vector<8x128xf32>
      %cst_186 = arith.constant 5.000000e-01 : f32
      %396 = vector.broadcast %cst_186 : f32 to vector<8x128xf32>
      %397 = arith.mulf %396, %395 : vector<8x128xf32>
      %cst_187 = arith.constant 5.000000e-01 : f32
      %398 = vector.broadcast %cst_187 : f32 to vector<8x128xf32>
      %399 = arith.addf %397, %398 : vector<8x128xf32>
      %400 = arith.mulf %389, %358 : vector<8x128xf32>
      %401 = arith.mulf %381, %391 : vector<8x128xf32>
      %402 = arith.addf %400, %401 : vector<8x128xf32>
      %403 = math.tanh %402 : vector<8x128xf32>
      %404 = arith.mulf %399, %403 : vector<8x128xf32>
      %c8_i32_188 = arith.constant 8 : i32
      %405 = arith.muli %arg0, %c8_i32_188 : i32
      %406 = arith.addi %405, %c7_i32 : i32
      %c12_i32_189 = arith.constant 12 : i32
      %407 = arith.cmpi slt, %406, %c12_i32_189 : i32
      %408 = arith.select %407, %402, %358 : vector<8x128xf32>
      %409 = arith.select %407, %404, %359 : vector<8x128xf32>
      %410 = arith.index_cast %c7_i32 : i32 to index
      %c0_190 = arith.constant 0 : index
      %c0_191 = arith.constant 0 : index
      %411 = vector.load %arg7[%410, %c0_190, %c0_191] : memref<8x8x128xf32, #tpu.memory_space<vmem>>, vector<1x8x128xf32>
      %412 = vector.shape_cast %411 : vector<1x8x128xf32> to vector<8x128xf32>
      %413 = vector.shape_cast %409 : vector<8x128xf32> to vector<1x8x128xf32>
      tpu.vector_store %arg7[%410, %c0_190, %c0_191], %413 {strides = array<i32>} : memref<8x8x128xf32, #tpu.memory_space<vmem>>, vector<1x8x128xf32>,
      %c8_i32_192 = arith.constant 8 : i32
      %c0_193 = arith.constant 0 : index
      %c0_194 = arith.constant 0 : index
      %414 = vector.load %arg10[%c0_193, %c0_194] : memref<8x128xf32, #tpu.memory_space<vmem>>, vector<8x128xf32>
      tpu.vector_store %arg10[%c0_193, %c0_194], %409 {strides = array<i32>} : memref<8x128xf32, #tpu.memory_space<vmem>>, vector<8x128xf32>,
      %c0_195 = arith.constant 0 : index
      %c0_196 = arith.constant 0 : index
      %415 = vector.load %arg11[%c0_195, %c0_196] : memref<8x128xf32, #tpu.memory_space<vmem>>, vector<8x128xf32>
      tpu.vector_store %arg11[%c0_195, %c0_196], %408 {strides = array<i32>} : memref<8x128xf32, #tpu.memory_space<vmem>>, vector<8x128xf32>,
    } else {
    }
    %c1_i32_4 = arith.constant 1 : i32
    %9 = arith.cmpi eq, %arg0, %c1_i32_4 : i32
    %10 = arith.extui %9 : i1 to i32
    %c0_i32_5 = arith.constant 0 : i32
    %11 = arith.cmpi ne, %10, %c0_i32_5 : i32
    scf.if %11 {
      %c0 = arith.constant 0 : index
      %c0_6 = arith.constant 0 : index
      %12 = vector.load %arg10[%c0, %c0_6] : memref<8x128xf32, #tpu.memory_space<vmem>>, vector<8x128xf32>
      %c0_7 = arith.constant 0 : index
      %c0_8 = arith.constant 0 : index
      %13 = vector.load %arg8[%c0_7, %c0_8] : memref<8x128xf32, #tpu.memory_space<vmem>>, vector<8x128xf32>
      tpu.vector_store %arg8[%c0_7, %c0_8], %12 {strides = array<i32>} : memref<8x128xf32, #tpu.memory_space<vmem>>, vector<8x128xf32>,
      %c0_9 = arith.constant 0 : index
      %c0_10 = arith.constant 0 : index
      %14 = vector.load %arg11[%c0_9, %c0_10] : memref<8x128xf32, #tpu.memory_space<vmem>>, vector<8x128xf32>
      %c0_11 = arith.constant 0 : index
      %c0_12 = arith.constant 0 : index
      %15 = vector.load %arg9[%c0_11, %c0_12] : memref<8x128xf32, #tpu.memory_space<vmem>>, vector<8x128xf32>
      tpu.vector_store %arg9[%c0_11, %c0_12], %14 {strides = array<i32>} : memref<8x128xf32, #tpu.memory_space<vmem>>, vector<8x128xf32>,
    } else {
    }
    return
  }
  func.func @transform_0(%arg0: i32) -> (i32, i32, i32) {
    %c0_i32 = arith.constant 0 : i32
    %c0_i32_0 = arith.constant 0 : i32
    %c0_i32_1 = arith.constant 0 : i32
    return %arg0, %c0_i32, %c0_i32_0 : i32, i32, i32
  }
  func.func @transform_1(%arg0: i32) -> (i32, i32) {
    %c0_i32 = arith.constant 0 : i32
    %c0_i32_0 = arith.constant 0 : i32
    %c0_i32_1 = arith.constant 0 : i32
    return %c0_i32, %c0_i32_0 : i32, i32
  }
  func.func @transform_2(%arg0: i32) -> (i32, i32) {
    %c0_i32 = arith.constant 0 : i32
    %c0_i32_0 = arith.constant 0 : i32
    %c0_i32_1 = arith.constant 0 : i32
    return %c0_i32, %c0_i32_0 : i32, i32
  }
  func.func @transform_3(%arg0: i32) -> (i32, i32) {
    %c0_i32 = arith.constant 0 : i32
    %c0_i32_0 = arith.constant 0 : i32
    %c0_i32_1 = arith.constant 0 : i32
    return %c0_i32, %c0_i32_0 : i32, i32
  }
  func.func @transform_4(%arg0: i32) -> (i32, i32) {
    %c0_i32 = arith.constant 0 : i32
    %c0_i32_0 = arith.constant 0 : i32
    %c0_i32_1 = arith.constant 0 : i32
    return %c0_i32, %c0_i32_0 : i32, i32
  }
  func.func @transform_5(%arg0: i32) -> (i32, i32) {
    %c0_i32 = arith.constant 0 : i32
    %c0_i32_0 = arith.constant 0 : i32
    %c0_i32_1 = arith.constant 0 : i32
    return %c0_i32, %c0_i32_0 : i32, i32
  }
  func.func @transform_6(%arg0: i32) -> (i32, i32, i32) {
    %c0_i32 = arith.constant 0 : i32
    %c0_i32_0 = arith.constant 0 : i32
    %c0_i32_1 = arith.constant 0 : i32
    return %arg0, %c0_i32, %c0_i32_0 : i32, i32, i32
  }
  func.func @transform_7(%arg0: i32) -> (i32, i32) {
    %c0_i32 = arith.constant 0 : i32
    %c0_i32_0 = arith.constant 0 : i32
    %c0_i32_1 = arith.constant 0 : i32
    return %c0_i32, %c0_i32_0 : i32, i32
  }
  func.func @transform_8(%arg0: i32) -> (i32, i32) {
    %c0_i32 = arith.constant 0 : i32
    %c0_i32_0 = arith.constant 0 : i32
    %c0_i32_1 = arith.constant 0 : i32
    return %c0_i32, %c0_i32_0 : i32, i32
  }
}

</mosaic_0001>

<llo_original>
// kernel: tpu_custom_call.1
$region0: #{tpu_custom_call.1}
  #allocation0 [shape = 'u32[]', space=smem, size = 0x4, offset = 0x4, fixed_abs, tag = 'smem constant byte address 0x4 - core index']
  #allocation1 [shape = 'u32[144,128]{1,0:T(1,128)}', space=vmem, size = 0x12000, scoped, tag = 'internal scratch']
  #allocation2 [shape = 'f32[8,128]{1,0:T(8,128)}', space=vmem, size = 0x1000, scoped, tag = 'scratch operand']
  #allocation3 [shape = 'f32[8,128]{1,0:T(8,128)}', space=vmem, size = 0x1000, scoped, tag = 'scratch operand']
  %s0 = inlined_call_operand.hbm [shape: f32[16,8,16], index: 0, kind: input, shape index: {}]
  %s1 = inlined_call_operand.hbm [shape: f32[16,512], index: 1, kind: input, shape index: {}]
  %s2 = inlined_call_operand.hbm [shape: f32[128,512], index: 2, kind: input, shape index: {}]
  %s3 = inlined_call_operand.hbm [shape: f32[8,512], index: 3, kind: input, shape index: {}]
  %s4 = inlined_call_operand.hbm [shape: f32[8,128], index: 4, kind: input, shape index: {}]
  %s5 = inlined_call_operand.vmem [shape: f32[8,128], index: 5, kind: input, shape index: {}]
  %s6 = inlined_call_operand.hbm [shape: f32[16,8,128], index: 6, kind: output, shape index: {0}]
  %s7 = inlined_call_operand.hbm [shape: f32[8,128], index: 7, kind: output, shape index: {1}]
  %s8 = inlined_call_operand.hbm [shape: f32[8,128], index: 8, kind: output, shape index: {2}]
  %9 = xla_tuple %s6, %s7, %s8
  %s10 = sld [smem:[#allocation0]]
  $region105: #{tpu_custom_call.1} parent=0
    _
  %s12 = ssub.s32 1, %s10
  %s13 = scalar_select 0, %s12, %s10
  $region1: #{tpu_custom_call.1} parent=0
    #allocation4 [shape = 'u8[65536]{0}', space=vmem, size = 0x10000, scoped, tag = 'input window, operand 0']
    #allocation5 [shape = 's32[2]{0}', space=sflag, size = 0x8, scoped, tag = 'scoped memory for tpu_custom_call.1']
    #allocation6 [shape = 's32[2]{0}', space=sflag, size = 0x8, scoped, tag = 'scoped memory for tpu_custom_call.1']
    #allocation7 [shape = 'u8[32768]{0}', space=vmem, size = 0x8000, scoped, tag = 'input window, operand 1, single buffered']
    #allocation8 [shape = 's32[1]{0}', space=sflag, size = 0x4, scoped, tag = 'scoped memory for tpu_custom_call.1']
    #allocation9 [shape = 'u8[262144]{0}', space=vmem, size = 0x40000, scoped, tag = 'input window, operand 2, single buffered']
    #allocation10 [shape = 'u8[16384]{0}', space=vmem, size = 0x4000, scoped, tag = 'input window, operand 3, single buffered']
    #allocation11 [shape = 's32[1]{0}', space=sflag, size = 0x4, scoped, tag = 'scoped memory for tpu_custom_call.1']
    #allocation12 [shape = 'u8[4096]{0}', space=vmem, size = 0x1000, scoped, tag = 'input window, operand 4, single buffered']
    #allocation13 [shape = 'u8[65536]{0}', space=vmem, size = 0x10000, scoped, tag = 'output window, operand 0']
    #allocation14 [shape = 'u8[4096]{0}', space=vmem, size = 0x1000, scoped, tag = 'output window, operand 1, single buffered']
    #allocation15 [shape = 's32[1]{0}', space=sflag, size = 0x4, scoped, tag = 'scoped memory for tpu_custom_call.1']
    #allocation16 [shape = 'u8[4096]{0}', space=vmem, size = 0x1000, scoped, tag = 'output window, operand 2, single buffered']
    %14 = vsyncpa [#allocation5], 0
    %s15 = scalar_lea.sflag [#allocation5], 1
    %16 = vsyncpa %s15, 0
    %17 = vsyncpa [#allocation8], 0
    %18 = vsyncpa [#allocation11], 0
    %19 = vsyncpa [#allocation6], 0
    %s20 = scalar_lea.sflag [#allocation6], 1
    %21 = vsyncpa %s20, 0
    %22 = vsyncpa [#allocation15], 0
    loop: start=0, step=1, limit=4
    $region2: #{tpu_custom_call.1} parent=1 // loop_pre_header
      _
    $region3: #{tpu_custom_call.1} parent=1 // loop_header
      %s24 = sphi 0, %s28
      %p25 = scmp.ge.s32.totalorder %s24, 4
      %s34 = sphi 0, %s36
      %s37 = sphi 0, %s34
      %s38 = sphi 0, %s37
      %s54 = sphi 0, %s38
      %s58 = sphi 0, %s58
      %s60 = sphi 0, %s58
      %s61 = sphi 0, %s60
      %s75 = sphi 0, %s61
      %s79 = sphi 0, %s79
      %s81 = sphi 0, %s79
      %s82 = sphi 0, %s81
      %s96 = sphi 0, %s82
      %s100 = sphi 0, %s100
      %s102 = sphi 0, %s100
      %s103 = sphi 0, %s102
      %s117 = sphi 0, %s103
      %s121 = sphi 0, %s121
      %s123 = sphi 0, %s121
      %s124 = sphi 0, %s123
      %s138 = sphi 0, %s124
      %s142 = sphi 0, %s142
      %s144 = sphi 0, %s142
      %s145 = sphi 0, %s144
      %s159 = sphi 0, %s145
      %s165 = sphi 0, %s167
      %s168 = sphi 0, %s165
      %s169 = sphi 0, %s168
      %s185 = sphi 0, %s169
      %s189 = sphi 0, %s189
      %s191 = sphi 0, %s189
      %s192 = sphi 0, %s191
      %s206 = sphi 0, %s192
      %s210 = sphi 0, %s210
      %s212 = sphi 0, %s210
      %s213 = sphi 0, %s212
      %s227 = sphi 0, %s213
    $region4: #{tpu_custom_call.1} parent=1 // loop_header_branch
      %27 = sbr.rel (%p25) target = $region8
    $region5: #{tpu_custom_call.1} parent=1 // loop_body
      %s29 = ssub.s32 %s24, 1
      %s30 = ssub.s32 %s24, 2
      %s31 = sadd.s32 %s24, 1
      %s32 = ssub.s32 %s24, %s31
      %p33 = scmp.eq.s32.totalorder %s32, 0
      %s35 = sadd.s32 %s34, 1
      %s36 = scalar_select %p33, %s34, %s35
      %p39 = pneg %p33
      %p40 = scmp.eq.s32.totalorder %s24, 1
      %p41 = por %p39, %p40
      %p42 = scmp.ne.s32.totalorder %s34, %s37
      %p43 = scmp.eq.s32.totalorder %s24, 0
      %p44 = por %p42, %p43
      %p45 = scmp.ne.s32.totalorder %s34, %s37
      %p46 = scmp.eq.s32.totalorder %s29, 1
      %p47 = por %p45, %p46
      %p48 = scmp.ne.s32.totalorder %s37, %s38
      %p49 = scmp.eq.s32.totalorder %s29, 0
      %p50 = por %p48, %p49
      %p51 = scmp.ne.s32.totalorder %s37, %s38
      %p52 = scmp.eq.s32.totalorder %s30, 1
      %p53 = por %p51, %p52
      %p55 = scmp.ne.s32.totalorder %s38, %s54
      %p56 = scmp.eq.s32.totalorder %s30, 0
      %p57 = por %p55, %p56
      %s59 = sadd.s32 %s58, 1
      %p62 = scmp.eq.s32.totalorder %s24, 1
      %p63 = scmp.ne.s32.totalorder %s58, %s60
      %p64 = scmp.eq.s32.totalorder %s24, 0
      %p65 = por %p63, %p64
      %p66 = scmp.ne.s32.totalorder %s58, %s60
      %p67 = scmp.eq.s32.totalorder %s29, 1
      %p68 = por %p66, %p67
      %p69 = scmp.ne.s32.totalorder %s60, %s61
      %p70 = scmp.eq.s32.totalorder %s29, 0
      %p71 = por %p69, %p70
      %p72 = scmp.ne.s32.totalorder %s60, %s61
      %p73 = scmp.eq.s32.totalorder %s30, 1
      %p74 = por %p72, %p73
      %p76 = scmp.ne.s32.totalorder %s61, %s75
      %p77 = scmp.eq.s32.totalorder %s30, 0
      %p78 = por %p76, %p77
      %s80 = sadd.s32 %s79, 1
      %p83 = scmp.eq.s32.totalorder %s24, 1
      %p84 = scmp.ne.s32.totalorder %s79, %s81
      %p85 = scmp.eq.s32.totalorder %s24, 0
      %p86 = por %p84, %p85
      %p87 = scmp.ne.s32.totalorder %s79, %s81
      %p88 = scmp.eq.s32.totalorder %s29, 1
      %p89 = por %p87, %p88
      %p90 = scmp.ne.s32.totalorder %s81, %s82
      %p91 = scmp.eq.s32.totalorder %s29, 0
      %p92 = por %p90, %p91
      %p93 = scmp.ne.s32.totalorder %s81, %s82
      %p94 = scmp.eq.s32.totalorder %s30, 1
      %p95 = por %p93, %p94
      %p97 = scmp.ne.s32.totalorder %s82, %s96
      %p98 = scmp.eq.s32.totalorder %s30, 0
      %p99 = por %p97, %p98
      %s101 = sadd.s32 %s100, 1
      %p104 = scmp.eq.s32.totalorder %s24, 1
      %p105 = scmp.ne.s32.totalorder %s100, %s102
      %p106 = scmp.eq.s32.totalorder %s24, 0
      %p107 = por %p105, %p106
      %p108 = scmp.ne.s32.totalorder %s100, %s102
      %p109 = scmp.eq.s32.totalorder %s29, 1
      %p110 = por %p108, %p109
      %p111 = scmp.ne.s32.totalorder %s102, %s103
      %p112 = scmp.eq.s32.totalorder %s29, 0
      %p113 = por %p111, %p112
      %p114 = scmp.ne.s32.totalorder %s102, %s103
      %p115 = scmp.eq.s32.totalorder %s30, 1
      %p116 = por %p114, %p115
      %p118 = scmp.ne.s32.totalorder %s103, %s117
      %p119 = scmp.eq.s32.totalorder %s30, 0
      %p120 = por %p118, %p119
      %s122 = sadd.s32 %s121, 1
      %p125 = scmp.eq.s32.totalorder %s24, 1
      %p126 = scmp.ne.s32.totalorder %s121, %s123
      %p127 = scmp.eq.s32.totalorder %s24, 0
      %p128 = por %p126, %p127
      %p129 = scmp.ne.s32.totalorder %s121, %s123
      %p130 = scmp.eq.s32.totalorder %s29, 1
      %p131 = por %p129, %p130
      %p132 = scmp.ne.s32.totalorder %s123, %s124
      %p133 = scmp.eq.s32.totalorder %s29, 0
      %p134 = por %p132, %p133
      %p135 = scmp.ne.s32.totalorder %s123, %s124
      %p136 = scmp.eq.s32.totalorder %s30, 1
      %p137 = por %p135, %p136
      %p139 = scmp.ne.s32.totalorder %s124, %s138
      %p140 = scmp.eq.s32.totalorder %s30, 0
      %p141 = por %p139, %p140
      %s143 = sadd.s32 %s142, 1
      %p146 = scmp.eq.s32.totalorder %s24, 1
      %p147 = scmp.ne.s32.totalorder %s142, %s144
      %p148 = scmp.eq.s32.totalorder %s24, 0
      %p149 = por %p147, %p148
      %p150 = scmp.ne.s32.totalorder %s142, %s144
      %p151 = scmp.eq.s32.totalorder %s29, 1
      %p152 = por %p150, %p151
      %p153 = scmp.ne.s32.totalorder %s144, %s145
      %p154 = scmp.eq.s32.totalorder %s29, 0
      %p155 = por %p153, %p154
      %p156 = scmp.ne.s32.totalorder %s144, %s145
      %p157 = scmp.eq.s32.totalorder %s30, 1
      %p158 = por %p156, %p157
      %p160 = scmp.ne.s32.totalorder %s145, %s159
      %p161 = scmp.eq.s32.totalorder %s30, 0
      %p162 = por %p160, %p161
      %s163 = ssub.s32 %s24, %s31
      %p164 = scmp.eq.s32.totalorder %s163, 0
      %s166 = sadd.s32 %s165, 1
      %s167 = scalar_select %p164, %s165, %s166
      %p170 = pneg %p164
      %p171 = scmp.eq.s32.totalorder %s24, 1
      %p172 = por %p170, %p171
      %p173 = scmp.ne.s32.totalorder %s165, %s168
      %p174 = scmp.eq.s32.totalorder %s24, 0
      %p175 = por %p173, %p174
      %p176 = scmp.ne.s32.totalorder %s165, %s168
      %p177 = scmp.eq.s32.totalorder %s29, 1
      %p178 = por %p176, %p177
      %p179 = scmp.ne.s32.totalorder %s168, %s169
      %p180 = scmp.eq.s32.totalorder %s29, 0
      %p181 = por %p179, %p180
      %p182 = scmp.ne.s32.totalorder %s168, %s169
      %p183 = scmp.eq.s32.totalorder %s30, 1
      %p184 = por %p182, %p183
      %p186 = scmp.ne.s32.totalorder %s169, %s185
      %p187 = scmp.eq.s32.totalorder %s30, 0
      %p188 = por %p186, %p187
      %s190 = sadd.s32 %s189, 1
      %p193 = scmp.eq.s32.totalorder %s24, 1
      %p194 = scmp.ne.s32.totalorder %s189, %s191
      %p195 = scmp.eq.s32.totalorder %s24, 0
      %p196 = por %p194, %p195
      %p197 = scmp.ne.s32.totalorder %s189, %s191
      %p198 = scmp.eq.s32.totalorder %s29, 1
      %p199 = por %p197, %p198
      %p200 = scmp.ne.s32.totalorder %s191, %s192
      %p201 = scmp.eq.s32.totalorder %s29, 0
      %p202 = por %p200, %p201
      %p203 = scmp.ne.s32.totalorder %s191, %s192
      %p204 = scmp.eq.s32.totalorder %s30, 1
      %p205 = por %p203, %p204
      %p207 = scmp.ne.s32.totalorder %s192, %s206
      %p208 = scmp.eq.s32.totalorder %s30, 0
      %p209 = por %p207, %p208
      %s211 = sadd.s32 %s210, 1
      %p214 = scmp.eq.s32.totalorder %s24, 1
      %p215 = scmp.ne.s32.totalorder %s210, %s212
      %p216 = scmp.eq.s32.totalorder %s24, 0
      %p217 = por %p215, %p216
      %p218 = scmp.ne.s32.totalorder %s210, %s212
      %p219 = scmp.eq.s32.totalorder %s29, 1
      %p220 = por %p218, %p219
      %p221 = scmp.ne.s32.totalorder %s212, %s213
      %p222 = scmp.eq.s32.totalorder %s29, 0
      %p223 = por %p221, %p222
      %p224 = scmp.ne.s32.totalorder %s212, %s213
      %p225 = scmp.eq.s32.totalorder %s30, 1
      %p226 = por %p224, %p225
      %p228 = scmp.ne.s32.totalorder %s213, %s227
      %p229 = scmp.eq.s32.totalorder %s30, 0
      %p230 = por %p228, %p229
      %p231 = scmp.le.s32.totalorder 1, %s24
      %p232 = scmp.lt.s32.totalorder %s24, 3
      %p233 = pnand %p231, %p232
      %p234 = pneg %p233
      // Predicated region
      $region9: #{tpu_custom_call.1} parent=5 // pred_check
        _
      $region10: #{tpu_custom_call.1} parent=5 // pred_check_branch
        %236 = sbr.rel (%p233) target = $region12
      $region11: #{tpu_custom_call.1} parent=5 // pred_region
        %s237 = ssub.s32 %s24, 1
        // Predicated region
        $region13: #{tpu_custom_call.1} parent=11 // pred_check
          %p238 = pneg %p71
        $region14: #{tpu_custom_call.1} parent=11 // pred_check_branch
          %240 = sbr.rel (%p238) target = $region16
        $region15: #{tpu_custom_call.1} parent=11 // pred_region
          %s242 = ssub.s32 1024, 1024
          %243 = vsyncadd [#allocation8], %s242
          %s244 = sshll.u32 [#allocation7], 4
          %s245 = int_to_ptr.vmem [resolvable:$true] %s244
          %250 = dma.hbm_to_vmem [thread:$0]  %s1, 1024, %s245, [#allocation8], 512, 512, 32
        $region16: #{tpu_custom_call.1} parent=11 // pred_fallthru
          _
        // Predicated region
        $region17: #{tpu_custom_call.1} parent=11 // pred_check
          %p251 = pneg %p92
        $region18: #{tpu_custom_call.1} parent=11 // pred_check_branch
          %253 = sbr.rel (%p251) target = $region20
        $region19: #{tpu_custom_call.1} parent=11 // pred_region
          %s255 = ssub.s32 8192, 8192
          %256 = vsyncadd [#allocation8], %s255
          %s257 = sshll.u32 [#allocation9], 4
          %s258 = int_to_ptr.vmem [resolvable:$true] %s257
          %263 = dma.hbm_to_vmem [thread:$0]  %s2, 8192, %s258, [#allocation8], 512, 512, 32
        $region20: #{tpu_custom_call.1} parent=11 // pred_fallthru
          _
        // Predicated region
        $region21: #{tpu_custom_call.1} parent=11 // pred_check
          %p264 = pneg %p113
        $region22: #{tpu_custom_call.1} parent=11 // pred_check_branch
          %266 = sbr.rel (%p264) target = $region24
        $region23: #{tpu_custom_call.1} parent=11 // pred_region
          %s268 = ssub.s32 512, 512
          %269 = vsyncadd [#allocation11], %s268
          %s271 = sshll.u32 [#allocation10], 4
          %s272 = int_to_ptr.vmem [resolvable:$true] %s271
          %274 = dma.hbm_to_vmem [thread:$0]  %s3, 512, %s272, [#allocation11]
        $region24: #{tpu_custom_call.1} parent=11 // pred_fallthru
          _
        // Predicated region
        $region25: #{tpu_custom_call.1} parent=11 // pred_check
          %p275 = pneg %p134
        $region26: #{tpu_custom_call.1} parent=11 // pred_check_branch
          %277 = sbr.rel (%p275) target = $region28
        $region27: #{tpu_custom_call.1} parent=11 // pred_region
          %s279 = ssub.s32 128, 128
          %280 = vsyncadd [#allocation11], %s279
          %s282 = sshll.u32 [#allocation12], 4
          %s283 = int_to_ptr.vmem [resolvable:$true] %s282
          %285 = dma.hbm_to_vmem [thread:$0]  %s4, 128, %s283, [#allocation11]
        $region28: #{tpu_custom_call.1} parent=11 // pred_fallthru
          _
        // Predicated region
        $region29: #{tpu_custom_call.1} parent=11 // pred_check
          %p286 = pneg %p155
        $region30: #{tpu_custom_call.1} parent=11 // pred_check_branch
          %288 = sbr.rel (%p286) target = $region32
        $region31: #{tpu_custom_call.1} parent=11 // pred_region
          _
        $region32: #{tpu_custom_call.1} parent=11 // pred_fallthru
          _
      $region12: #{tpu_custom_call.1} parent=5 // pred_fallthru
        _
      %p289 = scmp.lt.s32.totalorder %s24, 2
      // Predicated region
      $region33: #{tpu_custom_call.1} parent=5 // pred_check
        %p290 = pneg %p289
      $region34: #{tpu_custom_call.1} parent=5 // pred_check_branch
        %292 = sbr.rel (%p290) target = $region36
      $region35: #{tpu_custom_call.1} parent=5 // pred_region
        // Predicated region
        $region37: #{tpu_custom_call.1} parent=35 // pred_check
          %p293 = pneg %p44
        $region38: #{tpu_custom_call.1} parent=35 // pred_check_branch
          %295 = sbr.rel (%p293) target = $region40
        $region39: #{tpu_custom_call.1} parent=35 // pred_region
          %s296 = sand.u32 %s34, 1
          %s297 = scalar_lea.sflag [#allocation5], %s296
          %s298 = sand.u32 %s34, 1
          %s299 = smul.addr %s298, 64
          %s300 = scalar_lea.vmem [#allocation4], %s299
          %s301 = smul.u32 8, %s24
          %s303 = ssub.s32 1024, 1024
          %304 = vsyncadd %s297, %s303
          %s305 = smul.addr %s301, 128
          %s306 = scalar_lea.hbm %s0, %s305
          %s307 = sshll.u32 %s300, 4
          %s308 = int_to_ptr.vmem [resolvable:$true] %s307
          %313 = dma.hbm_to_vmem [thread:$0]  %s306, 1024, %s308, %s297, 128, 128, 8
        $region40: #{tpu_custom_call.1} parent=35 // pred_fallthru
          _
      $region36: #{tpu_custom_call.1} parent=5 // pred_fallthru
        _
      %p314 = scmp.le.s32.totalorder 1, %s24
      %p315 = scmp.lt.s32.totalorder %s24, 3
      %p316 = pnand %p314, %p315
      %p317 = pneg %p316
      // Predicated region
      $region41: #{tpu_custom_call.1} parent=5 // pred_check
        _
      $region42: #{tpu_custom_call.1} parent=5 // pred_check_branch
        %319 = sbr.rel (%p316) target = $region44
      $region43: #{tpu_custom_call.1} parent=5 // pred_region
        %s320 = ssub.s32 %s24, 1
        %s321 = sand.u32 %s37, 1
        %s322 = scalar_lea.sflag [#allocation5], %s321
        %s323 = sand.u32 %s37, 1
        %s324 = smul.addr %s323, 64
        %s325 = scalar_lea.vmem [#allocation4], %s324
        // Predicated region
        $region45: #{tpu_custom_call.1} parent=43 // pred_check
          %p326 = pneg %p50
        $region46: #{tpu_custom_call.1} parent=43 // pred_check_branch
          %328 = sbr.rel (%p326) target = $region48
        $region47: #{tpu_custom_call.1} parent=43 // pred_region
          %329 = dma.done %s322, 1024
        $region48: #{tpu_custom_call.1} parent=43 // pred_fallthru
          _
        // Predicated region
        $region49: #{tpu_custom_call.1} parent=43 // pred_check
          %p330 = pneg %p71
        $region50: #{tpu_custom_call.1} parent=43 // pred_check_branch
          %332 = sbr.rel (%p330) target = $region52
        $region51: #{tpu_custom_call.1} parent=43 // pred_region
          %333 = dma.done [#allocation8], 1024
        $region52: #{tpu_custom_call.1} parent=43 // pred_fallthru
          _
        // Predicated region
        $region53: #{tpu_custom_call.1} parent=43 // pred_check
          %p334 = pneg %p92
        $region54: #{tpu_custom_call.1} parent=43 // pred_check_branch
          %336 = sbr.rel (%p334) target = $region56
        $region55: #{tpu_custom_call.1} parent=43 // pred_region
          %337 = dma.done [#allocation8], 8192
        $region56: #{tpu_custom_call.1} parent=43 // pred_fallthru
          _
        // Predicated region
        $region57: #{tpu_custom_call.1} parent=43 // pred_check
          %p338 = pneg %p113
        $region58: #{tpu_custom_call.1} parent=43 // pred_check_branch
          %340 = sbr.rel (%p338) target = $region60
        $region59: #{tpu_custom_call.1} parent=43 // pred_region
          %341 = dma.done [#allocation11], 512
        $region60: #{tpu_custom_call.1} parent=43 // pred_fallthru
          _
        // Predicated region
        $region61: #{tpu_custom_call.1} parent=43 // pred_check
          %p342 = pneg %p134
        $region62: #{tpu_custom_call.1} parent=43 // pred_check_branch
          %344 = sbr.rel (%p342) target = $region64
        $region63: #{tpu_custom_call.1} parent=43 // pred_region
          %345 = dma.done [#allocation11], 128
        $region64: #{tpu_custom_call.1} parent=43 // pred_fallthru
          _
        %s346 = sand.u32 %s37, 1
        %s347 = scalar_lea.sflag [#allocation5], %s346
        %s348 = sand.u32 %s37, 1
        %s349 = smul.addr %s348, 64
        %s350 = scalar_lea.vmem [#allocation4], %s349
        %p351 = pneg %p50
        %p352 = pneg %p47
        %p353 = pneg %p71
        %p354 = pneg %p68
        %p355 = pneg %p92
        %p356 = pneg %p89
        %p357 = pneg %p113
        %p358 = pneg %p110
        %p359 = pneg %p134
        %p360 = pneg %p131
        %p361 = pneg %p155
        %p362 = pneg %p152
        %p363 = pneg %p181
        %p364 = pneg %p178
        %s365 = sand.u32 %s168, 1
        %s366 = scalar_lea.sflag [#allocation6], %s365
        %s367 = sand.u32 %s168, 1
        %s368 = smul.addr %s367, 64
        %s369 = scalar_lea.vmem [#allocation13], %s368
        %p370 = pneg %p202
        %p371 = pneg %p199
        %p372 = pneg %p223
        %p373 = pneg %p220
        %s374 = smul.u32 8, %s29
        %s375 = smul.u32 8, %s29
        %p376 = scmp.eq.s32.totalorder %s29, 0
        // Predicated region
        $region65: #{tpu_custom_call.1} parent=43 // pred_check
          %p377 = pneg %p376
        $region66: #{tpu_custom_call.1} parent=43 // pred_check_branch
          %379 = sbr.rel (%p377) target = $region68
        $region67: #{tpu_custom_call.1} parent=43 // pred_region
          %v380 = vld [vmem:[#allocation12] sm:$0xff]
          %381 = vst [vmem:[#allocation2] sm:$0xff] %v380
          %v382 = vld [vmem:[%s5] sm:$0xff]
          %383 = vst [vmem:[#allocation3] sm:$0xff] %v382
        $region68: #{tpu_custom_call.1} parent=43 // pred_fallthru
          _
        %p384 = scmp.ne.s32.totalorder %s29, 1
        // Predicated region
        $region69: #{tpu_custom_call.1} parent=43 // pred_check
          %p385 = pneg %p384
        $region70: #{tpu_custom_call.1} parent=43 // pred_check_branch
          %387 = sbr.rel (%p385) target = $region72
        $region71: #{tpu_custom_call.1} parent=43 // pred_region
          %v388 = vld [vmem:[#allocation2] sm:$0xff]
          %v389 = vld [vmem:[#allocation3] sm:$0xff]
          %v390 = vld [vmem:[%s325] sm:$0xff]
          %v391 = vld [vmem:[#allocation7] sm:$0xff]
          %v392 = vld [vmem:[#allocation7 + $0x8] sm:$0xff]
          %v393 = vld [vmem:[#allocation7 + $0x10] sm:$0xff]
          %v394 = vld [vmem:[#allocation7 + $0x18] sm:$0xff]
          %v395 = vld [vmem:[#allocation7 + $0x20] sm:$0xff]
          %v396 = vld [vmem:[#allocation7 + $0x28] sm:$0xff]
          %v397 = vld [vmem:[#allocation7 + $0x30] sm:$0xff]
          %v398 = vld [vmem:[#allocation7 + $0x38] sm:$0xff]
          %v399 = vld [vmem:[#allocation9] sm:$0xff]
          %v400 = vld [vmem:[#allocation9 + $0x8] sm:$0xff]
          %v401 = vld [vmem:[#allocation9 + $0x10] sm:$0xff]
          %v402 = vld [vmem:[#allocation9 + $0x18] sm:$0xff]
          %v403 = vld [vmem:[#allocation9 + $0x20] sm:$0xff]
          %v404 = vld [vmem:[#allocation9 + $0x28] sm:$0xff]
          %v405 = vld [vmem:[#allocation9 + $0x30] sm:$0xff]
          %v406 = vld [vmem:[#allocation9 + $0x38] sm:$0xff]
          %v407 = vld [vmem:[#allocation9 + $0x40] sm:$0xff]
          %v408 = vld [vmem:[#allocation9 + $0x48] sm:$0xff]
          %v409 = vld [vmem:[#allocation9 + $0x50] sm:$0xff]
          %v410 = vld [vmem:[#allocation9 + $0x58] sm:$0xff]
          %v411 = vld [vmem:[#allocation9 + $0x60] sm:$0xff]
          %v412 = vld [vmem:[#allocation9 + $0x68] sm:$0xff]
          %v413 = vld [vmem:[#allocation9 + $0x70] sm:$0xff]
          %v414 = vld [vmem:[#allocation9 + $0x78] sm:$0xff]
          %v415 = vld [vmem:[#allocation9 + $0x80] sm:$0xff]
          %v416 = vld [vmem:[#allocation9 + $0x88] sm:$0xff]
          %v417 = vld [vmem:[#allocation9 + $0x90] sm:$0xff]
          %v418 = vld [vmem:[#allocation9 + $0x98] sm:$0xff]
          %v419 = vld [vmem:[#allocation9 + $0xa0] sm:$0xff]
          %v420 = vld [vmem:[#allocation9 + $0xa8] sm:$0xff]
          %v421 = vld [vmem:[#allocation9 + $0xb0] sm:$0xff]
          %v422 = vld [vmem:[#allocation9 + $0xb8] sm:$0xff]
          %v423 = vld [vmem:[#allocation9 + $0xc0] sm:$0xff]
          %v424 = vld [vmem:[#allocation9 + $0xc8] sm:$0xff]
          %v425 = vld [vmem:[#allocation9 + $0xd0] sm:$0xff]
          %v426 = vld [vmem:[#allocation9 + $0xd8] sm:$0xff]
          %v427 = vld [vmem:[#allocation9 + $0xe0] sm:$0xff]
          %v428 = vld [vmem:[#allocation9 + $0xe8] sm:$0xff]
          %v429 = vld [vmem:[#allocation9 + $0xf0] sm:$0xff]
          %v430 = vld [vmem:[#allocation9 + $0xf8] sm:$0xff]
          %v431 = vld [vmem:[#allocation9 + $0x100] sm:$0xff]
          %v432 = vld [vmem:[#allocation9 + $0x108] sm:$0xff]
          %v433 = vld [vmem:[#allocation9 + $0x110] sm:$0xff]
          %v434 = vld [vmem:[#allocation9 + $0x118] sm:$0xff]
          %v435 = vld [vmem:[#allocation9 + $0x120] sm:$0xff]
          %v436 = vld [vmem:[#allocation9 + $0x128] sm:$0xff]
          %v437 = vld [vmem:[#allocation9 + $0x130] sm:$0xff]
          %v438 = vld [vmem:[#allocation9 + $0x138] sm:$0xff]
          %v439 = vld [vmem:[#allocation9 + $0x140] sm:$0xff]
          %v440 = vld [vmem:[#allocation9 + $0x148] sm:$0xff]
          %v441 = vld [vmem:[#allocation9 + $0x150] sm:$0xff]
          %v442 = vld [vmem:[#allocation9 + $0x158] sm:$0xff]
          %v443 = vld [vmem:[#allocation9 + $0x160] sm:$0xff]
          %v444 = vld [vmem:[#allocation9 + $0x168] sm:$0xff]
          %v445 = vld [vmem:[#allocation9 + $0x170] sm:$0xff]
          %v446 = vld [vmem:[#allocation9 + $0x178] sm:$0xff]
          %v447 = vld [vmem:[#allocation9 + $0x180] sm:$0xff]
          %v448 = vld [vmem:[#allocation9 + $0x188] sm:$0xff]
          %v449 = vld [vmem:[#allocation9 + $0x190] sm:$0xff]
          %v450 = vld [vmem:[#allocation9 + $0x198] sm:$0xff]
          %v451 = vld [vmem:[#allocation9 + $0x1a0] sm:$0xff]
          %v452 = vld [vmem:[#allocation9 + $0x1a8] sm:$0xff]
          %v453 = vld [vmem:[#allocation9 + $0x1b0] sm:$0xff]
          %v454 = vld [vmem:[#allocation9 + $0x1b8] sm:$0xff]
          %v455 = vld [vmem:[#allocation9 + $0x1c0] sm:$0xff]
          %v456 = vld [vmem:[#allocation9 + $0x1c8] sm:$0xff]
          %v457 = vld [vmem:[#allocation9 + $0x1d0] sm:$0xff]
          %v458 = vld [vmem:[#allocation9 + $0x1d8] sm:$0xff]
          %v459 = vld [vmem:[#allocation9 + $0x1e0] sm:$0xff]
          %v460 = vld [vmem:[#allocation9 + $0x1e8] sm:$0xff]
          %v461 = vld [vmem:[#allocation9 + $0x1f0] sm:$0xff]
          %v462 = vld [vmem:[#allocation9 + $0x1f8] sm:$0xff]
          %463 = vmatprep.subr.mxu0 %v460
          %464 = vmatpush1.msra.mxu0 %v459
          %465 = vmatprep.subr.mxu0 %v456
          %466 = vmatpush1.msra.mxu0 %v455
          %467 = vmatprep.subr.mxu0 %v452
          %468 = vmatpush1.msra.mxu0 %v451
          %469 = vmatprep.subr.mxu0 %v448
          %470 = vmatpush1.msra.mxu0 %v447
          %471 = vmatprep.subr.mxu0 %v444
          %472 = vmatpush1.msra.mxu0 %v443
          %473 = vmatprep.subr.mxu0 %v440
          %474 = vmatpush1.msra.mxu0 %v439
          %475 = vmatprep.subr.mxu0 %v436
          %476 = vmatpush1.msra.mxu0 %v435
          %477 = vmatprep.subr.mxu0 %v432
          %478 = vmatpush1.msra.mxu0 %v431
          %479 = vmatprep.subr.mxu0 %v428
          %480 = vmatpush1.msra.mxu0 %v427
          %481 = vmatprep.subr.mxu0 %v424
          %482 = vmatpush1.msra.mxu0 %v423
          %483 = vmatprep.subr.mxu0 %v420
          %484 = vmatpush1.msra.mxu0 %v419
          %485 = vmatprep.subr.mxu0 %v416
          %486 = vmatpush1.msra.mxu0 %v415
          %487 = vmatprep.subr.mxu0 %v412
          %488 = vmatpush1.msra.mxu0 %v411
          %489 = vmatprep.subr.mxu0 %v408
          %490 = vmatpush1.msra.mxu0 %v407
          %491 = vmatprep.subr.mxu0 %v404
          %492 = vmatpush1.msra.mxu0 %v403
          %493 = vmatprep.subr.mxu0 %v400
          %494 = vmatpush1.msra.mxu0 %v399
          %495 = vmatprep.subr.mxu0 0.0
          %496 = vmatpush2.msra.mxu0 0.0
          %497 = vmatprep.subr.mxu0 0.0
          %498 = vmatpush2.msra.mxu0 0.0
          %499 = vmatprep.subr.mxu0 0.0
          %500 = vmatpush2.msra.mxu0 0.0
          %501 = vmatprep.subr.mxu0 0.0
          %502 = vmatpush2.msra.mxu0 0.0
          %503 = vmatprep.subr.mxu0 0.0
          %504 = vmatpush2.msra.mxu0 0.0
          %505 = vmatprep.subr.mxu0 0.0
          %506 = vmatpush2.msra.mxu0 0.0
          %507 = vmatprep.subr.mxu0 0.0
          %508 = vmatpush2.msra.mxu0 0.0
          %509 = vmatprep.subr.mxu0 0.0
          %510 = vmatpush2.msra.mxu0 0.0
          %511 = vmatprep.subr.mxu0 0.0
          %512 = vmatpush2.msra.mxu0 0.0
          %513 = vmatprep.subr.mxu0 0.0
          %514 = vmatpush2.msra.mxu0 0.0
          %515 = vmatprep.subr.mxu0 0.0
          %516 = vmatpush2.msra.mxu0 0.0
          %517 = vmatprep.subr.mxu0 0.0
          %518 = vmatpush2.msra.mxu0 0.0
          %519 = vmatprep.subr.mxu0 0.0
          %520 = vmatpush2.msra.mxu0 0.0
          %521 = vmatprep.subr.mxu0 0.0
          %522 = vmatpush2.msra.mxu0 0.0
          %523 = vmatprep.subr.mxu0 0.0
          %524 = vmatpush2.msra.mxu0 0.0
          %525 = vmatprep.subr.mxu0 0.0
          %526 = vmatpush2.msra.mxu0 0.0
          %527 = vmatprep.mubr.f32.mxu0 0.0
          %528 = vmatmul.mubr.f32.gmra.mxu0 %v388
          %v529 = vpop.f32.mrf.mxu0
          %v530 = vadd.f32 0.0, %v529
          %v531 = vpop.f32.mrf.mxu0
          %v532 = vadd.f32 0.0, %v531
          %533 = vdwg.mxu0
          %534 = vmatprep.subr.mxu0 %v462
          %535 = vmatpush1.msra.mxu0 %v461
          %536 = vmatprep.subr.mxu0 %v458
          %537 = vmatpush1.msra.mxu0 %v457
          %538 = vmatprep.subr.mxu0 %v454
          %539 = vmatpush1.msra.mxu0 %v453
          %540 = vmatprep.subr.mxu0 %v450
          %541 = vmatpush1.msra.mxu0 %v449
          %542 = vmatprep.subr.mxu0 %v446
          %543 = vmatpush1.msra.mxu0 %v445
          %544 = vmatprep.subr.mxu0 %v442
          %545 = vmatpush1.msra.mxu0 %v441
          %546 = vmatprep.subr.mxu0 %v438
          %547 = vmatpush1.msra.mxu0 %v437
          %548 = vmatprep.subr.mxu0 %v434
          %549 = vmatpush1.msra.mxu0 %v433
          %550 = vmatprep.subr.mxu0 %v430
          %551 = vmatpush1.msra.mxu0 %v429
          %552 = vmatprep.subr.mxu0 %v426
          %553 = vmatpush1.msra.mxu0 %v425
          %554 = vmatprep.subr.mxu0 %v422
          %555 = vmatpush1.msra.mxu0 %v421
          %556 = vmatprep.subr.mxu0 %v418
          %557 = vmatpush1.msra.mxu0 %v417
          %558 = vmatprep.subr.mxu0 %v414
          %559 = vmatpush1.msra.mxu0 %v413
          %560 = vmatprep.subr.mxu0 %v410
          %561 = vmatpush1.msra.mxu0 %v409
          %562 = vmatprep.subr.mxu0 %v406
          %563 = vmatpush1.msra.mxu0 %v405
          %564 = vmatprep.subr.mxu0 %v402
          %565 = vmatpush1.msra.mxu0 %v401
          %566 = vmatprep.subr.mxu0 0.0
          %567 = vmatpush2.msra.mxu0 0.0
          %568 = vmatprep.subr.mxu0 0.0
          %569 = vmatpush2.msra.mxu0 0.0
          %570 = vmatprep.subr.mxu0 0.0
          %571 = vmatpush2.msra.mxu0 0.0
          %572 = vmatprep.subr.mxu0 0.0
          %573 = vmatpush2.msra.mxu0 0.0
          %574 = vmatprep.subr.mxu0 0.0
          %575 = vmatpush2.msra.mxu0 0.0
          %576 = vmatprep.subr.mxu0 0.0
          %577 = vmatpush2.msra.mxu0 0.0
          %578 = vmatprep.subr.mxu0 0.0
          %579 = vmatpush2.msra.mxu0 0.0
          %580 = vmatprep.subr.mxu0 0.0
          %581 = vmatpush2.msra.mxu0 0.0
          %582 = vmatprep.subr.mxu0 0.0
          %583 = vmatpush2.msra.mxu0 0.0
          %584 = vmatprep.subr.mxu0 0.0
          %585 = vmatpush2.msra.mxu0 0.0
          %586 = vmatprep.subr.mxu0 0.0
          %587 = vmatpush2.msra.mxu0 0.0
          %588 = vmatprep.subr.mxu0 0.0
          %589 = vmatpush2.msra.mxu0 0.0
          %590 = vmatprep.subr.mxu0 0.0
          %591 = vmatpush2.msra.mxu0 0.0
          %592 = vmatprep.subr.mxu0 0.0
          %593 = vmatpush2.msra.mxu0 0.0
          %594 = vmatprep.subr.mxu0 0.0
          %595 = vmatpush2.msra.mxu0 0.0
          %596 = vmatprep.subr.mxu0 0.0
          %597 = vmatpush2.msra.mxu0 0.0
          %598 = vmatprep.mubr.f32.mxu0 0.0
          %599 = vmatmul.mubr.f32.gmra.mxu0 %v388
          %v600 = vpop.f32.mrf.mxu0
          %v601 = vadd.f32 0.0, %v600
          %v602 = vpop.f32.mrf.mxu0
          %v603 = vadd.f32 0.0, %v602
          %604 = vdwg.mxu0
          %vm605 = vcmask 130048
          %v607 = vsel %vm605, %v390, 0
          %609 = vmatprep.subr.mxu0 0.0
          %610 = vmatpush1.msra.mxu0 0.0
          %611 = vmatprep.subr.mxu0 0.0
          %612 = vmatpush1.msra.mxu0 0.0
          %613 = vmatprep.subr.mxu0 0.0
          %614 = vmatpush1.msra.mxu0 0.0
          %615 = vmatprep.subr.mxu0 0.0
          %616 = vmatpush1.msra.mxu0 0.0
          %617 = vmatprep.subr.mxu0 0.0
          %618 = vmatpush1.msra.mxu0 0.0
          %619 = vmatprep.subr.mxu0 0.0
          %620 = vmatpush1.msra.mxu0 0.0
          %621 = vmatprep.subr.mxu0 0.0
          %622 = vmatpush1.msra.mxu0 0.0
          %623 = vmatprep.subr.mxu0 0.0
          %624 = vmatpush1.msra.mxu0 0.0
          %625 = vmatprep.subr.mxu0 0.0
          %626 = vmatpush1.msra.mxu0 0.0
          %627 = vmatprep.subr.mxu0 0.0
          %628 = vmatpush1.msra.mxu0 0.0
          %629 = vmatprep.subr.mxu0 0.0
          %630 = vmatpush1.msra.mxu0 0.0
          %631 = vmatprep.subr.mxu0 0.0
          %632 = vmatpush1.msra.mxu0 0.0
          %633 = vmatprep.subr.mxu0 0.0
          %634 = vmatpush1.msra.mxu0 0.0
          %635 = vmatprep.subr.mxu0 0.0
          %636 = vmatpush1.msra.mxu0 0.0
          %637 = vmatprep.subr.mxu0 %v396
          %638 = vmatpush1.msra.mxu0 %v395
          %639 = vmatprep.subr.mxu0 %v392
          %640 = vmatpush1.msra.mxu0 %v391
          %641 = vmatprep.subr.mxu0 0.0
          %642 = vmatpush2.msra.mxu0 0.0
          %643 = vmatprep.subr.mxu0 0.0
          %644 = vmatpush2.msra.mxu0 0.0
          %645 = vmatprep.subr.mxu0 0.0
          %646 = vmatpush2.msra.mxu0 0.0
          %647 = vmatprep.subr.mxu0 0.0
          %648 = vmatpush2.msra.mxu0 0.0
          %649 = vmatprep.subr.mxu0 0.0
          %650 = vmatpush2.msra.mxu0 0.0
          %651 = vmatprep.subr.mxu0 0.0
          %652 = vmatpush2.msra.mxu0 0.0
          %653 = vmatprep.subr.mxu0 0.0
          %654 = vmatpush2.msra.mxu0 0.0
          %655 = vmatprep.subr.mxu0 0.0
          %656 = vmatpush2.msra.mxu0 0.0
          %657 = vmatprep.subr.mxu0 0.0
          %658 = vmatpush2.msra.mxu0 0.0
          %659 = vmatprep.subr.mxu0 0.0
          %660 = vmatpush2.msra.mxu0 0.0
          %661 = vmatprep.subr.mxu0 0.0
          %662 = vmatpush2.msra.mxu0 0.0
          %663 = vmatprep.subr.mxu0 0.0
          %664 = vmatpush2.msra.mxu0 0.0
          %665 = vmatprep.subr.mxu0 0.0
          %666 = vmatpush2.msra.mxu0 0.0
          %667 = vmatprep.subr.mxu0 0.0
          %668 = vmatpush2.msra.mxu0 0.0
          %669 = vmatprep.subr.mxu0 0.0
          %670 = vmatpush2.msra.mxu0 0.0
          %671 = vmatprep.subr.mxu0 0.0
          %672 = vmatpush2.msra.mxu0 0.0
          %673 = vmatprep.mubr.f32.mxu0 0.0
          %674 = vmatmul.mubr.f32.gmra.mxu0 %v607
          %v675 = vpop.f32.mrf.mxu0
          %v676 = vadd.f32 %v530, %v675
          %v677 = vpop.f32.mrf.mxu0
          %v678 = vadd.f32 %v532, %v677
          %679 = vdwg.mxu0
          %680 = vmatprep.subr.mxu0 0.0
          %681 = vmatpush1.msra.mxu0 0.0
          %682 = vmatprep.subr.mxu0 0.0
          %683 = vmatpush1.msra.mxu0 0.0
          %684 = vmatprep.subr.mxu0 0.0
          %685 = vmatpush1.msra.mxu0 0.0
          %686 = vmatprep.subr.mxu0 0.0
          %687 = vmatpush1.msra.mxu0 0.0
          %688 = vmatprep.subr.mxu0 0.0
          %689 = vmatpush1.msra.mxu0 0.0
          %690 = vmatprep.subr.mxu0 0.0
          %691 = vmatpush1.msra.mxu0 0.0
          %692 = vmatprep.subr.mxu0 0.0
          %693 = vmatpush1.msra.mxu0 0.0
          %694 = vmatprep.subr.mxu0 0.0
          %695 = vmatpush1.msra.mxu0 0.0
          %696 = vmatprep.subr.mxu0 0.0
          %697 = vmatpush1.msra.mxu0 0.0
          %698 = vmatprep.subr.mxu0 0.0
          %699 = vmatpush1.msra.mxu0 0.0
          %700 = vmatprep.subr.mxu0 0.0
          %701 = vmatpush1.msra.mxu0 0.0
          %702 = vmatprep.subr.mxu0 0.0
          %703 = vmatpush1.msra.mxu0 0.0
          %704 = vmatprep.subr.mxu0 0.0
          %705 = vmatpush1.msra.mxu0 0.0
          %706 = vmatprep.subr.mxu0 0.0
          %707 = vmatpush1.msra.mxu0 0.0
          %708 = vmatprep.subr.mxu0 %v398
          %709 = vmatpush1.msra.mxu0 %v397
          %710 = vmatprep.subr.mxu0 %v394
          %711 = vmatpush1.msra.mxu0 %v393
          %712 = vmatprep.subr.mxu0 0.0
          %713 = vmatpush2.msra.mxu0 0.0
          %714 = vmatprep.subr.mxu0 0.0
          %715 = vmatpush2.msra.mxu0 0.0
          %716 = vmatprep.subr.mxu0 0.0
          %717 = vmatpush2.msra.mxu0 0.0
          %718 = vmatprep.subr.mxu0 0.0
          %719 = vmatpush2.msra.mxu0 0.0
          %720 = vmatprep.subr.mxu0 0.0
          %721 = vmatpush2.msra.mxu0 0.0
          %722 = vmatprep.subr.mxu0 0.0
          %723 = vmatpush2.msra.mxu0 0.0
          %724 = vmatprep.subr.mxu0 0.0
          %725 = vmatpush2.msra.mxu0 0.0
          %726 = vmatprep.subr.mxu0 0.0
          %727 = vmatpush2.msra.mxu0 0.0
          %728 = vmatprep.subr.mxu0 0.0
          %729 = vmatpush2.msra.mxu0 0.0
          %730 = vmatprep.subr.mxu0 0.0
          %731 = vmatpush2.msra.mxu0 0.0
          %732 = vmatprep.subr.mxu0 0.0
          %733 = vmatpush2.msra.mxu0 0.0
          %734 = vmatprep.subr.mxu0 0.0
          %735 = vmatpush2.msra.mxu0 0.0
          %736 = vmatprep.subr.mxu0 0.0
          %737 = vmatpush2.msra.mxu0 0.0
          %738 = vmatprep.subr.mxu0 0.0
          %739 = vmatpush2.msra.mxu0 0.0
          %740 = vmatprep.subr.mxu0 0.0
          %741 = vmatpush2.msra.mxu0 0.0
          %742 = vmatprep.subr.mxu0 0.0
          %743 = vmatpush2.msra.mxu0 0.0
          %744 = vmatprep.mubr.f32.mxu0 0.0
          %745 = vmatmul.mubr.f32.gmra.mxu0 %v607
          %v746 = vpop.f32.mrf.mxu0
          %v747 = vadd.f32 %v601, %v746
          %v748 = vpop.f32.mrf.mxu0
          %v749 = vadd.f32 %v603, %v748
          %750 = vdwg.mxu0
          %v751 = vld [vmem:[#allocation10] sm:$0xff]
          %v752 = vld [vmem:[#allocation10 + $0x8] sm:$0xff]
          %v753 = vld [vmem:[#allocation10 + $0x10] sm:$0xff]
          %v754 = vld [vmem:[#allocation10 + $0x18] sm:$0xff]
          %v755 = vadd.f32 %v676, %v751
          %v756 = vadd.f32 %v678, %v752
          %v757 = vadd.f32 %v747, %v753
          %v758 = vadd.f32 %v749, %v754
          %v759 = vmul.f32 %v755, 0.5
          %v760 = vtanh.pop %v759
          %v761 = vmul.f32 %v760, 0.5
          %v762 = vadd.f32 %v761, 0.5
          %v763 = vmul.f32 %v756, 0.5
          %v764 = vtanh.pop %v763
          %v765 = vmul.f32 %v764, 0.5
          %v766 = vadd.f32 %v765, 0.5
          %v767 = vtanh.pop %v757
          %v768 = vmul.f32 %v758, 0.5
          %v769 = vtanh.pop %v768
          %v770 = vmul.f32 %v769, 0.5
          %v771 = vadd.f32 %v770, 0.5
          %v772 = vmul.f32 %v766, %v389
          %v773 = vmul.f32 %v762, %v767
          %v774 = vadd.f32 %v772, %v773
          %v775 = vtanh.pop %v774
          %v776 = vmul.f32 %v771, %v775
          %777 = vst [vmem:[%s369] sm:$0xff] %v776
          %s778 = scalar_lea.vmem %s325, 8 [#allocation4]
          %v779 = vld [vmem:[%s778] sm:$0xff]
          %v780 = vld [vmem:[#allocation7] sm:$0xff]
          %v781 = vld [vmem:[#allocation7 + $0x8] sm:$0xff]
          %v782 = vld [vmem:[#allocation7 + $0x10] sm:$0xff]
          %v783 = vld [vmem:[#allocation7 + $0x18] sm:$0xff]
          %v784 = vld [vmem:[#allocation7 + $0x20] sm:$0xff]
          %v785 = vld [vmem:[#allocation7 + $0x28] sm:$0xff]
          %v786 = vld [vmem:[#allocation7 + $0x30] sm:$0xff]
          %v787 = vld [vmem:[#allocation7 + $0x38] sm:$0xff]
          %v788 = vld [vmem:[#allocation9] sm:$0xff]
          %v789 = vld [vmem:[#allocation9 + $0x8] sm:$0xff]
          %v790 = vld [vmem:[#allocation9 + $0x10] sm:$0xff]
          %v791 = vld [vmem:[#allocation9 + $0x18] sm:$0xff]
          %v792 = vld [vmem:[#allocation9 + $0x20] sm:$0xff]
          %v793 = vld [vmem:[#allocation9 + $0x28] sm:$0xff]
          %v794 = vld [vmem:[#allocation9 + $0x30] sm:$0xff]
          %v795 = vld [vmem:[#allocation9 + $0x38] sm:$0xff]
          %v796 = vld [vmem:[#allocation9 + $0x40] sm:$0xff]
          %v797 = vld [vmem:[#allocation9 + $0x48] sm:$0xff]
          %v798 = vld [vmem:[#allocation9 + $0x50] sm:$0xff]
          %v799 = vld [vmem:[#allocation9 + $0x58] sm:$0xff]
          %v800 = vld [vmem:[#allocation9 + $0x60] sm:$0xff]
          %v801 = vld [vmem:[#allocation9 + $0x68] sm:$0xff]
          %v802 = vld [vmem:[#allocation9 + $0x70] sm:$0xff]
          %v803 = vld [vmem:[#allocation9 + $0x78] sm:$0xff]
          %v804 = vld [vmem:[#allocation9 + $0x80] sm:$0xff]
          %v805 = vld [vmem:[#allocation9 + $0x88] sm:$0xff]
          %v806 = vld [vmem:[#allocation9 + $0x90] sm:$0xff]
          %v807 = vld [vmem:[#allocation9 + $0x98] sm:$0xff]
          %v808 = vld [vmem:[#allocation9 + $0xa0] sm:$0xff]
          %v809 = vld [vmem:[#allocation9 + $0xa8] sm:$0xff]
          %v810 = vld [vmem:[#allocation9 + $0xb0] sm:$0xff]
          %v811 = vld [vmem:[#allocation9 + $0xb8] sm:$0xff]
          %v812 = vld [vmem:[#allocation9 + $0xc0] sm:$0xff]
          %v813 = vld [vmem:[#allocation9 + $0xc8] sm:$0xff]
          %v814 = vld [vmem:[#allocation9 + $0xd0] sm:$0xff]
          %v815 = vld [vmem:[#allocation9 + $0xd8] sm:$0xff]
          %v816 = vld [vmem:[#allocation9 + $0xe0] sm:$0xff]
          %v817 = vld [vmem:[#allocation9 + $0xe8] sm:$0xff]
          %v818 = vld [vmem:[#allocation9 + $0xf0] sm:$0xff]
          %v819 = vld [vmem:[#allocation9 + $0xf8] sm:$0xff]
          %v820 = vld [vmem:[#allocation9 + $0x100] sm:$0xff]
          %v821 = vld [vmem:[#allocation9 + $0x108] sm:$0xff]
          %v822 = vld [vmem:[#allocation9 + $0x110] sm:$0xff]
          %v823 = vld [vmem:[#allocation9 + $0x118] sm:$0xff]
          %v824 = vld [vmem:[#allocation9 + $0x120] sm:$0xff]
          %v825 = vld [vmem:[#allocation9 + $0x128] sm:$0xff]
          %v826 = vld [vmem:[#allocation9 + $0x130] sm:$0xff]
          %v827 = vld [vmem:[#allocation9 + $0x138] sm:$0xff]
          %v828 = vld [vmem:[#allocation9 + $0x140] sm:$0xff]
          %v829 = vld [vmem:[#allocation9 + $0x148] sm:$0xff]
          %v830 = vld [vmem:[#allocation9 + $0x150] sm:$0xff]
          %v831 = vld [vmem:[#allocation9 + $0x158] sm:$0xff]
          %v832 = vld [vmem:[#allocation9 + $0x160] sm:$0xff]
          %v833 = vld [vmem:[#allocation9 + $0x168] sm:$0xff]
          %v834 = vld [vmem:[#allocation9 + $0x170] sm:$0xff]
          %v835 = vld [vmem:[#allocation9 + $0x178] sm:$0xff]
          %v836 = vld [vmem:[#allocation9 + $0x180] sm:$0xff]
          %v837 = vld [vmem:[#allocation9 + $0x188] sm:$0xff]
          %v838 = vld [vmem:[#allocation9 + $0x190] sm:$0xff]
          %v839 = vld [vmem:[#allocation9 + $0x198] sm:$0xff]
          %v840 = vld [vmem:[#allocation9 + $0x1a0] sm:$0xff]
          %v841 = vld [vmem:[#allocation9 + $0x1a8] sm:$0xff]
          %v842 = vld [vmem:[#allocation9 + $0x1b0] sm:$0xff]
          %v843 = vld [vmem:[#allocation9 + $0x1b8] sm:$0xff]
          %v844 = vld [vmem:[#allocation9 + $0x1c0] sm:$0xff]
          %v845 = vld [vmem:[#allocation9 + $0x1c8] sm:$0xff]
          %v846 = vld [vmem:[#allocation9 + $0x1d0] sm:$0xff]
          %v847 = vld [vmem:[#allocation9 + $0x1d8] sm:$0xff]
          %v848 = vld [vmem:[#allocation9 + $0x1e0] sm:$0xff]
          %v849 = vld [vmem:[#allocation9 + $0x1e8] sm:$0xff]
          %v850 = vld [vmem:[#allocation9 + $0x1f0] sm:$0xff]
          %v851 = vld [vmem:[#allocation9 + $0x1f8] sm:$0xff]
          %852 = vmatprep.subr.mxu0 %v849
          %853 = vmatpush1.msra.mxu0 %v848
          %854 = vmatprep.subr.mxu0 %v845
          %855 = vmatpush1.msra.mxu0 %v844
          %856 = vmatprep.subr.mxu0 %v841
          %857 = vmatpush1.msra.mxu0 %v840
          %858 = vmatprep.subr.mxu0 %v837
          %859 = vmatpush1.msra.mxu0 %v836
          %860 = vmatprep.subr.mxu0 %v833
          %861 = vmatpush1.msra.mxu0 %v832
          %862 = vmatprep.subr.mxu0 %v829
          %863 = vmatpush1.msra.mxu0 %v828
          %864 = vmatprep.subr.mxu0 %v825
          %865 = vmatpush1.msra.mxu0 %v824
          %866 = vmatprep.subr.mxu0 %v821
          %867 = vmatpush1.msra.mxu0 %v820
          %868 = vmatprep.subr.mxu0 %v817
          %869 = vmatpush1.msra.mxu0 %v816
          %870 = vmatprep.subr.mxu0 %v813
          %871 = vmatpush1.msra.mxu0 %v812
          %872 = vmatprep.subr.mxu0 %v809
          %873 = vmatpush1.msra.mxu0 %v808
          %874 = vmatprep.subr.mxu0 %v805
          %875 = vmatpush1.msra.mxu0 %v804
          %876 = vmatprep.subr.mxu0 %v801
          %877 = vmatpush1.msra.mxu0 %v800
          %878 = vmatprep.subr.mxu0 %v797
          %879 = vmatpush1.msra.mxu0 %v796
          %880 = vmatprep.subr.mxu0 %v793
          %881 = vmatpush1.msra.mxu0 %v792
          %882 = vmatprep.subr.mxu0 %v789
          %883 = vmatpush1.msra.mxu0 %v788
          %884 = vmatprep.subr.mxu0 0.0
          %885 = vmatpush2.msra.mxu0 0.0
          %886 = vmatprep.subr.mxu0 0.0
          %887 = vmatpush2.msra.mxu0 0.0
          %888 = vmatprep.subr.mxu0 0.0
          %889 = vmatpush2.msra.mxu0 0.0
          %890 = vmatprep.subr.mxu0 0.0
          %891 = vmatpush2.msra.mxu0 0.0
          %892 = vmatprep.subr.mxu0 0.0
          %893 = vmatpush2.msra.mxu0 0.0
          %894 = vmatprep.subr.mxu0 0.0
          %895 = vmatpush2.msra.mxu0 0.0
          %896 = vmatprep.subr.mxu0 0.0
          %897 = vmatpush2.msra.mxu0 0.0
          %898 = vmatprep.subr.mxu0 0.0
          %899 = vmatpush2.msra.mxu0 0.0
          %900 = vmatprep.subr.mxu0 0.0
          %901 = vmatpush2.msra.mxu0 0.0
          %902 = vmatprep.subr.mxu0 0.0
          %903 = vmatpush2.msra.mxu0 0.0
          %904 = vmatprep.subr.mxu0 0.0
          %905 = vmatpush2.msra.mxu0 0.0
          %906 = vmatprep.subr.mxu0 0.0
          %907 = vmatpush2.msra.mxu0 0.0
          %908 = vmatprep.subr.mxu0 0.0
          %909 = vmatpush2.msra.mxu0 0.0
          %910 = vmatprep.subr.mxu0 0.0
          %911 = vmatpush2.msra.mxu0 0.0
          %912 = vmatprep.subr.mxu0 0.0
          %913 = vmatpush2.msra.mxu0 0.0
          %914 = vmatprep.subr.mxu0 0.0
          %915 = vmatpush2.msra.mxu0 0.0
          %916 = vmatprep.mubr.f32.mxu0 0.0
          %917 = vmatmul.mubr.f32.gmra.mxu0 %v776
          %v918 = vpop.f32.mrf.mxu0
          %v919 = vadd.f32 0.0, %v918
          %v920 = vpop.f32.mrf.mxu0
          %v921 = vadd.f32 0.0, %v920
          %922 = vdwg.mxu0
          %923 = vmatprep.subr.mxu0 %v851
          %924 = vmatpush1.msra.mxu0 %v850
          %925 = vmatprep.subr.mxu0 %v847
          %926 = vmatpush1.msra.mxu0 %v846
          %927 = vmatprep.subr.mxu0 %v843
          %928 = vmatpush1.msra.mxu0 %v842
          %929 = vmatprep.subr.mxu0 %v839
          %930 = vmatpush1.msra.mxu0 %v838
          %931 = vmatprep.subr.mxu0 %v835
          %932 = vmatpush1.msra.mxu0 %v834
          %933 = vmatprep.subr.mxu0 %v831
          %934 = vmatpush1.msra.mxu0 %v830
          %935 = vmatprep.subr.mxu0 %v827
          %936 = vmatpush1.msra.mxu0 %v826
          %937 = vmatprep.subr.mxu0 %v823
          %938 = vmatpush1.msra.mxu0 %v822
          %939 = vmatprep.subr.mxu0 %v819
          %940 = vmatpush1.msra.mxu0 %v818
          %941 = vmatprep.subr.mxu0 %v815
          %942 = vmatpush1.msra.mxu0 %v814
          %943 = vmatprep.subr.mxu0 %v811
          %944 = vmatpush1.msra.mxu0 %v810
          %945 = vmatprep.subr.mxu0 %v807
          %946 = vmatpush1.msra.mxu0 %v806
          %947 = vmatprep.subr.mxu0 %v803
          %948 = vmatpush1.msra.mxu0 %v802
          %949 = vmatprep.subr.mxu0 %v799
          %950 = vmatpush1.msra.mxu0 %v798
          %951 = vmatprep.subr.mxu0 %v795
          %952 = vmatpush1.msra.mxu0 %v794
          %953 = vmatprep.subr.mxu0 %v791
          %954 = vmatpush1.msra.mxu0 %v790
          %955 = vmatprep.subr.mxu0 0.0
          %956 = vmatpush2.msra.mxu0 0.0
          %957 = vmatprep.subr.mxu0 0.0
          %958 = vmatpush2.msra.mxu0 0.0
          %959 = vmatprep.subr.mxu0 0.0
          %960 = vmatpush2.msra.mxu0 0.0
          %961 = vmatprep.subr.mxu0 0.0
          %962 = vmatpush2.msra.mxu0 0.0
          %963 = vmatprep.subr.mxu0 0.0
          %964 = vmatpush2.msra.mxu0 0.0
          %965 = vmatprep.subr.mxu0 0.0
          %966 = vmatpush2.msra.mxu0 0.0
          %967 = vmatprep.subr.mxu0 0.0
          %968 = vmatpush2.msra.mxu0 0.0
          %969 = vmatprep.subr.mxu0 0.0
          %970 = vmatpush2.msra.mxu0 0.0
          %971 = vmatprep.subr.mxu0 0.0
          %972 = vmatpush2.msra.mxu0 0.0
          %973 = vmatprep.subr.mxu0 0.0
          %974 = vmatpush2.msra.mxu0 0.0
          %975 = vmatprep.subr.mxu0 0.0
          %976 = vmatpush2.msra.mxu0 0.0
          %977 = vmatprep.subr.mxu0 0.0
          %978 = vmatpush2.msra.mxu0 0.0
          %979 = vmatprep.subr.mxu0 0.0
          %980 = vmatpush2.msra.mxu0 0.0
          %981 = vmatprep.subr.mxu0 0.0
          %982 = vmatpush2.msra.mxu0 0.0
          %983 = vmatprep.subr.mxu0 0.0
          %984 = vmatpush2.msra.mxu0 0.0
          %985 = vmatprep.subr.mxu0 0.0
          %986 = vmatpush2.msra.mxu0 0.0
          %987 = vmatprep.mubr.f32.mxu0 0.0
          %988 = vmatmul.mubr.f32.gmra.mxu0 %v776
          %v989 = vpop.f32.mrf.mxu0
          %v990 = vadd.f32 0.0, %v989
          %v991 = vpop.f32.mrf.mxu0
          %v992 = vadd.f32 0.0, %v991
          %993 = vdwg.mxu0
          %v995 = vsel %vm605, %v779, 0
          %997 = vmatprep.subr.mxu0 0.0
          %998 = vmatpush1.msra.mxu0 0.0
          %999 = vmatprep.subr.mxu0 0.0
          %1000 = vmatpush1.msra.mxu0 0.0
          %1001 = vmatprep.subr.mxu0 0.0
          %1002 = vmatpush1.msra.mxu0 0.0
          %1003 = vmatprep.subr.mxu0 0.0
          %1004 = vmatpush1.msra.mxu0 0.0
          %1005 = vmatprep.subr.mxu0 0.0
          %1006 = vmatpush1.msra.mxu0 0.0
          %1007 = vmatprep.subr.mxu0 0.0
          %1008 = vmatpush1.msra.mxu0 0.0
          %1009 = vmatprep.subr.mxu0 0.0
          %1010 = vmatpush1.msra.mxu0 0.0
          %1011 = vmatprep.subr.mxu0 0.0
          %1012 = vmatpush1.msra.mxu0 0.0
          %1013 = vmatprep.subr.mxu0 0.0
          %1014 = vmatpush1.msra.mxu0 0.0
          %1015 = vmatprep.subr.mxu0 0.0
          %1016 = vmatpush1.msra.mxu0 0.0
          %1017 = vmatprep.subr.mxu0 0.0
          %1018 = vmatpush1.msra.mxu0 0.0
          %1019 = vmatprep.subr.mxu0 0.0
          %1020 = vmatpush1.msra.mxu0 0.0
          %1021 = vmatprep.subr.mxu0 0.0
          %1022 = vmatpush1.msra.mxu0 0.0
          %1023 = vmatprep.subr.mxu0 0.0
          %1024 = vmatpush1.msra.mxu0 0.0
          %1025 = vmatprep.subr.mxu0 %v785
          %1026 = vmatpush1.msra.mxu0 %v784
          %1027 = vmatprep.subr.mxu0 %v781
          %1028 = vmatpush1.msra.mxu0 %v780
          %1029 = vmatprep.subr.mxu0 0.0
          %1030 = vmatpush2.msra.mxu0 0.0
          %1031 = vmatprep.subr.mxu0 0.0
          %1032 = vmatpush2.msra.mxu0 0.0
          %1033 = vmatprep.subr.mxu0 0.0
          %1034 = vmatpush2.msra.mxu0 0.0
          %1035 = vmatprep.subr.mxu0 0.0
          %1036 = vmatpush2.msra.mxu0 0.0
          %1037 = vmatprep.subr.mxu0 0.0
          %1038 = vmatpush2.msra.mxu0 0.0
          %1039 = vmatprep.subr.mxu0 0.0
          %1040 = vmatpush2.msra.mxu0 0.0
          %1041 = vmatprep.subr.mxu0 0.0
          %1042 = vmatpush2.msra.mxu0 0.0
          %1043 = vmatprep.subr.mxu0 0.0
          %1044 = vmatpush2.msra.mxu0 0.0
          %1045 = vmatprep.subr.mxu0 0.0
          %1046 = vmatpush2.msra.mxu0 0.0
          %1047 = vmatprep.subr.mxu0 0.0
          %1048 = vmatpush2.msra.mxu0 0.0
          %1049 = vmatprep.subr.mxu0 0.0
          %1050 = vmatpush2.msra.mxu0 0.0
          %1051 = vmatprep.subr.mxu0 0.0
          %1052 = vmatpush2.msra.mxu0 0.0
          %1053 = vmatprep.subr.mxu0 0.0
          %1054 = vmatpush2.msra.mxu0 0.0
          %1055 = vmatprep.subr.mxu0 0.0
          %1056 = vmatpush2.msra.mxu0 0.0
          %1057 = vmatprep.subr.mxu0 0.0
          %1058 = vmatpush2.msra.mxu0 0.0
          %1059 = vmatprep.subr.mxu0 0.0
          %1060 = vmatpush2.msra.mxu0 0.0
          %1061 = vmatprep.mubr.f32.mxu0 0.0
          %1062 = vmatmul.mubr.f32.gmra.mxu0 %v995
          %v1063 = vpop.f32.mrf.mxu0
          %v1064 = vadd.f32 %v919, %v1063
          %v1065 = vpop.f32.mrf.mxu0
          %v1066 = vadd.f32 %v921, %v1065
          %1067 = vdwg.mxu0
          %1068 = vmatprep.subr.mxu0 0.0
          %1069 = vmatpush1.msra.mxu0 0.0
          %1070 = vmatprep.subr.mxu0 0.0
          %1071 = vmatpush1.msra.mxu0 0.0
          %1072 = vmatprep.subr.mxu0 0.0
          %1073 = vmatpush1.msra.mxu0 0.0
          %1074 = vmatprep.subr.mxu0 0.0
          %1075 = vmatpush1.msra.mxu0 0.0
          %1076 = vmatprep.subr.mxu0 0.0
          %1077 = vmatpush1.msra.mxu0 0.0
          %1078 = vmatprep.subr.mxu0 0.0
          %1079 = vmatpush1.msra.mxu0 0.0
          %1080 = vmatprep.subr.mxu0 0.0
          %1081 = vmatpush1.msra.mxu0 0.0
          %1082 = vmatprep.subr.mxu0 0.0
          %1083 = vmatpush1.msra.mxu0 0.0
          %1084 = vmatprep.subr.mxu0 0.0
          %1085 = vmatpush1.msra.mxu0 0.0
          %1086 = vmatprep.subr.mxu0 0.0
          %1087 = vmatpush1.msra.mxu0 0.0
          %1088 = vmatprep.subr.mxu0 0.0
          %1089 = vmatpush1.msra.mxu0 0.0
          %1090 = vmatprep.subr.mxu0 0.0
          %1091 = vmatpush1.msra.mxu0 0.0
          %1092 = vmatprep.subr.mxu0 0.0
          %1093 = vmatpush1.msra.mxu0 0.0
          %1094 = vmatprep.subr.mxu0 0.0
          %1095 = vmatpush1.msra.mxu0 0.0
          %1096 = vmatprep.subr.mxu0 %v787
          %1097 = vmatpush1.msra.mxu0 %v786
          %1098 = vmatprep.subr.mxu0 %v783
          %1099 = vmatpush1.msra.mxu0 %v782
          %1100 = vmatprep.subr.mxu0 0.0
          %1101 = vmatpush2.msra.mxu0 0.0
          %1102 = vmatprep.subr.mxu0 0.0
          %1103 = vmatpush2.msra.mxu0 0.0
          %1104 = vmatprep.subr.mxu0 0.0
          %1105 = vmatpush2.msra.mxu0 0.0
          %1106 = vmatprep.subr.mxu0 0.0
          %1107 = vmatpush2.msra.mxu0 0.0
          %1108 = vmatprep.subr.mxu0 0.0
          %1109 = vmatpush2.msra.mxu0 0.0
          %1110 = vmatprep.subr.mxu0 0.0
          %1111 = vmatpush2.msra.mxu0 0.0
          %1112 = vmatprep.subr.mxu0 0.0
          %1113 = vmatpush2.msra.mxu0 0.0
          %1114 = vmatprep.subr.mxu0 0.0
          %1115 = vmatpush2.msra.mxu0 0.0
          %1116 = vmatprep.subr.mxu0 0.0
          %1117 = vmatpush2.msra.mxu0 0.0
          %1118 = vmatprep.subr.mxu0 0.0
          %1119 = vmatpush2.msra.mxu0 0.0
          %1120 = vmatprep.subr.mxu0 0.0
          %1121 = vmatpush2.msra.mxu0 0.0
          %1122 = vmatprep.subr.mxu0 0.0
          %1123 = vmatpush2.msra.mxu0 0.0
          %1124 = vmatprep.subr.mxu0 0.0
          %1125 = vmatpush2.msra.mxu0 0.0
          %1126 = vmatprep.subr.mxu0 0.0
          %1127 = vmatpush2.msra.mxu0 0.0
          %1128 = vmatprep.subr.mxu0 0.0
          %1129 = vmatpush2.msra.mxu0 0.0
          %1130 = vmatprep.subr.mxu0 0.0
          %1131 = vmatpush2.msra.mxu0 0.0
          %1132 = vmatprep.mubr.f32.mxu0 0.0
          %1133 = vmatmul.mubr.f32.gmra.mxu0 %v995
          %v1134 = vpop.f32.mrf.mxu0
          %v1135 = vadd.f32 %v990, %v1134
          %v1136 = vpop.f32.mrf.mxu0
          %v1137 = vadd.f32 %v992, %v1136
          %1138 = vdwg.mxu0
          %v1139 = vld [vmem:[#allocation10] sm:$0xff]
          %v1140 = vld [vmem:[#allocation10 + $0x8] sm:$0xff]
          %v1141 = vld [vmem:[#allocation10 + $0x10] sm:$0xff]
          %v1142 = vld [vmem:[#allocation10 + $0x18] sm:$0xff]
          %v1143 = vadd.f32 %v1064, %v1139
          %v1144 = vadd.f32 %v1066, %v1140
          %v1145 = vadd.f32 %v1135, %v1141
          %v1146 = vadd.f32 %v1137, %v1142
          %v1147 = vmul.f32 %v1143, 0.5
          %v1148 = vtanh.pop %v1147
          %v1149 = vmul.f32 %v1148, 0.5
          %v1150 = vadd.f32 %v1149, 0.5
          %v1151 = vmul.f32 %v1144, 0.5
          %v1152 = vtanh.pop %v1151
          %v1153 = vmul.f32 %v1152, 0.5
          %v1154 = vadd.f32 %v1153, 0.5
          %v1155 = vtanh.pop %v1145
          %v1156 = vmul.f32 %v1146, 0.5
          %v1157 = vtanh.pop %v1156
          %v1158 = vmul.f32 %v1157, 0.5
          %v1159 = vadd.f32 %v1158, 0.5
          %v1160 = vmul.f32 %v1154, %v774
          %v1161 = vmul.f32 %v1150, %v1155
          %v1162 = vadd.f32 %v1160, %v1161
          %v1163 = vtanh.pop %v1162
          %v1164 = vmul.f32 %v1159, %v1163
          %s1165 = scalar_lea.vmem %s369, 8 [#allocation13]
          %1166 = vst [vmem:[%s1165] sm:$0xff] %v1164
          %s1167 = scalar_lea.vmem %s325, 16 [#allocation4]
          %v1168 = vld [vmem:[%s1167] sm:$0xff]
          %v1169 = vld [vmem:[#allocation7] sm:$0xff]
          %v1170 = vld [vmem:[#allocation7 + $0x8] sm:$0xff]
          %v1171 = vld [vmem:[#allocation7 + $0x10] sm:$0xff]
          %v1172 = vld [vmem:[#allocation7 + $0x18] sm:$0xff]
          %v1173 = vld [vmem:[#allocation7 + $0x20] sm:$0xff]
          %v1174 = vld [vmem:[#allocation7 + $0x28] sm:$0xff]
          %v1175 = vld [vmem:[#allocation7 + $0x30] sm:$0xff]
          %v1176 = vld [vmem:[#allocation7 + $0x38] sm:$0xff]
          %v1177 = vld [vmem:[#allocation9] sm:$0xff]
          %v1178 = vld [vmem:[#allocation9 + $0x8] sm:$0xff]
          %v1179 = vld [vmem:[#allocation9 + $0x10] sm:$0xff]
          %v1180 = vld [vmem:[#allocation9 + $0x18] sm:$0xff]
          %v1181 = vld [vmem:[#allocation9 + $0x20] sm:$0xff]
          %v1182 = vld [vmem:[#allocation9 + $0x28] sm:$0xff]
          %v1183 = vld [vmem:[#allocation9 + $0x30] sm:$0xff]
          %v1184 = vld [vmem:[#allocation9 + $0x38] sm:$0xff]
          %v1185 = vld [vmem:[#allocation9 + $0x40] sm:$0xff]
          %v1186 = vld [vmem:[#allocation9 + $0x48] sm:$0xff]
          %v1187 = vld [vmem:[#allocation9 + $0x50] sm:$0xff]
          %v1188 = vld [vmem:[#allocation9 + $0x58] sm:$0xff]
          %v1189 = vld [vmem:[#allocation9 + $0x60] sm:$0xff]
          %v1190 = vld [vmem:[#allocation9 + $0x68] sm:$0xff]
          %v1191 = vld [vmem:[#allocation9 + $0x70] sm:$0xff]
          %v1192 = vld [vmem:[#allocation9 + $0x78] sm:$0xff]
          %v1193 = vld [vmem:[#allocation9 + $0x80] sm:$0xff]
          %v1194 = vld [vmem:[#allocation9 + $0x88] sm:$0xff]
          %v1195 = vld [vmem:[#allocation9 + $0x90] sm:$0xff]
          %v1196 = vld [vmem:[#allocation9 + $0x98] sm:$0xff]
          %v1197 = vld [vmem:[#allocation9 + $0xa0] sm:$0xff]
          %v1198 = vld [vmem:[#allocation9 + $0xa8] sm:$0xff]
          %v1199 = vld [vmem:[#allocation9 + $0xb0] sm:$0xff]
          %v1200 = vld [vmem:[#allocation9 + $0xb8] sm:$0xff]
          %v1201 = vld [vmem:[#allocation9 + $0xc0] sm:$0xff]
          %v1202 = vld [vmem:[#allocation9 + $0xc8] sm:$0xff]
          %v1203 = vld [vmem:[#allocation9 + $0xd0] sm:$0xff]
          %v1204 = vld [vmem:[#allocation9 + $0xd8] sm:$0xff]
          %v1205 = vld [vmem:[#allocation9 + $0xe0] sm:$0xff]
          %v1206 = vld [vmem:[#allocation9 + $0xe8] sm:$0xff]
          %v1207 = vld [vmem:[#allocation9 + $0xf0] sm:$0xff]
          %v1208 = vld [vmem:[#allocation9 + $0xf8] sm:$0xff]
          %v1209 = vld [vmem:[#allocation9 + $0x100] sm:$0xff]
          %v1210 = vld [vmem:[#allocation9 + $0x108] sm:$0xff]
          %v1211 = vld [vmem:[#allocation9 + $0x110] sm:$0xff]
          %v1212 = vld [vmem:[#allocation9 + $0x118] sm:$0xff]
          %v1213 = vld [vmem:[#allocation9 + $0x120] sm:$0xff]
          %v1214 = vld [vmem:[#allocation9 + $0x128] sm:$0xff]
          %v1215 = vld [vmem:[#allocation9 + $0x130] sm:$0xff]
          %v1216 = vld [vmem:[#allocation9 + $0x138] sm:$0xff]
          %v1217 = vld [vmem:[#allocation9 + $0x140] sm:$0xff]
          %v1218 = vld [vmem:[#allocation9 + $0x148] sm:$0xff]
          %v1219 = vld [vmem:[#allocation9 + $0x150] sm:$0xff]
          %v1220 = vld [vmem:[#allocation9 + $0x158] sm:$0xff]
          %v1221 = vld [vmem:[#allocation9 + $0x160] sm:$0xff]
          %v1222 = vld [vmem:[#allocation9 + $0x168] sm:$0xff]
          %v1223 = vld [vmem:[#allocation9 + $0x170] sm:$0xff]
          %v1224 = vld [vmem:[#allocation9 + $0x178] sm:$0xff]
          %v1225 = vld [vmem:[#allocation9 + $0x180] sm:$0xff]
          %v1226 = vld [vmem:[#allocation9 + $0x188] sm:$0xff]
          %v1227 = vld [vmem:[#allocation9 + $0x190] sm:$0xff]
          %v1228 = vld [vmem:[#allocation9 + $0x198] sm:$0xff]
          %v1229 = vld [vmem:[#allocation9 + $0x1a0] sm:$0xff]
          %v1230 = vld [vmem:[#allocation9 + $0x1a8] sm:$0xff]
          %v1231 = vld [vmem:[#allocation9 + $0x1b0] sm:$0xff]
          %v1232 = vld [vmem:[#allocation9 + $0x1b8] sm:$0xff]
          %v1233 = vld [vmem:[#allocation9 + $0x1c0] sm:$0xff]
          %v1234 = vld [vmem:[#allocation9 + $0x1c8] sm:$0xff]
          %v1235 = vld [vmem:[#allocation9 + $0x1d0] sm:$0xff]
          %v1236 = vld [vmem:[#allocation9 + $0x1d8] sm:$0xff]
          %v1237 = vld [vmem:[#allocation9 + $0x1e0] sm:$0xff]
          %v1238 = vld [vmem:[#allocation9 + $0x1e8] sm:$0xff]
          %v1239 = vld [vmem:[#allocation9 + $0x1f0] sm:$0xff]
          %v1240 = vld [vmem:[#allocation9 + $0x1f8] sm:$0xff]
          %1241 = vmatprep.subr.mxu0 %v1238
          %1242 = vmatpush1.msra.mxu0 %v1237
          %1243 = vmatprep.subr.mxu0 %v1234
          %1244 = vmatpush1.msra.mxu0 %v1233
          %1245 = vmatprep.subr.mxu0 %v1230
          %1246 = vmatpush1.msra.mxu0 %v1229
          %1247 = vmatprep.subr.mxu0 %v1226
          %1248 = vmatpush1.msra.mxu0 %v1225
          %1249 = vmatprep.subr.mxu0 %v1222
          %1250 = vmatpush1.msra.mxu0 %v1221
          %1251 = vmatprep.subr.mxu0 %v1218
          %1252 = vmatpush1.msra.mxu0 %v1217
          %1253 = vmatprep.subr.mxu0 %v1214
          %1254 = vmatpush1.msra.mxu0 %v1213
          %1255 = vmatprep.subr.mxu0 %v1210
          %1256 = vmatpush1.msra.mxu0 %v1209
          %1257 = vmatprep.subr.mxu0 %v1206
          %1258 = vmatpush1.msra.mxu0 %v1205
          %1259 = vmatprep.subr.mxu0 %v1202
          %1260 = vmatpush1.msra.mxu0 %v1201
          %1261 = vmatprep.subr.mxu0 %v1198
          %1262 = vmatpush1.msra.mxu0 %v1197
          %1263 = vmatprep.subr.mxu0 %v1194
          %1264 = vmatpush1.msra.mxu0 %v1193
          %1265 = vmatprep.subr.mxu0 %v1190
          %1266 = vmatpush1.msra.mxu0 %v1189
          %1267 = vmatprep.subr.mxu0 %v1186
          %1268 = vmatpush1.msra.mxu0 %v1185
          %1269 = vmatprep.subr.mxu0 %v1182
          %1270 = vmatpush1.msra.mxu0 %v1181
          %1271 = vmatprep.subr.mxu0 %v1178
          %1272 = vmatpush1.msra.mxu0 %v1177
          %1273 = vmatprep.subr.mxu0 0.0
          %1274 = vmatpush2.msra.mxu0 0.0
          %1275 = vmatprep.subr.mxu0 0.0
          %1276 = vmatpush2.msra.mxu0 0.0
          %1277 = vmatprep.subr.mxu0 0.0
          %1278 = vmatpush2.msra.mxu0 0.0
          %1279 = vmatprep.subr.mxu0 0.0
          %1280 = vmatpush2.msra.mxu0 0.0
          %1281 = vmatprep.subr.mxu0 0.0
          %1282 = vmatpush2.msra.mxu0 0.0
          %1283 = vmatprep.subr.mxu0 0.0
          %1284 = vmatpush2.msra.mxu0 0.0
          %1285 = vmatprep.subr.mxu0 0.0
          %1286 = vmatpush2.msra.mxu0 0.0
          %1287 = vmatprep.subr.mxu0 0.0
          %1288 = vmatpush2.msra.mxu0 0.0
          %1289 = vmatprep.subr.mxu0 0.0
          %1290 = vmatpush2.msra.mxu0 0.0
          %1291 = vmatprep.subr.mxu0 0.0
          %1292 = vmatpush2.msra.mxu0 0.0
          %1293 = vmatprep.subr.mxu0 0.0
          %1294 = vmatpush2.msra.mxu0 0.0
          %1295 = vmatprep.subr.mxu0 0.0
          %1296 = vmatpush2.msra.mxu0 0.0
          %1297 = vmatprep.subr.mxu0 0.0
          %1298 = vmatpush2.msra.mxu0 0.0
          %1299 = vmatprep.subr.mxu0 0.0
          %1300 = vmatpush2.msra.mxu0 0.0
          %1301 = vmatprep.subr.mxu0 0.0
          %1302 = vmatpush2.msra.mxu0 0.0
          %1303 = vmatprep.subr.mxu0 0.0
          %1304 = vmatpush2.msra.mxu0 0.0
          %1305 = vmatprep.mubr.f32.mxu0 0.0
          %1306 = vmatmul.mubr.f32.gmra.mxu0 %v1164
          %v1307 = vpop.f32.mrf.mxu0
          %v1308 = vadd.f32 0.0, %v1307
          %v1309 = vpop.f32.mrf.mxu0
          %v1310 = vadd.f32 0.0, %v1309
          %1311 = vdwg.mxu0
          %1312 = vmatprep.subr.mxu0 %v1240
          %1313 = vmatpush1.msra.mxu0 %v1239
          %1314 = vmatprep.subr.mxu0 %v1236
          %1315 = vmatpush1.msra.mxu0 %v1235
          %1316 = vmatprep.subr.mxu0 %v1232
          %1317 = vmatpush1.msra.mxu0 %v1231
          %1318 = vmatprep.subr.mxu0 %v1228
          %1319 = vmatpush1.msra.mxu0 %v1227
          %1320 = vmatprep.subr.mxu0 %v1224
          %1321 = vmatpush1.msra.mxu0 %v1223
          %1322 = vmatprep.subr.mxu0 %v1220
          %1323 = vmatpush1.msra.mxu0 %v1219
          %1324 = vmatprep.subr.mxu0 %v1216
          %1325 = vmatpush1.msra.mxu0 %v1215
          %1326 = vmatprep.subr.mxu0 %v1212
          %1327 = vmatpush1.msra.mxu0 %v1211
          %1328 = vmatprep.subr.mxu0 %v1208
          %1329 = vmatpush1.msra.mxu0 %v1207
          %1330 = vmatprep.subr.mxu0 %v1204
          %1331 = vmatpush1.msra.mxu0 %v1203
          %1332 = vmatprep.subr.mxu0 %v1200
          %1333 = vmatpush1.msra.mxu0 %v1199
          %1334 = vmatprep.subr.mxu0 %v1196
          %1335 = vmatpush1.msra.mxu0 %v1195
          %1336 = vmatprep.subr.mxu0 %v1192
          %1337 = vmatpush1.msra.mxu0 %v1191
          %1338 = vmatprep.subr.mxu0 %v1188
          %1339 = vmatpush1.msra.mxu0 %v1187
          %1340 = vmatprep.subr.mxu0 %v1184
          %1341 = vmatpush1.msra.mxu0 %v1183
          %1342 = vmatprep.subr.mxu0 %v1180
          %1343 = vmatpush1.msra.mxu0 %v1179
          %1344 = vmatprep.subr.mxu0 0.0
          %1345 = vmatpush2.msra.mxu0 0.0
          %1346 = vmatprep.subr.mxu0 0.0
          %1347 = vmatpush2.msra.mxu0 0.0
          %1348 = vmatprep.subr.mxu0 0.0
          %1349 = vmatpush2.msra.mxu0 0.0
          %1350 = vmatprep.subr.mxu0 0.0
          %1351 = vmatpush2.msra.mxu0 0.0
          %1352 = vmatprep.subr.mxu0 0.0
          %1353 = vmatpush2.msra.mxu0 0.0
          %1354 = vmatprep.subr.mxu0 0.0
          %1355 = vmatpush2.msra.mxu0 0.0
          %1356 = vmatprep.subr.mxu0 0.0
          %1357 = vmatpush2.msra.mxu0 0.0
          %1358 = vmatprep.subr.mxu0 0.0
          %1359 = vmatpush2.msra.mxu0 0.0
          %1360 = vmatprep.subr.mxu0 0.0
          %1361 = vmatpush2.msra.mxu0 0.0
          %1362 = vmatprep.subr.mxu0 0.0
          %1363 = vmatpush2.msra.mxu0 0.0
          %1364 = vmatprep.subr.mxu0 0.0
          %1365 = vmatpush2.msra.mxu0 0.0
          %1366 = vmatprep.subr.mxu0 0.0
          %1367 = vmatpush2.msra.mxu0 0.0
          %1368 = vmatprep.subr.mxu0 0.0
          %1369 = vmatpush2.msra.mxu0 0.0
          %1370 = vmatprep.subr.mxu0 0.0
          %1371 = vmatpush2.msra.mxu0 0.0
          %1372 = vmatprep.subr.mxu0 0.0
          %1373 = vmatpush2.msra.mxu0 0.0
          %1374 = vmatprep.subr.mxu0 0.0
          %1375 = vmatpush2.msra.mxu0 0.0
          %1376 = vmatprep.mubr.f32.mxu0 0.0
          %1377 = vmatmul.mubr.f32.gmra.mxu0 %v1164
          %v1378 = vpop.f32.mrf.mxu0
          %v1379 = vadd.f32 0.0, %v1378
          %v1380 = vpop.f32.mrf.mxu0
          %v1381 = vadd.f32 0.0, %v1380
          %1382 = vdwg.mxu0
          %v1384 = vsel %vm605, %v1168, 0
          %1386 = vmatprep.subr.mxu0 0.0
          %1387 = vmatpush1.msra.mxu0 0.0
          %1388 = vmatprep.subr.mxu0 0.0
          %1389 = vmatpush1.msra.mxu0 0.0
          %1390 = vmatprep.subr.mxu0 0.0
          %1391 = vmatpush1.msra.mxu0 0.0
          %1392 = vmatprep.subr.mxu0 0.0
          %1393 = vmatpush1.msra.mxu0 0.0
          %1394 = vmatprep.subr.mxu0 0.0
          %1395 = vmatpush1.msra.mxu0 0.0
          %1396 = vmatprep.subr.mxu0 0.0
          %1397 = vmatpush1.msra.mxu0 0.0
          %1398 = vmatprep.subr.mxu0 0.0
          %1399 = vmatpush1.msra.mxu0 0.0
          %1400 = vmatprep.subr.mxu0 0.0
          %1401 = vmatpush1.msra.mxu0 0.0
          %1402 = vmatprep.subr.mxu0 0.0
          %1403 = vmatpush1.msra.mxu0 0.0
          %1404 = vmatprep.subr.mxu0 0.0
          %1405 = vmatpush1.msra.mxu0 0.0
          %1406 = vmatprep.subr.mxu0 0.0
          %1407 = vmatpush1.msra.mxu0 0.0
          %1408 = vmatprep.subr.mxu0 0.0
          %1409 = vmatpush1.msra.mxu0 0.0
          %1410 = vmatprep.subr.mxu0 0.0
          %1411 = vmatpush1.msra.mxu0 0.0
          %1412 = vmatprep.subr.mxu0 0.0
          %1413 = vmatpush1.msra.mxu0 0.0
          %1414 = vmatprep.subr.mxu0 %v1174
          %1415 = vmatpush1.msra.mxu0 %v1173
          %1416 = vmatprep.subr.mxu0 %v1170
          %1417 = vmatpush1.msra.mxu0 %v1169
          %1418 = vmatprep.subr.mxu0 0.0
          %1419 = vmatpush2.msra.mxu0 0.0
          %1420 = vmatprep.subr.mxu0 0.0
          %1421 = vmatpush2.msra.mxu0 0.0
          %1422 = vmatprep.subr.mxu0 0.0
          %1423 = vmatpush2.msra.mxu0 0.0
          %1424 = vmatprep.subr.mxu0 0.0
          %1425 = vmatpush2.msra.mxu0 0.0
          %1426 = vmatprep.subr.mxu0 0.0
          %1427 = vmatpush2.msra.mxu0 0.0
          %1428 = vmatprep.subr.mxu0 0.0
          %1429 = vmatpush2.msra.mxu0 0.0
          %1430 = vmatprep.subr.mxu0 0.0
          %1431 = vmatpush2.msra.mxu0 0.0
          %1432 = vmatprep.subr.mxu0 0.0
          %1433 = vmatpush2.msra.mxu0 0.0
          %1434 = vmatprep.subr.mxu0 0.0
          %1435 = vmatpush2.msra.mxu0 0.0
          %1436 = vmatprep.subr.mxu0 0.0
          %1437 = vmatpush2.msra.mxu0 0.0
          %1438 = vmatprep.subr.mxu0 0.0
          %1439 = vmatpush2.msra.mxu0 0.0
          %1440 = vmatprep.subr.mxu0 0.0
          %1441 = vmatpush2.msra.mxu0 0.0
          %1442 = vmatprep.subr.mxu0 0.0
          %1443 = vmatpush2.msra.mxu0 0.0
          %1444 = vmatprep.subr.mxu0 0.0
          %1445 = vmatpush2.msra.mxu0 0.0
          %1446 = vmatprep.subr.mxu0 0.0
          %1447 = vmatpush2.msra.mxu0 0.0
          %1448 = vmatprep.subr.mxu0 0.0
          %1449 = vmatpush2.msra.mxu0 0.0
          %1450 = vmatprep.mubr.f32.mxu0 0.0
          %1451 = vmatmul.mubr.f32.gmra.mxu0 %v1384
          %v1452 = vpop.f32.mrf.mxu0
          %v1453 = vadd.f32 %v1308, %v1452
          %v1454 = vpop.f32.mrf.mxu0
          %v1455 = vadd.f32 %v1310, %v1454
          %1456 = vdwg.mxu0
          %1457 = vmatprep.subr.mxu0 0.0
          %1458 = vmatpush1.msra.mxu0 0.0
          %1459 = vmatprep.subr.mxu0 0.0
          %1460 = vmatpush1.msra.mxu0 0.0
          %1461 = vmatprep.subr.mxu0 0.0
          %1462 = vmatpush1.msra.mxu0 0.0
          %1463 = vmatprep.subr.mxu0 0.0
          %1464 = vmatpush1.msra.mxu0 0.0
          %1465 = vmatprep.subr.mxu0 0.0
          %1466 = vmatpush1.msra.mxu0 0.0
          %1467 = vmatprep.subr.mxu0 0.0
          %1468 = vmatpush1.msra.mxu0 0.0
          %1469 = vmatprep.subr.mxu0 0.0
          %1470 = vmatpush1.msra.mxu0 0.0
          %1471 = vmatprep.subr.mxu0 0.0
          %1472 = vmatpush1.msra.mxu0 0.0
          %1473 = vmatprep.subr.mxu0 0.0
          %1474 = vmatpush1.msra.mxu0 0.0
          %1475 = vmatprep.subr.mxu0 0.0
          %1476 = vmatpush1.msra.mxu0 0.0
          %1477 = vmatprep.subr.mxu0 0.0
          %1478 = vmatpush1.msra.mxu0 0.0
          %1479 = vmatprep.subr.mxu0 0.0
          %1480 = vmatpush1.msra.mxu0 0.0
          %1481 = vmatprep.subr.mxu0 0.0
          %1482 = vmatpush1.msra.mxu0 0.0
          %1483 = vmatprep.subr.mxu0 0.0
          %1484 = vmatpush1.msra.mxu0 0.0
          %1485 = vmatprep.subr.mxu0 %v1176
          %1486 = vmatpush1.msra.mxu0 %v1175
          %1487 = vmatprep.subr.mxu0 %v1172
          %1488 = vmatpush1.msra.mxu0 %v1171
          %1489 = vmatprep.subr.mxu0 0.0
          %1490 = vmatpush2.msra.mxu0 0.0
          %1491 = vmatprep.subr.mxu0 0.0
          %1492 = vmatpush2.msra.mxu0 0.0
          %1493 = vmatprep.subr.mxu0 0.0
          %1494 = vmatpush2.msra.mxu0 0.0
          %1495 = vmatprep.subr.mxu0 0.0
          %1496 = vmatpush2.msra.mxu0 0.0
          %1497 = vmatprep.subr.mxu0 0.0
          %1498 = vmatpush2.msra.mxu0 0.0
          %1499 = vmatprep.subr.mxu0 0.0
          %1500 = vmatpush2.msra.mxu0 0.0
          %1501 = vmatprep.subr.mxu0 0.0
          %1502 = vmatpush2.msra.mxu0 0.0
          %1503 = vmatprep.subr.mxu0 0.0
          %1504 = vmatpush2.msra.mxu0 0.0
          %1505 = vmatprep.subr.mxu0 0.0
          %1506 = vmatpush2.msra.mxu0 0.0
          %1507 = vmatprep.subr.mxu0 0.0
          %1508 = vmatpush2.msra.mxu0 0.0
          %1509 = vmatprep.subr.mxu0 0.0
          %1510 = vmatpush2.msra.mxu0 0.0
          %1511 = vmatprep.subr.mxu0 0.0
          %1512 = vmatpush2.msra.mxu0 0.0
          %1513 = vmatprep.subr.mxu0 0.0
          %1514 = vmatpush2.msra.mxu0 0.0
          %1515 = vmatprep.subr.mxu0 0.0
          %1516 = vmatpush2.msra.mxu0 0.0
          %1517 = vmatprep.subr.mxu0 0.0
          %1518 = vmatpush2.msra.mxu0 0.0
          %1519 = vmatprep.subr.mxu0 0.0
          %1520 = vmatpush2.msra.mxu0 0.0
          %1521 = vmatprep.mubr.f32.mxu0 0.0
          %1522 = vmatmul.mubr.f32.gmra.mxu0 %v1384
          %v1523 = vpop.f32.mrf.mxu0
          %v1524 = vadd.f32 %v1379, %v1523
          %v1525 = vpop.f32.mrf.mxu0
          %v1526 = vadd.f32 %v1381, %v1525
          %1527 = vdwg.mxu0
          %v1528 = vld [vmem:[#allocation10] sm:$0xff]
          %v1529 = vld [vmem:[#allocation10 + $0x8] sm:$0xff]
          %v1530 = vld [vmem:[#allocation10 + $0x10] sm:$0xff]
          %v1531 = vld [vmem:[#allocation10 + $0x18] sm:$0xff]
          %v1532 = vadd.f32 %v1453, %v1528
          %v1533 = vadd.f32 %v1455, %v1529
          %v1534 = vadd.f32 %v1524, %v1530
          %v1535 = vadd.f32 %v1526, %v1531
          %v1536 = vmul.f32 %v1532, 0.5
          %v1537 = vtanh.pop %v1536
          %v1538 = vmul.f32 %v1537, 0.5
          %v1539 = vadd.f32 %v1538, 0.5
          %v1540 = vmul.f32 %v1533, 0.5
          %v1541 = vtanh.pop %v1540
          %v1542 = vmul.f32 %v1541, 0.5
          %v1543 = vadd.f32 %v1542, 0.5
          %v1544 = vtanh.pop %v1534
          %v1545 = vmul.f32 %v1535, 0.5
          %v1546 = vtanh.pop %v1545
          %v1547 = vmul.f32 %v1546, 0.5
          %v1548 = vadd.f32 %v1547, 0.5
          %v1549 = vmul.f32 %v1543, %v1162
          %v1550 = vmul.f32 %v1539, %v1544
          %v1551 = vadd.f32 %v1549, %v1550
          %v1552 = vtanh.pop %v1551
          %v1553 = vmul.f32 %v1548, %v1552
          %s1554 = scalar_lea.vmem %s369, 16 [#allocation13]
          %1555 = vst [vmem:[%s1554] sm:$0xff] %v1553
          %s1556 = scalar_lea.vmem %s325, 24 [#allocation4]
          %v1557 = vld [vmem:[%s1556] sm:$0xff]
          %v1558 = vld [vmem:[#allocation7] sm:$0xff]
          %v1559 = vld [vmem:[#allocation7 + $0x8] sm:$0xff]
          %v1560 = vld [vmem:[#allocation7 + $0x10] sm:$0xff]
          %v1561 = vld [vmem:[#allocation7 + $0x18] sm:$0xff]
          %v1562 = vld [vmem:[#allocation7 + $0x20] sm:$0xff]
          %v1563 = vld [vmem:[#allocation7 + $0x28] sm:$0xff]
          %v1564 = vld [vmem:[#allocation7 + $0x30] sm:$0xff]
          %v1565 = vld [vmem:[#allocation7 + $0x38] sm:$0xff]
          %v1566 = vld [vmem:[#allocation9] sm:$0xff]
          %v1567 = vld [vmem:[#allocation9 + $0x8] sm:$0xff]
          %v1568 = vld [vmem:[#allocation9 + $0x10] sm:$0xff]
          %v1569 = vld [vmem:[#allocation9 + $0x18] sm:$0xff]
          %v1570 = vld [vmem:[#allocation9 + $0x20] sm:$0xff]
          %v1571 = vld [vmem:[#allocation9 + $0x28] sm:$0xff]
          %v1572 = vld [vmem:[#allocation9 + $0x30] sm:$0xff]
          %v1573 = vld [vmem:[#allocation9 + $0x38] sm:$0xff]
          %v1574 = vld [vmem:[#allocation9 + $0x40] sm:$0xff]
          %v1575 = vld [vmem:[#allocation9 + $0x48] sm:$0xff]
          %v1576 = vld [vmem:[#allocation9 + $0x50] sm:$0xff]
          %v1577 = vld [vmem:[#allocation9 + $0x58] sm:$0xff]
          %v1578 = vld [vmem:[#allocation9 + $0x60] sm:$0xff]
          %v1579 = vld [vmem:[#allocation9 + $0x68] sm:$0xff]
          %v1580 = vld [vmem:[#allocation9 + $0x70] sm:$0xff]
          %v1581 = vld [vmem:[#allocation9 + $0x78] sm:$0xff]
          %v1582 = vld [vmem:[#allocation9 + $0x80] sm:$0xff]
          %v1583 = vld [vmem:[#allocation9 + $0x88] sm:$0xff]
          %v1584 = vld [vmem:[#allocation9 + $0x90] sm:$0xff]
          %v1585 = vld [vmem:[#allocation9 + $0x98] sm:$0xff]
          %v1586 = vld [vmem:[#allocation9 + $0xa0] sm:$0xff]
          %v1587 = vld [vmem:[#allocation9 + $0xa8] sm:$0xff]
          %v1588 = vld [vmem:[#allocation9 + $0xb0] sm:$0xff]
          %v1589 = vld [vmem:[#allocation9 + $0xb8] sm:$0xff]
          %v1590 = vld [vmem:[#allocation9 + $0xc0] sm:$0xff]
          %v1591 = vld [vmem:[#allocation9 + $0xc8] sm:$0xff]
          %v1592 = vld [vmem:[#allocation9 + $0xd0] sm:$0xff]
          %v1593 = vld [vmem:[#allocation9 + $0xd8] sm:$0xff]
          %v1594 = vld [vmem:[#allocation9 + $0xe0] sm:$0xff]
          %v1595 = vld [vmem:[#allocation9 + $0xe8] sm:$0xff]
          %v1596 = vld [vmem:[#allocation9 + $0xf0] sm:$0xff]
          %v1597 = vld [vmem:[#allocation9 + $0xf8] sm:$0xff]
          %v1598 = vld [vmem:[#allocation9 + $0x100] sm:$0xff]
          %v1599 = vld [vmem:[#allocation9 + $0x108] sm:$0xff]
          %v1600 = vld [vmem:[#allocation9 + $0x110] sm:$0xff]
          %v1601 = vld [vmem:[#allocation9 + $0x118] sm:$0xff]
          %v1602 = vld [vmem:[#allocation9 + $0x120] sm:$0xff]
          %v1603 = vld [vmem:[#allocation9 + $0x128] sm:$0xff]
          %v1604 = vld [vmem:[#allocation9 + $0x130] sm:$0xff]
          %v1605 = vld [vmem:[#allocation9 + $0x138] sm:$0xff]
          %v1606 = vld [vmem:[#allocation9 + $0x140] sm:$0xff]
          %v1607 = vld [vmem:[#allocation9 + $0x148] sm:$0xff]
          %v1608 = vld [vmem:[#allocation9 + $0x150] sm:$0xff]
          %v1609 = vld [vmem:[#allocation9 + $0x158] sm:$0xff]
          %v1610 = vld [vmem:[#allocation9 + $0x160] sm:$0xff]
          %v1611 = vld [vmem:[#allocation9 + $0x168] sm:$0xff]
          %v1612 = vld [vmem:[#allocation9 + $0x170] sm:$0xff]
          %v1613 = vld [vmem:[#allocation9 + $0x178] sm:$0xff]
          %v1614 = vld [vmem:[#allocation9 + $0x180] sm:$0xff]
          %v1615 = vld [vmem:[#allocation9 + $0x188] sm:$0xff]
          %v1616 = vld [vmem:[#allocation9 + $0x190] sm:$0xff]
          %v1617 = vld [vmem:[#allocation9 + $0x198] sm:$0xff]
          %v1618 = vld [vmem:[#allocation9 + $0x1a0] sm:$0xff]
          %v1619 = vld [vmem:[#allocation9 + $0x1a8] sm:$0xff]
          %v1620 = vld [vmem:[#allocation9 + $0x1b0] sm:$0xff]
          %v1621 = vld [vmem:[#allocation9 + $0x1b8] sm:$0xff]
          %v1622 = vld [vmem:[#allocation9 + $0x1c0] sm:$0xff]
          %v1623 = vld [vmem:[#allocation9 + $0x1c8] sm:$0xff]
          %v1624 = vld [vmem:[#allocation9 + $0x1d0] sm:$0xff]
          %v1625 = vld [vmem:[#allocation9 + $0x1d8] sm:$0xff]
          %v1626 = vld [vmem:[#allocation9 + $0x1e0] sm:$0xff]
          %v1627 = vld [vmem:[#allocation9 + $0x1e8] sm:$0xff]
          %v1628 = vld [vmem:[#allocation9 + $0x1f0] sm:$0xff]
          %v1629 = vld [vmem:[#allocation9 + $0x1f8] sm:$0xff]
          %1630 = vmatprep.subr.mxu0 %v1627
          %1631 = vmatpush1.msra.mxu0 %v1626
          %1632 = vmatprep.subr.mxu0 %v1623
          %1633 = vmatpush1.msra.mxu0 %v1622
          %1634 = vmatprep.subr.mxu0 %v1619
          %1635 = vmatpush1.msra.mxu0 %v1618
          %1636 = vmatprep.subr.mxu0 %v1615
          %1637 = vmatpush1.msra.mxu0 %v1614
          %1638 = vmatprep.subr.mxu0 %v1611
          %1639 = vmatpush1.msra.mxu0 %v1610
          %1640 = vmatprep.subr.mxu0 %v1607
          %1641 = vmatpush1.msra.mxu0 %v1606
          %1642 = vmatprep.subr.mxu0 %v1603
          %1643 = vmatpush1.msra.mxu0 %v1602
          %1644 = vmatprep.subr.mxu0 %v1599
          %1645 = vmatpush1.msra.mxu0 %v1598
          %1646 = vmatprep.subr.mxu0 %v1595
          %1647 = vmatpush1.msra.mxu0 %v1594
          %1648 = vmatprep.subr.mxu0 %v1591
          %1649 = vmatpush1.msra.mxu0 %v1590
          %1650 = vmatprep.subr.mxu0 %v1587
          %1651 = vmatpush1.msra.mxu0 %v1586
          %1652 = vmatprep.subr.mxu0 %v1583
          %1653 = vmatpush1.msra.mxu0 %v1582
          %1654 = vmatprep.subr.mxu0 %v1579
          %1655 = vmatpush1.msra.mxu0 %v1578
          %1656 = vmatprep.subr.mxu0 %v1575
          %1657 = vmatpush1.msra.mxu0 %v1574
          %1658 = vmatprep.subr.mxu0 %v1571
          %1659 = vmatpush1.msra.mxu0 %v1570
          %1660 = vmatprep.subr.mxu0 %v1567
          %1661 = vmatpush1.msra.mxu0 %v1566
          %1662 = vmatprep.subr.mxu0 0.0
          %1663 = vmatpush2.msra.mxu0 0.0
          %1664 = vmatprep.subr.mxu0 0.0
          %1665 = vmatpush2.msra.mxu0 0.0
          %1666 = vmatprep.subr.mxu0 0.0
          %1667 = vmatpush2.msra.mxu0 0.0
          %1668 = vmatprep.subr.mxu0 0.0
          %1669 = vmatpush2.msra.mxu0 0.0
          %1670 = vmatprep.subr.mxu0 0.0
          %1671 = vmatpush2.msra.mxu0 0.0
          %1672 = vmatprep.subr.mxu0 0.0
          %1673 = vmatpush2.msra.mxu0 0.0
          %1674 = vmatprep.subr.mxu0 0.0
          %1675 = vmatpush2.msra.mxu0 0.0
          %1676 = vmatprep.subr.mxu0 0.0
          %1677 = vmatpush2.msra.mxu0 0.0
          %1678 = vmatprep.subr.mxu0 0.0
          %1679 = vmatpush2.msra.mxu0 0.0
          %1680 = vmatprep.subr.mxu0 0.0
          %1681 = vmatpush2.msra.mxu0 0.0
          %1682 = vmatprep.subr.mxu0 0.0
          %1683 = vmatpush2.msra.mxu0 0.0
          %1684 = vmatprep.subr.mxu0 0.0
          %1685 = vmatpush2.msra.mxu0 0.0
          %1686 = vmatprep.subr.mxu0 0.0
          %1687 = vmatpush2.msra.mxu0 0.0
          %1688 = vmatprep.subr.mxu0 0.0
          %1689 = vmatpush2.msra.mxu0 0.0
          %1690 = vmatprep.subr.mxu0 0.0
          %1691 = vmatpush2.msra.mxu0 0.0
          %1692 = vmatprep.subr.mxu0 0.0
          %1693 = vmatpush2.msra.mxu0 0.0
          %1694 = vmatprep.mubr.f32.mxu0 0.0
          %1695 = vmatmul.mubr.f32.gmra.mxu0 %v1553
          %v1696 = vpop.f32.mrf.mxu0
          %v1697 = vadd.f32 0.0, %v1696
          %v1698 = vpop.f32.mrf.mxu0
          %v1699 = vadd.f32 0.0, %v1698
          %1700 = vdwg.mxu0
          %1701 = vmatprep.subr.mxu0 %v1629
          %1702 = vmatpush1.msra.mxu0 %v1628
          %1703 = vmatprep.subr.mxu0 %v1625
          %1704 = vmatpush1.msra.mxu0 %v1624
          %1705 = vmatprep.subr.mxu0 %v1621
          %1706 = vmatpush1.msra.mxu0 %v1620
          %1707 = vmatprep.subr.mxu0 %v1617
          %1708 = vmatpush1.msra.mxu0 %v1616
          %1709 = vmatprep.subr.mxu0 %v1613
          %1710 = vmatpush1.msra.mxu0 %v1612
          %1711 = vmatprep.subr.mxu0 %v1609
          %1712 = vmatpush1.msra.mxu0 %v1608
          %1713 = vmatprep.subr.mxu0 %v1605
          %1714 = vmatpush1.msra.mxu0 %v1604
          %1715 = vmatprep.subr.mxu0 %v1601
          %1716 = vmatpush1.msra.mxu0 %v1600
          %1717 = vmatprep.subr.mxu0 %v1597
          %1718 = vmatpush1.msra.mxu0 %v1596
          %1719 = vmatprep.subr.mxu0 %v1593
          %1720 = vmatpush1.msra.mxu0 %v1592
          %1721 = vmatprep.subr.mxu0 %v1589
          %1722 = vmatpush1.msra.mxu0 %v1588
          %1723 = vmatprep.subr.mxu0 %v1585
          %1724 = vmatpush1.msra.mxu0 %v1584
          %1725 = vmatprep.subr.mxu0 %v1581
          %1726 = vmatpush1.msra.mxu0 %v1580
          %1727 = vmatprep.subr.mxu0 %v1577
          %1728 = vmatpush1.msra.mxu0 %v1576
          %1729 = vmatprep.subr.mxu0 %v1573
          %1730 = vmatpush1.msra.mxu0 %v1572
          %1731 = vmatprep.subr.mxu0 %v1569
          %1732 = vmatpush1.msra.mxu0 %v1568
          %1733 = vmatprep.subr.mxu0 0.0
          %1734 = vmatpush2.msra.mxu0 0.0
          %1735 = vmatprep.subr.mxu0 0.0
          %1736 = vmatpush2.msra.mxu0 0.0
          %1737 = vmatprep.subr.mxu0 0.0
          %1738 = vmatpush2.msra.mxu0 0.0
          %1739 = vmatprep.subr.mxu0 0.0
          %1740 = vmatpush2.msra.mxu0 0.0
          %1741 = vmatprep.subr.mxu0 0.0
          %1742 = vmatpush2.msra.mxu0 0.0
          %1743 = vmatprep.subr.mxu0 0.0
          %1744 = vmatpush2.msra.mxu0 0.0
          %1745 = vmatprep.subr.mxu0 0.0
          %1746 = vmatpush2.msra.mxu0 0.0
          %1747 = vmatprep.subr.mxu0 0.0
          %1748 = vmatpush2.msra.mxu0 0.0
          %1749 = vmatprep.subr.mxu0 0.0
          %1750 = vmatpush2.msra.mxu0 0.0
          %1751 = vmatprep.subr.mxu0 0.0
          %1752 = vmatpush2.msra.mxu0 0.0
          %1753 = vmatprep.subr.mxu0 0.0
          %1754 = vmatpush2.msra.mxu0 0.0
          %1755 = vmatprep.subr.mxu0 0.0
          %1756 = vmatpush2.msra.mxu0 0.0
          %1757 = vmatprep.subr.mxu0 0.0
          %1758 = vmatpush2.msra.mxu0 0.0
          %1759 = vmatprep.subr.mxu0 0.0
          %1760 = vmatpush2.msra.mxu0 0.0
          %1761 = vmatprep.subr.mxu0 0.0
          %1762 = vmatpush2.msra.mxu0 0.0
          %1763 = vmatprep.subr.mxu0 0.0
          %1764 = vmatpush2.msra.mxu0 0.0
          %1765 = vmatprep.mubr.f32.mxu0 0.0
          %1766 = vmatmul.mubr.f32.gmra.mxu0 %v1553
          %v1767 = vpop.f32.mrf.mxu0
          %v1768 = vadd.f32 0.0, %v1767
          %v1769 = vpop.f32.mrf.mxu0
          %v1770 = vadd.f32 0.0, %v1769
          %1771 = vdwg.mxu0
          %v1773 = vsel %vm605, %v1557, 0
          %1775 = vmatprep.subr.mxu0 0.0
          %1776 = vmatpush1.msra.mxu0 0.0
          %1777 = vmatprep.subr.mxu0 0.0
          %1778 = vmatpush1.msra.mxu0 0.0
          %1779 = vmatprep.subr.mxu0 0.0
          %1780 = vmatpush1.msra.mxu0 0.0
          %1781 = vmatprep.subr.mxu0 0.0
          %1782 = vmatpush1.msra.mxu0 0.0
          %1783 = vmatprep.subr.mxu0 0.0
          %1784 = vmatpush1.msra.mxu0 0.0
          %1785 = vmatprep.subr.mxu0 0.0
          %1786 = vmatpush1.msra.mxu0 0.0
          %1787 = vmatprep.subr.mxu0 0.0
          %1788 = vmatpush1.msra.mxu0 0.0
          %1789 = vmatprep.subr.mxu0 0.0
          %1790 = vmatpush1.msra.mxu0 0.0
          %1791 = vmatprep.subr.mxu0 0.0
          %1792 = vmatpush1.msra.mxu0 0.0
          %1793 = vmatprep.subr.mxu0 0.0
          %1794 = vmatpush1.msra.mxu0 0.0
          %1795 = vmatprep.subr.mxu0 0.0
          %1796 = vmatpush1.msra.mxu0 0.0
          %1797 = vmatprep.subr.mxu0 0.0
          %1798 = vmatpush1.msra.mxu0 0.0
          %1799 = vmatprep.subr.mxu0 0.0
          %1800 = vmatpush1.msra.mxu0 0.0
          %1801 = vmatprep.subr.mxu0 0.0
          %1802 = vmatpush1.msra.mxu0 0.0
          %1803 = vmatprep.subr.mxu0 %v1563
          %1804 = vmatpush1.msra.mxu0 %v1562
          %1805 = vmatprep.subr.mxu0 %v1559
          %1806 = vmatpush1.msra.mxu0 %v1558
          %1807 = vmatprep.subr.mxu0 0.0
          %1808 = vmatpush2.msra.mxu0 0.0
          %1809 = vmatprep.subr.mxu0 0.0
          %1810 = vmatpush2.msra.mxu0 0.0
          %1811 = vmatprep.subr.mxu0 0.0
          %1812 = vmatpush2.msra.mxu0 0.0
          %1813 = vmatprep.subr.mxu0 0.0
          %1814 = vmatpush2.msra.mxu0 0.0
          %1815 = vmatprep.subr.mxu0 0.0
          %1816 = vmatpush2.msra.mxu0 0.0
          %1817 = vmatprep.subr.mxu0 0.0
          %1818 = vmatpush2.msra.mxu0 0.0
          %1819 = vmatprep.subr.mxu0 0.0
          %1820 = vmatpush2.msra.mxu0 0.0
          %1821 = vmatprep.subr.mxu0 0.0
          %1822 = vmatpush2.msra.mxu0 0.0
          %1823 = vmatprep.subr.mxu0 0.0
          %1824 = vmatpush2.msra.mxu0 0.0
          %1825 = vmatprep.subr.mxu0 0.0
          %1826 = vmatpush2.msra.mxu0 0.0
          %1827 = vmatprep.subr.mxu0 0.0
          %1828 = vmatpush2.msra.mxu0 0.0
          %1829 = vmatprep.subr.mxu0 0.0
          %1830 = vmatpush2.msra.mxu0 0.0
          %1831 = vmatprep.subr.mxu0 0.0
          %1832 = vmatpush2.msra.mxu0 0.0
          %1833 = vmatprep.subr.mxu0 0.0
          %1834 = vmatpush2.msra.mxu0 0.0
          %1835 = vmatprep.subr.mxu0 0.0
          %1836 = vmatpush2.msra.mxu0 0.0
          %1837 = vmatprep.subr.mxu0 0.0
          %1838 = vmatpush2.msra.mxu0 0.0
          %1839 = vmatprep.mubr.f32.mxu0 0.0
          %1840 = vmatmul.mubr.f32.gmra.mxu0 %v1773
          %v1841 = vpop.f32.mrf.mxu0
          %v1842 = vadd.f32 %v1697, %v1841
          %v1843 = vpop.f32.mrf.mxu0
          %v1844 = vadd.f32 %v1699, %v1843
          %1845 = vdwg.mxu0
          %1846 = vmatprep.subr.mxu0 0.0
          %1847 = vmatpush1.msra.mxu0 0.0
          %1848 = vmatprep.subr.mxu0 0.0
          %1849 = vmatpush1.msra.mxu0 0.0
          %1850 = vmatprep.subr.mxu0 0.0
          %1851 = vmatpush1.msra.mxu0 0.0
          %1852 = vmatprep.subr.mxu0 0.0
          %1853 = vmatpush1.msra.mxu0 0.0
          %1854 = vmatprep.subr.mxu0 0.0
          %1855 = vmatpush1.msra.mxu0 0.0
          %1856 = vmatprep.subr.mxu0 0.0
          %1857 = vmatpush1.msra.mxu0 0.0
          %1858 = vmatprep.subr.mxu0 0.0
          %1859 = vmatpush1.msra.mxu0 0.0
          %1860 = vmatprep.subr.mxu0 0.0
          %1861 = vmatpush1.msra.mxu0 0.0
          %1862 = vmatprep.subr.mxu0 0.0
          %1863 = vmatpush1.msra.mxu0 0.0
          %1864 = vmatprep.subr.mxu0 0.0
          %1865 = vmatpush1.msra.mxu0 0.0
          %1866 = vmatprep.subr.mxu0 0.0
          %1867 = vmatpush1.msra.mxu0 0.0
          %1868 = vmatprep.subr.mxu0 0.0
          %1869 = vmatpush1.msra.mxu0 0.0
          %1870 = vmatprep.subr.mxu0 0.0
          %1871 = vmatpush1.msra.mxu0 0.0
          %1872 = vmatprep.subr.mxu0 0.0
          %1873 = vmatpush1.msra.mxu0 0.0
          %1874 = vmatprep.subr.mxu0 %v1565
          %1875 = vmatpush1.msra.mxu0 %v1564
          %1876 = vmatprep.subr.mxu0 %v1561
          %1877 = vmatpush1.msra.mxu0 %v1560
          %1878 = vmatprep.subr.mxu0 0.0
          %1879 = vmatpush2.msra.mxu0 0.0
          %1880 = vmatprep.subr.mxu0 0.0
          %1881 = vmatpush2.msra.mxu0 0.0
          %1882 = vmatprep.subr.mxu0 0.0
          %1883 = vmatpush2.msra.mxu0 0.0
          %1884 = vmatprep.subr.mxu0 0.0
          %1885 = vmatpush2.msra.mxu0 0.0
          %1886 = vmatprep.subr.mxu0 0.0
          %1887 = vmatpush2.msra.mxu0 0.0
          %1888 = vmatprep.subr.mxu0 0.0
          %1889 = vmatpush2.msra.mxu0 0.0
          %1890 = vmatprep.subr.mxu0 0.0
          %1891 = vmatpush2.msra.mxu0 0.0
          %1892 = vmatprep.subr.mxu0 0.0
          %1893 = vmatpush2.msra.mxu0 0.0
          %1894 = vmatprep.subr.mxu0 0.0
          %1895 = vmatpush2.msra.mxu0 0.0
          %1896 = vmatprep.subr.mxu0 0.0
          %1897 = vmatpush2.msra.mxu0 0.0
          %1898 = vmatprep.subr.mxu0 0.0
          %1899 = vmatpush2.msra.mxu0 0.0
          %1900 = vmatprep.subr.mxu0 0.0
          %1901 = vmatpush2.msra.mxu0 0.0
          %1902 = vmatprep.subr.mxu0 0.0
          %1903 = vmatpush2.msra.mxu0 0.0
          %1904 = vmatprep.subr.mxu0 0.0
          %1905 = vmatpush2.msra.mxu0 0.0
          %1906 = vmatprep.subr.mxu0 0.0
          %1907 = vmatpush2.msra.mxu0 0.0
          %1908 = vmatprep.subr.mxu0 0.0
          %1909 = vmatpush2.msra.mxu0 0.0
          %1910 = vmatprep.mubr.f32.mxu0 0.0
          %1911 = vmatmul.mubr.f32.gmra.mxu0 %v1773
          %v1912 = vpop.f32.mrf.mxu0
          %v1913 = vadd.f32 %v1768, %v1912
          %v1914 = vpop.f32.mrf.mxu0
          %v1915 = vadd.f32 %v1770, %v1914
          %1916 = vdwg.mxu0
          %v1917 = vld [vmem:[#allocation10] sm:$0xff]
          %v1918 = vld [vmem:[#allocation10 + $0x8] sm:$0xff]
          %v1919 = vld [vmem:[#allocation10 + $0x10] sm:$0xff]
          %v1920 = vld [vmem:[#allocation10 + $0x18] sm:$0xff]
          %v1921 = vadd.f32 %v1842, %v1917
          %v1922 = vadd.f32 %v1844, %v1918
          %v1923 = vadd.f32 %v1913, %v1919
          %v1924 = vadd.f32 %v1915, %v1920
          %v1925 = vmul.f32 %v1921, 0.5
          %v1926 = vtanh.pop %v1925
          %v1927 = vmul.f32 %v1926, 0.5
          %v1928 = vadd.f32 %v1927, 0.5
          %v1929 = vmul.f32 %v1922, 0.5
          %v1930 = vtanh.pop %v1929
          %v1931 = vmul.f32 %v1930, 0.5
          %v1932 = vadd.f32 %v1931, 0.5
          %v1933 = vtanh.pop %v1923
          %v1934 = vmul.f32 %v1924, 0.5
          %v1935 = vtanh.pop %v1934
          %v1936 = vmul.f32 %v1935, 0.5
          %v1937 = vadd.f32 %v1936, 0.5
          %v1938 = vmul.f32 %v1932, %v1551
          %v1939 = vmul.f32 %v1928, %v1933
          %v1940 = vadd.f32 %v1938, %v1939
          %v1941 = vtanh.pop %v1940
          %v1942 = vmul.f32 %v1937, %v1941
          %s1943 = scalar_lea.vmem %s369, 24 [#allocation13]
          %1944 = vst [vmem:[%s1943] sm:$0xff] %v1942
          %s1945 = scalar_lea.vmem %s325, 32 [#allocation4]
          %v1946 = vld [vmem:[%s1945] sm:$0xff]
          %v1947 = vld [vmem:[#allocation7] sm:$0xff]
          %v1948 = vld [vmem:[#allocation7 + $0x8] sm:$0xff]
          %v1949 = vld [vmem:[#allocation7 + $0x10] sm:$0xff]
          %v1950 = vld [vmem:[#allocation7 + $0x18] sm:$0xff]
          %v1951 = vld [vmem:[#allocation7 + $0x20] sm:$0xff]
          %v1952 = vld [vmem:[#allocation7 + $0x28] sm:$0xff]
          %v1953 = vld [vmem:[#allocation7 + $0x30] sm:$0xff]
          %v1954 = vld [vmem:[#allocation7 + $0x38] sm:$0xff]
          %v1955 = vld [vmem:[#allocation9] sm:$0xff]
          %v1956 = vld [vmem:[#allocation9 + $0x8] sm:$0xff]
          %v1957 = vld [vmem:[#allocation9 + $0x10] sm:$0xff]
          %v1958 = vld [vmem:[#allocation9 + $0x18] sm:$0xff]
          %v1959 = vld [vmem:[#allocation9 + $0x20] sm:$0xff]
          %v1960 = vld [vmem:[#allocation9 + $0x28] sm:$0xff]
          %v1961 = vld [vmem:[#allocation9 + $0x30] sm:$0xff]
          %v1962 = vld [vmem:[#allocation9 + $0x38] sm:$0xff]
          %v1963 = vld [vmem:[#allocation9 + $0x40] sm:$0xff]
          %v1964 = vld [vmem:[#allocation9 + $0x48] sm:$0xff]
          %v1965 = vld [vmem:[#allocation9 + $0x50] sm:$0xff]
          %v1966 = vld [vmem:[#allocation9 + $0x58] sm:$0xff]
          %v1967 = vld [vmem:[#allocation9 + $0x60] sm:$0xff]
          %v1968 = vld [vmem:[#allocation9 + $0x68] sm:$0xff]
          %v1969 = vld [vmem:[#allocation9 + $0x70] sm:$0xff]
          %v1970 = vld [vmem:[#allocation9 + $0x78] sm:$0xff]
          %v1971 = vld [vmem:[#allocation9 + $0x80] sm:$0xff]
          %v1972 = vld [vmem:[#allocation9 + $0x88] sm:$0xff]
          %v1973 = vld [vmem:[#allocation9 + $0x90] sm:$0xff]
          %v1974 = vld [vmem:[#allocation9 + $0x98] sm:$0xff]
          %v1975 = vld [vmem:[#allocation9 + $0xa0] sm:$0xff]
          %v1976 = vld [vmem:[#allocation9 + $0xa8] sm:$0xff]
          %v1977 = vld [vmem:[#allocation9 + $0xb0] sm:$0xff]
          %v1978 = vld [vmem:[#allocation9 + $0xb8] sm:$0xff]
          %v1979 = vld [vmem:[#allocation9 + $0xc0] sm:$0xff]
          %v1980 = vld [vmem:[#allocation9 + $0xc8] sm:$0xff]
          %v1981 = vld [vmem:[#allocation9 + $0xd0] sm:$0xff]
          %v1982 = vld [vmem:[#allocation9 + $0xd8] sm:$0xff]
          %v1983 = vld [vmem:[#allocation9 + $0xe0] sm:$0xff]
          %v1984 = vld [vmem:[#allocation9 + $0xe8] sm:$0xff]
          %v1985 = vld [vmem:[#allocation9 + $0xf0] sm:$0xff]
          %v1986 = vld [vmem:[#allocation9 + $0xf8] sm:$0xff]
          %v1987 = vld [vmem:[#allocation9 + $0x100] sm:$0xff]
          %v1988 = vld [vmem:[#allocation9 + $0x108] sm:$0xff]
          %v1989 = vld [vmem:[#allocation9 + $0x110] sm:$0xff]
          %v1990 = vld [vmem:[#allocation9 + $0x118] sm:$0xff]
          %v1991 = vld [vmem:[#allocation9 + $0x120] sm:$0xff]
          %v1992 = vld [vmem:[#allocation9 + $0x128] sm:$0xff]
          %v1993 = vld [vmem:[#allocation9 + $0x130] sm:$0xff]
          %v1994 = vld [vmem:[#allocation9 + $0x138] sm:$0xff]
          %v1995 = vld [vmem:[#allocation9 + $0x140] sm:$0xff]
          %v1996 = vld [vmem:[#allocation9 + $0x148] sm:$0xff]
          %v1997 = vld [vmem:[#allocation9 + $0x150] sm:$0xff]
          %v1998 = vld [vmem:[#allocation9 + $0x158] sm:$0xff]
          %v1999 = vld [vmem:[#allocation9 + $0x160] sm:$0xff]
          %v2000 = vld [vmem:[#allocation9 + $0x168] sm:$0xff]
          %v2001 = vld [vmem:[#allocation9 + $0x170] sm:$0xff]
          %v2002 = vld [vmem:[#allocation9 + $0x178] sm:$0xff]
          %v2003 = vld [vmem:[#allocation9 + $0x180] sm:$0xff]
          %v2004 = vld [vmem:[#allocation9 + $0x188] sm:$0xff]
          %v2005 = vld [vmem:[#allocation9 + $0x190] sm:$0xff]
          %v2006 = vld [vmem:[#allocation9 + $0x198] sm:$0xff]
          %v2007 = vld [vmem:[#allocation9 + $0x1a0] sm:$0xff]
          %v2008 = vld [vmem:[#allocation9 + $0x1a8] sm:$0xff]
          %v2009 = vld [vmem:[#allocation9 + $0x1b0] sm:$0xff]
          %v2010 = vld [vmem:[#allocation9 + $0x1b8] sm:$0xff]
          %v2011 = vld [vmem:[#allocation9 + $0x1c0] sm:$0xff]
          %v2012 = vld [vmem:[#allocation9 + $0x1c8] sm:$0xff]
          %v2013 = vld [vmem:[#allocation9 + $0x1d0] sm:$0xff]
          %v2014 = vld [vmem:[#allocation9 + $0x1d8] sm:$0xff]
          %v2015 = vld [vmem:[#allocation9 + $0x1e0] sm:$0xff]
          %v2016 = vld [vmem:[#allocation9 + $0x1e8] sm:$0xff]
          %v2017 = vld [vmem:[#allocation9 + $0x1f0] sm:$0xff]
          %v2018 = vld [vmem:[#allocation9 + $0x1f8] sm:$0xff]
          %2019 = vmatprep.subr.mxu0 %v2016
          %2020 = vmatpush1.msra.mxu0 %v2015
          %2021 = vmatprep.subr.mxu0 %v2012
          %2022 = vmatpush1.msra.mxu0 %v2011
          %2023 = vmatprep.subr.mxu0 %v2008
          %2024 = vmatpush1.msra.mxu0 %v2007
          %2025 = vmatprep.subr.mxu0 %v2004
          %2026 = vmatpush1.msra.mxu0 %v2003
          %2027 = vmatprep.subr.mxu0 %v2000
          %2028 = vmatpush1.msra.mxu0 %v1999
          %2029 = vmatprep.subr.mxu0 %v1996
          %2030 = vmatpush1.msra.mxu0 %v1995
          %2031 = vmatprep.subr.mxu0 %v1992
          %2032 = vmatpush1.msra.mxu0 %v1991
          %2033 = vmatprep.subr.mxu0 %v1988
          %2034 = vmatpush1.msra.mxu0 %v1987
          %2035 = vmatprep.subr.mxu0 %v1984
          %2036 = vmatpush1.msra.mxu0 %v1983
          %2037 = vmatprep.subr.mxu0 %v1980
          %2038 = vmatpush1.msra.mxu0 %v1979
          %2039 = vmatprep.subr.mxu0 %v1976
          %2040 = vmatpush1.msra.mxu0 %v1975
          %2041 = vmatprep.subr.mxu0 %v1972
          %2042 = vmatpush1.msra.mxu0 %v1971
          %2043 = vmatprep.subr.mxu0 %v1968
          %2044 = vmatpush1.msra.mxu0 %v1967
          %2045 = vmatprep.subr.mxu0 %v1964
          %2046 = vmatpush1.msra.mxu0 %v1963
          %2047 = vmatprep.subr.mxu0 %v1960
          %2048 = vmatpush1.msra.mxu0 %v1959
          %2049 = vmatprep.subr.mxu0 %v1956
          %2050 = vmatpush1.msra.mxu0 %v1955
          %2051 = vmatprep.subr.mxu0 0.0
          %2052 = vmatpush2.msra.mxu0 0.0
          %2053 = vmatprep.subr.mxu0 0.0
          %2054 = vmatpush2.msra.mxu0 0.0
          %2055 = vmatprep.subr.mxu0 0.0
          %2056 = vmatpush2.msra.mxu0 0.0
          %2057 = vmatprep.subr.mxu0 0.0
          %2058 = vmatpush2.msra.mxu0 0.0
          %2059 = vmatprep.subr.mxu0 0.0
          %2060 = vmatpush2.msra.mxu0 0.0
          %2061 = vmatprep.subr.mxu0 0.0
          %2062 = vmatpush2.msra.mxu0 0.0
          %2063 = vmatprep.subr.mxu0 0.0
          %2064 = vmatpush2.msra.mxu0 0.0
          %2065 = vmatprep.subr.mxu0 0.0
          %2066 = vmatpush2.msra.mxu0 0.0
          %2067 = vmatprep.subr.mxu0 0.0
          %2068 = vmatpush2.msra.mxu0 0.0
          %2069 = vmatprep.subr.mxu0 0.0
          %2070 = vmatpush2.msra.mxu0 0.0
          %2071 = vmatprep.subr.mxu0 0.0
          %2072 = vmatpush2.msra.mxu0 0.0
          %2073 = vmatprep.subr.mxu0 0.0
          %2074 = vmatpush2.msra.mxu0 0.0
          %2075 = vmatprep.subr.mxu0 0.0
          %2076 = vmatpush2.msra.mxu0 0.0
          %2077 = vmatprep.subr.mxu0 0.0
          %2078 = vmatpush2.msra.mxu0 0.0
          %2079 = vmatprep.subr.mxu0 0.0
          %2080 = vmatpush2.msra.mxu0 0.0
          %2081 = vmatprep.subr.mxu0 0.0
          %2082 = vmatpush2.msra.mxu0 0.0
          %2083 = vmatprep.mubr.f32.mxu0 0.0
          %2084 = vmatmul.mubr.f32.gmra.mxu0 %v1942
          %v2085 = vpop.f32.mrf.mxu0
          %v2086 = vadd.f32 0.0, %v2085
          %v2087 = vpop.f32.mrf.mxu0
          %v2088 = vadd.f32 0.0, %v2087
          %2089 = vdwg.mxu0
          %2090 = vmatprep.subr.mxu0 %v2018
          %2091 = vmatpush1.msra.mxu0 %v2017
          %2092 = vmatprep.subr.mxu0 %v2014
          %2093 = vmatpush1.msra.mxu0 %v2013
          %2094 = vmatprep.subr.mxu0 %v2010
          %2095 = vmatpush1.msra.mxu0 %v2009
          %2096 = vmatprep.subr.mxu0 %v2006
          %2097 = vmatpush1.msra.mxu0 %v2005
          %2098 = vmatprep.subr.mxu0 %v2002
          %2099 = vmatpush1.msra.mxu0 %v2001
          %2100 = vmatprep.subr.mxu0 %v1998
          %2101 = vmatpush1.msra.mxu0 %v1997
          %2102 = vmatprep.subr.mxu0 %v1994
          %2103 = vmatpush1.msra.mxu0 %v1993
          %2104 = vmatprep.subr.mxu0 %v1990
          %2105 = vmatpush1.msra.mxu0 %v1989
          %2106 = vmatprep.subr.mxu0 %v1986
          %2107 = vmatpush1.msra.mxu0 %v1985
          %2108 = vmatprep.subr.mxu0 %v1982
          %2109 = vmatpush1.msra.mxu0 %v1981
          %2110 = vmatprep.subr.mxu0 %v1978
          %2111 = vmatpush1.msra.mxu0 %v1977
          %2112 = vmatprep.subr.mxu0 %v1974
          %2113 = vmatpush1.msra.mxu0 %v1973
          %2114 = vmatprep.subr.mxu0 %v1970
          %2115 = vmatpush1.msra.mxu0 %v1969
          %2116 = vmatprep.subr.mxu0 %v1966
          %2117 = vmatpush1.msra.mxu0 %v1965
          %2118 = vmatprep.subr.mxu0 %v1962
          %2119 = vmatpush1.msra.mxu0 %v1961
          %2120 = vmatprep.subr.mxu0 %v1958
          %2121 = vmatpush1.msra.mxu0 %v1957
          %2122 = vmatprep.subr.mxu0 0.0
          %2123 = vmatpush2.msra.mxu0 0.0
          %2124 = vmatprep.subr.mxu0 0.0
          %2125 = vmatpush2.msra.mxu0 0.0
          %2126 = vmatprep.subr.mxu0 0.0
          %2127 = vmatpush2.msra.mxu0 0.0
          %2128 = vmatprep.subr.mxu0 0.0
          %2129 = vmatpush2.msra.mxu0 0.0
          %2130 = vmatprep.subr.mxu0 0.0
          %2131 = vmatpush2.msra.mxu0 0.0
          %2132 = vmatprep.subr.mxu0 0.0
          %2133 = vmatpush2.msra.mxu0 0.0
          %2134 = vmatprep.subr.mxu0 0.0
          %2135 = vmatpush2.msra.mxu0 0.0
          %2136 = vmatprep.subr.mxu0 0.0
          %2137 = vmatpush2.msra.mxu0 0.0
          %2138 = vmatprep.subr.mxu0 0.0
          %2139 = vmatpush2.msra.mxu0 0.0
          %2140 = vmatprep.subr.mxu0 0.0
          %2141 = vmatpush2.msra.mxu0 0.0
          %2142 = vmatprep.subr.mxu0 0.0
          %2143 = vmatpush2.msra.mxu0 0.0
          %2144 = vmatprep.subr.mxu0 0.0
          %2145 = vmatpush2.msra.mxu0 0.0
          %2146 = vmatprep.subr.mxu0 0.0
          %2147 = vmatpush2.msra.mxu0 0.0
          %2148 = vmatprep.subr.mxu0 0.0
          %2149 = vmatpush2.msra.mxu0 0.0
          %2150 = vmatprep.subr.mxu0 0.0
          %2151 = vmatpush2.msra.mxu0 0.0
          %2152 = vmatprep.subr.mxu0 0.0
          %2153 = vmatpush2.msra.mxu0 0.0
          %2154 = vmatprep.mubr.f32.mxu0 0.0
          %2155 = vmatmul.mubr.f32.gmra.mxu0 %v1942
          %v2156 = vpop.f32.mrf.mxu0
          %v2157 = vadd.f32 0.0, %v2156
          %v2158 = vpop.f32.mrf.mxu0
          %v2159 = vadd.f32 0.0, %v2158
          %2160 = vdwg.mxu0
          %v2162 = vsel %vm605, %v1946, 0
          %2164 = vmatprep.subr.mxu0 0.0
          %2165 = vmatpush1.msra.mxu0 0.0
          %2166 = vmatprep.subr.mxu0 0.0
          %2167 = vmatpush1.msra.mxu0 0.0
          %2168 = vmatprep.subr.mxu0 0.0
          %2169 = vmatpush1.msra.mxu0 0.0
          %2170 = vmatprep.subr.mxu0 0.0
          %2171 = vmatpush1.msra.mxu0 0.0
          %2172 = vmatprep.subr.mxu0 0.0
          %2173 = vmatpush1.msra.mxu0 0.0
          %2174 = vmatprep.subr.mxu0 0.0
          %2175 = vmatpush1.msra.mxu0 0.0
          %2176 = vmatprep.subr.mxu0 0.0
          %2177 = vmatpush1.msra.mxu0 0.0
          %2178 = vmatprep.subr.mxu0 0.0
          %2179 = vmatpush1.msra.mxu0 0.0
          %2180 = vmatprep.subr.mxu0 0.0
          %2181 = vmatpush1.msra.mxu0 0.0
          %2182 = vmatprep.subr.mxu0 0.0
          %2183 = vmatpush1.msra.mxu0 0.0
          %2184 = vmatprep.subr.mxu0 0.0
          %2185 = vmatpush1.msra.mxu0 0.0
          %2186 = vmatprep.subr.mxu0 0.0
          %2187 = vmatpush1.msra.mxu0 0.0
          %2188 = vmatprep.subr.mxu0 0.0
          %2189 = vmatpush1.msra.mxu0 0.0
          %2190 = vmatprep.subr.mxu0 0.0
          %2191 = vmatpush1.msra.mxu0 0.0
          %2192 = vmatprep.subr.mxu0 %v1952
          %2193 = vmatpush1.msra.mxu0 %v1951
          %2194 = vmatprep.subr.mxu0 %v1948
          %2195 = vmatpush1.msra.mxu0 %v1947
          %2196 = vmatprep.subr.mxu0 0.0
          %2197 = vmatpush2.msra.mxu0 0.0
          %2198 = vmatprep.subr.mxu0 0.0
          %2199 = vmatpush2.msra.mxu0 0.0
          %2200 = vmatprep.subr.mxu0 0.0
          %2201 = vmatpush2.msra.mxu0 0.0
          %2202 = vmatprep.subr.mxu0 0.0
          %2203 = vmatpush2.msra.mxu0 0.0
          %2204 = vmatprep.subr.mxu0 0.0
          %2205 = vmatpush2.msra.mxu0 0.0
          %2206 = vmatprep.subr.mxu0 0.0
          %2207 = vmatpush2.msra.mxu0 0.0
          %2208 = vmatprep.subr.mxu0 0.0
          %2209 = vmatpush2.msra.mxu0 0.0
          %2210 = vmatprep.subr.mxu0 0.0
          %2211 = vmatpush2.msra.mxu0 0.0
          %2212 = vmatprep.subr.mxu0 0.0
          %2213 = vmatpush2.msra.mxu0 0.0
          %2214 = vmatprep.subr.mxu0 0.0
          %2215 = vmatpush2.msra.mxu0 0.0
          %2216 = vmatprep.subr.mxu0 0.0
          %2217 = vmatpush2.msra.mxu0 0.0
          %2218 = vmatprep.subr.mxu0 0.0
          %2219 = vmatpush2.msra.mxu0 0.0
          %2220 = vmatprep.subr.mxu0 0.0
          %2221 = vmatpush2.msra.mxu0 0.0
          %2222 = vmatprep.subr.mxu0 0.0
          %2223 = vmatpush2.msra.mxu0 0.0
          %2224 = vmatprep.subr.mxu0 0.0
          %2225 = vmatpush2.msra.mxu0 0.0
          %2226 = vmatprep.subr.mxu0 0.0
          %2227 = vmatpush2.msra.mxu0 0.0
          %2228 = vmatprep.mubr.f32.mxu0 0.0
          %2229 = vmatmul.mubr.f32.gmra.mxu0 %v2162
          %v2230 = vpop.f32.mrf.mxu0
          %v2231 = vadd.f32 %v2086, %v2230
          %v2232 = vpop.f32.mrf.mxu0
          %v2233 = vadd.f32 %v2088, %v2232
          %2234 = vdwg.mxu0
          %2235 = vmatprep.subr.mxu0 0.0
          %2236 = vmatpush1.msra.mxu0 0.0
          %2237 = vmatprep.subr.mxu0 0.0
          %2238 = vmatpush1.msra.mxu0 0.0
          %2239 = vmatprep.subr.mxu0 0.0
          %2240 = vmatpush1.msra.mxu0 0.0
          %2241 = vmatprep.subr.mxu0 0.0
          %2242 = vmatpush1.msra.mxu0 0.0
          %2243 = vmatprep.subr.mxu0 0.0
          %2244 = vmatpush1.msra.mxu0 0.0
          %2245 = vmatprep.subr.mxu0 0.0
          %2246 = vmatpush1.msra.mxu0 0.0
          %2247 = vmatprep.subr.mxu0 0.0
          %2248 = vmatpush1.msra.mxu0 0.0
          %2249 = vmatprep.subr.mxu0 0.0
          %2250 = vmatpush1.msra.mxu0 0.0
          %2251 = vmatprep.subr.mxu0 0.0
          %2252 = vmatpush1.msra.mxu0 0.0
          %2253 = vmatprep.subr.mxu0 0.0
          %2254 = vmatpush1.msra.mxu0 0.0
          %2255 = vmatprep.subr.mxu0 0.0
          %2256 = vmatpush1.msra.mxu0 0.0
          %2257 = vmatprep.subr.mxu0 0.0
          %2258 = vmatpush1.msra.mxu0 0.0
          %2259 = vmatprep.subr.mxu0 0.0
          %2260 = vmatpush1.msra.mxu0 0.0
          %2261 = vmatprep.subr.mxu0 0.0
          %2262 = vmatpush1.msra.mxu0 0.0
          %2263 = vmatprep.subr.mxu0 %v1954
          %2264 = vmatpush1.msra.mxu0 %v1953
          %2265 = vmatprep.subr.mxu0 %v1950
          %2266 = vmatpush1.msra.mxu0 %v1949
          %2267 = vmatprep.subr.mxu0 0.0
          %2268 = vmatpush2.msra.mxu0 0.0
          %2269 = vmatprep.subr.mxu0 0.0
          %2270 = vmatpush2.msra.mxu0 0.0
          %2271 = vmatprep.subr.mxu0 0.0
          %2272 = vmatpush2.msra.mxu0 0.0
          %2273 = vmatprep.subr.mxu0 0.0
          %2274 = vmatpush2.msra.mxu0 0.0
          %2275 = vmatprep.subr.mxu0 0.0
          %2276 = vmatpush2.msra.mxu0 0.0
          %2277 = vmatprep.subr.mxu0 0.0
          %2278 = vmatpush2.msra.mxu0 0.0
          %2279 = vmatprep.subr.mxu0 0.0
          %2280 = vmatpush2.msra.mxu0 0.0
          %2281 = vmatprep.subr.mxu0 0.0
          %2282 = vmatpush2.msra.mxu0 0.0
          %2283 = vmatprep.subr.mxu0 0.0
          %2284 = vmatpush2.msra.mxu0 0.0
          %2285 = vmatprep.subr.mxu0 0.0
          %2286 = vmatpush2.msra.mxu0 0.0
          %2287 = vmatprep.subr.mxu0 0.0
          %2288 = vmatpush2.msra.mxu0 0.0
          %2289 = vmatprep.subr.mxu0 0.0
          %2290 = vmatpush2.msra.mxu0 0.0
          %2291 = vmatprep.subr.mxu0 0.0
          %2292 = vmatpush2.msra.mxu0 0.0
          %2293 = vmatprep.subr.mxu0 0.0
          %2294 = vmatpush2.msra.mxu0 0.0
          %2295 = vmatprep.subr.mxu0 0.0
          %2296 = vmatpush2.msra.mxu0 0.0
          %2297 = vmatprep.subr.mxu0 0.0
          %2298 = vmatpush2.msra.mxu0 0.0
          %2299 = vmatprep.mubr.f32.mxu0 0.0
          %2300 = vmatmul.mubr.f32.gmra.mxu0 %v2162
          %v2301 = vpop.f32.mrf.mxu0
          %v2302 = vadd.f32 %v2157, %v2301
          %v2303 = vpop.f32.mrf.mxu0
          %v2304 = vadd.f32 %v2159, %v2303
          %2305 = vdwg.mxu0
          %v2306 = vld [vmem:[#allocation10] sm:$0xff]
          %v2307 = vld [vmem:[#allocation10 + $0x8] sm:$0xff]
          %v2308 = vld [vmem:[#allocation10 + $0x10] sm:$0xff]
          %v2309 = vld [vmem:[#allocation10 + $0x18] sm:$0xff]
          %v2310 = vadd.f32 %v2231, %v2306
          %v2311 = vadd.f32 %v2233, %v2307
          %v2312 = vadd.f32 %v2302, %v2308
          %v2313 = vadd.f32 %v2304, %v2309
          %v2314 = vmul.f32 %v2310, 0.5
          %v2315 = vtanh.pop %v2314
          %v2316 = vmul.f32 %v2315, 0.5
          %v2317 = vadd.f32 %v2316, 0.5
          %v2318 = vmul.f32 %v2311, 0.5
          %v2319 = vtanh.pop %v2318
          %v2320 = vmul.f32 %v2319, 0.5
          %v2321 = vadd.f32 %v2320, 0.5
          %v2322 = vtanh.pop %v2312
          %v2323 = vmul.f32 %v2313, 0.5
          %v2324 = vtanh.pop %v2323
          %v2325 = vmul.f32 %v2324, 0.5
          %v2326 = vadd.f32 %v2325, 0.5
          %v2327 = vmul.f32 %v2321, %v1940
          %v2328 = vmul.f32 %v2317, %v2322
          %v2329 = vadd.f32 %v2327, %v2328
          %v2330 = vtanh.pop %v2329
          %v2331 = vmul.f32 %v2326, %v2330
          %s2332 = scalar_lea.vmem %s369, 32 [#allocation13]
          %2333 = vst [vmem:[%s2332] sm:$0xff] %v2331
          %s2334 = scalar_lea.vmem %s325, 40 [#allocation4]
          %v2335 = vld [vmem:[%s2334] sm:$0xff]
          %v2336 = vld [vmem:[#allocation7] sm:$0xff]
          %v2337 = vld [vmem:[#allocation7 + $0x8] sm:$0xff]
          %v2338 = vld [vmem:[#allocation7 + $0x10] sm:$0xff]
          %v2339 = vld [vmem:[#allocation7 + $0x18] sm:$0xff]
          %v2340 = vld [vmem:[#allocation7 + $0x20] sm:$0xff]
          %v2341 = vld [vmem:[#allocation7 + $0x28] sm:$0xff]
          %v2342 = vld [vmem:[#allocation7 + $0x30] sm:$0xff]
          %v2343 = vld [vmem:[#allocation7 + $0x38] sm:$0xff]
          %v2344 = vld [vmem:[#allocation9] sm:$0xff]
          %v2345 = vld [vmem:[#allocation9 + $0x8] sm:$0xff]
          %v2346 = vld [vmem:[#allocation9 + $0x10] sm:$0xff]
          %v2347 = vld [vmem:[#allocation9 + $0x18] sm:$0xff]
          %v2348 = vld [vmem:[#allocation9 + $0x20] sm:$0xff]
          %v2349 = vld [vmem:[#allocation9 + $0x28] sm:$0xff]
          %v2350 = vld [vmem:[#allocation9 + $0x30] sm:$0xff]
          %v2351 = vld [vmem:[#allocation9 + $0x38] sm:$0xff]
          %v2352 = vld [vmem:[#allocation9 + $0x40] sm:$0xff]
          %v2353 = vld [vmem:[#allocation9 + $0x48] sm:$0xff]
          %v2354 = vld [vmem:[#allocation9 + $0x50] sm:$0xff]
          %v2355 = vld [vmem:[#allocation9 + $0x58] sm:$0xff]
          %v2356 = vld [vmem:[#allocation9 + $0x60] sm:$0xff]
          %v2357 = vld [vmem:[#allocation9 + $0x68] sm:$0xff]
          %v2358 = vld [vmem:[#allocation9 + $0x70] sm:$0xff]
          %v2359 = vld [vmem:[#allocation9 + $0x78] sm:$0xff]
          %v2360 = vld [vmem:[#allocation9 + $0x80] sm:$0xff]
          %v2361 = vld [vmem:[#allocation9 + $0x88] sm:$0xff]
          %v2362 = vld [vmem:[#allocation9 + $0x90] sm:$0xff]
          %v2363 = vld [vmem:[#allocation9 + $0x98] sm:$0xff]
          %v2364 = vld [vmem:[#allocation9 + $0xa0] sm:$0xff]
          %v2365 = vld [vmem:[#allocation9 + $0xa8] sm:$0xff]
          %v2366 = vld [vmem:[#allocation9 + $0xb0] sm:$0xff]
          %v2367 = vld [vmem:[#allocation9 + $0xb8] sm:$0xff]
          %v2368 = vld [vmem:[#allocation9 + $0xc0] sm:$0xff]
          %v2369 = vld [vmem:[#allocation9 + $0xc8] sm:$0xff]
          %v2370 = vld [vmem:[#allocation9 + $0xd0] sm:$0xff]
          %v2371 = vld [vmem:[#allocation9 + $0xd8] sm:$0xff]
          %v2372 = vld [vmem:[#allocation9 + $0xe0] sm:$0xff]
          %v2373 = vld [vmem:[#allocation9 + $0xe8] sm:$0xff]
          %v2374 = vld [vmem:[#allocation9 + $0xf0] sm:$0xff]
          %v2375 = vld [vmem:[#allocation9 + $0xf8] sm:$0xff]
          %v2376 = vld [vmem:[#allocation9 + $0x100] sm:$0xff]
          %v2377 = vld [vmem:[#allocation9 + $0x108] sm:$0xff]
          %v2378 = vld [vmem:[#allocation9 + $0x110] sm:$0xff]
          %v2379 = vld [vmem:[#allocation9 + $0x118] sm:$0xff]
          %v2380 = vld [vmem:[#allocation9 + $0x120] sm:$0xff]
          %v2381 = vld [vmem:[#allocation9 + $0x128] sm:$0xff]
          %v2382 = vld [vmem:[#allocation9 + $0x130] sm:$0xff]
          %v2383 = vld [vmem:[#allocation9 + $0x138] sm:$0xff]
          %v2384 = vld [vmem:[#allocation9 + $0x140] sm:$0xff]
          %v2385 = vld [vmem:[#allocation9 + $0x148] sm:$0xff]
          %v2386 = vld [vmem:[#allocation9 + $0x150] sm:$0xff]
          %v2387 = vld [vmem:[#allocation9 + $0x158] sm:$0xff]
          %v2388 = vld [vmem:[#allocation9 + $0x160] sm:$0xff]
          %v2389 = vld [vmem:[#allocation9 + $0x168] sm:$0xff]
          %v2390 = vld [vmem:[#allocation9 + $0x170] sm:$0xff]
          %v2391 = vld [vmem:[#allocation9 + $0x178] sm:$0xff]
          %v2392 = vld [vmem:[#allocation9 + $0x180] sm:$0xff]
          %v2393 = vld [vmem:[#allocation9 + $0x188] sm:$0xff]
          %v2394 = vld [vmem:[#allocation9 + $0x190] sm:$0xff]
          %v2395 = vld [vmem:[#allocation9 + $0x198] sm:$0xff]
          %v2396 = vld [vmem:[#allocation9 + $0x1a0] sm:$0xff]
          %v2397 = vld [vmem:[#allocation9 + $0x1a8] sm:$0xff]
          %v2398 = vld [vmem:[#allocation9 + $0x1b0] sm:$0xff]
          %v2399 = vld [vmem:[#allocation9 + $0x1b8] sm:$0xff]
          %v2400 = vld [vmem:[#allocation9 + $0x1c0] sm:$0xff]
          %v2401 = vld [vmem:[#allocation9 + $0x1c8] sm:$0xff]
          %v2402 = vld [vmem:[#allocation9 + $0x1d0] sm:$0xff]
          %v2403 = vld [vmem:[#allocation9 + $0x1d8] sm:$0xff]
          %v2404 = vld [vmem:[#allocation9 + $0x1e0] sm:$0xff]
          %v2405 = vld [vmem:[#allocation9 + $0x1e8] sm:$0xff]
          %v2406 = vld [vmem:[#allocation9 + $0x1f0] sm:$0xff]
          %v2407 = vld [vmem:[#allocation9 + $0x1f8] sm:$0xff]
          %2408 = vmatprep.subr.mxu0 %v2405
          %2409 = vmatpush1.msra.mxu0 %v2404
          %2410 = vmatprep.subr.mxu0 %v2401
          %2411 = vmatpush1.msra.mxu0 %v2400
          %2412 = vmatprep.subr.mxu0 %v2397
          %2413 = vmatpush1.msra.mxu0 %v2396
          %2414 = vmatprep.subr.mxu0 %v2393
          %2415 = vmatpush1.msra.mxu0 %v2392
          %2416 = vmatprep.subr.mxu0 %v2389
          %2417 = vmatpush1.msra.mxu0 %v2388
          %2418 = vmatprep.subr.mxu0 %v2385
          %2419 = vmatpush1.msra.mxu0 %v2384
          %2420 = vmatprep.subr.mxu0 %v2381
          %2421 = vmatpush1.msra.mxu0 %v2380
          %2422 = vmatprep.subr.mxu0 %v2377
          %2423 = vmatpush1.msra.mxu0 %v2376
          %2424 = vmatprep.subr.mxu0 %v2373
          %2425 = vmatpush1.msra.mxu0 %v2372
          %2426 = vmatprep.subr.mxu0 %v2369
          %2427 = vmatpush1.msra.mxu0 %v2368
          %2428 = vmatprep.subr.mxu0 %v2365
          %2429 = vmatpush1.msra.mxu0 %v2364
          %2430 = vmatprep.subr.mxu0 %v2361
          %2431 = vmatpush1.msra.mxu0 %v2360
          %2432 = vmatprep.subr.mxu0 %v2357
          %2433 = vmatpush1.msra.mxu0 %v2356
          %2434 = vmatprep.subr.mxu0 %v2353
          %2435 = vmatpush1.msra.mxu0 %v2352
          %2436 = vmatprep.subr.mxu0 %v2349
          %2437 = vmatpush1.msra.mxu0 %v2348
          %2438 = vmatprep.subr.mxu0 %v2345
          %2439 = vmatpush1.msra.mxu0 %v2344
          %2440 = vmatprep.subr.mxu0 0.0
          %2441 = vmatpush2.msra.mxu0 0.0
          %2442 = vmatprep.subr.mxu0 0.0
          %2443 = vmatpush2.msra.mxu0 0.0
          %2444 = vmatprep.subr.mxu0 0.0
          %2445 = vmatpush2.msra.mxu0 0.0
          %2446 = vmatprep.subr.mxu0 0.0
          %2447 = vmatpush2.msra.mxu0 0.0
          %2448 = vmatprep.subr.mxu0 0.0
          %2449 = vmatpush2.msra.mxu0 0.0
          %2450 = vmatprep.subr.mxu0 0.0
          %2451 = vmatpush2.msra.mxu0 0.0
          %2452 = vmatprep.subr.mxu0 0.0
          %2453 = vmatpush2.msra.mxu0 0.0
          %2454 = vmatprep.subr.mxu0 0.0
          %2455 = vmatpush2.msra.mxu0 0.0
          %2456 = vmatprep.subr.mxu0 0.0
          %2457 = vmatpush2.msra.mxu0 0.0
          %2458 = vmatprep.subr.mxu0 0.0
          %2459 = vmatpush2.msra.mxu0 0.0
          %2460 = vmatprep.subr.mxu0 0.0
          %2461 = vmatpush2.msra.mxu0 0.0
          %2462 = vmatprep.subr.mxu0 0.0
          %2463 = vmatpush2.msra.mxu0 0.0
          %2464 = vmatprep.subr.mxu0 0.0
          %2465 = vmatpush2.msra.mxu0 0.0
          %2466 = vmatprep.subr.mxu0 0.0
          %2467 = vmatpush2.msra.mxu0 0.0
          %2468 = vmatprep.subr.mxu0 0.0
          %2469 = vmatpush2.msra.mxu0 0.0
          %2470 = vmatprep.subr.mxu0 0.0
          %2471 = vmatpush2.msra.mxu0 0.0
          %2472 = vmatprep.mubr.f32.mxu0 0.0
          %2473 = vmatmul.mubr.f32.gmra.mxu0 %v2331
          %v2474 = vpop.f32.mrf.mxu0
          %v2475 = vadd.f32 0.0, %v2474
          %v2476 = vpop.f32.mrf.mxu0
          %v2477 = vadd.f32 0.0, %v2476
          %2478 = vdwg.mxu0
          %2479 = vmatprep.subr.mxu0 %v2407
          %2480 = vmatpush1.msra.mxu0 %v2406
          %2481 = vmatprep.subr.mxu0 %v2403
          %2482 = vmatpush1.msra.mxu0 %v2402
          %2483 = vmatprep.subr.mxu0 %v2399
          %2484 = vmatpush1.msra.mxu0 %v2398
          %2485 = vmatprep.subr.mxu0 %v2395
          %2486 = vmatpush1.msra.mxu0 %v2394
          %2487 = vmatprep.subr.mxu0 %v2391
          %2488 = vmatpush1.msra.mxu0 %v2390
          %2489 = vmatprep.subr.mxu0 %v2387
          %2490 = vmatpush1.msra.mxu0 %v2386
          %2491 = vmatprep.subr.mxu0 %v2383
          %2492 = vmatpush1.msra.mxu0 %v2382
          %2493 = vmatprep.subr.mxu0 %v2379
          %2494 = vmatpush1.msra.mxu0 %v2378
          %2495 = vmatprep.subr.mxu0 %v2375
          %2496 = vmatpush1.msra.mxu0 %v2374
          %2497 = vmatprep.subr.mxu0 %v2371
          %2498 = vmatpush1.msra.mxu0 %v2370
          %2499 = vmatprep.subr.mxu0 %v2367
          %2500 = vmatpush1.msra.mxu0 %v2366
          %2501 = vmatprep.subr.mxu0 %v2363
          %2502 = vmatpush1.msra.mxu0 %v2362
          %2503 = vmatprep.subr.mxu0 %v2359
          %2504 = vmatpush1.msra.mxu0 %v2358
          %2505 = vmatprep.subr.mxu0 %v2355
          %2506 = vmatpush1.msra.mxu0 %v2354
          %2507 = vmatprep.subr.mxu0 %v2351
          %2508 = vmatpush1.msra.mxu0 %v2350
          %2509 = vmatprep.subr.mxu0 %v2347
          %2510 = vmatpush1.msra.mxu0 %v2346
          %2511 = vmatprep.subr.mxu0 0.0
          %2512 = vmatpush2.msra.mxu0 0.0
          %2513 = vmatprep.subr.mxu0 0.0
          %2514 = vmatpush2.msra.mxu0 0.0
          %2515 = vmatprep.subr.mxu0 0.0
          %2516 = vmatpush2.msra.mxu0 0.0
          %2517 = vmatprep.subr.mxu0 0.0
          %2518 = vmatpush2.msra.mxu0 0.0
          %2519 = vmatprep.subr.mxu0 0.0
          %2520 = vmatpush2.msra.mxu0 0.0
          %2521 = vmatprep.subr.mxu0 0.0
          %2522 = vmatpush2.msra.mxu0 0.0
          %2523 = vmatprep.subr.mxu0 0.0
          %2524 = vmatpush2.msra.mxu0 0.0
          %2525 = vmatprep.subr.mxu0 0.0
          %2526 = vmatpush2.msra.mxu0 0.0
          %2527 = vmatprep.subr.mxu0 0.0
          %2528 = vmatpush2.msra.mxu0 0.0
          %2529 = vmatprep.subr.mxu0 0.0
          %2530 = vmatpush2.msra.mxu0 0.0
          %2531 = vmatprep.subr.mxu0 0.0
          %2532 = vmatpush2.msra.mxu0 0.0
          %2533 = vmatprep.subr.mxu0 0.0
          %2534 = vmatpush2.msra.mxu0 0.0
          %2535 = vmatprep.subr.mxu0 0.0
          %2536 = vmatpush2.msra.mxu0 0.0
          %2537 = vmatprep.subr.mxu0 0.0
          %2538 = vmatpush2.msra.mxu0 0.0
          %2539 = vmatprep.subr.mxu0 0.0
          %2540 = vmatpush2.msra.mxu0 0.0
          %2541 = vmatprep.subr.mxu0 0.0
          %2542 = vmatpush2.msra.mxu0 0.0
          %2543 = vmatprep.mubr.f32.mxu0 0.0
          %2544 = vmatmul.mubr.f32.gmra.mxu0 %v2331
          %v2545 = vpop.f32.mrf.mxu0
          %v2546 = vadd.f32 0.0, %v2545
          %v2547 = vpop.f32.mrf.mxu0
          %v2548 = vadd.f32 0.0, %v2547
          %2549 = vdwg.mxu0
          %v2551 = vsel %vm605, %v2335, 0
          %2553 = vmatprep.subr.mxu0 0.0
          %2554 = vmatpush1.msra.mxu0 0.0
          %2555 = vmatprep.subr.mxu0 0.0
          %2556 = vmatpush1.msra.mxu0 0.0
          %2557 = vmatprep.subr.mxu0 0.0
          %2558 = vmatpush1.msra.mxu0 0.0
          %2559 = vmatprep.subr.mxu0 0.0
          %2560 = vmatpush1.msra.mxu0 0.0
          %2561 = vmatprep.subr.mxu0 0.0
          %2562 = vmatpush1.msra.mxu0 0.0
          %2563 = vmatprep.subr.mxu0 0.0
          %2564 = vmatpush1.msra.mxu0 0.0
          %2565 = vmatprep.subr.mxu0 0.0
          %2566 = vmatpush1.msra.mxu0 0.0
          %2567 = vmatprep.subr.mxu0 0.0
          %2568 = vmatpush1.msra.mxu0 0.0
          %2569 = vmatprep.subr.mxu0 0.0
          %2570 = vmatpush1.msra.mxu0 0.0
          %2571 = vmatprep.subr.mxu0 0.0
          %2572 = vmatpush1.msra.mxu0 0.0
          %2573 = vmatprep.subr.mxu0 0.0
          %2574 = vmatpush1.msra.mxu0 0.0
          %2575 = vmatprep.subr.mxu0 0.0
          %2576 = vmatpush1.msra.mxu0 0.0
          %2577 = vmatprep.subr.mxu0 0.0
          %2578 = vmatpush1.msra.mxu0 0.0
          %2579 = vmatprep.subr.mxu0 0.0
          %2580 = vmatpush1.msra.mxu0 0.0
          %2581 = vmatprep.subr.mxu0 %v2341
          %2582 = vmatpush1.msra.mxu0 %v2340
          %2583 = vmatprep.subr.mxu0 %v2337
          %2584 = vmatpush1.msra.mxu0 %v2336
          %2585 = vmatprep.subr.mxu0 0.0
          %2586 = vmatpush2.msra.mxu0 0.0
          %2587 = vmatprep.subr.mxu0 0.0
          %2588 = vmatpush2.msra.mxu0 0.0
          %2589 = vmatprep.subr.mxu0 0.0
          %2590 = vmatpush2.msra.mxu0 0.0
          %2591 = vmatprep.subr.mxu0 0.0
          %2592 = vmatpush2.msra.mxu0 0.0
          %2593 = vmatprep.subr.mxu0 0.0
          %2594 = vmatpush2.msra.mxu0 0.0
          %2595 = vmatprep.subr.mxu0 0.0
          %2596 = vmatpush2.msra.mxu0 0.0
          %2597 = vmatprep.subr.mxu0 0.0
          %2598 = vmatpush2.msra.mxu0 0.0
          %2599 = vmatprep.subr.mxu0 0.0
          %2600 = vmatpush2.msra.mxu0 0.0
          %2601 = vmatprep.subr.mxu0 0.0
          %2602 = vmatpush2.msra.mxu0 0.0
          %2603 = vmatprep.subr.mxu0 0.0
          %2604 = vmatpush2.msra.mxu0 0.0
          %2605 = vmatprep.subr.mxu0 0.0
          %2606 = vmatpush2.msra.mxu0 0.0
          %2607 = vmatprep.subr.mxu0 0.0
          %2608 = vmatpush2.msra.mxu0 0.0
          %2609 = vmatprep.subr.mxu0 0.0
          %2610 = vmatpush2.msra.mxu0 0.0
          %2611 = vmatprep.subr.mxu0 0.0
          %2612 = vmatpush2.msra.mxu0 0.0
          %2613 = vmatprep.subr.mxu0 0.0
          %2614 = vmatpush2.msra.mxu0 0.0
          %2615 = vmatprep.subr.mxu0 0.0
          %2616 = vmatpush2.msra.mxu0 0.0
          %2617 = vmatprep.mubr.f32.mxu0 0.0
          %2618 = vmatmul.mubr.f32.gmra.mxu0 %v2551
          %v2619 = vpop.f32.mrf.mxu0
          %v2620 = vadd.f32 %v2475, %v2619
          %v2621 = vpop.f32.mrf.mxu0
          %v2622 = vadd.f32 %v2477, %v2621
          %2623 = vdwg.mxu0
          %2624 = vmatprep.subr.mxu0 0.0
          %2625 = vmatpush1.msra.mxu0 0.0
          %2626 = vmatprep.subr.mxu0 0.0
          %2627 = vmatpush1.msra.mxu0 0.0
          %2628 = vmatprep.subr.mxu0 0.0
          %2629 = vmatpush1.msra.mxu0 0.0
          %2630 = vmatprep.subr.mxu0 0.0
          %2631 = vmatpush1.msra.mxu0 0.0
          %2632 = vmatprep.subr.mxu0 0.0
          %2633 = vmatpush1.msra.mxu0 0.0
          %2634 = vmatprep.subr.mxu0 0.0
          %2635 = vmatpush1.msra.mxu0 0.0
          %2636 = vmatprep.subr.mxu0 0.0
          %2637 = vmatpush1.msra.mxu0 0.0
          %2638 = vmatprep.subr.mxu0 0.0
          %2639 = vmatpush1.msra.mxu0 0.0
          %2640 = vmatprep.subr.mxu0 0.0
          %2641 = vmatpush1.msra.mxu0 0.0
          %2642 = vmatprep.subr.mxu0 0.0
          %2643 = vmatpush1.msra.mxu0 0.0
          %2644 = vmatprep.subr.mxu0 0.0
          %2645 = vmatpush1.msra.mxu0 0.0
          %2646 = vmatprep.subr.mxu0 0.0
          %2647 = vmatpush1.msra.mxu0 0.0
          %2648 = vmatprep.subr.mxu0 0.0
          %2649 = vmatpush1.msra.mxu0 0.0
          %2650 = vmatprep.subr.mxu0 0.0
          %2651 = vmatpush1.msra.mxu0 0.0
          %2652 = vmatprep.subr.mxu0 %v2343
          %2653 = vmatpush1.msra.mxu0 %v2342
          %2654 = vmatprep.subr.mxu0 %v2339
          %2655 = vmatpush1.msra.mxu0 %v2338
          %2656 = vmatprep.subr.mxu0 0.0
          %2657 = vmatpush2.msra.mxu0 0.0
          %2658 = vmatprep.subr.mxu0 0.0
          %2659 = vmatpush2.msra.mxu0 0.0
          %2660 = vmatprep.subr.mxu0 0.0
          %2661 = vmatpush2.msra.mxu0 0.0
          %2662 = vmatprep.subr.mxu0 0.0
          %2663 = vmatpush2.msra.mxu0 0.0
          %2664 = vmatprep.subr.mxu0 0.0
          %2665 = vmatpush2.msra.mxu0 0.0
          %2666 = vmatprep.subr.mxu0 0.0
          %2667 = vmatpush2.msra.mxu0 0.0
          %2668 = vmatprep.subr.mxu0 0.0
          %2669 = vmatpush2.msra.mxu0 0.0
          %2670 = vmatprep.subr.mxu0 0.0
          %2671 = vmatpush2.msra.mxu0 0.0
          %2672 = vmatprep.subr.mxu0 0.0
          %2673 = vmatpush2.msra.mxu0 0.0
          %2674 = vmatprep.subr.mxu0 0.0
          %2675 = vmatpush2.msra.mxu0 0.0
          %2676 = vmatprep.subr.mxu0 0.0
          %2677 = vmatpush2.msra.mxu0 0.0
          %2678 = vmatprep.subr.mxu0 0.0
          %2679 = vmatpush2.msra.mxu0 0.0
          %2680 = vmatprep.subr.mxu0 0.0
          %2681 = vmatpush2.msra.mxu0 0.0
          %2682 = vmatprep.subr.mxu0 0.0
          %2683 = vmatpush2.msra.mxu0 0.0
          %2684 = vmatprep.subr.mxu0 0.0
          %2685 = vmatpush2.msra.mxu0 0.0
          %2686 = vmatprep.subr.mxu0 0.0
          %2687 = vmatpush2.msra.mxu0 0.0
          %2688 = vmatprep.mubr.f32.mxu0 0.0
          %2689 = vmatmul.mubr.f32.gmra.mxu0 %v2551
          %v2690 = vpop.f32.mrf.mxu0
          %v2691 = vadd.f32 %v2546, %v2690
          %v2692 = vpop.f32.mrf.mxu0
          %v2693 = vadd.f32 %v2548, %v2692
          %2694 = vdwg.mxu0
          %v2695 = vld [vmem:[#allocation10] sm:$0xff]
          %v2696 = vld [vmem:[#allocation10 + $0x8] sm:$0xff]
          %v2697 = vld [vmem:[#allocation10 + $0x10] sm:$0xff]
          %v2698 = vld [vmem:[#allocation10 + $0x18] sm:$0xff]
          %v2699 = vadd.f32 %v2620, %v2695
          %v2700 = vadd.f32 %v2622, %v2696
          %v2701 = vadd.f32 %v2691, %v2697
          %v2702 = vadd.f32 %v2693, %v2698
          %v2703 = vmul.f32 %v2699, 0.5
          %v2704 = vtanh.pop %v2703
          %v2705 = vmul.f32 %v2704, 0.5
          %v2706 = vadd.f32 %v2705, 0.5
          %v2707 = vmul.f32 %v2700, 0.5
          %v2708 = vtanh.pop %v2707
          %v2709 = vmul.f32 %v2708, 0.5
          %v2710 = vadd.f32 %v2709, 0.5
          %v2711 = vtanh.pop %v2701
          %v2712 = vmul.f32 %v2702, 0.5
          %v2713 = vtanh.pop %v2712
          %v2714 = vmul.f32 %v2713, 0.5
          %v2715 = vadd.f32 %v2714, 0.5
          %v2716 = vmul.f32 %v2710, %v2329
          %v2717 = vmul.f32 %v2706, %v2711
          %v2718 = vadd.f32 %v2716, %v2717
          %v2719 = vtanh.pop %v2718
          %v2720 = vmul.f32 %v2715, %v2719
          %s2721 = scalar_lea.vmem %s369, 40 [#allocation13]
          %2722 = vst [vmem:[%s2721] sm:$0xff] %v2720
          %s2723 = scalar_lea.vmem %s325, 48 [#allocation4]
          %v2724 = vld [vmem:[%s2723] sm:$0xff]
          %v2725 = vld [vmem:[#allocation7] sm:$0xff]
          %v2726 = vld [vmem:[#allocation7 + $0x8] sm:$0xff]
          %v2727 = vld [vmem:[#allocation7 + $0x10] sm:$0xff]
          %v2728 = vld [vmem:[#allocation7 + $0x18] sm:$0xff]
          %v2729 = vld [vmem:[#allocation7 + $0x20] sm:$0xff]
          %v2730 = vld [vmem:[#allocation7 + $0x28] sm:$0xff]
          %v2731 = vld [vmem:[#allocation7 + $0x30] sm:$0xff]
          %v2732 = vld [vmem:[#allocation7 + $0x38] sm:$0xff]
          %v2733 = vld [vmem:[#allocation9] sm:$0xff]
          %v2734 = vld [vmem:[#allocation9 + $0x8] sm:$0xff]
          %v2735 = vld [vmem:[#allocation9 + $0x10] sm:$0xff]
          %v2736 = vld [vmem:[#allocation9 + $0x18] sm:$0xff]
          %v2737 = vld [vmem:[#allocation9 + $0x20] sm:$0xff]
          %v2738 = vld [vmem:[#allocation9 + $0x28] sm:$0xff]
          %v2739 = vld [vmem:[#allocation9 + $0x30] sm:$0xff]
          %v2740 = vld [vmem:[#allocation9 + $0x38] sm:$0xff]
          %v2741 = vld [vmem:[#allocation9 + $0x40] sm:$0xff]
          %v2742 = vld [vmem:[#allocation9 + $0x48] sm:$0xff]
          %v2743 = vld [vmem:[#allocation9 + $0x50] sm:$0xff]
          %v2744 = vld [vmem:[#allocation9 + $0x58] sm:$0xff]
          %v2745 = vld [vmem:[#allocation9 + $0x60] sm:$0xff]
          %v2746 = vld [vmem:[#allocation9 + $0x68] sm:$0xff]
          %v2747 = vld [vmem:[#allocation9 + $0x70] sm:$0xff]
          %v2748 = vld [vmem:[#allocation9 + $0x78] sm:$0xff]
          %v2749 = vld [vmem:[#allocation9 + $0x80] sm:$0xff]
          %v2750 = vld [vmem:[#allocation9 + $0x88] sm:$0xff]
          %v2751 = vld [vmem:[#allocation9 + $0x90] sm:$0xff]
          %v2752 = vld [vmem:[#allocation9 + $0x98] sm:$0xff]
          %v2753 = vld [vmem:[#allocation9 + $0xa0] sm:$0xff]
          %v2754 = vld [vmem:[#allocation9 + $0xa8] sm:$0xff]
          %v2755 = vld [vmem:[#allocation9 + $0xb0] sm:$0xff]
          %v2756 = vld [vmem:[#allocation9 + $0xb8] sm:$0xff]
          %v2757 = vld [vmem:[#allocation9 + $0xc0] sm:$0xff]
          %v2758 = vld [vmem:[#allocation9 + $0xc8] sm:$0xff]
          %v2759 = vld [vmem:[#allocation9 + $0xd0] sm:$0xff]
          %v2760 = vld [vmem:[#allocation9 + $0xd8] sm:$0xff]
          %v2761 = vld [vmem:[#allocation9 + $0xe0] sm:$0xff]
          %v2762 = vld [vmem:[#allocation9 + $0xe8] sm:$0xff]
          %v2763 = vld [vmem:[#allocation9 + $0xf0] sm:$0xff]
          %v2764 = vld [vmem:[#allocation9 + $0xf8] sm:$0xff]
          %v2765 = vld [vmem:[#allocation9 + $0x100] sm:$0xff]
          %v2766 = vld [vmem:[#allocation9 + $0x108] sm:$0xff]
          %v2767 = vld [vmem:[#allocation9 + $0x110] sm:$0xff]
          %v2768 = vld [vmem:[#allocation9 + $0x118] sm:$0xff]
          %v2769 = vld [vmem:[#allocation9 + $0x120] sm:$0xff]
          %v2770 = vld [vmem:[#allocation9 + $0x128] sm:$0xff]
          %v2771 = vld [vmem:[#allocation9 + $0x130] sm:$0xff]
          %v2772 = vld [vmem:[#allocation9 + $0x138] sm:$0xff]
          %v2773 = vld [vmem:[#allocation9 + $0x140] sm:$0xff]
          %v2774 = vld [vmem:[#allocation9 + $0x148] sm:$0xff]
          %v2775 = vld [vmem:[#allocation9 + $0x150] sm:$0xff]
          %v2776 = vld [vmem:[#allocation9 + $0x158] sm:$0xff]
          %v2777 = vld [vmem:[#allocation9 + $0x160] sm:$0xff]
          %v2778 = vld [vmem:[#allocation9 + $0x168] sm:$0xff]
          %v2779 = vld [vmem:[#allocation9 + $0x170] sm:$0xff]
          %v2780 = vld [vmem:[#allocation9 + $0x178] sm:$0xff]
          %v2781 = vld [vmem:[#allocation9 + $0x180] sm:$0xff]
          %v2782 = vld [vmem:[#allocation9 + $0x188] sm:$0xff]
          %v2783 = vld [vmem:[#allocation9 + $0x190] sm:$0xff]
          %v2784 = vld [vmem:[#allocation9 + $0x198] sm:$0xff]
          %v2785 = vld [vmem:[#allocation9 + $0x1a0] sm:$0xff]
          %v2786 = vld [vmem:[#allocation9 + $0x1a8] sm:$0xff]
          %v2787 = vld [vmem:[#allocation9 + $0x1b0] sm:$0xff]
          %v2788 = vld [vmem:[#allocation9 + $0x1b8] sm:$0xff]
          %v2789 = vld [vmem:[#allocation9 + $0x1c0] sm:$0xff]
          %v2790 = vld [vmem:[#allocation9 + $0x1c8] sm:$0xff]
          %v2791 = vld [vmem:[#allocation9 + $0x1d0] sm:$0xff]
          %v2792 = vld [vmem:[#allocation9 + $0x1d8] sm:$0xff]
          %v2793 = vld [vmem:[#allocation9 + $0x1e0] sm:$0xff]
          %v2794 = vld [vmem:[#allocation9 + $0x1e8] sm:$0xff]
          %v2795 = vld [vmem:[#allocation9 + $0x1f0] sm:$0xff]
          %v2796 = vld [vmem:[#allocation9 + $0x1f8] sm:$0xff]
          %2797 = vmatprep.subr.mxu0 %v2794
          %2798 = vmatpush1.msra.mxu0 %v2793
          %2799 = vmatprep.subr.mxu0 %v2790
          %2800 = vmatpush1.msra.mxu0 %v2789
          %2801 = vmatprep.subr.mxu0 %v2786
          %2802 = vmatpush1.msra.mxu0 %v2785
          %2803 = vmatprep.subr.mxu0 %v2782
          %2804 = vmatpush1.msra.mxu0 %v2781
          %2805 = vmatprep.subr.mxu0 %v2778
          %2806 = vmatpush1.msra.mxu0 %v2777
          %2807 = vmatprep.subr.mxu0 %v2774
          %2808 = vmatpush1.msra.mxu0 %v2773
          %2809 = vmatprep.subr.mxu0 %v2770
          %2810 = vmatpush1.msra.mxu0 %v2769
          %2811 = vmatprep.subr.mxu0 %v2766
          %2812 = vmatpush1.msra.mxu0 %v2765
          %2813 = vmatprep.subr.mxu0 %v2762
          %2814 = vmatpush1.msra.mxu0 %v2761
          %2815 = vmatprep.subr.mxu0 %v2758
          %2816 = vmatpush1.msra.mxu0 %v2757
          %2817 = vmatprep.subr.mxu0 %v2754
          %2818 = vmatpush1.msra.mxu0 %v2753
          %2819 = vmatprep.subr.mxu0 %v2750
          %2820 = vmatpush1.msra.mxu0 %v2749
          %2821 = vmatprep.subr.mxu0 %v2746
          %2822 = vmatpush1.msra.mxu0 %v2745
          %2823 = vmatprep.subr.mxu0 %v2742
          %2824 = vmatpush1.msra.mxu0 %v2741
          %2825 = vmatprep.subr.mxu0 %v2738
          %2826 = vmatpush1.msra.mxu0 %v2737
          %2827 = vmatprep.subr.mxu0 %v2734
          %2828 = vmatpush1.msra.mxu0 %v2733
          %2829 = vmatprep.subr.mxu0 0.0
          %2830 = vmatpush2.msra.mxu0 0.0
          %2831 = vmatprep.subr.mxu0 0.0
          %2832 = vmatpush2.msra.mxu0 0.0
          %2833 = vmatprep.subr.mxu0 0.0
          %2834 = vmatpush2.msra.mxu0 0.0
          %2835 = vmatprep.subr.mxu0 0.0
          %2836 = vmatpush2.msra.mxu0 0.0
          %2837 = vmatprep.subr.mxu0 0.0
          %2838 = vmatpush2.msra.mxu0 0.0
          %2839 = vmatprep.subr.mxu0 0.0
          %2840 = vmatpush2.msra.mxu0 0.0
          %2841 = vmatprep.subr.mxu0 0.0
          %2842 = vmatpush2.msra.mxu0 0.0
          %2843 = vmatprep.subr.mxu0 0.0
          %2844 = vmatpush2.msra.mxu0 0.0
          %2845 = vmatprep.subr.mxu0 0.0
          %2846 = vmatpush2.msra.mxu0 0.0
          %2847 = vmatprep.subr.mxu0 0.0
          %2848 = vmatpush2.msra.mxu0 0.0
          %2849 = vmatprep.subr.mxu0 0.0
          %2850 = vmatpush2.msra.mxu0 0.0
          %2851 = vmatprep.subr.mxu0 0.0
          %2852 = vmatpush2.msra.mxu0 0.0
          %2853 = vmatprep.subr.mxu0 0.0
          %2854 = vmatpush2.msra.mxu0 0.0
          %2855 = vmatprep.subr.mxu0 0.0
          %2856 = vmatpush2.msra.mxu0 0.0
          %2857 = vmatprep.subr.mxu0 0.0
          %2858 = vmatpush2.msra.mxu0 0.0
          %2859 = vmatprep.subr.mxu0 0.0
          %2860 = vmatpush2.msra.mxu0 0.0
          %2861 = vmatprep.mubr.f32.mxu0 0.0
          %2862 = vmatmul.mubr.f32.gmra.mxu0 %v2720
          %v2863 = vpop.f32.mrf.mxu0
          %v2864 = vadd.f32 0.0, %v2863
          %v2865 = vpop.f32.mrf.mxu0
          %v2866 = vadd.f32 0.0, %v2865
          %2867 = vdwg.mxu0
          %2868 = vmatprep.subr.mxu0 %v2796
          %2869 = vmatpush1.msra.mxu0 %v2795
          %2870 = vmatprep.subr.mxu0 %v2792
          %2871 = vmatpush1.msra.mxu0 %v2791
          %2872 = vmatprep.subr.mxu0 %v2788
          %2873 = vmatpush1.msra.mxu0 %v2787
          %2874 = vmatprep.subr.mxu0 %v2784
          %2875 = vmatpush1.msra.mxu0 %v2783
          %2876 = vmatprep.subr.mxu0 %v2780
          %2877 = vmatpush1.msra.mxu0 %v2779
          %2878 = vmatprep.subr.mxu0 %v2776
          %2879 = vmatpush1.msra.mxu0 %v2775
          %2880 = vmatprep.subr.mxu0 %v2772
          %2881 = vmatpush1.msra.mxu0 %v2771
          %2882 = vmatprep.subr.mxu0 %v2768
          %2883 = vmatpush1.msra.mxu0 %v2767
          %2884 = vmatprep.subr.mxu0 %v2764
          %2885 = vmatpush1.msra.mxu0 %v2763
          %2886 = vmatprep.subr.mxu0 %v2760
          %2887 = vmatpush1.msra.mxu0 %v2759
          %2888 = vmatprep.subr.mxu0 %v2756
          %2889 = vmatpush1.msra.mxu0 %v2755
          %2890 = vmatprep.subr.mxu0 %v2752
          %2891 = vmatpush1.msra.mxu0 %v2751
          %2892 = vmatprep.subr.mxu0 %v2748
          %2893 = vmatpush1.msra.mxu0 %v2747
          %2894 = vmatprep.subr.mxu0 %v2744
          %2895 = vmatpush1.msra.mxu0 %v2743
          %2896 = vmatprep.subr.mxu0 %v2740
          %2897 = vmatpush1.msra.mxu0 %v2739
          %2898 = vmatprep.subr.mxu0 %v2736
          %2899 = vmatpush1.msra.mxu0 %v2735
          %2900 = vmatprep.subr.mxu0 0.0
          %2901 = vmatpush2.msra.mxu0 0.0
          %2902 = vmatprep.subr.mxu0 0.0
          %2903 = vmatpush2.msra.mxu0 0.0
          %2904 = vmatprep.subr.mxu0 0.0
          %2905 = vmatpush2.msra.mxu0 0.0
          %2906 = vmatprep.subr.mxu0 0.0
          %2907 = vmatpush2.msra.mxu0 0.0
          %2908 = vmatprep.subr.mxu0 0.0
          %2909 = vmatpush2.msra.mxu0 0.0
          %2910 = vmatprep.subr.mxu0 0.0
          %2911 = vmatpush2.msra.mxu0 0.0
          %2912 = vmatprep.subr.mxu0 0.0
          %2913 = vmatpush2.msra.mxu0 0.0
          %2914 = vmatprep.subr.mxu0 0.0
          %2915 = vmatpush2.msra.mxu0 0.0
          %2916 = vmatprep.subr.mxu0 0.0
          %2917 = vmatpush2.msra.mxu0 0.0
          %2918 = vmatprep.subr.mxu0 0.0
          %2919 = vmatpush2.msra.mxu0 0.0
          %2920 = vmatprep.subr.mxu0 0.0
          %2921 = vmatpush2.msra.mxu0 0.0
          %2922 = vmatprep.subr.mxu0 0.0
          %2923 = vmatpush2.msra.mxu0 0.0
          %2924 = vmatprep.subr.mxu0 0.0
          %2925 = vmatpush2.msra.mxu0 0.0
          %2926 = vmatprep.subr.mxu0 0.0
          %2927 = vmatpush2.msra.mxu0 0.0
          %2928 = vmatprep.subr.mxu0 0.0
          %2929 = vmatpush2.msra.mxu0 0.0
          %2930 = vmatprep.subr.mxu0 0.0
          %2931 = vmatpush2.msra.mxu0 0.0
          %2932 = vmatprep.mubr.f32.mxu0 0.0
          %2933 = vmatmul.mubr.f32.gmra.mxu0 %v2720
          %v2934 = vpop.f32.mrf.mxu0
          %v2935 = vadd.f32 0.0, %v2934
          %v2936 = vpop.f32.mrf.mxu0
          %v2937 = vadd.f32 0.0, %v2936
          %2938 = vdwg.mxu0
          %v2940 = vsel %vm605, %v2724, 0
          %2942 = vmatprep.subr.mxu0 0.0
          %2943 = vmatpush1.msra.mxu0 0.0
          %2944 = vmatprep.subr.mxu0 0.0
          %2945 = vmatpush1.msra.mxu0 0.0
          %2946 = vmatprep.subr.mxu0 0.0
          %2947 = vmatpush1.msra.mxu0 0.0
          %2948 = vmatprep.subr.mxu0 0.0
          %2949 = vmatpush1.msra.mxu0 0.0
          %2950 = vmatprep.subr.mxu0 0.0
          %2951 = vmatpush1.msra.mxu0 0.0
          %2952 = vmatprep.subr.mxu0 0.0
          %2953 = vmatpush1.msra.mxu0 0.0
          %2954 = vmatprep.subr.mxu0 0.0
          %2955 = vmatpush1.msra.mxu0 0.0
          %2956 = vmatprep.subr.mxu0 0.0
          %2957 = vmatpush1.msra.mxu0 0.0
          %2958 = vmatprep.subr.mxu0 0.0
          %2959 = vmatpush1.msra.mxu0 0.0
          %2960 = vmatprep.subr.mxu0 0.0
          %2961 = vmatpush1.msra.mxu0 0.0
          %2962 = vmatprep.subr.mxu0 0.0
          %2963 = vmatpush1.msra.mxu0 0.0
          %2964 = vmatprep.subr.mxu0 0.0
          %2965 = vmatpush1.msra.mxu0 0.0
          %2966 = vmatprep.subr.mxu0 0.0
          %2967 = vmatpush1.msra.mxu0 0.0
          %2968 = vmatprep.subr.mxu0 0.0
          %2969 = vmatpush1.msra.mxu0 0.0
          %2970 = vmatprep.subr.mxu0 %v2730
          %2971 = vmatpush1.msra.mxu0 %v2729
          %2972 = vmatprep.subr.mxu0 %v2726
          %2973 = vmatpush1.msra.mxu0 %v2725
          %2974 = vmatprep.subr.mxu0 0.0
          %2975 = vmatpush2.msra.mxu0 0.0
          %2976 = vmatprep.subr.mxu0 0.0
          %2977 = vmatpush2.msra.mxu0 0.0
          %2978 = vmatprep.subr.mxu0 0.0
          %2979 = vmatpush2.msra.mxu0 0.0
          %2980 = vmatprep.subr.mxu0 0.0
          %2981 = vmatpush2.msra.mxu0 0.0
          %2982 = vmatprep.subr.mxu0 0.0
          %2983 = vmatpush2.msra.mxu0 0.0
          %2984 = vmatprep.subr.mxu0 0.0
          %2985 = vmatpush2.msra.mxu0 0.0
          %2986 = vmatprep.subr.mxu0 0.0
          %2987 = vmatpush2.msra.mxu0 0.0
          %2988 = vmatprep.subr.mxu0 0.0
          %2989 = vmatpush2.msra.mxu0 0.0
          %2990 = vmatprep.subr.mxu0 0.0
          %2991 = vmatpush2.msra.mxu0 0.0
          %2992 = vmatprep.subr.mxu0 0.0
          %2993 = vmatpush2.msra.mxu0 0.0
          %2994 = vmatprep.subr.mxu0 0.0
          %2995 = vmatpush2.msra.mxu0 0.0
          %2996 = vmatprep.subr.mxu0 0.0
          %2997 = vmatpush2.msra.mxu0 0.0
          %2998 = vmatprep.subr.mxu0 0.0
          %2999 = vmatpush2.msra.mxu0 0.0
          %3000 = vmatprep.subr.mxu0 0.0
          %3001 = vmatpush2.msra.mxu0 0.0
          %3002 = vmatprep.subr.mxu0 0.0
          %3003 = vmatpush2.msra.mxu0 0.0
          %3004 = vmatprep.subr.mxu0 0.0
          %3005 = vmatpush2.msra.mxu0 0.0
          %3006 = vmatprep.mubr.f32.mxu0 0.0
          %3007 = vmatmul.mubr.f32.gmra.mxu0 %v2940
          %v3008 = vpop.f32.mrf.mxu0
          %v3009 = vadd.f32 %v2864, %v3008
          %v3010 = vpop.f32.mrf.mxu0
          %v3011 = vadd.f32 %v2866, %v3010
          %3012 = vdwg.mxu0
          %3013 = vmatprep.subr.mxu0 0.0
          %3014 = vmatpush1.msra.mxu0 0.0
          %3015 = vmatprep.subr.mxu0 0.0
          %3016 = vmatpush1.msra.mxu0 0.0
          %3017 = vmatprep.subr.mxu0 0.0
          %3018 = vmatpush1.msra.mxu0 0.0
          %3019 = vmatprep.subr.mxu0 0.0
          %3020 = vmatpush1.msra.mxu0 0.0
          %3021 = vmatprep.subr.mxu0 0.0
          %3022 = vmatpush1.msra.mxu0 0.0
          %3023 = vmatprep.subr.mxu0 0.0
          %3024 = vmatpush1.msra.mxu0 0.0
          %3025 = vmatprep.subr.mxu0 0.0
          %3026 = vmatpush1.msra.mxu0 0.0
          %3027 = vmatprep.subr.mxu0 0.0
          %3028 = vmatpush1.msra.mxu0 0.0
          %3029 = vmatprep.subr.mxu0 0.0
          %3030 = vmatpush1.msra.mxu0 0.0
          %3031 = vmatprep.subr.mxu0 0.0
          %3032 = vmatpush1.msra.mxu0 0.0
          %3033 = vmatprep.subr.mxu0 0.0
          %3034 = vmatpush1.msra.mxu0 0.0
          %3035 = vmatprep.subr.mxu0 0.0
          %3036 = vmatpush1.msra.mxu0 0.0
          %3037 = vmatprep.subr.mxu0 0.0
          %3038 = vmatpush1.msra.mxu0 0.0
          %3039 = vmatprep.subr.mxu0 0.0
          %3040 = vmatpush1.msra.mxu0 0.0
          %3041 = vmatprep.subr.mxu0 %v2732
          %3042 = vmatpush1.msra.mxu0 %v2731
          %3043 = vmatprep.subr.mxu0 %v2728
          %3044 = vmatpush1.msra.mxu0 %v2727
          %3045 = vmatprep.subr.mxu0 0.0
          %3046 = vmatpush2.msra.mxu0 0.0
          %3047 = vmatprep.subr.mxu0 0.0
          %3048 = vmatpush2.msra.mxu0 0.0
          %3049 = vmatprep.subr.mxu0 0.0
          %3050 = vmatpush2.msra.mxu0 0.0
          %3051 = vmatprep.subr.mxu0 0.0
          %3052 = vmatpush2.msra.mxu0 0.0
          %3053 = vmatprep.subr.mxu0 0.0
          %3054 = vmatpush2.msra.mxu0 0.0
          %3055 = vmatprep.subr.mxu0 0.0
          %3056 = vmatpush2.msra.mxu0 0.0
          %3057 = vmatprep.subr.mxu0 0.0
          %3058 = vmatpush2.msra.mxu0 0.0
          %3059 = vmatprep.subr.mxu0 0.0
          %3060 = vmatpush2.msra.mxu0 0.0
          %3061 = vmatprep.subr.mxu0 0.0
          %3062 = vmatpush2.msra.mxu0 0.0
          %3063 = vmatprep.subr.mxu0 0.0
          %3064 = vmatpush2.msra.mxu0 0.0
          %3065 = vmatprep.subr.mxu0 0.0
          %3066 = vmatpush2.msra.mxu0 0.0
          %3067 = vmatprep.subr.mxu0 0.0
          %3068 = vmatpush2.msra.mxu0 0.0
          %3069 = vmatprep.subr.mxu0 0.0
          %3070 = vmatpush2.msra.mxu0 0.0
          %3071 = vmatprep.subr.mxu0 0.0
          %3072 = vmatpush2.msra.mxu0 0.0
          %3073 = vmatprep.subr.mxu0 0.0
          %3074 = vmatpush2.msra.mxu0 0.0
          %3075 = vmatprep.subr.mxu0 0.0
          %3076 = vmatpush2.msra.mxu0 0.0
          %3077 = vmatprep.mubr.f32.mxu0 0.0
          %3078 = vmatmul.mubr.f32.gmra.mxu0 %v2940
          %v3079 = vpop.f32.mrf.mxu0
          %v3080 = vadd.f32 %v2935, %v3079
          %v3081 = vpop.f32.mrf.mxu0
          %v3082 = vadd.f32 %v2937, %v3081
          %3083 = vdwg.mxu0
          %v3084 = vld [vmem:[#allocation10] sm:$0xff]
          %v3085 = vld [vmem:[#allocation10 + $0x8] sm:$0xff]
          %v3086 = vld [vmem:[#allocation10 + $0x10] sm:$0xff]
          %v3087 = vld [vmem:[#allocation10 + $0x18] sm:$0xff]
          %v3088 = vadd.f32 %v3009, %v3084
          %v3089 = vadd.f32 %v3011, %v3085
          %v3090 = vadd.f32 %v3080, %v3086
          %v3091 = vadd.f32 %v3082, %v3087
          %v3092 = vmul.f32 %v3088, 0.5
          %v3093 = vtanh.pop %v3092
          %v3094 = vmul.f32 %v3093, 0.5
          %v3095 = vadd.f32 %v3094, 0.5
          %v3096 = vmul.f32 %v3089, 0.5
          %v3097 = vtanh.pop %v3096
          %v3098 = vmul.f32 %v3097, 0.5
          %v3099 = vadd.f32 %v3098, 0.5
          %v3100 = vtanh.pop %v3090
          %v3101 = vmul.f32 %v3091, 0.5
          %v3102 = vtanh.pop %v3101
          %v3103 = vmul.f32 %v3102, 0.5
          %v3104 = vadd.f32 %v3103, 0.5
          %v3105 = vmul.f32 %v3099, %v2718
          %v3106 = vmul.f32 %v3095, %v3100
          %v3107 = vadd.f32 %v3105, %v3106
          %v3108 = vtanh.pop %v3107
          %v3109 = vmul.f32 %v3104, %v3108
          %s3110 = scalar_lea.vmem %s369, 48 [#allocation13]
          %3111 = vst [vmem:[%s3110] sm:$0xff] %v3109
          %s3112 = scalar_lea.vmem %s325, 56 [#allocation4]
          %v3113 = vld [vmem:[%s3112] sm:$0xff]
          %v3114 = vld [vmem:[#allocation7] sm:$0xff]
          %v3115 = vld [vmem:[#allocation7 + $0x8] sm:$0xff]
          %v3116 = vld [vmem:[#allocation7 + $0x10] sm:$0xff]
          %v3117 = vld [vmem:[#allocation7 + $0x18] sm:$0xff]
          %v3118 = vld [vmem:[#allocation7 + $0x20] sm:$0xff]
          %v3119 = vld [vmem:[#allocation7 + $0x28] sm:$0xff]
          %v3120 = vld [vmem:[#allocation7 + $0x30] sm:$0xff]
          %v3121 = vld [vmem:[#allocation7 + $0x38] sm:$0xff]
          %v3122 = vld [vmem:[#allocation9] sm:$0xff]
          %v3123 = vld [vmem:[#allocation9 + $0x8] sm:$0xff]
          %v3124 = vld [vmem:[#allocation9 + $0x10] sm:$0xff]
          %v3125 = vld [vmem:[#allocation9 + $0x18] sm:$0xff]
          %v3126 = vld [vmem:[#allocation9 + $0x20] sm:$0xff]
          %v3127 = vld [vmem:[#allocation9 + $0x28] sm:$0xff]
          %v3128 = vld [vmem:[#allocation9 + $0x30] sm:$0xff]
          %v3129 = vld [vmem:[#allocation9 + $0x38] sm:$0xff]
          %v3130 = vld [vmem:[#allocation9 + $0x40] sm:$0xff]
          %v3131 = vld [vmem:[#allocation9 + $0x48] sm:$0xff]
          %v3132 = vld [vmem:[#allocation9 + $0x50] sm:$0xff]
          %v3133 = vld [vmem:[#allocation9 + $0x58] sm:$0xff]
          %v3134 = vld [vmem:[#allocation9 + $0x60] sm:$0xff]
          %v3135 = vld [vmem:[#allocation9 + $0x68] sm:$0xff]
          %v3136 = vld [vmem:[#allocation9 + $0x70] sm:$0xff]
          %v3137 = vld [vmem:[#allocation9 + $0x78] sm:$0xff]
          %v3138 = vld [vmem:[#allocation9 + $0x80] sm:$0xff]
          %v3139 = vld [vmem:[#allocation9 + $0x88] sm:$0xff]
          %v3140 = vld [vmem:[#allocation9 + $0x90] sm:$0xff]
          %v3141 = vld [vmem:[#allocation9 + $0x98] sm:$0xff]
          %v3142 = vld [vmem:[#allocation9 + $0xa0] sm:$0xff]
          %v3143 = vld [vmem:[#allocation9 + $0xa8] sm:$0xff]
          %v3144 = vld [vmem:[#allocation9 + $0xb0] sm:$0xff]
          %v3145 = vld [vmem:[#allocation9 + $0xb8] sm:$0xff]
          %v3146 = vld [vmem:[#allocation9 + $0xc0] sm:$0xff]
          %v3147 = vld [vmem:[#allocation9 + $0xc8] sm:$0xff]
          %v3148 = vld [vmem:[#allocation9 + $0xd0] sm:$0xff]
          %v3149 = vld [vmem:[#allocation9 + $0xd8] sm:$0xff]
          %v3150 = vld [vmem:[#allocation9 + $0xe0] sm:$0xff]
          %v3151 = vld [vmem:[#allocation9 + $0xe8] sm:$0xff]
          %v3152 = vld [vmem:[#allocation9 + $0xf0] sm:$0xff]
          %v3153 = vld [vmem:[#allocation9 + $0xf8] sm:$0xff]
          %v3154 = vld [vmem:[#allocation9 + $0x100] sm:$0xff]
          %v3155 = vld [vmem:[#allocation9 + $0x108] sm:$0xff]
          %v3156 = vld [vmem:[#allocation9 + $0x110] sm:$0xff]
          %v3157 = vld [vmem:[#allocation9 + $0x118] sm:$0xff]
          %v3158 = vld [vmem:[#allocation9 + $0x120] sm:$0xff]
          %v3159 = vld [vmem:[#allocation9 + $0x128] sm:$0xff]
          %v3160 = vld [vmem:[#allocation9 + $0x130] sm:$0xff]
          %v3161 = vld [vmem:[#allocation9 + $0x138] sm:$0xff]
          %v3162 = vld [vmem:[#allocation9 + $0x140] sm:$0xff]
          %v3163 = vld [vmem:[#allocation9 + $0x148] sm:$0xff]
          %v3164 = vld [vmem:[#allocation9 + $0x150] sm:$0xff]
          %v3165 = vld [vmem:[#allocation9 + $0x158] sm:$0xff]
          %v3166 = vld [vmem:[#allocation9 + $0x160] sm:$0xff]
          %v3167 = vld [vmem:[#allocation9 + $0x168] sm:$0xff]
          %v3168 = vld [vmem:[#allocation9 + $0x170] sm:$0xff]
          %v3169 = vld [vmem:[#allocation9 + $0x178] sm:$0xff]
          %v3170 = vld [vmem:[#allocation9 + $0x180] sm:$0xff]
          %v3171 = vld [vmem:[#allocation9 + $0x188] sm:$0xff]
          %v3172 = vld [vmem:[#allocation9 + $0x190] sm:$0xff]
          %v3173 = vld [vmem:[#allocation9 + $0x198] sm:$0xff]
          %v3174 = vld [vmem:[#allocation9 + $0x1a0] sm:$0xff]
          %v3175 = vld [vmem:[#allocation9 + $0x1a8] sm:$0xff]
          %v3176 = vld [vmem:[#allocation9 + $0x1b0] sm:$0xff]
          %v3177 = vld [vmem:[#allocation9 + $0x1b8] sm:$0xff]
          %v3178 = vld [vmem:[#allocation9 + $0x1c0] sm:$0xff]
          %v3179 = vld [vmem:[#allocation9 + $0x1c8] sm:$0xff]
          %v3180 = vld [vmem:[#allocation9 + $0x1d0] sm:$0xff]
          %v3181 = vld [vmem:[#allocation9 + $0x1d8] sm:$0xff]
          %v3182 = vld [vmem:[#allocation9 + $0x1e0] sm:$0xff]
          %v3183 = vld [vmem:[#allocation9 + $0x1e8] sm:$0xff]
          %v3184 = vld [vmem:[#allocation9 + $0x1f0] sm:$0xff]
          %v3185 = vld [vmem:[#allocation9 + $0x1f8] sm:$0xff]
          %3186 = vmatprep.subr.mxu0 %v3183
          %3187 = vmatpush1.msra.mxu0 %v3182
          %3188 = vmatprep.subr.mxu0 %v3179
          %3189 = vmatpush1.msra.mxu0 %v3178
          %3190 = vmatprep.subr.mxu0 %v3175
          %3191 = vmatpush1.msra.mxu0 %v3174
          %3192 = vmatprep.subr.mxu0 %v3171
          %3193 = vmatpush1.msra.mxu0 %v3170
          %3194 = vmatprep.subr.mxu0 %v3167
          %3195 = vmatpush1.msra.mxu0 %v3166
          %3196 = vmatprep.subr.mxu0 %v3163
          %3197 = vmatpush1.msra.mxu0 %v3162
          %3198 = vmatprep.subr.mxu0 %v3159
          %3199 = vmatpush1.msra.mxu0 %v3158
          %3200 = vmatprep.subr.mxu0 %v3155
          %3201 = vmatpush1.msra.mxu0 %v3154
          %3202 = vmatprep.subr.mxu0 %v3151
          %3203 = vmatpush1.msra.mxu0 %v3150
          %3204 = vmatprep.subr.mxu0 %v3147
          %3205 = vmatpush1.msra.mxu0 %v3146
          %3206 = vmatprep.subr.mxu0 %v3143
          %3207 = vmatpush1.msra.mxu0 %v3142
          %3208 = vmatprep.subr.mxu0 %v3139
          %3209 = vmatpush1.msra.mxu0 %v3138
          %3210 = vmatprep.subr.mxu0 %v3135
          %3211 = vmatpush1.msra.mxu0 %v3134
          %3212 = vmatprep.subr.mxu0 %v3131
          %3213 = vmatpush1.msra.mxu0 %v3130
          %3214 = vmatprep.subr.mxu0 %v3127
          %3215 = vmatpush1.msra.mxu0 %v3126
          %3216 = vmatprep.subr.mxu0 %v3123
          %3217 = vmatpush1.msra.mxu0 %v3122
          %3218 = vmatprep.subr.mxu0 0.0
          %3219 = vmatpush2.msra.mxu0 0.0
          %3220 = vmatprep.subr.mxu0 0.0
          %3221 = vmatpush2.msra.mxu0 0.0
          %3222 = vmatprep.subr.mxu0 0.0
          %3223 = vmatpush2.msra.mxu0 0.0
          %3224 = vmatprep.subr.mxu0 0.0
          %3225 = vmatpush2.msra.mxu0 0.0
          %3226 = vmatprep.subr.mxu0 0.0
          %3227 = vmatpush2.msra.mxu0 0.0
          %3228 = vmatprep.subr.mxu0 0.0
          %3229 = vmatpush2.msra.mxu0 0.0
          %3230 = vmatprep.subr.mxu0 0.0
          %3231 = vmatpush2.msra.mxu0 0.0
          %3232 = vmatprep.subr.mxu0 0.0
          %3233 = vmatpush2.msra.mxu0 0.0
          %3234 = vmatprep.subr.mxu0 0.0
          %3235 = vmatpush2.msra.mxu0 0.0
          %3236 = vmatprep.subr.mxu0 0.0
          %3237 = vmatpush2.msra.mxu0 0.0
          %3238 = vmatprep.subr.mxu0 0.0
          %3239 = vmatpush2.msra.mxu0 0.0
          %3240 = vmatprep.subr.mxu0 0.0
          %3241 = vmatpush2.msra.mxu0 0.0
          %3242 = vmatprep.subr.mxu0 0.0
          %3243 = vmatpush2.msra.mxu0 0.0
          %3244 = vmatprep.subr.mxu0 0.0
          %3245 = vmatpush2.msra.mxu0 0.0
          %3246 = vmatprep.subr.mxu0 0.0
          %3247 = vmatpush2.msra.mxu0 0.0
          %3248 = vmatprep.subr.mxu0 0.0
          %3249 = vmatpush2.msra.mxu0 0.0
          %3250 = vmatprep.mubr.f32.mxu0 0.0
          %3251 = vmatmul.mubr.f32.gmra.mxu0 %v3109
          %v3252 = vpop.f32.mrf.mxu0
          %v3253 = vadd.f32 0.0, %v3252
          %v3254 = vpop.f32.mrf.mxu0
          %v3255 = vadd.f32 0.0, %v3254
          %3256 = vdwg.mxu0
          %3257 = vmatprep.subr.mxu0 %v3185
          %3258 = vmatpush1.msra.mxu0 %v3184
          %3259 = vmatprep.subr.mxu0 %v3181
          %3260 = vmatpush1.msra.mxu0 %v3180
          %3261 = vmatprep.subr.mxu0 %v3177
          %3262 = vmatpush1.msra.mxu0 %v3176
          %3263 = vmatprep.subr.mxu0 %v3173
          %3264 = vmatpush1.msra.mxu0 %v3172
          %3265 = vmatprep.subr.mxu0 %v3169
          %3266 = vmatpush1.msra.mxu0 %v3168
          %3267 = vmatprep.subr.mxu0 %v3165
          %3268 = vmatpush1.msra.mxu0 %v3164
          %3269 = vmatprep.subr.mxu0 %v3161
          %3270 = vmatpush1.msra.mxu0 %v3160
          %3271 = vmatprep.subr.mxu0 %v3157
          %3272 = vmatpush1.msra.mxu0 %v3156
          %3273 = vmatprep.subr.mxu0 %v3153
          %3274 = vmatpush1.msra.mxu0 %v3152
          %3275 = vmatprep.subr.mxu0 %v3149
          %3276 = vmatpush1.msra.mxu0 %v3148
          %3277 = vmatprep.subr.mxu0 %v3145
          %3278 = vmatpush1.msra.mxu0 %v3144
          %3279 = vmatprep.subr.mxu0 %v3141
          %3280 = vmatpush1.msra.mxu0 %v3140
          %3281 = vmatprep.subr.mxu0 %v3137
          %3282 = vmatpush1.msra.mxu0 %v3136
          %3283 = vmatprep.subr.mxu0 %v3133
          %3284 = vmatpush1.msra.mxu0 %v3132
          %3285 = vmatprep.subr.mxu0 %v3129
          %3286 = vmatpush1.msra.mxu0 %v3128
          %3287 = vmatprep.subr.mxu0 %v3125
          %3288 = vmatpush1.msra.mxu0 %v3124
          %3289 = vmatprep.subr.mxu0 0.0
          %3290 = vmatpush2.msra.mxu0 0.0
          %3291 = vmatprep.subr.mxu0 0.0
          %3292 = vmatpush2.msra.mxu0 0.0
          %3293 = vmatprep.subr.mxu0 0.0
          %3294 = vmatpush2.msra.mxu0 0.0
          %3295 = vmatprep.subr.mxu0 0.0
          %3296 = vmatpush2.msra.mxu0 0.0
          %3297 = vmatprep.subr.mxu0 0.0
          %3298 = vmatpush2.msra.mxu0 0.0
          %3299 = vmatprep.subr.mxu0 0.0
          %3300 = vmatpush2.msra.mxu0 0.0
          %3301 = vmatprep.subr.mxu0 0.0
          %3302 = vmatpush2.msra.mxu0 0.0
          %3303 = vmatprep.subr.mxu0 0.0
          %3304 = vmatpush2.msra.mxu0 0.0
          %3305 = vmatprep.subr.mxu0 0.0
          %3306 = vmatpush2.msra.mxu0 0.0
          %3307 = vmatprep.subr.mxu0 0.0
          %3308 = vmatpush2.msra.mxu0 0.0
          %3309 = vmatprep.subr.mxu0 0.0
          %3310 = vmatpush2.msra.mxu0 0.0
          %3311 = vmatprep.subr.mxu0 0.0
          %3312 = vmatpush2.msra.mxu0 0.0
          %3313 = vmatprep.subr.mxu0 0.0
          %3314 = vmatpush2.msra.mxu0 0.0
          %3315 = vmatprep.subr.mxu0 0.0
          %3316 = vmatpush2.msra.mxu0 0.0
          %3317 = vmatprep.subr.mxu0 0.0
          %3318 = vmatpush2.msra.mxu0 0.0
          %3319 = vmatprep.subr.mxu0 0.0
          %3320 = vmatpush2.msra.mxu0 0.0
          %3321 = vmatprep.mubr.f32.mxu0 0.0
          %3322 = vmatmul.mubr.f32.gmra.mxu0 %v3109
          %v3323 = vpop.f32.mrf.mxu0
          %v3324 = vadd.f32 0.0, %v3323
          %v3325 = vpop.f32.mrf.mxu0
          %v3326 = vadd.f32 0.0, %v3325
          %3327 = vdwg.mxu0
          %v3329 = vsel %vm605, %v3113, 0
          %3331 = vmatprep.subr.mxu0 0.0
          %3332 = vmatpush1.msra.mxu0 0.0
          %3333 = vmatprep.subr.mxu0 0.0
          %3334 = vmatpush1.msra.mxu0 0.0
          %3335 = vmatprep.subr.mxu0 0.0
          %3336 = vmatpush1.msra.mxu0 0.0
          %3337 = vmatprep.subr.mxu0 0.0
          %3338 = vmatpush1.msra.mxu0 0.0
          %3339 = vmatprep.subr.mxu0 0.0
          %3340 = vmatpush1.msra.mxu0 0.0
          %3341 = vmatprep.subr.mxu0 0.0
          %3342 = vmatpush1.msra.mxu0 0.0
          %3343 = vmatprep.subr.mxu0 0.0
          %3344 = vmatpush1.msra.mxu0 0.0
          %3345 = vmatprep.subr.mxu0 0.0
          %3346 = vmatpush1.msra.mxu0 0.0
          %3347 = vmatprep.subr.mxu0 0.0
          %3348 = vmatpush1.msra.mxu0 0.0
          %3349 = vmatprep.subr.mxu0 0.0
          %3350 = vmatpush1.msra.mxu0 0.0
          %3351 = vmatprep.subr.mxu0 0.0
          %3352 = vmatpush1.msra.mxu0 0.0
          %3353 = vmatprep.subr.mxu0 0.0
          %3354 = vmatpush1.msra.mxu0 0.0
          %3355 = vmatprep.subr.mxu0 0.0
          %3356 = vmatpush1.msra.mxu0 0.0
          %3357 = vmatprep.subr.mxu0 0.0
          %3358 = vmatpush1.msra.mxu0 0.0
          %3359 = vmatprep.subr.mxu0 %v3119
          %3360 = vmatpush1.msra.mxu0 %v3118
          %3361 = vmatprep.subr.mxu0 %v3115
          %3362 = vmatpush1.msra.mxu0 %v3114
          %3363 = vmatprep.subr.mxu0 0.0
          %3364 = vmatpush2.msra.mxu0 0.0
          %3365 = vmatprep.subr.mxu0 0.0
          %3366 = vmatpush2.msra.mxu0 0.0
          %3367 = vmatprep.subr.mxu0 0.0
          %3368 = vmatpush2.msra.mxu0 0.0
          %3369 = vmatprep.subr.mxu0 0.0
          %3370 = vmatpush2.msra.mxu0 0.0
          %3371 = vmatprep.subr.mxu0 0.0
          %3372 = vmatpush2.msra.mxu0 0.0
          %3373 = vmatprep.subr.mxu0 0.0
          %3374 = vmatpush2.msra.mxu0 0.0
          %3375 = vmatprep.subr.mxu0 0.0
          %3376 = vmatpush2.msra.mxu0 0.0
          %3377 = vmatprep.subr.mxu0 0.0
          %3378 = vmatpush2.msra.mxu0 0.0
          %3379 = vmatprep.subr.mxu0 0.0
          %3380 = vmatpush2.msra.mxu0 0.0
          %3381 = vmatprep.subr.mxu0 0.0
          %3382 = vmatpush2.msra.mxu0 0.0
          %3383 = vmatprep.subr.mxu0 0.0
          %3384 = vmatpush2.msra.mxu0 0.0
          %3385 = vmatprep.subr.mxu0 0.0
          %3386 = vmatpush2.msra.mxu0 0.0
          %3387 = vmatprep.subr.mxu0 0.0
          %3388 = vmatpush2.msra.mxu0 0.0
          %3389 = vmatprep.subr.mxu0 0.0
          %3390 = vmatpush2.msra.mxu0 0.0
          %3391 = vmatprep.subr.mxu0 0.0
          %3392 = vmatpush2.msra.mxu0 0.0
          %3393 = vmatprep.subr.mxu0 0.0
          %3394 = vmatpush2.msra.mxu0 0.0
          %3395 = vmatprep.mubr.f32.mxu0 0.0
          %3396 = vmatmul.mubr.f32.gmra.mxu0 %v3329
          %v3397 = vpop.f32.mrf.mxu0
          %v3398 = vadd.f32 %v3253, %v3397
          %v3399 = vpop.f32.mrf.mxu0
          %v3400 = vadd.f32 %v3255, %v3399
          %3401 = vdwg.mxu0
          %3402 = vmatprep.subr.mxu0 0.0
          %3403 = vmatpush1.msra.mxu0 0.0
          %3404 = vmatprep.subr.mxu0 0.0
          %3405 = vmatpush1.msra.mxu0 0.0
          %3406 = vmatprep.subr.mxu0 0.0
          %3407 = vmatpush1.msra.mxu0 0.0
          %3408 = vmatprep.subr.mxu0 0.0
          %3409 = vmatpush1.msra.mxu0 0.0
          %3410 = vmatprep.subr.mxu0 0.0
          %3411 = vmatpush1.msra.mxu0 0.0
          %3412 = vmatprep.subr.mxu0 0.0
          %3413 = vmatpush1.msra.mxu0 0.0
          %3414 = vmatprep.subr.mxu0 0.0
          %3415 = vmatpush1.msra.mxu0 0.0
          %3416 = vmatprep.subr.mxu0 0.0
          %3417 = vmatpush1.msra.mxu0 0.0
          %3418 = vmatprep.subr.mxu0 0.0
          %3419 = vmatpush1.msra.mxu0 0.0
          %3420 = vmatprep.subr.mxu0 0.0
          %3421 = vmatpush1.msra.mxu0 0.0
          %3422 = vmatprep.subr.mxu0 0.0
          %3423 = vmatpush1.msra.mxu0 0.0
          %3424 = vmatprep.subr.mxu0 0.0
          %3425 = vmatpush1.msra.mxu0 0.0
          %3426 = vmatprep.subr.mxu0 0.0
          %3427 = vmatpush1.msra.mxu0 0.0
          %3428 = vmatprep.subr.mxu0 0.0
          %3429 = vmatpush1.msra.mxu0 0.0
          %3430 = vmatprep.subr.mxu0 %v3121
          %3431 = vmatpush1.msra.mxu0 %v3120
          %3432 = vmatprep.subr.mxu0 %v3117
          %3433 = vmatpush1.msra.mxu0 %v3116
          %3434 = vmatprep.subr.mxu0 0.0
          %3435 = vmatpush2.msra.mxu0 0.0
          %3436 = vmatprep.subr.mxu0 0.0
          %3437 = vmatpush2.msra.mxu0 0.0
          %3438 = vmatprep.subr.mxu0 0.0
          %3439 = vmatpush2.msra.mxu0 0.0
          %3440 = vmatprep.subr.mxu0 0.0
          %3441 = vmatpush2.msra.mxu0 0.0
          %3442 = vmatprep.subr.mxu0 0.0
          %3443 = vmatpush2.msra.mxu0 0.0
          %3444 = vmatprep.subr.mxu0 0.0
          %3445 = vmatpush2.msra.mxu0 0.0
          %3446 = vmatprep.subr.mxu0 0.0
          %3447 = vmatpush2.msra.mxu0 0.0
          %3448 = vmatprep.subr.mxu0 0.0
          %3449 = vmatpush2.msra.mxu0 0.0
          %3450 = vmatprep.subr.mxu0 0.0
          %3451 = vmatpush2.msra.mxu0 0.0
          %3452 = vmatprep.subr.mxu0 0.0
          %3453 = vmatpush2.msra.mxu0 0.0
          %3454 = vmatprep.subr.mxu0 0.0
          %3455 = vmatpush2.msra.mxu0 0.0
          %3456 = vmatprep.subr.mxu0 0.0
          %3457 = vmatpush2.msra.mxu0 0.0
          %3458 = vmatprep.subr.mxu0 0.0
          %3459 = vmatpush2.msra.mxu0 0.0
          %3460 = vmatprep.subr.mxu0 0.0
          %3461 = vmatpush2.msra.mxu0 0.0
          %3462 = vmatprep.subr.mxu0 0.0
          %3463 = vmatpush2.msra.mxu0 0.0
          %3464 = vmatprep.subr.mxu0 0.0
          %3465 = vmatpush2.msra.mxu0 0.0
          %3466 = vmatprep.mubr.f32.mxu0 0.0
          %3467 = vmatmul.mubr.f32.gmra.mxu0 %v3329
          %v3468 = vpop.f32.mrf.mxu0
          %v3469 = vadd.f32 %v3324, %v3468
          %v3470 = vpop.f32.mrf.mxu0
          %v3471 = vadd.f32 %v3326, %v3470
          %3472 = vdwg.mxu0
          %v3473 = vld [vmem:[#allocation10] sm:$0xff]
          %v3474 = vld [vmem:[#allocation10 + $0x8] sm:$0xff]
          %v3475 = vld [vmem:[#allocation10 + $0x10] sm:$0xff]
          %v3476 = vld [vmem:[#allocation10 + $0x18] sm:$0xff]
          %v3477 = vadd.f32 %v3398, %v3473
          %v3478 = vadd.f32 %v3400, %v3474
          %v3479 = vadd.f32 %v3469, %v3475
          %v3480 = vadd.f32 %v3471, %v3476
          %v3481 = vmul.f32 %v3477, 0.5
          %v3482 = vtanh.pop %v3481
          %v3483 = vmul.f32 %v3482, 0.5
          %v3484 = vadd.f32 %v3483, 0.5
          %v3485 = vmul.f32 %v3478, 0.5
          %v3486 = vtanh.pop %v3485
          %v3487 = vmul.f32 %v3486, 0.5
          %v3488 = vadd.f32 %v3487, 0.5
          %v3489 = vtanh.pop %v3479
          %v3490 = vmul.f32 %v3480, 0.5
          %v3491 = vtanh.pop %v3490
          %v3492 = vmul.f32 %v3491, 0.5
          %v3493 = vadd.f32 %v3492, 0.5
          %v3494 = vmul.f32 %v3488, %v3107
          %v3495 = vmul.f32 %v3484, %v3489
          %v3496 = vadd.f32 %v3494, %v3495
          %v3497 = vtanh.pop %v3496
          %v3498 = vmul.f32 %v3493, %v3497
          %s3499 = scalar_lea.vmem %s369, 56 [#allocation13]
          %3500 = vst [vmem:[%s3499] sm:$0xff] %v3498
          %3501 = vst [vmem:[#allocation2] sm:$0xff] %v3498
          %3502 = vst [vmem:[#allocation3] sm:$0xff] %v3496
        $region72: #{tpu_custom_call.1} parent=43 // pred_fallthru
          _
        %p3503 = scmp.eq.s32.totalorder %s29, 1
        // Predicated region
        $region73: #{tpu_custom_call.1} parent=43 // pred_check
          %p3504 = pneg %p3503
        $region74: #{tpu_custom_call.1} parent=43 // pred_check_branch
          %3506 = sbr.rel (%p3504) target = $region76
        $region75: #{tpu_custom_call.1} parent=43 // pred_region
          %v3507 = vld [vmem:[#allocation2] sm:$0xff]
          %v3508 = vld [vmem:[#allocation3] sm:$0xff]
          %v3509 = vld [vmem:[%s325] sm:$0xff]
          %v3510 = vld [vmem:[#allocation7] sm:$0xff]
          %v3511 = vld [vmem:[#allocation7 + $0x8] sm:$0xff]
          %v3512 = vld [vmem:[#allocation7 + $0x10] sm:$0xff]
          %v3513 = vld [vmem:[#allocation7 + $0x18] sm:$0xff]
          %v3514 = vld [vmem:[#allocation7 + $0x20] sm:$0xff]
          %v3515 = vld [vmem:[#allocation7 + $0x28] sm:$0xff]
          %v3516 = vld [vmem:[#allocation7 + $0x30] sm:$0xff]
          %v3517 = vld [vmem:[#allocation7 + $0x38] sm:$0xff]
          %v3518 = vld [vmem:[#allocation9] sm:$0xff]
          %v3519 = vld [vmem:[#allocation9 + $0x8] sm:$0xff]
          %v3520 = vld [vmem:[#allocation9 + $0x10] sm:$0xff]
          %v3521 = vld [vmem:[#allocation9 + $0x18] sm:$0xff]
          %v3522 = vld [vmem:[#allocation9 + $0x20] sm:$0xff]
          %v3523 = vld [vmem:[#allocation9 + $0x28] sm:$0xff]
          %v3524 = vld [vmem:[#allocation9 + $0x30] sm:$0xff]
          %v3525 = vld [vmem:[#allocation9 + $0x38] sm:$0xff]
          %v3526 = vld [vmem:[#allocation9 + $0x40] sm:$0xff]
          %v3527 = vld [vmem:[#allocation9 + $0x48] sm:$0xff]
          %v3528 = vld [vmem:[#allocation9 + $0x50] sm:$0xff]
          %v3529 = vld [vmem:[#allocation9 + $0x58] sm:$0xff]
          %v3530 = vld [vmem:[#allocation9 + $0x60] sm:$0xff]
          %v3531 = vld [vmem:[#allocation9 + $0x68] sm:$0xff]
          %v3532 = vld [vmem:[#allocation9 + $0x70] sm:$0xff]
          %v3533 = vld [vmem:[#allocation9 + $0x78] sm:$0xff]
          %v3534 = vld [vmem:[#allocation9 + $0x80] sm:$0xff]
          %v3535 = vld [vmem:[#allocation9 + $0x88] sm:$0xff]
          %v3536 = vld [vmem:[#allocation9 + $0x90] sm:$0xff]
          %v3537 = vld [vmem:[#allocation9 + $0x98] sm:$0xff]
          %v3538 = vld [vmem:[#allocation9 + $0xa0] sm:$0xff]
          %v3539 = vld [vmem:[#allocation9 + $0xa8] sm:$0xff]
          %v3540 = vld [vmem:[#allocation9 + $0xb0] sm:$0xff]
          %v3541 = vld [vmem:[#allocation9 + $0xb8] sm:$0xff]
          %v3542 = vld [vmem:[#allocation9 + $0xc0] sm:$0xff]
          %v3543 = vld [vmem:[#allocation9 + $0xc8] sm:$0xff]
          %v3544 = vld [vmem:[#allocation9 + $0xd0] sm:$0xff]
          %v3545 = vld [vmem:[#allocation9 + $0xd8] sm:$0xff]
          %v3546 = vld [vmem:[#allocation9 + $0xe0] sm:$0xff]
          %v3547 = vld [vmem:[#allocation9 + $0xe8] sm:$0xff]
          %v3548 = vld [vmem:[#allocation9 + $0xf0] sm:$0xff]
          %v3549 = vld [vmem:[#allocation9 + $0xf8] sm:$0xff]
          %v3550 = vld [vmem:[#allocation9 + $0x100] sm:$0xff]
          %v3551 = vld [vmem:[#allocation9 + $0x108] sm:$0xff]
          %v3552 = vld [vmem:[#allocation9 + $0x110] sm:$0xff]
          %v3553 = vld [vmem:[#allocation9 + $0x118] sm:$0xff]
          %v3554 = vld [vmem:[#allocation9 + $0x120] sm:$0xff]
          %v3555 = vld [vmem:[#allocation9 + $0x128] sm:$0xff]
          %v3556 = vld [vmem:[#allocation9 + $0x130] sm:$0xff]
          %v3557 = vld [vmem:[#allocation9 + $0x138] sm:$0xff]
          %v3558 = vld [vmem:[#allocation9 + $0x140] sm:$0xff]
          %v3559 = vld [vmem:[#allocation9 + $0x148] sm:$0xff]
          %v3560 = vld [vmem:[#allocation9 + $0x150] sm:$0xff]
          %v3561 = vld [vmem:[#allocation9 + $0x158] sm:$0xff]
          %v3562 = vld [vmem:[#allocation9 + $0x160] sm:$0xff]
          %v3563 = vld [vmem:[#allocation9 + $0x168] sm:$0xff]
          %v3564 = vld [vmem:[#allocation9 + $0x170] sm:$0xff]
          %v3565 = vld [vmem:[#allocation9 + $0x178] sm:$0xff]
          %v3566 = vld [vmem:[#allocation9 + $0x180] sm:$0xff]
          %v3567 = vld [vmem:[#allocation9 + $0x188] sm:$0xff]
          %v3568 = vld [vmem:[#allocation9 + $0x190] sm:$0xff]
          %v3569 = vld [vmem:[#allocation9 + $0x198] sm:$0xff]
          %v3570 = vld [vmem:[#allocation9 + $0x1a0] sm:$0xff]
          %v3571 = vld [vmem:[#allocation9 + $0x1a8] sm:$0xff]
          %v3572 = vld [vmem:[#allocation9 + $0x1b0] sm:$0xff]
          %v3573 = vld [vmem:[#allocation9 + $0x1b8] sm:$0xff]
          %v3574 = vld [vmem:[#allocation9 + $0x1c0] sm:$0xff]
          %v3575 = vld [vmem:[#allocation9 + $0x1c8] sm:$0xff]
          %v3576 = vld [vmem:[#allocation9 + $0x1d0] sm:$0xff]
          %v3577 = vld [vmem:[#allocation9 + $0x1d8] sm:$0xff]
          %v3578 = vld [vmem:[#allocation9 + $0x1e0] sm:$0xff]
          %v3579 = vld [vmem:[#allocation9 + $0x1e8] sm:$0xff]
          %v3580 = vld [vmem:[#allocation9 + $0x1f0] sm:$0xff]
          %v3581 = vld [vmem:[#allocation9 + $0x1f8] sm:$0xff]
          %3582 = vmatprep.subr.mxu0 %v3579
          %3583 = vmatpush1.msra.mxu0 %v3578
          %3584 = vmatprep.subr.mxu0 %v3575
          %3585 = vmatpush1.msra.mxu0 %v3574
          %3586 = vmatprep.subr.mxu0 %v3571
          %3587 = vmatpush1.msra.mxu0 %v3570
          %3588 = vmatprep.subr.mxu0 %v3567
          %3589 = vmatpush1.msra.mxu0 %v3566
          %3590 = vmatprep.subr.mxu0 %v3563
          %3591 = vmatpush1.msra.mxu0 %v3562
          %3592 = vmatprep.subr.mxu0 %v3559
          %3593 = vmatpush1.msra.mxu0 %v3558
          %3594 = vmatprep.subr.mxu0 %v3555
          %3595 = vmatpush1.msra.mxu0 %v3554
          %3596 = vmatprep.subr.mxu0 %v3551
          %3597 = vmatpush1.msra.mxu0 %v3550
          %3598 = vmatprep.subr.mxu0 %v3547
          %3599 = vmatpush1.msra.mxu0 %v3546
          %3600 = vmatprep.subr.mxu0 %v3543
          %3601 = vmatpush1.msra.mxu0 %v3542
          %3602 = vmatprep.subr.mxu0 %v3539
          %3603 = vmatpush1.msra.mxu0 %v3538
          %3604 = vmatprep.subr.mxu0 %v3535
          %3605 = vmatpush1.msra.mxu0 %v3534
          %3606 = vmatprep.subr.mxu0 %v3531
          %3607 = vmatpush1.msra.mxu0 %v3530
          %3608 = vmatprep.subr.mxu0 %v3527
          %3609 = vmatpush1.msra.mxu0 %v3526
          %3610 = vmatprep.subr.mxu0 %v3523
          %3611 = vmatpush1.msra.mxu0 %v3522
          %3612 = vmatprep.subr.mxu0 %v3519
          %3613 = vmatpush1.msra.mxu0 %v3518
          %3614 = vmatprep.subr.mxu0 0.0
          %3615 = vmatpush2.msra.mxu0 0.0
          %3616 = vmatprep.subr.mxu0 0.0
          %3617 = vmatpush2.msra.mxu0 0.0
          %3618 = vmatprep.subr.mxu0 0.0
          %3619 = vmatpush2.msra.mxu0 0.0
          %3620 = vmatprep.subr.mxu0 0.0
          %3621 = vmatpush2.msra.mxu0 0.0
          %3622 = vmatprep.subr.mxu0 0.0
          %3623 = vmatpush2.msra.mxu0 0.0
          %3624 = vmatprep.subr.mxu0 0.0
          %3625 = vmatpush2.msra.mxu0 0.0
          %3626 = vmatprep.subr.mxu0 0.0
          %3627 = vmatpush2.msra.mxu0 0.0
          %3628 = vmatprep.subr.mxu0 0.0
          %3629 = vmatpush2.msra.mxu0 0.0
          %3630 = vmatprep.subr.mxu0 0.0
          %3631 = vmatpush2.msra.mxu0 0.0
          %3632 = vmatprep.subr.mxu0 0.0
          %3633 = vmatpush2.msra.mxu0 0.0
          %3634 = vmatprep.subr.mxu0 0.0
          %3635 = vmatpush2.msra.mxu0 0.0
          %3636 = vmatprep.subr.mxu0 0.0
          %3637 = vmatpush2.msra.mxu0 0.0
          %3638 = vmatprep.subr.mxu0 0.0
          %3639 = vmatpush2.msra.mxu0 0.0
          %3640 = vmatprep.subr.mxu0 0.0
          %3641 = vmatpush2.msra.mxu0 0.0
          %3642 = vmatprep.subr.mxu0 0.0
          %3643 = vmatpush2.msra.mxu0 0.0
          %3644 = vmatprep.subr.mxu0 0.0
          %3645 = vmatpush2.msra.mxu0 0.0
          %3646 = vmatprep.mubr.f32.mxu0 0.0
          %3647 = vmatmul.mubr.f32.gmra.mxu0 %v3507
          %v3648 = vpop.f32.mrf.mxu0
          %v3649 = vadd.f32 0.0, %v3648
          %v3650 = vpop.f32.mrf.mxu0
          %v3651 = vadd.f32 0.0, %v3650
          %3652 = vdwg.mxu0
          %3653 = vmatprep.subr.mxu0 %v3581
          %3654 = vmatpush1.msra.mxu0 %v3580
          %3655 = vmatprep.subr.mxu0 %v3577
          %3656 = vmatpush1.msra.mxu0 %v3576
          %3657 = vmatprep.subr.mxu0 %v3573
          %3658 = vmatpush1.msra.mxu0 %v3572
          %3659 = vmatprep.subr.mxu0 %v3569
          %3660 = vmatpush1.msra.mxu0 %v3568
          %3661 = vmatprep.subr.mxu0 %v3565
          %3662 = vmatpush1.msra.mxu0 %v3564
          %3663 = vmatprep.subr.mxu0 %v3561
          %3664 = vmatpush1.msra.mxu0 %v3560
          %3665 = vmatprep.subr.mxu0 %v3557
          %3666 = vmatpush1.msra.mxu0 %v3556
          %3667 = vmatprep.subr.mxu0 %v3553
          %3668 = vmatpush1.msra.mxu0 %v3552
          %3669 = vmatprep.subr.mxu0 %v3549
          %3670 = vmatpush1.msra.mxu0 %v3548
          %3671 = vmatprep.subr.mxu0 %v3545
          %3672 = vmatpush1.msra.mxu0 %v3544
          %3673 = vmatprep.subr.mxu0 %v3541
          %3674 = vmatpush1.msra.mxu0 %v3540
          %3675 = vmatprep.subr.mxu0 %v3537
          %3676 = vmatpush1.msra.mxu0 %v3536
          %3677 = vmatprep.subr.mxu0 %v3533
          %3678 = vmatpush1.msra.mxu0 %v3532
          %3679 = vmatprep.subr.mxu0 %v3529
          %3680 = vmatpush1.msra.mxu0 %v3528
          %3681 = vmatprep.subr.mxu0 %v3525
          %3682 = vmatpush1.msra.mxu0 %v3524
          %3683 = vmatprep.subr.mxu0 %v3521
          %3684 = vmatpush1.msra.mxu0 %v3520
          %3685 = vmatprep.subr.mxu0 0.0
          %3686 = vmatpush2.msra.mxu0 0.0
          %3687 = vmatprep.subr.mxu0 0.0
          %3688 = vmatpush2.msra.mxu0 0.0
          %3689 = vmatprep.subr.mxu0 0.0
          %3690 = vmatpush2.msra.mxu0 0.0
          %3691 = vmatprep.subr.mxu0 0.0
          %3692 = vmatpush2.msra.mxu0 0.0
          %3693 = vmatprep.subr.mxu0 0.0
          %3694 = vmatpush2.msra.mxu0 0.0
          %3695 = vmatprep.subr.mxu0 0.0
          %3696 = vmatpush2.msra.mxu0 0.0
          %3697 = vmatprep.subr.mxu0 0.0
          %3698 = vmatpush2.msra.mxu0 0.0
          %3699 = vmatprep.subr.mxu0 0.0
          %3700 = vmatpush2.msra.mxu0 0.0
          %3701 = vmatprep.subr.mxu0 0.0
          %3702 = vmatpush2.msra.mxu0 0.0
          %3703 = vmatprep.subr.mxu0 0.0
          %3704 = vmatpush2.msra.mxu0 0.0
          %3705 = vmatprep.subr.mxu0 0.0
          %3706 = vmatpush2.msra.mxu0 0.0
          %3707 = vmatprep.subr.mxu0 0.0
          %3708 = vmatpush2.msra.mxu0 0.0
          %3709 = vmatprep.subr.mxu0 0.0
          %3710 = vmatpush2.msra.mxu0 0.0
          %3711 = vmatprep.subr.mxu0 0.0
          %3712 = vmatpush2.msra.mxu0 0.0
          %3713 = vmatprep.subr.mxu0 0.0
          %3714 = vmatpush2.msra.mxu0 0.0
          %3715 = vmatprep.subr.mxu0 0.0
          %3716 = vmatpush2.msra.mxu0 0.0
          %3717 = vmatprep.mubr.f32.mxu0 0.0
          %3718 = vmatmul.mubr.f32.gmra.mxu0 %v3507
          %v3719 = vpop.f32.mrf.mxu0
          %v3720 = vadd.f32 0.0, %v3719
          %v3721 = vpop.f32.mrf.mxu0
          %v3722 = vadd.f32 0.0, %v3721
          %3723 = vdwg.mxu0
          %vm3724 = vcmask 130048
          %v3726 = vsel %vm3724, %v3509, 0
          %3728 = vmatprep.subr.mxu0 0.0
          %3729 = vmatpush1.msra.mxu0 0.0
          %3730 = vmatprep.subr.mxu0 0.0
          %3731 = vmatpush1.msra.mxu0 0.0
          %3732 = vmatprep.subr.mxu0 0.0
          %3733 = vmatpush1.msra.mxu0 0.0
          %3734 = vmatprep.subr.mxu0 0.0
          %3735 = vmatpush1.msra.mxu0 0.0
          %3736 = vmatprep.subr.mxu0 0.0
          %3737 = vmatpush1.msra.mxu0 0.0
          %3738 = vmatprep.subr.mxu0 0.0
          %3739 = vmatpush1.msra.mxu0 0.0
          %3740 = vmatprep.subr.mxu0 0.0
          %3741 = vmatpush1.msra.mxu0 0.0
          %3742 = vmatprep.subr.mxu0 0.0
          %3743 = vmatpush1.msra.mxu0 0.0
          %3744 = vmatprep.subr.mxu0 0.0
          %3745 = vmatpush1.msra.mxu0 0.0
          %3746 = vmatprep.subr.mxu0 0.0
          %3747 = vmatpush1.msra.mxu0 0.0
          %3748 = vmatprep.subr.mxu0 0.0
          %3749 = vmatpush1.msra.mxu0 0.0
          %3750 = vmatprep.subr.mxu0 0.0
          %3751 = vmatpush1.msra.mxu0 0.0
          %3752 = vmatprep.subr.mxu0 0.0
          %3753 = vmatpush1.msra.mxu0 0.0
          %3754 = vmatprep.subr.mxu0 0.0
          %3755 = vmatpush1.msra.mxu0 0.0
          %3756 = vmatprep.subr.mxu0 %v3515
          %3757 = vmatpush1.msra.mxu0 %v3514
          %3758 = vmatprep.subr.mxu0 %v3511
          %3759 = vmatpush1.msra.mxu0 %v3510
          %3760 = vmatprep.subr.mxu0 0.0
          %3761 = vmatpush2.msra.mxu0 0.0
          %3762 = vmatprep.subr.mxu0 0.0
          %3763 = vmatpush2.msra.mxu0 0.0
          %3764 = vmatprep.subr.mxu0 0.0
          %3765 = vmatpush2.msra.mxu0 0.0
          %3766 = vmatprep.subr.mxu0 0.0
          %3767 = vmatpush2.msra.mxu0 0.0
          %3768 = vmatprep.subr.mxu0 0.0
          %3769 = vmatpush2.msra.mxu0 0.0
          %3770 = vmatprep.subr.mxu0 0.0
          %3771 = vmatpush2.msra.mxu0 0.0
          %3772 = vmatprep.subr.mxu0 0.0
          %3773 = vmatpush2.msra.mxu0 0.0
          %3774 = vmatprep.subr.mxu0 0.0
          %3775 = vmatpush2.msra.mxu0 0.0
          %3776 = vmatprep.subr.mxu0 0.0
          %3777 = vmatpush2.msra.mxu0 0.0
          %3778 = vmatprep.subr.mxu0 0.0
          %3779 = vmatpush2.msra.mxu0 0.0
          %3780 = vmatprep.subr.mxu0 0.0
          %3781 = vmatpush2.msra.mxu0 0.0
          %3782 = vmatprep.subr.mxu0 0.0
          %3783 = vmatpush2.msra.mxu0 0.0
          %3784 = vmatprep.subr.mxu0 0.0
          %3785 = vmatpush2.msra.mxu0 0.0
          %3786 = vmatprep.subr.mxu0 0.0
          %3787 = vmatpush2.msra.mxu0 0.0
          %3788 = vmatprep.subr.mxu0 0.0
          %3789 = vmatpush2.msra.mxu0 0.0
          %3790 = vmatprep.subr.mxu0 0.0
          %3791 = vmatpush2.msra.mxu0 0.0
          %3792 = vmatprep.mubr.f32.mxu0 0.0
          %3793 = vmatmul.mubr.f32.gmra.mxu0 %v3726
          %v3794 = vpop.f32.mrf.mxu0
          %v3795 = vadd.f32 %v3649, %v3794
          %v3796 = vpop.f32.mrf.mxu0
          %v3797 = vadd.f32 %v3651, %v3796
          %3798 = vdwg.mxu0
          %3799 = vmatprep.subr.mxu0 0.0
          %3800 = vmatpush1.msra.mxu0 0.0
          %3801 = vmatprep.subr.mxu0 0.0
          %3802 = vmatpush1.msra.mxu0 0.0
          %3803 = vmatprep.subr.mxu0 0.0
          %3804 = vmatpush1.msra.mxu0 0.0
          %3805 = vmatprep.subr.mxu0 0.0
          %3806 = vmatpush1.msra.mxu0 0.0
          %3807 = vmatprep.subr.mxu0 0.0
          %3808 = vmatpush1.msra.mxu0 0.0
          %3809 = vmatprep.subr.mxu0 0.0
          %3810 = vmatpush1.msra.mxu0 0.0
          %3811 = vmatprep.subr.mxu0 0.0
          %3812 = vmatpush1.msra.mxu0 0.0
          %3813 = vmatprep.subr.mxu0 0.0
          %3814 = vmatpush1.msra.mxu0 0.0
          %3815 = vmatprep.subr.mxu0 0.0
          %3816 = vmatpush1.msra.mxu0 0.0
          %3817 = vmatprep.subr.mxu0 0.0
          %3818 = vmatpush1.msra.mxu0 0.0
          %3819 = vmatprep.subr.mxu0 0.0
          %3820 = vmatpush1.msra.mxu0 0.0
          %3821 = vmatprep.subr.mxu0 0.0
          %3822 = vmatpush1.msra.mxu0 0.0
          %3823 = vmatprep.subr.mxu0 0.0
          %3824 = vmatpush1.msra.mxu0 0.0
          %3825 = vmatprep.subr.mxu0 0.0
          %3826 = vmatpush1.msra.mxu0 0.0
          %3827 = vmatprep.subr.mxu0 %v3517
          %3828 = vmatpush1.msra.mxu0 %v3516
          %3829 = vmatprep.subr.mxu0 %v3513
          %3830 = vmatpush1.msra.mxu0 %v3512
          %3831 = vmatprep.subr.mxu0 0.0
          %3832 = vmatpush2.msra.mxu0 0.0
          %3833 = vmatprep.subr.mxu0 0.0
          %3834 = vmatpush2.msra.mxu0 0.0
          %3835 = vmatprep.subr.mxu0 0.0
          %3836 = vmatpush2.msra.mxu0 0.0
          %3837 = vmatprep.subr.mxu0 0.0
          %3838 = vmatpush2.msra.mxu0 0.0
          %3839 = vmatprep.subr.mxu0 0.0
          %3840 = vmatpush2.msra.mxu0 0.0
          %3841 = vmatprep.subr.mxu0 0.0
          %3842 = vmatpush2.msra.mxu0 0.0
          %3843 = vmatprep.subr.mxu0 0.0
          %3844 = vmatpush2.msra.mxu0 0.0
          %3845 = vmatprep.subr.mxu0 0.0
          %3846 = vmatpush2.msra.mxu0 0.0
          %3847 = vmatprep.subr.mxu0 0.0
          %3848 = vmatpush2.msra.mxu0 0.0
          %3849 = vmatprep.subr.mxu0 0.0
          %3850 = vmatpush2.msra.mxu0 0.0
          %3851 = vmatprep.subr.mxu0 0.0
          %3852 = vmatpush2.msra.mxu0 0.0
          %3853 = vmatprep.subr.mxu0 0.0
          %3854 = vmatpush2.msra.mxu0 0.0
          %3855 = vmatprep.subr.mxu0 0.0
          %3856 = vmatpush2.msra.mxu0 0.0
          %3857 = vmatprep.subr.mxu0 0.0
          %3858 = vmatpush2.msra.mxu0 0.0
          %3859 = vmatprep.subr.mxu0 0.0
          %3860 = vmatpush2.msra.mxu0 0.0
          %3861 = vmatprep.subr.mxu0 0.0
          %3862 = vmatpush2.msra.mxu0 0.0
          %3863 = vmatprep.mubr.f32.mxu0 0.0
          %3864 = vmatmul.mubr.f32.gmra.mxu0 %v3726
          %v3865 = vpop.f32.mrf.mxu0
          %v3866 = vadd.f32 %v3720, %v3865
          %v3867 = vpop.f32.mrf.mxu0
          %v3868 = vadd.f32 %v3722, %v3867
          %3869 = vdwg.mxu0
          %v3870 = vld [vmem:[#allocation10] sm:$0xff]
          %v3871 = vld [vmem:[#allocation10 + $0x8] sm:$0xff]
          %v3872 = vld [vmem:[#allocation10 + $0x10] sm:$0xff]
          %v3873 = vld [vmem:[#allocation10 + $0x18] sm:$0xff]
          %v3874 = vadd.f32 %v3795, %v3870
          %v3875 = vadd.f32 %v3797, %v3871
          %v3876 = vadd.f32 %v3866, %v3872
          %v3877 = vadd.f32 %v3868, %v3873
          %v3878 = vmul.f32 %v3874, 0.5
          %v3879 = vtanh.pop %v3878
          %v3880 = vmul.f32 %v3879, 0.5
          %v3881 = vadd.f32 %v3880, 0.5
          %v3882 = vmul.f32 %v3875, 0.5
          %v3883 = vtanh.pop %v3882
          %v3884 = vmul.f32 %v3883, 0.5
          %v3885 = vadd.f32 %v3884, 0.5
          %v3886 = vtanh.pop %v3876
          %v3887 = vmul.f32 %v3877, 0.5
          %v3888 = vtanh.pop %v3887
          %v3889 = vmul.f32 %v3888, 0.5
          %v3890 = vadd.f32 %v3889, 0.5
          %v3891 = vmul.f32 %v3885, %v3508
          %v3892 = vmul.f32 %v3881, %v3886
          %v3893 = vadd.f32 %v3891, %v3892
          %v3894 = vtanh.pop %v3893
          %v3895 = vmul.f32 %v3890, %v3894
          %s3896 = smul.u32 %s29, 8
          %p3897 = scmp.lt.s32.totalorder %s3896, 12
          %s3898 = scalar_select %p3897, 1, 0
          %v3899 = vstv %s3898
          %vm3900 = vcmp.eq.s32.totalorder %v3899, 1
          %v3901 = vsel %vm3900, %v3893, %v3508
          %v3902 = vsel %vm3900, %v3895, %v3507
          %3903 = vst [vmem:[%s369] sm:$0xff] %v3902
          %s3904 = scalar_lea.vmem %s325, 8 [#allocation4]
          %v3905 = vld [vmem:[%s3904] sm:$0xff]
          %v3906 = vld [vmem:[#allocation7] sm:$0xff]
          %v3907 = vld [vmem:[#allocation7 + $0x8] sm:$0xff]
          %v3908 = vld [vmem:[#allocation7 + $0x10] sm:$0xff]
          %v3909 = vld [vmem:[#allocation7 + $0x18] sm:$0xff]
          %v3910 = vld [vmem:[#allocation7 + $0x20] sm:$0xff]
          %v3911 = vld [vmem:[#allocation7 + $0x28] sm:$0xff]
          %v3912 = vld [vmem:[#allocation7 + $0x30] sm:$0xff]
          %v3913 = vld [vmem:[#allocation7 + $0x38] sm:$0xff]
          %v3914 = vld [vmem:[#allocation9] sm:$0xff]
          %v3915 = vld [vmem:[#allocation9 + $0x8] sm:$0xff]
          %v3916 = vld [vmem:[#allocation9 + $0x10] sm:$0xff]
          %v3917 = vld [vmem:[#allocation9 + $0x18] sm:$0xff]
          %v3918 = vld [vmem:[#allocation9 + $0x20] sm:$0xff]
          %v3919 = vld [vmem:[#allocation9 + $0x28] sm:$0xff]
          %v3920 = vld [vmem:[#allocation9 + $0x30] sm:$0xff]
          %v3921 = vld [vmem:[#allocation9 + $0x38] sm:$0xff]
          %v3922 = vld [vmem:[#allocation9 + $0x40] sm:$0xff]
          %v3923 = vld [vmem:[#allocation9 + $0x48] sm:$0xff]
          %v3924 = vld [vmem:[#allocation9 + $0x50] sm:$0xff]
          %v3925 = vld [vmem:[#allocation9 + $0x58] sm:$0xff]
          %v3926 = vld [vmem:[#allocation9 + $0x60] sm:$0xff]
          %v3927 = vld [vmem:[#allocation9 + $0x68] sm:$0xff]
          %v3928 = vld [vmem:[#allocation9 + $0x70] sm:$0xff]
          %v3929 = vld [vmem:[#allocation9 + $0x78] sm:$0xff]
          %v3930 = vld [vmem:[#allocation9 + $0x80] sm:$0xff]
          %v3931 = vld [vmem:[#allocation9 + $0x88] sm:$0xff]
          %v3932 = vld [vmem:[#allocation9 + $0x90] sm:$0xff]
          %v3933 = vld [vmem:[#allocation9 + $0x98] sm:$0xff]
          %v3934 = vld [vmem:[#allocation9 + $0xa0] sm:$0xff]
          %v3935 = vld [vmem:[#allocation9 + $0xa8] sm:$0xff]
          %v3936 = vld [vmem:[#allocation9 + $0xb0] sm:$0xff]
          %v3937 = vld [vmem:[#allocation9 + $0xb8] sm:$0xff]
          %v3938 = vld [vmem:[#allocation9 + $0xc0] sm:$0xff]
          %v3939 = vld [vmem:[#allocation9 + $0xc8] sm:$0xff]
          %v3940 = vld [vmem:[#allocation9 + $0xd0] sm:$0xff]
          %v3941 = vld [vmem:[#allocation9 + $0xd8] sm:$0xff]
          %v3942 = vld [vmem:[#allocation9 + $0xe0] sm:$0xff]
          %v3943 = vld [vmem:[#allocation9 + $0xe8] sm:$0xff]
          %v3944 = vld [vmem:[#allocation9 + $0xf0] sm:$0xff]
          %v3945 = vld [vmem:[#allocation9 + $0xf8] sm:$0xff]
          %v3946 = vld [vmem:[#allocation9 + $0x100] sm:$0xff]
          %v3947 = vld [vmem:[#allocation9 + $0x108] sm:$0xff]
          %v3948 = vld [vmem:[#allocation9 + $0x110] sm:$0xff]
          %v3949 = vld [vmem:[#allocation9 + $0x118] sm:$0xff]
          %v3950 = vld [vmem:[#allocation9 + $0x120] sm:$0xff]
          %v3951 = vld [vmem:[#allocation9 + $0x128] sm:$0xff]
          %v3952 = vld [vmem:[#allocation9 + $0x130] sm:$0xff]
          %v3953 = vld [vmem:[#allocation9 + $0x138] sm:$0xff]
          %v3954 = vld [vmem:[#allocation9 + $0x140] sm:$0xff]
          %v3955 = vld [vmem:[#allocation9 + $0x148] sm:$0xff]
          %v3956 = vld [vmem:[#allocation9 + $0x150] sm:$0xff]
          %v3957 = vld [vmem:[#allocation9 + $0x158] sm:$0xff]
          %v3958 = vld [vmem:[#allocation9 + $0x160] sm:$0xff]
          %v3959 = vld [vmem:[#allocation9 + $0x168] sm:$0xff]
          %v3960 = vld [vmem:[#allocation9 + $0x170] sm:$0xff]
          %v3961 = vld [vmem:[#allocation9 + $0x178] sm:$0xff]
          %v3962 = vld [vmem:[#allocation9 + $0x180] sm:$0xff]
          %v3963 = vld [vmem:[#allocation9 + $0x188] sm:$0xff]
          %v3964 = vld [vmem:[#allocation9 + $0x190] sm:$0xff]
          %v3965 = vld [vmem:[#allocation9 + $0x198] sm:$0xff]
          %v3966 = vld [vmem:[#allocation9 + $0x1a0] sm:$0xff]
          %v3967 = vld [vmem:[#allocation9 + $0x1a8] sm:$0xff]
          %v3968 = vld [vmem:[#allocation9 + $0x1b0] sm:$0xff]
          %v3969 = vld [vmem:[#allocation9 + $0x1b8] sm:$0xff]
          %v3970 = vld [vmem:[#allocation9 + $0x1c0] sm:$0xff]
          %v3971 = vld [vmem:[#allocation9 + $0x1c8] sm:$0xff]
          %v3972 = vld [vmem:[#allocation9 + $0x1d0] sm:$0xff]
          %v3973 = vld [vmem:[#allocation9 + $0x1d8] sm:$0xff]
          %v3974 = vld [vmem:[#allocation9 + $0x1e0] sm:$0xff]
          %v3975 = vld [vmem:[#allocation9 + $0x1e8] sm:$0xff]
          %v3976 = vld [vmem:[#allocation9 + $0x1f0] sm:$0xff]
          %v3977 = vld [vmem:[#allocation9 + $0x1f8] sm:$0xff]
          %3978 = vmatprep.subr.mxu0 %v3975
          %3979 = vmatpush1.msra.mxu0 %v3974
          %3980 = vmatprep.subr.mxu0 %v3971
          %3981 = vmatpush1.msra.mxu0 %v3970
          %3982 = vmatprep.subr.mxu0 %v3967
          %3983 = vmatpush1.msra.mxu0 %v3966
          %3984 = vmatprep.subr.mxu0 %v3963
          %3985 = vmatpush1.msra.mxu0 %v3962
          %3986 = vmatprep.subr.mxu0 %v3959
          %3987 = vmatpush1.msra.mxu0 %v3958
          %3988 = vmatprep.subr.mxu0 %v3955
          %3989 = vmatpush1.msra.mxu0 %v3954
          %3990 = vmatprep.subr.mxu0 %v3951
          %3991 = vmatpush1.msra.mxu0 %v3950
          %3992 = vmatprep.subr.mxu0 %v3947
          %3993 = vmatpush1.msra.mxu0 %v3946
          %3994 = vmatprep.subr.mxu0 %v3943
          %3995 = vmatpush1.msra.mxu0 %v3942
          %3996 = vmatprep.subr.mxu0 %v3939
          %3997 = vmatpush1.msra.mxu0 %v3938
          %3998 = vmatprep.subr.mxu0 %v3935
          %3999 = vmatpush1.msra.mxu0 %v3934
          %4000 = vmatprep.subr.mxu0 %v3931
          %4001 = vmatpush1.msra.mxu0 %v3930
          %4002 = vmatprep.subr.mxu0 %v3927
          %4003 = vmatpush1.msra.mxu0 %v3926
          %4004 = vmatprep.subr.mxu0 %v3923
          %4005 = vmatpush1.msra.mxu0 %v3922
          %4006 = vmatprep.subr.mxu0 %v3919
          %4007 = vmatpush1.msra.mxu0 %v3918
          %4008 = vmatprep.subr.mxu0 %v3915
          %4009 = vmatpush1.msra.mxu0 %v3914
          %4010 = vmatprep.subr.mxu0 0.0
          %4011 = vmatpush2.msra.mxu0 0.0
          %4012 = vmatprep.subr.mxu0 0.0
          %4013 = vmatpush2.msra.mxu0 0.0
          %4014 = vmatprep.subr.mxu0 0.0
          %4015 = vmatpush2.msra.mxu0 0.0
          %4016 = vmatprep.subr.mxu0 0.0
          %4017 = vmatpush2.msra.mxu0 0.0
          %4018 = vmatprep.subr.mxu0 0.0
          %4019 = vmatpush2.msra.mxu0 0.0
          %4020 = vmatprep.subr.mxu0 0.0
          %4021 = vmatpush2.msra.mxu0 0.0
          %4022 = vmatprep.subr.mxu0 0.0
          %4023 = vmatpush2.msra.mxu0 0.0
          %4024 = vmatprep.subr.mxu0 0.0
          %4025 = vmatpush2.msra.mxu0 0.0
          %4026 = vmatprep.subr.mxu0 0.0
          %4027 = vmatpush2.msra.mxu0 0.0
          %4028 = vmatprep.subr.mxu0 0.0
          %4029 = vmatpush2.msra.mxu0 0.0
          %4030 = vmatprep.subr.mxu0 0.0
          %4031 = vmatpush2.msra.mxu0 0.0
          %4032 = vmatprep.subr.mxu0 0.0
          %4033 = vmatpush2.msra.mxu0 0.0
          %4034 = vmatprep.subr.mxu0 0.0
          %4035 = vmatpush2.msra.mxu0 0.0
          %4036 = vmatprep.subr.mxu0 0.0
          %4037 = vmatpush2.msra.mxu0 0.0
          %4038 = vmatprep.subr.mxu0 0.0
          %4039 = vmatpush2.msra.mxu0 0.0
          %4040 = vmatprep.subr.mxu0 0.0
          %4041 = vmatpush2.msra.mxu0 0.0
          %4042 = vmatprep.mubr.f32.mxu0 0.0
          %4043 = vmatmul.mubr.f32.gmra.mxu0 %v3902
          %v4044 = vpop.f32.mrf.mxu0
          %v4045 = vadd.f32 0.0, %v4044
          %v4046 = vpop.f32.mrf.mxu0
          %v4047 = vadd.f32 0.0, %v4046
          %4048 = vdwg.mxu0
          %4049 = vmatprep.subr.mxu0 %v3977
          %4050 = vmatpush1.msra.mxu0 %v3976
          %4051 = vmatprep.subr.mxu0 %v3973
          %4052 = vmatpush1.msra.mxu0 %v3972
          %4053 = vmatprep.subr.mxu0 %v3969
          %4054 = vmatpush1.msra.mxu0 %v3968
          %4055 = vmatprep.subr.mxu0 %v3965
          %4056 = vmatpush1.msra.mxu0 %v3964
          %4057 = vmatprep.subr.mxu0 %v3961
          %4058 = vmatpush1.msra.mxu0 %v3960
          %4059 = vmatprep.subr.mxu0 %v3957
          %4060 = vmatpush1.msra.mxu0 %v3956
          %4061 = vmatprep.subr.mxu0 %v3953
          %4062 = vmatpush1.msra.mxu0 %v3952
          %4063 = vmatprep.subr.mxu0 %v3949
          %4064 = vmatpush1.msra.mxu0 %v3948
          %4065 = vmatprep.subr.mxu0 %v3945
          %4066 = vmatpush1.msra.mxu0 %v3944
          %4067 = vmatprep.subr.mxu0 %v3941
          %4068 = vmatpush1.msra.mxu0 %v3940
          %4069 = vmatprep.subr.mxu0 %v3937
          %4070 = vmatpush1.msra.mxu0 %v3936
          %4071 = vmatprep.subr.mxu0 %v3933
          %4072 = vmatpush1.msra.mxu0 %v3932
          %4073 = vmatprep.subr.mxu0 %v3929
          %4074 = vmatpush1.msra.mxu0 %v3928
          %4075 = vmatprep.subr.mxu0 %v3925
          %4076 = vmatpush1.msra.mxu0 %v3924
          %4077 = vmatprep.subr.mxu0 %v3921
          %4078 = vmatpush1.msra.mxu0 %v3920
          %4079 = vmatprep.subr.mxu0 %v3917
          %4080 = vmatpush1.msra.mxu0 %v3916
          %4081 = vmatprep.subr.mxu0 0.0
          %4082 = vmatpush2.msra.mxu0 0.0
          %4083 = vmatprep.subr.mxu0 0.0
          %4084 = vmatpush2.msra.mxu0 0.0
          %4085 = vmatprep.subr.mxu0 0.0
          %4086 = vmatpush2.msra.mxu0 0.0
          %4087 = vmatprep.subr.mxu0 0.0
          %4088 = vmatpush2.msra.mxu0 0.0
          %4089 = vmatprep.subr.mxu0 0.0
          %4090 = vmatpush2.msra.mxu0 0.0
          %4091 = vmatprep.subr.mxu0 0.0
          %4092 = vmatpush2.msra.mxu0 0.0
          %4093 = vmatprep.subr.mxu0 0.0
          %4094 = vmatpush2.msra.mxu0 0.0
          %4095 = vmatprep.subr.mxu0 0.0
          %4096 = vmatpush2.msra.mxu0 0.0
          %4097 = vmatprep.subr.mxu0 0.0
          %4098 = vmatpush2.msra.mxu0 0.0
          %4099 = vmatprep.subr.mxu0 0.0
          %4100 = vmatpush2.msra.mxu0 0.0
          %4101 = vmatprep.subr.mxu0 0.0
          %4102 = vmatpush2.msra.mxu0 0.0
          %4103 = vmatprep.subr.mxu0 0.0
          %4104 = vmatpush2.msra.mxu0 0.0
          %4105 = vmatprep.subr.mxu0 0.0
          %4106 = vmatpush2.msra.mxu0 0.0
          %4107 = vmatprep.subr.mxu0 0.0
          %4108 = vmatpush2.msra.mxu0 0.0
          %4109 = vmatprep.subr.mxu0 0.0
          %4110 = vmatpush2.msra.mxu0 0.0
          %4111 = vmatprep.subr.mxu0 0.0
          %4112 = vmatpush2.msra.mxu0 0.0
          %4113 = vmatprep.mubr.f32.mxu0 0.0
          %4114 = vmatmul.mubr.f32.gmra.mxu0 %v3902
          %v4115 = vpop.f32.mrf.mxu0
          %v4116 = vadd.f32 0.0, %v4115
          %v4117 = vpop.f32.mrf.mxu0
          %v4118 = vadd.f32 0.0, %v4117
          %4119 = vdwg.mxu0
          %v4121 = vsel %vm3724, %v3905, 0
          %4123 = vmatprep.subr.mxu0 0.0
          %4124 = vmatpush1.msra.mxu0 0.0
          %4125 = vmatprep.subr.mxu0 0.0
          %4126 = vmatpush1.msra.mxu0 0.0
          %4127 = vmatprep.subr.mxu0 0.0
          %4128 = vmatpush1.msra.mxu0 0.0
          %4129 = vmatprep.subr.mxu0 0.0
          %4130 = vmatpush1.msra.mxu0 0.0
          %4131 = vmatprep.subr.mxu0 0.0
          %4132 = vmatpush1.msra.mxu0 0.0
          %4133 = vmatprep.subr.mxu0 0.0
          %4134 = vmatpush1.msra.mxu0 0.0
          %4135 = vmatprep.subr.mxu0 0.0
          %4136 = vmatpush1.msra.mxu0 0.0
          %4137 = vmatprep.subr.mxu0 0.0
          %4138 = vmatpush1.msra.mxu0 0.0
          %4139 = vmatprep.subr.mxu0 0.0
          %4140 = vmatpush1.msra.mxu0 0.0
          %4141 = vmatprep.subr.mxu0 0.0
          %4142 = vmatpush1.msra.mxu0 0.0
          %4143 = vmatprep.subr.mxu0 0.0
          %4144 = vmatpush1.msra.mxu0 0.0
          %4145 = vmatprep.subr.mxu0 0.0
          %4146 = vmatpush1.msra.mxu0 0.0
          %4147 = vmatprep.subr.mxu0 0.0
          %4148 = vmatpush1.msra.mxu0 0.0
          %4149 = vmatprep.subr.mxu0 0.0
          %4150 = vmatpush1.msra.mxu0 0.0
          %4151 = vmatprep.subr.mxu0 %v3911
          %4152 = vmatpush1.msra.mxu0 %v3910
          %4153 = vmatprep.subr.mxu0 %v3907
          %4154 = vmatpush1.msra.mxu0 %v3906
          %4155 = vmatprep.subr.mxu0 0.0
          %4156 = vmatpush2.msra.mxu0 0.0
          %4157 = vmatprep.subr.mxu0 0.0
          %4158 = vmatpush2.msra.mxu0 0.0
          %4159 = vmatprep.subr.mxu0 0.0
          %4160 = vmatpush2.msra.mxu0 0.0
          %4161 = vmatprep.subr.mxu0 0.0
          %4162 = vmatpush2.msra.mxu0 0.0
          %4163 = vmatprep.subr.mxu0 0.0
          %4164 = vmatpush2.msra.mxu0 0.0
          %4165 = vmatprep.subr.mxu0 0.0
          %4166 = vmatpush2.msra.mxu0 0.0
          %4167 = vmatprep.subr.mxu0 0.0
          %4168 = vmatpush2.msra.mxu0 0.0
          %4169 = vmatprep.subr.mxu0 0.0
          %4170 = vmatpush2.msra.mxu0 0.0
          %4171 = vmatprep.subr.mxu0 0.0
          %4172 = vmatpush2.msra.mxu0 0.0
          %4173 = vmatprep.subr.mxu0 0.0
          %4174 = vmatpush2.msra.mxu0 0.0
          %4175 = vmatprep.subr.mxu0 0.0
          %4176 = vmatpush2.msra.mxu0 0.0
          %4177 = vmatprep.subr.mxu0 0.0
          %4178 = vmatpush2.msra.mxu0 0.0
          %4179 = vmatprep.subr.mxu0 0.0
          %4180 = vmatpush2.msra.mxu0 0.0
          %4181 = vmatprep.subr.mxu0 0.0
          %4182 = vmatpush2.msra.mxu0 0.0
          %4183 = vmatprep.subr.mxu0 0.0
          %4184 = vmatpush2.msra.mxu0 0.0
          %4185 = vmatprep.subr.mxu0 0.0
          %4186 = vmatpush2.msra.mxu0 0.0
          %4187 = vmatprep.mubr.f32.mxu0 0.0
          %4188 = vmatmul.mubr.f32.gmra.mxu0 %v4121
          %v4189 = vpop.f32.mrf.mxu0
          %v4190 = vadd.f32 %v4045, %v4189
          %v4191 = vpop.f32.mrf.mxu0
          %v4192 = vadd.f32 %v4047, %v4191
          %4193 = vdwg.mxu0
          %4194 = vmatprep.subr.mxu0 0.0
          %4195 = vmatpush1.msra.mxu0 0.0
          %4196 = vmatprep.subr.mxu0 0.0
          %4197 = vmatpush1.msra.mxu0 0.0
          %4198 = vmatprep.subr.mxu0 0.0
          %4199 = vmatpush1.msra.mxu0 0.0
          %4200 = vmatprep.subr.mxu0 0.0
          %4201 = vmatpush1.msra.mxu0 0.0
          %4202 = vmatprep.subr.mxu0 0.0
          %4203 = vmatpush1.msra.mxu0 0.0
          %4204 = vmatprep.subr.mxu0 0.0
          %4205 = vmatpush1.msra.mxu0 0.0
          %4206 = vmatprep.subr.mxu0 0.0
          %4207 = vmatpush1.msra.mxu0 0.0
          %4208 = vmatprep.subr.mxu0 0.0
          %4209 = vmatpush1.msra.mxu0 0.0
          %4210 = vmatprep.subr.mxu0 0.0
          %4211 = vmatpush1.msra.mxu0 0.0
          %4212 = vmatprep.subr.mxu0 0.0
          %4213 = vmatpush1.msra.mxu0 0.0
          %4214 = vmatprep.subr.mxu0 0.0
          %4215 = vmatpush1.msra.mxu0 0.0
          %4216 = vmatprep.subr.mxu0 0.0
          %4217 = vmatpush1.msra.mxu0 0.0
          %4218 = vmatprep.subr.mxu0 0.0
          %4219 = vmatpush1.msra.mxu0 0.0
          %4220 = vmatprep.subr.mxu0 0.0
          %4221 = vmatpush1.msra.mxu0 0.0
          %4222 = vmatprep.subr.mxu0 %v3913
          %4223 = vmatpush1.msra.mxu0 %v3912
          %4224 = vmatprep.subr.mxu0 %v3909
          %4225 = vmatpush1.msra.mxu0 %v3908
          %4226 = vmatprep.subr.mxu0 0.0
          %4227 = vmatpush2.msra.mxu0 0.0
          %4228 = vmatprep.subr.mxu0 0.0
          %4229 = vmatpush2.msra.mxu0 0.0
          %4230 = vmatprep.subr.mxu0 0.0
          %4231 = vmatpush2.msra.mxu0 0.0
          %4232 = vmatprep.subr.mxu0 0.0
          %4233 = vmatpush2.msra.mxu0 0.0
          %4234 = vmatprep.subr.mxu0 0.0
          %4235 = vmatpush2.msra.mxu0 0.0
          %4236 = vmatprep.subr.mxu0 0.0
          %4237 = vmatpush2.msra.mxu0 0.0
          %4238 = vmatprep.subr.mxu0 0.0
          %4239 = vmatpush2.msra.mxu0 0.0
          %4240 = vmatprep.subr.mxu0 0.0
          %4241 = vmatpush2.msra.mxu0 0.0
          %4242 = vmatprep.subr.mxu0 0.0
          %4243 = vmatpush2.msra.mxu0 0.0
          %4244 = vmatprep.subr.mxu0 0.0
          %4245 = vmatpush2.msra.mxu0 0.0
          %4246 = vmatprep.subr.mxu0 0.0
          %4247 = vmatpush2.msra.mxu0 0.0
          %4248 = vmatprep.subr.mxu0 0.0
          %4249 = vmatpush2.msra.mxu0 0.0
          %4250 = vmatprep.subr.mxu0 0.0
          %4251 = vmatpush2.msra.mxu0 0.0
          %4252 = vmatprep.subr.mxu0 0.0
          %4253 = vmatpush2.msra.mxu0 0.0
          %4254 = vmatprep.subr.mxu0 0.0
          %4255 = vmatpush2.msra.mxu0 0.0
          %4256 = vmatprep.subr.mxu0 0.0
          %4257 = vmatpush2.msra.mxu0 0.0
          %4258 = vmatprep.mubr.f32.mxu0 0.0
          %4259 = vmatmul.mubr.f32.gmra.mxu0 %v4121
          %v4260 = vpop.f32.mrf.mxu0
          %v4261 = vadd.f32 %v4116, %v4260
          %v4262 = vpop.f32.mrf.mxu0
          %v4263 = vadd.f32 %v4118, %v4262
          %4264 = vdwg.mxu0
          %v4265 = vld [vmem:[#allocation10] sm:$0xff]
          %v4266 = vld [vmem:[#allocation10 + $0x8] sm:$0xff]
          %v4267 = vld [vmem:[#allocation10 + $0x10] sm:$0xff]
          %v4268 = vld [vmem:[#allocation10 + $0x18] sm:$0xff]
          %v4269 = vadd.f32 %v4190, %v4265
          %v4270 = vadd.f32 %v4192, %v4266
          %v4271 = vadd.f32 %v4261, %v4267
          %v4272 = vadd.f32 %v4263, %v4268
          %v4273 = vmul.f32 %v4269, 0.5
          %v4274 = vtanh.pop %v4273
          %v4275 = vmul.f32 %v4274, 0.5
          %v4276 = vadd.f32 %v4275, 0.5
          %v4277 = vmul.f32 %v4270, 0.5
          %v4278 = vtanh.pop %v4277
          %v4279 = vmul.f32 %v4278, 0.5
          %v4280 = vadd.f32 %v4279, 0.5
          %v4281 = vtanh.pop %v4271
          %v4282 = vmul.f32 %v4272, 0.5
          %v4283 = vtanh.pop %v4282
          %v4284 = vmul.f32 %v4283, 0.5
          %v4285 = vadd.f32 %v4284, 0.5
          %v4286 = vmul.f32 %v4280, %v3901
          %v4287 = vmul.f32 %v4276, %v4281
          %v4288 = vadd.f32 %v4286, %v4287
          %v4289 = vtanh.pop %v4288
          %v4290 = vmul.f32 %v4285, %v4289
          %s4291 = sadd.s32 %s3896, 1
          %p4292 = scmp.lt.s32.totalorder %s4291, 12
          %s4293 = scalar_select %p4292, 1, 0
          %v4294 = vstv %s4293
          %vm4295 = vcmp.eq.s32.totalorder %v4294, 1
          %v4296 = vsel %vm4295, %v4288, %v3901
          %v4297 = vsel %vm4295, %v4290, %v3902
          %s4298 = scalar_lea.vmem %s369, 8 [#allocation13]
          %4299 = vst [vmem:[%s4298] sm:$0xff] %v4297
          %s4300 = scalar_lea.vmem %s325, 16 [#allocation4]
          %v4301 = vld [vmem:[%s4300] sm:$0xff]
          %v4302 = vld [vmem:[#allocation7] sm:$0xff]
          %v4303 = vld [vmem:[#allocation7 + $0x8] sm:$0xff]
          %v4304 = vld [vmem:[#allocation7 + $0x10] sm:$0xff]
          %v4305 = vld [vmem:[#allocation7 + $0x18] sm:$0xff]
          %v4306 = vld [vmem:[#allocation7 + $0x20] sm:$0xff]
          %v4307 = vld [vmem:[#allocation7 + $0x28] sm:$0xff]
          %v4308 = vld [vmem:[#allocation7 + $0x30] sm:$0xff]
          %v4309 = vld [vmem:[#allocation7 + $0x38] sm:$0xff]
          %v4310 = vld [vmem:[#allocation9] sm:$0xff]
          %v4311 = vld [vmem:[#allocation9 + $0x8] sm:$0xff]
          %v4312 = vld [vmem:[#allocation9 + $0x10] sm:$0xff]
          %v4313 = vld [vmem:[#allocation9 + $0x18] sm:$0xff]
          %v4314 = vld [vmem:[#allocation9 + $0x20] sm:$0xff]
          %v4315 = vld [vmem:[#allocation9 + $0x28] sm:$0xff]
          %v4316 = vld [vmem:[#allocation9 + $0x30] sm:$0xff]
          %v4317 = vld [vmem:[#allocation9 + $0x38] sm:$0xff]
          %v4318 = vld [vmem:[#allocation9 + $0x40] sm:$0xff]
          %v4319 = vld [vmem:[#allocation9 + $0x48] sm:$0xff]
          %v4320 = vld [vmem:[#allocation9 + $0x50] sm:$0xff]
          %v4321 = vld [vmem:[#allocation9 + $0x58] sm:$0xff]
          %v4322 = vld [vmem:[#allocation9 + $0x60] sm:$0xff]
          %v4323 = vld [vmem:[#allocation9 + $0x68] sm:$0xff]
          %v4324 = vld [vmem:[#allocation9 + $0x70] sm:$0xff]
          %v4325 = vld [vmem:[#allocation9 + $0x78] sm:$0xff]
          %v4326 = vld [vmem:[#allocation9 + $0x80] sm:$0xff]
          %v4327 = vld [vmem:[#allocation9 + $0x88] sm:$0xff]
          %v4328 = vld [vmem:[#allocation9 + $0x90] sm:$0xff]
          %v4329 = vld [vmem:[#allocation9 + $0x98] sm:$0xff]
          %v4330 = vld [vmem:[#allocation9 + $0xa0] sm:$0xff]
          %v4331 = vld [vmem:[#allocation9 + $0xa8] sm:$0xff]
          %v4332 = vld [vmem:[#allocation9 + $0xb0] sm:$0xff]
          %v4333 = vld [vmem:[#allocation9 + $0xb8] sm:$0xff]
          %v4334 = vld [vmem:[#allocation9 + $0xc0] sm:$0xff]
          %v4335 = vld [vmem:[#allocation9 + $0xc8] sm:$0xff]
          %v4336 = vld [vmem:[#allocation9 + $0xd0] sm:$0xff]
          %v4337 = vld [vmem:[#allocation9 + $0xd8] sm:$0xff]
          %v4338 = vld [vmem:[#allocation9 + $0xe0] sm:$0xff]
          %v4339 = vld [vmem:[#allocation9 + $0xe8] sm:$0xff]
          %v4340 = vld [vmem:[#allocation9 + $0xf0] sm:$0xff]
          %v4341 = vld [vmem:[#allocation9 + $0xf8] sm:$0xff]
          %v4342 = vld [vmem:[#allocation9 + $0x100] sm:$0xff]
          %v4343 = vld [vmem:[#allocation9 + $0x108] sm:$0xff]
          %v4344 = vld [vmem:[#allocation9 + $0x110] sm:$0xff]
          %v4345 = vld [vmem:[#allocation9 + $0x118] sm:$0xff]
          %v4346 = vld [vmem:[#allocation9 + $0x120] sm:$0xff]
          %v4347 = vld [vmem:[#allocation9 + $0x128] sm:$0xff]
          %v4348 = vld [vmem:[#allocation9 + $0x130] sm:$0xff]
          %v4349 = vld [vmem:[#allocation9 + $0x138] sm:$0xff]
          %v4350 = vld [vmem:[#allocation9 + $0x140] sm:$0xff]
          %v4351 = vld [vmem:[#allocation9 + $0x148] sm:$0xff]
          %v4352 = vld [vmem:[#allocation9 + $0x150] sm:$0xff]
          %v4353 = vld [vmem:[#allocation9 + $0x158] sm:$0xff]
          %v4354 = vld [vmem:[#allocation9 + $0x160] sm:$0xff]
          %v4355 = vld [vmem:[#allocation9 + $0x168] sm:$0xff]
          %v4356 = vld [vmem:[#allocation9 + $0x170] sm:$0xff]
          %v4357 = vld [vmem:[#allocation9 + $0x178] sm:$0xff]
          %v4358 = vld [vmem:[#allocation9 + $0x180] sm:$0xff]
          %v4359 = vld [vmem:[#allocation9 + $0x188] sm:$0xff]
          %v4360 = vld [vmem:[#allocation9 + $0x190] sm:$0xff]
          %v4361 = vld [vmem:[#allocation9 + $0x198] sm:$0xff]
          %v4362 = vld [vmem:[#allocation9 + $0x1a0] sm:$0xff]
          %v4363 = vld [vmem:[#allocation9 + $0x1a8] sm:$0xff]
          %v4364 = vld [vmem:[#allocation9 + $0x1b0] sm:$0xff]
          %v4365 = vld [vmem:[#allocation9 + $0x1b8] sm:$0xff]
          %v4366 = vld [vmem:[#allocation9 + $0x1c0] sm:$0xff]
          %v4367 = vld [vmem:[#allocation9 + $0x1c8] sm:$0xff]
          %v4368 = vld [vmem:[#allocation9 + $0x1d0] sm:$0xff]
          %v4369 = vld [vmem:[#allocation9 + $0x1d8] sm:$0xff]
          %v4370 = vld [vmem:[#allocation9 + $0x1e0] sm:$0xff]
          %v4371 = vld [vmem:[#allocation9 + $0x1e8] sm:$0xff]
          %v4372 = vld [vmem:[#allocation9 + $0x1f0] sm:$0xff]
          %v4373 = vld [vmem:[#allocation9 + $0x1f8] sm:$0xff]
          %4374 = vmatprep.subr.mxu0 %v4371
          %4375 = vmatpush1.msra.mxu0 %v4370
          %4376 = vmatprep.subr.mxu0 %v4367
          %4377 = vmatpush1.msra.mxu0 %v4366
          %4378 = vmatprep.subr.mxu0 %v4363
          %4379 = vmatpush1.msra.mxu0 %v4362
          %4380 = vmatprep.subr.mxu0 %v4359
          %4381 = vmatpush1.msra.mxu0 %v4358
          %4382 = vmatprep.subr.mxu0 %v4355
          %4383 = vmatpush1.msra.mxu0 %v4354
          %4384 = vmatprep.subr.mxu0 %v4351
          %4385 = vmatpush1.msra.mxu0 %v4350
          %4386 = vmatprep.subr.mxu0 %v4347
          %4387 = vmatpush1.msra.mxu0 %v4346
          %4388 = vmatprep.subr.mxu0 %v4343
          %4389 = vmatpush1.msra.mxu0 %v4342
          %4390 = vmatprep.subr.mxu0 %v4339
          %4391 = vmatpush1.msra.mxu0 %v4338
          %4392 = vmatprep.subr.mxu0 %v4335
          %4393 = vmatpush1.msra.mxu0 %v4334
          %4394 = vmatprep.subr.mxu0 %v4331
          %4395 = vmatpush1.msra.mxu0 %v4330
          %4396 = vmatprep.subr.mxu0 %v4327
          %4397 = vmatpush1.msra.mxu0 %v4326
          %4398 = vmatprep.subr.mxu0 %v4323
          %4399 = vmatpush1.msra.mxu0 %v4322
          %4400 = vmatprep.subr.mxu0 %v4319
          %4401 = vmatpush1.msra.mxu0 %v4318
          %4402 = vmatprep.subr.mxu0 %v4315
          %4403 = vmatpush1.msra.mxu0 %v4314
          %4404 = vmatprep.subr.mxu0 %v4311
          %4405 = vmatpush1.msra.mxu0 %v4310
          %4406 = vmatprep.subr.mxu0 0.0
          %4407 = vmatpush2.msra.mxu0 0.0
          %4408 = vmatprep.subr.mxu0 0.0
          %4409 = vmatpush2.msra.mxu0 0.0
          %4410 = vmatprep.subr.mxu0 0.0
          %4411 = vmatpush2.msra.mxu0 0.0
          %4412 = vmatprep.subr.mxu0 0.0
          %4413 = vmatpush2.msra.mxu0 0.0
          %4414 = vmatprep.subr.mxu0 0.0
          %4415 = vmatpush2.msra.mxu0 0.0
          %4416 = vmatprep.subr.mxu0 0.0
          %4417 = vmatpush2.msra.mxu0 0.0
          %4418 = vmatprep.subr.mxu0 0.0
          %4419 = vmatpush2.msra.mxu0 0.0
          %4420 = vmatprep.subr.mxu0 0.0
          %4421 = vmatpush2.msra.mxu0 0.0
          %4422 = vmatprep.subr.mxu0 0.0
          %4423 = vmatpush2.msra.mxu0 0.0
          %4424 = vmatprep.subr.mxu0 0.0
          %4425 = vmatpush2.msra.mxu0 0.0
          %4426 = vmatprep.subr.mxu0 0.0
          %4427 = vmatpush2.msra.mxu0 0.0
          %4428 = vmatprep.subr.mxu0 0.0
          %4429 = vmatpush2.msra.mxu0 0.0
          %4430 = vmatprep.subr.mxu0 0.0
          %4431 = vmatpush2.msra.mxu0 0.0
          %4432 = vmatprep.subr.mxu0 0.0
          %4433 = vmatpush2.msra.mxu0 0.0
          %4434 = vmatprep.subr.mxu0 0.0
          %4435 = vmatpush2.msra.mxu0 0.0
          %4436 = vmatprep.subr.mxu0 0.0
          %4437 = vmatpush2.msra.mxu0 0.0
          %4438 = vmatprep.mubr.f32.mxu0 0.0
          %4439 = vmatmul.mubr.f32.gmra.mxu0 %v4297
          %v4440 = vpop.f32.mrf.mxu0
          %v4441 = vadd.f32 0.0, %v4440
          %v4442 = vpop.f32.mrf.mxu0
          %v4443 = vadd.f32 0.0, %v4442
          %4444 = vdwg.mxu0
          %4445 = vmatprep.subr.mxu0 %v4373
          %4446 = vmatpush1.msra.mxu0 %v4372
          %4447 = vmatprep.subr.mxu0 %v4369
          %4448 = vmatpush1.msra.mxu0 %v4368
          %4449 = vmatprep.subr.mxu0 %v4365
          %4450 = vmatpush1.msra.mxu0 %v4364
          %4451 = vmatprep.subr.mxu0 %v4361
          %4452 = vmatpush1.msra.mxu0 %v4360
          %4453 = vmatprep.subr.mxu0 %v4357
          %4454 = vmatpush1.msra.mxu0 %v4356
          %4455 = vmatprep.subr.mxu0 %v4353
          %4456 = vmatpush1.msra.mxu0 %v4352
          %4457 = vmatprep.subr.mxu0 %v4349
          %4458 = vmatpush1.msra.mxu0 %v4348
          %4459 = vmatprep.subr.mxu0 %v4345
          %4460 = vmatpush1.msra.mxu0 %v4344
          %4461 = vmatprep.subr.mxu0 %v4341
          %4462 = vmatpush1.msra.mxu0 %v4340
          %4463 = vmatprep.subr.mxu0 %v4337
          %4464 = vmatpush1.msra.mxu0 %v4336
          %4465 = vmatprep.subr.mxu0 %v4333
          %4466 = vmatpush1.msra.mxu0 %v4332
          %4467 = vmatprep.subr.mxu0 %v4329
          %4468 = vmatpush1.msra.mxu0 %v4328
          %4469 = vmatprep.subr.mxu0 %v4325
          %4470 = vmatpush1.msra.mxu0 %v4324
          %4471 = vmatprep.subr.mxu0 %v4321
          %4472 = vmatpush1.msra.mxu0 %v4320
          %4473 = vmatprep.subr.mxu0 %v4317
          %4474 = vmatpush1.msra.mxu0 %v4316
          %4475 = vmatprep.subr.mxu0 %v4313
          %4476 = vmatpush1.msra.mxu0 %v4312
          %4477 = vmatprep.subr.mxu0 0.0
          %4478 = vmatpush2.msra.mxu0 0.0
          %4479 = vmatprep.subr.mxu0 0.0
          %4480 = vmatpush2.msra.mxu0 0.0
          %4481 = vmatprep.subr.mxu0 0.0
          %4482 = vmatpush2.msra.mxu0 0.0
          %4483 = vmatprep.subr.mxu0 0.0
          %4484 = vmatpush2.msra.mxu0 0.0
          %4485 = vmatprep.subr.mxu0 0.0
          %4486 = vmatpush2.msra.mxu0 0.0
          %4487 = vmatprep.subr.mxu0 0.0
          %4488 = vmatpush2.msra.mxu0 0.0
          %4489 = vmatprep.subr.mxu0 0.0
          %4490 = vmatpush2.msra.mxu0 0.0
          %4491 = vmatprep.subr.mxu0 0.0
          %4492 = vmatpush2.msra.mxu0 0.0
          %4493 = vmatprep.subr.mxu0 0.0
          %4494 = vmatpush2.msra.mxu0 0.0
          %4495 = vmatprep.subr.mxu0 0.0
          %4496 = vmatpush2.msra.mxu0 0.0
          %4497 = vmatprep.subr.mxu0 0.0
          %4498 = vmatpush2.msra.mxu0 0.0
          %4499 = vmatprep.subr.mxu0 0.0
          %4500 = vmatpush2.msra.mxu0 0.0
          %4501 = vmatprep.subr.mxu0 0.0
          %4502 = vmatpush2.msra.mxu0 0.0
          %4503 = vmatprep.subr.mxu0 0.0
          %4504 = vmatpush2.msra.mxu0 0.0
          %4505 = vmatprep.subr.mxu0 0.0
          %4506 = vmatpush2.msra.mxu0 0.0
          %4507 = vmatprep.subr.mxu0 0.0
          %4508 = vmatpush2.msra.mxu0 0.0
          %4509 = vmatprep.mubr.f32.mxu0 0.0
          %4510 = vmatmul.mubr.f32.gmra.mxu0 %v4297
          %v4511 = vpop.f32.mrf.mxu0
          %v4512 = vadd.f32 0.0, %v4511
          %v4513 = vpop.f32.mrf.mxu0
          %v4514 = vadd.f32 0.0, %v4513
          %4515 = vdwg.mxu0
          %v4517 = vsel %vm3724, %v4301, 0
          %4519 = vmatprep.subr.mxu0 0.0
          %4520 = vmatpush1.msra.mxu0 0.0
          %4521 = vmatprep.subr.mxu0 0.0
          %4522 = vmatpush1.msra.mxu0 0.0
          %4523 = vmatprep.subr.mxu0 0.0
          %4524 = vmatpush1.msra.mxu0 0.0
          %4525 = vmatprep.subr.mxu0 0.0
          %4526 = vmatpush1.msra.mxu0 0.0
          %4527 = vmatprep.subr.mxu0 0.0
          %4528 = vmatpush1.msra.mxu0 0.0
          %4529 = vmatprep.subr.mxu0 0.0
          %4530 = vmatpush1.msra.mxu0 0.0
          %4531 = vmatprep.subr.mxu0 0.0
          %4532 = vmatpush1.msra.mxu0 0.0
          %4533 = vmatprep.subr.mxu0 0.0
          %4534 = vmatpush1.msra.mxu0 0.0
          %4535 = vmatprep.subr.mxu0 0.0
          %4536 = vmatpush1.msra.mxu0 0.0
          %4537 = vmatprep.subr.mxu0 0.0
          %4538 = vmatpush1.msra.mxu0 0.0
          %4539 = vmatprep.subr.mxu0 0.0
          %4540 = vmatpush1.msra.mxu0 0.0
          %4541 = vmatprep.subr.mxu0 0.0
          %4542 = vmatpush1.msra.mxu0 0.0
          %4543 = vmatprep.subr.mxu0 0.0
          %4544 = vmatpush1.msra.mxu0 0.0
          %4545 = vmatprep.subr.mxu0 0.0
          %4546 = vmatpush1.msra.mxu0 0.0
          %4547 = vmatprep.subr.mxu0 %v4307
          %4548 = vmatpush1.msra.mxu0 %v4306
          %4549 = vmatprep.subr.mxu0 %v4303
          %4550 = vmatpush1.msra.mxu0 %v4302
          %4551 = vmatprep.subr.mxu0 0.0
          %4552 = vmatpush2.msra.mxu0 0.0
          %4553 = vmatprep.subr.mxu0 0.0
          %4554 = vmatpush2.msra.mxu0 0.0
          %4555 = vmatprep.subr.mxu0 0.0
          %4556 = vmatpush2.msra.mxu0 0.0
          %4557 = vmatprep.subr.mxu0 0.0
          %4558 = vmatpush2.msra.mxu0 0.0
          %4559 = vmatprep.subr.mxu0 0.0
          %4560 = vmatpush2.msra.mxu0 0.0
          %4561 = vmatprep.subr.mxu0 0.0
          %4562 = vmatpush2.msra.mxu0 0.0
          %4563 = vmatprep.subr.mxu0 0.0
          %4564 = vmatpush2.msra.mxu0 0.0
          %4565 = vmatprep.subr.mxu0 0.0
          %4566 = vmatpush2.msra.mxu0 0.0
          %4567 = vmatprep.subr.mxu0 0.0
          %4568 = vmatpush2.msra.mxu0 0.0
          %4569 = vmatprep.subr.mxu0 0.0
          %4570 = vmatpush2.msra.mxu0 0.0
          %4571 = vmatprep.subr.mxu0 0.0
          %4572 = vmatpush2.msra.mxu0 0.0
          %4573 = vmatprep.subr.mxu0 0.0
          %4574 = vmatpush2.msra.mxu0 0.0
          %4575 = vmatprep.subr.mxu0 0.0
          %4576 = vmatpush2.msra.mxu0 0.0
          %4577 = vmatprep.subr.mxu0 0.0
          %4578 = vmatpush2.msra.mxu0 0.0
          %4579 = vmatprep.subr.mxu0 0.0
          %4580 = vmatpush2.msra.mxu0 0.0
          %4581 = vmatprep.subr.mxu0 0.0
          %4582 = vmatpush2.msra.mxu0 0.0
          %4583 = vmatprep.mubr.f32.mxu0 0.0
          %4584 = vmatmul.mubr.f32.gmra.mxu0 %v4517
          %v4585 = vpop.f32.mrf.mxu0
          %v4586 = vadd.f32 %v4441, %v4585
          %v4587 = vpop.f32.mrf.mxu0
          %v4588 = vadd.f32 %v4443, %v4587
          %4589 = vdwg.mxu0
          %4590 = vmatprep.subr.mxu0 0.0
          %4591 = vmatpush1.msra.mxu0 0.0
          %4592 = vmatprep.subr.mxu0 0.0
          %4593 = vmatpush1.msra.mxu0 0.0
          %4594 = vmatprep.subr.mxu0 0.0
          %4595 = vmatpush1.msra.mxu0 0.0
          %4596 = vmatprep.subr.mxu0 0.0
          %4597 = vmatpush1.msra.mxu0 0.0
          %4598 = vmatprep.subr.mxu0 0.0
          %4599 = vmatpush1.msra.mxu0 0.0
          %4600 = vmatprep.subr.mxu0 0.0
          %4601 = vmatpush1.msra.mxu0 0.0
          %4602 = vmatprep.subr.mxu0 0.0
          %4603 = vmatpush1.msra.mxu0 0.0
          %4604 = vmatprep.subr.mxu0 0.0
          %4605 = vmatpush1.msra.mxu0 0.0
          %4606 = vmatprep.subr.mxu0 0.0
          %4607 = vmatpush1.msra.mxu0 0.0
          %4608 = vmatprep.subr.mxu0 0.0
          %4609 = vmatpush1.msra.mxu0 0.0
          %4610 = vmatprep.subr.mxu0 0.0
          %4611 = vmatpush1.msra.mxu0 0.0
          %4612 = vmatprep.subr.mxu0 0.0
          %4613 = vmatpush1.msra.mxu0 0.0
          %4614 = vmatprep.subr.mxu0 0.0
          %4615 = vmatpush1.msra.mxu0 0.0
          %4616 = vmatprep.subr.mxu0 0.0
          %4617 = vmatpush1.msra.mxu0 0.0
          %4618 = vmatprep.subr.mxu0 %v4309
          %4619 = vmatpush1.msra.mxu0 %v4308
          %4620 = vmatprep.subr.mxu0 %v4305
          %4621 = vmatpush1.msra.mxu0 %v4304
          %4622 = vmatprep.subr.mxu0 0.0
          %4623 = vmatpush2.msra.mxu0 0.0
          %4624 = vmatprep.subr.mxu0 0.0
          %4625 = vmatpush2.msra.mxu0 0.0
          %4626 = vmatprep.subr.mxu0 0.0
          %4627 = vmatpush2.msra.mxu0 0.0
          %4628 = vmatprep.subr.mxu0 0.0
          %4629 = vmatpush2.msra.mxu0 0.0
          %4630 = vmatprep.subr.mxu0 0.0
          %4631 = vmatpush2.msra.mxu0 0.0
          %4632 = vmatprep.subr.mxu0 0.0
          %4633 = vmatpush2.msra.mxu0 0.0
          %4634 = vmatprep.subr.mxu0 0.0
          %4635 = vmatpush2.msra.mxu0 0.0
          %4636 = vmatprep.subr.mxu0 0.0
          %4637 = vmatpush2.msra.mxu0 0.0
          %4638 = vmatprep.subr.mxu0 0.0
          %4639 = vmatpush2.msra.mxu0 0.0
          %4640 = vmatprep.subr.mxu0 0.0
          %4641 = vmatpush2.msra.mxu0 0.0
          %4642 = vmatprep.subr.mxu0 0.0
          %4643 = vmatpush2.msra.mxu0 0.0
          %4644 = vmatprep.subr.mxu0 0.0
          %4645 = vmatpush2.msra.mxu0 0.0
          %4646 = vmatprep.subr.mxu0 0.0
          %4647 = vmatpush2.msra.mxu0 0.0
          %4648 = vmatprep.subr.mxu0 0.0
          %4649 = vmatpush2.msra.mxu0 0.0
          %4650 = vmatprep.subr.mxu0 0.0
          %4651 = vmatpush2.msra.mxu0 0.0
          %4652 = vmatprep.subr.mxu0 0.0
          %4653 = vmatpush2.msra.mxu0 0.0
          %4654 = vmatprep.mubr.f32.mxu0 0.0
          %4655 = vmatmul.mubr.f32.gmra.mxu0 %v4517
          %v4656 = vpop.f32.mrf.mxu0
          %v4657 = vadd.f32 %v4512, %v4656
          %v4658 = vpop.f32.mrf.mxu0
          %v4659 = vadd.f32 %v4514, %v4658
          %4660 = vdwg.mxu0
          %v4661 = vld [vmem:[#allocation10] sm:$0xff]
          %v4662 = vld [vmem:[#allocation10 + $0x8] sm:$0xff]
          %v4663 = vld [vmem:[#allocation10 + $0x10] sm:$0xff]
          %v4664 = vld [vmem:[#allocation10 + $0x18] sm:$0xff]
          %v4665 = vadd.f32 %v4586, %v4661
          %v4666 = vadd.f32 %v4588, %v4662
          %v4667 = vadd.f32 %v4657, %v4663
          %v4668 = vadd.f32 %v4659, %v4664
          %v4669 = vmul.f32 %v4665, 0.5
          %v4670 = vtanh.pop %v4669
          %v4671 = vmul.f32 %v4670, 0.5
          %v4672 = vadd.f32 %v4671, 0.5
          %v4673 = vmul.f32 %v4666, 0.5
          %v4674 = vtanh.pop %v4673
          %v4675 = vmul.f32 %v4674, 0.5
          %v4676 = vadd.f32 %v4675, 0.5
          %v4677 = vtanh.pop %v4667
          %v4678 = vmul.f32 %v4668, 0.5
          %v4679 = vtanh.pop %v4678
          %v4680 = vmul.f32 %v4679, 0.5
          %v4681 = vadd.f32 %v4680, 0.5
          %v4682 = vmul.f32 %v4676, %v4296
          %v4683 = vmul.f32 %v4672, %v4677
          %v4684 = vadd.f32 %v4682, %v4683
          %v4685 = vtanh.pop %v4684
          %v4686 = vmul.f32 %v4681, %v4685
          %s4687 = sadd.s32 %s3896, 2
          %p4688 = scmp.lt.s32.totalorder %s4687, 12
          %s4689 = scalar_select %p4688, 1, 0
          %v4690 = vstv %s4689
          %vm4691 = vcmp.eq.s32.totalorder %v4690, 1
          %v4692 = vsel %vm4691, %v4684, %v4296
          %v4693 = vsel %vm4691, %v4686, %v4297
          %s4694 = scalar_lea.vmem %s369, 16 [#allocation13]
          %4695 = vst [vmem:[%s4694] sm:$0xff] %v4693
          %s4696 = scalar_lea.vmem %s325, 24 [#allocation4]
          %v4697 = vld [vmem:[%s4696] sm:$0xff]
          %v4698 = vld [vmem:[#allocation7] sm:$0xff]
          %v4699 = vld [vmem:[#allocation7 + $0x8] sm:$0xff]
          %v4700 = vld [vmem:[#allocation7 + $0x10] sm:$0xff]
          %v4701 = vld [vmem:[#allocation7 + $0x18] sm:$0xff]
          %v4702 = vld [vmem:[#allocation7 + $0x20] sm:$0xff]
          %v4703 = vld [vmem:[#allocation7 + $0x28] sm:$0xff]
          %v4704 = vld [vmem:[#allocation7 + $0x30] sm:$0xff]
          %v4705 = vld [vmem:[#allocation7 + $0x38] sm:$0xff]
          %v4706 = vld [vmem:[#allocation9] sm:$0xff]
          %v4707 = vld [vmem:[#allocation9 + $0x8] sm:$0xff]
          %v4708 = vld [vmem:[#allocation9 + $0x10] sm:$0xff]
          %v4709 = vld [vmem:[#allocation9 + $0x18] sm:$0xff]
          %v4710 = vld [vmem:[#allocation9 + $0x20] sm:$0xff]
          %v4711 = vld [vmem:[#allocation9 + $0x28] sm:$0xff]
          %v4712 = vld [vmem:[#allocation9 + $0x30] sm:$0xff]
          %v4713 = vld [vmem:[#allocation9 + $0x38] sm:$0xff]
          %v4714 = vld [vmem:[#allocation9 + $0x40] sm:$0xff]
          %v4715 = vld [vmem:[#allocation9 + $0x48] sm:$0xff]
          %v4716 = vld [vmem:[#allocation9 + $0x50] sm:$0xff]
          %v4717 = vld [vmem:[#allocation9 + $0x58] sm:$0xff]
          %v4718 = vld [vmem:[#allocation9 + $0x60] sm:$0xff]
          %v4719 = vld [vmem:[#allocation9 + $0x68] sm:$0xff]
          %v4720 = vld [vmem:[#allocation9 + $0x70] sm:$0xff]
          %v4721 = vld [vmem:[#allocation9 + $0x78] sm:$0xff]
          %v4722 = vld [vmem:[#allocation9 + $0x80] sm:$0xff]
          %v4723 = vld [vmem:[#allocation9 + $0x88] sm:$0xff]
          %v4724 = vld [vmem:[#allocation9 + $0x90] sm:$0xff]
          %v4725 = vld [vmem:[#allocation9 + $0x98] sm:$0xff]
          %v4726 = vld [vmem:[#allocation9 + $0xa0] sm:$0xff]
          %v4727 = vld [vmem:[#allocation9 + $0xa8] sm:$0xff]
          %v4728 = vld [vmem:[#allocation9 + $0xb0] sm:$0xff]
          %v4729 = vld [vmem:[#allocation9 + $0xb8] sm:$0xff]
          %v4730 = vld [vmem:[#allocation9 + $0xc0] sm:$0xff]
          %v4731 = vld [vmem:[#allocation9 + $0xc8] sm:$0xff]
          %v4732 = vld [vmem:[#allocation9 + $0xd0] sm:$0xff]
          %v4733 = vld [vmem:[#allocation9 + $0xd8] sm:$0xff]
          %v4734 = vld [vmem:[#allocation9 + $0xe0] sm:$0xff]
          %v4735 = vld [vmem:[#allocation9 + $0xe8] sm:$0xff]
          %v4736 = vld [vmem:[#allocation9 + $0xf0] sm:$0xff]
          %v4737 = vld [vmem:[#allocation9 + $0xf8] sm:$0xff]
          %v4738 = vld [vmem:[#allocation9 + $0x100] sm:$0xff]
          %v4739 = vld [vmem:[#allocation9 + $0x108] sm:$0xff]
          %v4740 = vld [vmem:[#allocation9 + $0x110] sm:$0xff]
          %v4741 = vld [vmem:[#allocation9 + $0x118] sm:$0xff]
          %v4742 = vld [vmem:[#allocation9 + $0x120] sm:$0xff]
          %v4743 = vld [vmem:[#allocation9 + $0x128] sm:$0xff]
          %v4744 = vld [vmem:[#allocation9 + $0x130] sm:$0xff]
          %v4745 = vld [vmem:[#allocation9 + $0x138] sm:$0xff]
          %v4746 = vld [vmem:[#allocation9 + $0x140] sm:$0xff]
          %v4747 = vld [vmem:[#allocation9 + $0x148] sm:$0xff]
          %v4748 = vld [vmem:[#allocation9 + $0x150] sm:$0xff]
          %v4749 = vld [vmem:[#allocation9 + $0x158] sm:$0xff]
          %v4750 = vld [vmem:[#allocation9 + $0x160] sm:$0xff]
          %v4751 = vld [vmem:[#allocation9 + $0x168] sm:$0xff]
          %v4752 = vld [vmem:[#allocation9 + $0x170] sm:$0xff]
          %v4753 = vld [vmem:[#allocation9 + $0x178] sm:$0xff]
          %v4754 = vld [vmem:[#allocation9 + $0x180] sm:$0xff]
          %v4755 = vld [vmem:[#allocation9 + $0x188] sm:$0xff]
          %v4756 = vld [vmem:[#allocation9 + $0x190] sm:$0xff]
          %v4757 = vld [vmem:[#allocation9 + $0x198] sm:$0xff]
          %v4758 = vld [vmem:[#allocation9 + $0x1a0] sm:$0xff]
          %v4759 = vld [vmem:[#allocation9 + $0x1a8] sm:$0xff]
          %v4760 = vld [vmem:[#allocation9 + $0x1b0] sm:$0xff]
          %v4761 = vld [vmem:[#allocation9 + $0x1b8] sm:$0xff]
          %v4762 = vld [vmem:[#allocation9 + $0x1c0] sm:$0xff]
          %v4763 = vld [vmem:[#allocation9 + $0x1c8] sm:$0xff]
          %v4764 = vld [vmem:[#allocation9 + $0x1d0] sm:$0xff]
          %v4765 = vld [vmem:[#allocation9 + $0x1d8] sm:$0xff]
          %v4766 = vld [vmem:[#allocation9 + $0x1e0] sm:$0xff]
          %v4767 = vld [vmem:[#allocation9 + $0x1e8] sm:$0xff]
          %v4768 = vld [vmem:[#allocation9 + $0x1f0] sm:$0xff]
          %v4769 = vld [vmem:[#allocation9 + $0x1f8] sm:$0xff]
          %4770 = vmatprep.subr.mxu0 %v4767
          %4771 = vmatpush1.msra.mxu0 %v4766
          %4772 = vmatprep.subr.mxu0 %v4763
          %4773 = vmatpush1.msra.mxu0 %v4762
          %4774 = vmatprep.subr.mxu0 %v4759
          %4775 = vmatpush1.msra.mxu0 %v4758
          %4776 = vmatprep.subr.mxu0 %v4755
          %4777 = vmatpush1.msra.mxu0 %v4754
          %4778 = vmatprep.subr.mxu0 %v4751
          %4779 = vmatpush1.msra.mxu0 %v4750
          %4780 = vmatprep.subr.mxu0 %v4747
          %4781 = vmatpush1.msra.mxu0 %v4746
          %4782 = vmatprep.subr.mxu0 %v4743
          %4783 = vmatpush1.msra.mxu0 %v4742
          %4784 = vmatprep.subr.mxu0 %v4739
          %4785 = vmatpush1.msra.mxu0 %v4738
          %4786 = vmatprep.subr.mxu0 %v4735
          %4787 = vmatpush1.msra.mxu0 %v4734
          %4788 = vmatprep.subr.mxu0 %v4731
          %4789 = vmatpush1.msra.mxu0 %v4730
          %4790 = vmatprep.subr.mxu0 %v4727
          %4791 = vmatpush1.msra.mxu0 %v4726
          %4792 = vmatprep.subr.mxu0 %v4723
          %4793 = vmatpush1.msra.mxu0 %v4722
          %4794 = vmatprep.subr.mxu0 %v4719
          %4795 = vmatpush1.msra.mxu0 %v4718
          %4796 = vmatprep.subr.mxu0 %v4715
          %4797 = vmatpush1.msra.mxu0 %v4714
          %4798 = vmatprep.subr.mxu0 %v4711
          %4799 = vmatpush1.msra.mxu0 %v4710
          %4800 = vmatprep.subr.mxu0 %v4707
          %4801 = vmatpush1.msra.mxu0 %v4706
          %4802 = vmatprep.subr.mxu0 0.0
          %4803 = vmatpush2.msra.mxu0 0.0
          %4804 = vmatprep.subr.mxu0 0.0
          %4805 = vmatpush2.msra.mxu0 0.0
          %4806 = vmatprep.subr.mxu0 0.0
          %4807 = vmatpush2.msra.mxu0 0.0
          %4808 = vmatprep.subr.mxu0 0.0
          %4809 = vmatpush2.msra.mxu0 0.0
          %4810 = vmatprep.subr.mxu0 0.0
          %4811 = vmatpush2.msra.mxu0 0.0
          %4812 = vmatprep.subr.mxu0 0.0
          %4813 = vmatpush2.msra.mxu0 0.0
          %4814 = vmatprep.subr.mxu0 0.0
          %4815 = vmatpush2.msra.mxu0 0.0
          %4816 = vmatprep.subr.mxu0 0.0
          %4817 = vmatpush2.msra.mxu0 0.0
          %4818 = vmatprep.subr.mxu0 0.0
          %4819 = vmatpush2.msra.mxu0 0.0
          %4820 = vmatprep.subr.mxu0 0.0
          %4821 = vmatpush2.msra.mxu0 0.0
          %4822 = vmatprep.subr.mxu0 0.0
          %4823 = vmatpush2.msra.mxu0 0.0
          %4824 = vmatprep.subr.mxu0 0.0
          %4825 = vmatpush2.msra.mxu0 0.0
          %4826 = vmatprep.subr.mxu0 0.0
          %4827 = vmatpush2.msra.mxu0 0.0
          %4828 = vmatprep.subr.mxu0 0.0
          %4829 = vmatpush2.msra.mxu0 0.0
          %4830 = vmatprep.subr.mxu0 0.0
          %4831 = vmatpush2.msra.mxu0 0.0
          %4832 = vmatprep.subr.mxu0 0.0
          %4833 = vmatpush2.msra.mxu0 0.0
          %4834 = vmatprep.mubr.f32.mxu0 0.0
          %4835 = vmatmul.mubr.f32.gmra.mxu0 %v4693
          %v4836 = vpop.f32.mrf.mxu0
          %v4837 = vadd.f32 0.0, %v4836
          %v4838 = vpop.f32.mrf.mxu0
          %v4839 = vadd.f32 0.0, %v4838
          %4840 = vdwg.mxu0
          %4841 = vmatprep.subr.mxu0 %v4769
          %4842 = vmatpush1.msra.mxu0 %v4768
          %4843 = vmatprep.subr.mxu0 %v4765
          %4844 = vmatpush1.msra.mxu0 %v4764
          %4845 = vmatprep.subr.mxu0 %v4761
          %4846 = vmatpush1.msra.mxu0 %v4760
          %4847 = vmatprep.subr.mxu0 %v4757
          %4848 = vmatpush1.msra.mxu0 %v4756
          %4849 = vmatprep.subr.mxu0 %v4753
          %4850 = vmatpush1.msra.mxu0 %v4752
          %4851 = vmatprep.subr.mxu0 %v4749
          %4852 = vmatpush1.msra.mxu0 %v4748
          %4853 = vmatprep.subr.mxu0 %v4745
          %4854 = vmatpush1.msra.mxu0 %v4744
          %4855 = vmatprep.subr.mxu0 %v4741
          %4856 = vmatpush1.msra.mxu0 %v4740
          %4857 = vmatprep.subr.mxu0 %v4737
          %4858 = vmatpush1.msra.mxu0 %v4736
          %4859 = vmatprep.subr.mxu0 %v4733
          %4860 = vmatpush1.msra.mxu0 %v4732
          %4861 = vmatprep.subr.mxu0 %v4729
          %4862 = vmatpush1.msra.mxu0 %v4728
          %4863 = vmatprep.subr.mxu0 %v4725
          %4864 = vmatpush1.msra.mxu0 %v4724
          %4865 = vmatprep.subr.mxu0 %v4721
          %4866 = vmatpush1.msra.mxu0 %v4720
          %4867 = vmatprep.subr.mxu0 %v4717
          %4868 = vmatpush1.msra.mxu0 %v4716
          %4869 = vmatprep.subr.mxu0 %v4713
          %4870 = vmatpush1.msra.mxu0 %v4712
          %4871 = vmatprep.subr.mxu0 %v4709
          %4872 = vmatpush1.msra.mxu0 %v4708
          %4873 = vmatprep.subr.mxu0 0.0
          %4874 = vmatpush2.msra.mxu0 0.0
          %4875 = vmatprep.subr.mxu0 0.0
          %4876 = vmatpush2.msra.mxu0 0.0
          %4877 = vmatprep.subr.mxu0 0.0
          %4878 = vmatpush2.msra.mxu0 0.0
          %4879 = vmatprep.subr.mxu0 0.0
          %4880 = vmatpush2.msra.mxu0 0.0
          %4881 = vmatprep.subr.mxu0 0.0
          %4882 = vmatpush2.msra.mxu0 0.0
          %4883 = vmatprep.subr.mxu0 0.0
          %4884 = vmatpush2.msra.mxu0 0.0
          %4885 = vmatprep.subr.mxu0 0.0
          %4886 = vmatpush2.msra.mxu0 0.0
          %4887 = vmatprep.subr.mxu0 0.0
          %4888 = vmatpush2.msra.mxu0 0.0
          %4889 = vmatprep.subr.mxu0 0.0
          %4890 = vmatpush2.msra.mxu0 0.0
          %4891 = vmatprep.subr.mxu0 0.0
          %4892 = vmatpush2.msra.mxu0 0.0
          %4893 = vmatprep.subr.mxu0 0.0
          %4894 = vmatpush2.msra.mxu0 0.0
          %4895 = vmatprep.subr.mxu0 0.0
          %4896 = vmatpush2.msra.mxu0 0.0
          %4897 = vmatprep.subr.mxu0 0.0
          %4898 = vmatpush2.msra.mxu0 0.0
          %4899 = vmatprep.subr.mxu0 0.0
          %4900 = vmatpush2.msra.mxu0 0.0
          %4901 = vmatprep.subr.mxu0 0.0
          %4902 = vmatpush2.msra.mxu0 0.0
          %4903 = vmatprep.subr.mxu0 0.0
          %4904 = vmatpush2.msra.mxu0 0.0
          %4905 = vmatprep.mubr.f32.mxu0 0.0
          %4906 = vmatmul.mubr.f32.gmra.mxu0 %v4693
          %v4907 = vpop.f32.mrf.mxu0
          %v4908 = vadd.f32 0.0, %v4907
          %v4909 = vpop.f32.mrf.mxu0
          %v4910 = vadd.f32 0.0, %v4909
          %4911 = vdwg.mxu0
          %v4913 = vsel %vm3724, %v4697, 0
          %4915 = vmatprep.subr.mxu0 0.0
          %4916 = vmatpush1.msra.mxu0 0.0
          %4917 = vmatprep.subr.mxu0 0.0
          %4918 = vmatpush1.msra.mxu0 0.0
          %4919 = vmatprep.subr.mxu0 0.0
          %4920 = vmatpush1.msra.mxu0 0.0
          %4921 = vmatprep.subr.mxu0 0.0
          %4922 = vmatpush1.msra.mxu0 0.0
          %4923 = vmatprep.subr.mxu0 0.0
          %4924 = vmatpush1.msra.mxu0 0.0
          %4925 = vmatprep.subr.mxu0 0.0
          %4926 = vmatpush1.msra.mxu0 0.0
          %4927 = vmatprep.subr.mxu0 0.0
          %4928 = vmatpush1.msra.mxu0 0.0
          %4929 = vmatprep.subr.mxu0 0.0
          %4930 = vmatpush1.msra.mxu0 0.0
          %4931 = vmatprep.subr.mxu0 0.0
          %4932 = vmatpush1.msra.mxu0 0.0
          %4933 = vmatprep.subr.mxu0 0.0
          %4934 = vmatpush1.msra.mxu0 0.0
          %4935 = vmatprep.subr.mxu0 0.0
          %4936 = vmatpush1.msra.mxu0 0.0
          %4937 = vmatprep.subr.mxu0 0.0
          %4938 = vmatpush1.msra.mxu0 0.0
          %4939 = vmatprep.subr.mxu0 0.0
          %4940 = vmatpush1.msra.mxu0 0.0
          %4941 = vmatprep.subr.mxu0 0.0
          %4942 = vmatpush1.msra.mxu0 0.0
          %4943 = vmatprep.subr.mxu0 %v4703
          %4944 = vmatpush1.msra.mxu0 %v4702
          %4945 = vmatprep.subr.mxu0 %v4699
          %4946 = vmatpush1.msra.mxu0 %v4698
          %4947 = vmatprep.subr.mxu0 0.0
          %4948 = vmatpush2.msra.mxu0 0.0
          %4949 = vmatprep.subr.mxu0 0.0
          %4950 = vmatpush2.msra.mxu0 0.0
          %4951 = vmatprep.subr.mxu0 0.0
          %4952 = vmatpush2.msra.mxu0 0.0
          %4953 = vmatprep.subr.mxu0 0.0
          %4954 = vmatpush2.msra.mxu0 0.0
          %4955 = vmatprep.subr.mxu0 0.0
          %4956 = vmatpush2.msra.mxu0 0.0
          %4957 = vmatprep.subr.mxu0 0.0
          %4958 = vmatpush2.msra.mxu0 0.0
          %4959 = vmatprep.subr.mxu0 0.0
          %4960 = vmatpush2.msra.mxu0 0.0
          %4961 = vmatprep.subr.mxu0 0.0
          %4962 = vmatpush2.msra.mxu0 0.0
          %4963 = vmatprep.subr.mxu0 0.0
          %4964 = vmatpush2.msra.mxu0 0.0
          %4965 = vmatprep.subr.mxu0 0.0
          %4966 = vmatpush2.msra.mxu0 0.0
          %4967 = vmatprep.subr.mxu0 0.0
          %4968 = vmatpush2.msra.mxu0 0.0
          %4969 = vmatprep.subr.mxu0 0.0
          %4970 = vmatpush2.msra.mxu0 0.0
          %4971 = vmatprep.subr.mxu0 0.0
          %4972 = vmatpush2.msra.mxu0 0.0
          %4973 = vmatprep.subr.mxu0 0.0
          %4974 = vmatpush2.msra.mxu0 0.0
          %4975 = vmatprep.subr.mxu0 0.0
          %4976 = vmatpush2.msra.mxu0 0.0
          %4977 = vmatprep.subr.mxu0 0.0
          %4978 = vmatpush2.msra.mxu0 0.0
          %4979 = vmatprep.mubr.f32.mxu0 0.0
          %4980 = vmatmul.mubr.f32.gmra.mxu0 %v4913
          %v4981 = vpop.f32.mrf.mxu0
          %v4982 = vadd.f32 %v4837, %v4981
          %v4983 = vpop.f32.mrf.mxu0
          %v4984 = vadd.f32 %v4839, %v4983
          %4985 = vdwg.mxu0
          %4986 = vmatprep.subr.mxu0 0.0
          %4987 = vmatpush1.msra.mxu0 0.0
          %4988 = vmatprep.subr.mxu0 0.0
          %4989 = vmatpush1.msra.mxu0 0.0
          %4990 = vmatprep.subr.mxu0 0.0
          %4991 = vmatpush1.msra.mxu0 0.0
          %4992 = vmatprep.subr.mxu0 0.0
          %4993 = vmatpush1.msra.mxu0 0.0
          %4994 = vmatprep.subr.mxu0 0.0
          %4995 = vmatpush1.msra.mxu0 0.0
          %4996 = vmatprep.subr.mxu0 0.0
          %4997 = vmatpush1.msra.mxu0 0.0
          %4998 = vmatprep.subr.mxu0 0.0
          %4999 = vmatpush1.msra.mxu0 0.0
          %5000 = vmatprep.subr.mxu0 0.0
          %5001 = vmatpush1.msra.mxu0 0.0
          %5002 = vmatprep.subr.mxu0 0.0
          %5003 = vmatpush1.msra.mxu0 0.0
          %5004 = vmatprep.subr.mxu0 0.0
          %5005 = vmatpush1.msra.mxu0 0.0
          %5006 = vmatprep.subr.mxu0 0.0
          %5007 = vmatpush1.msra.mxu0 0.0
          %5008 = vmatprep.subr.mxu0 0.0
          %5009 = vmatpush1.msra.mxu0 0.0
          %5010 = vmatprep.subr.mxu0 0.0
          %5011 = vmatpush1.msra.mxu0 0.0
          %5012 = vmatprep.subr.mxu0 0.0
          %5013 = vmatpush1.msra.mxu0 0.0
          %5014 = vmatprep.subr.mxu0 %v4705
          %5015 = vmatpush1.msra.mxu0 %v4704
          %5016 = vmatprep.subr.mxu0 %v4701
          %5017 = vmatpush1.msra.mxu0 %v4700
          %5018 = vmatprep.subr.mxu0 0.0
          %5019 = vmatpush2.msra.mxu0 0.0
          %5020 = vmatprep.subr.mxu0 0.0
          %5021 = vmatpush2.msra.mxu0 0.0
          %5022 = vmatprep.subr.mxu0 0.0
          %5023 = vmatpush2.msra.mxu0 0.0
          %5024 = vmatprep.subr.mxu0 0.0
          %5025 = vmatpush2.msra.mxu0 0.0
          %5026 = vmatprep.subr.mxu0 0.0
          %5027 = vmatpush2.msra.mxu0 0.0
          %5028 = vmatprep.subr.mxu0 0.0
          %5029 = vmatpush2.msra.mxu0 0.0
          %5030 = vmatprep.subr.mxu0 0.0
          %5031 = vmatpush2.msra.mxu0 0.0
          %5032 = vmatprep.subr.mxu0 0.0
          %5033 = vmatpush2.msra.mxu0 0.0
          %5034 = vmatprep.subr.mxu0 0.0
          %5035 = vmatpush2.msra.mxu0 0.0
          %5036 = vmatprep.subr.mxu0 0.0
          %5037 = vmatpush2.msra.mxu0 0.0
          %5038 = vmatprep.subr.mxu0 0.0
          %5039 = vmatpush2.msra.mxu0 0.0
          %5040 = vmatprep.subr.mxu0 0.0
          %5041 = vmatpush2.msra.mxu0 0.0
          %5042 = vmatprep.subr.mxu0 0.0
          %5043 = vmatpush2.msra.mxu0 0.0
          %5044 = vmatprep.subr.mxu0 0.0
          %5045 = vmatpush2.msra.mxu0 0.0
          %5046 = vmatprep.subr.mxu0 0.0
          %5047 = vmatpush2.msra.mxu0 0.0
          %5048 = vmatprep.subr.mxu0 0.0
          %5049 = vmatpush2.msra.mxu0 0.0
          %5050 = vmatprep.mubr.f32.mxu0 0.0
          %5051 = vmatmul.mubr.f32.gmra.mxu0 %v4913
          %v5052 = vpop.f32.mrf.mxu0
          %v5053 = vadd.f32 %v4908, %v5052
          %v5054 = vpop.f32.mrf.mxu0
          %v5055 = vadd.f32 %v4910, %v5054
          %5056 = vdwg.mxu0
          %v5057 = vld [vmem:[#allocation10] sm:$0xff]
          %v5058 = vld [vmem:[#allocation10 + $0x8] sm:$0xff]
          %v5059 = vld [vmem:[#allocation10 + $0x10] sm:$0xff]
          %v5060 = vld [vmem:[#allocation10 + $0x18] sm:$0xff]
          %v5061 = vadd.f32 %v4982, %v5057
          %v5062 = vadd.f32 %v4984, %v5058
          %v5063 = vadd.f32 %v5053, %v5059
          %v5064 = vadd.f32 %v5055, %v5060
          %v5065 = vmul.f32 %v5061, 0.5
          %v5066 = vtanh.pop %v5065
          %v5067 = vmul.f32 %v5066, 0.5
          %v5068 = vadd.f32 %v5067, 0.5
          %v5069 = vmul.f32 %v5062, 0.5
          %v5070 = vtanh.pop %v5069
          %v5071 = vmul.f32 %v5070, 0.5
          %v5072 = vadd.f32 %v5071, 0.5
          %v5073 = vtanh.pop %v5063
          %v5074 = vmul.f32 %v5064, 0.5
          %v5075 = vtanh.pop %v5074
          %v5076 = vmul.f32 %v5075, 0.5
          %v5077 = vadd.f32 %v5076, 0.5
          %v5078 = vmul.f32 %v5072, %v4692
          %v5079 = vmul.f32 %v5068, %v5073
          %v5080 = vadd.f32 %v5078, %v5079
          %v5081 = vtanh.pop %v5080
          %v5082 = vmul.f32 %v5077, %v5081
          %s5083 = sadd.s32 %s3896, 3
          %p5084 = scmp.lt.s32.totalorder %s5083, 12
          %s5085 = scalar_select %p5084, 1, 0
          %v5086 = vstv %s5085
          %vm5087 = vcmp.eq.s32.totalorder %v5086, 1
          %v5088 = vsel %vm5087, %v5080, %v4692
          %v5089 = vsel %vm5087, %v5082, %v4693
          %s5090 = scalar_lea.vmem %s369, 24 [#allocation13]
          %5091 = vst [vmem:[%s5090] sm:$0xff] %v5089
          %s5092 = scalar_lea.vmem %s325, 32 [#allocation4]
          %v5093 = vld [vmem:[%s5092] sm:$0xff]
          %v5094 = vld [vmem:[#allocation7] sm:$0xff]
          %v5095 = vld [vmem:[#allocation7 + $0x8] sm:$0xff]
          %v5096 = vld [vmem:[#allocation7 + $0x10] sm:$0xff]
          %v5097 = vld [vmem:[#allocation7 + $0x18] sm:$0xff]
          %v5098 = vld [vmem:[#allocation7 + $0x20] sm:$0xff]
          %v5099 = vld [vmem:[#allocation7 + $0x28] sm:$0xff]
          %v5100 = vld [vmem:[#allocation7 + $0x30] sm:$0xff]
          %v5101 = vld [vmem:[#allocation7 + $0x38] sm:$0xff]
          %v5102 = vld [vmem:[#allocation9] sm:$0xff]
          %v5103 = vld [vmem:[#allocation9 + $0x8] sm:$0xff]
          %v5104 = vld [vmem:[#allocation9 + $0x10] sm:$0xff]
          %v5105 = vld [vmem:[#allocation9 + $0x18] sm:$0xff]
          %v5106 = vld [vmem:[#allocation9 + $0x20] sm:$0xff]
          %v5107 = vld [vmem:[#allocation9 + $0x28] sm:$0xff]
          %v5108 = vld [vmem:[#allocation9 + $0x30] sm:$0xff]
          %v5109 = vld [vmem:[#allocation9 + $0x38] sm:$0xff]
          %v5110 = vld [vmem:[#allocation9 + $0x40] sm:$0xff]
          %v5111 = vld [vmem:[#allocation9 + $0x48] sm:$0xff]
          %v5112 = vld [vmem:[#allocation9 + $0x50] sm:$0xff]
          %v5113 = vld [vmem:[#allocation9 + $0x58] sm:$0xff]
          %v5114 = vld [vmem:[#allocation9 + $0x60] sm:$0xff]
          %v5115 = vld [vmem:[#allocation9 + $0x68] sm:$0xff]
          %v5116 = vld [vmem:[#allocation9 + $0x70] sm:$0xff]
          %v5117 = vld [vmem:[#allocation9 + $0x78] sm:$0xff]
          %v5118 = vld [vmem:[#allocation9 + $0x80] sm:$0xff]
          %v5119 = vld [vmem:[#allocation9 + $0x88] sm:$0xff]
          %v5120 = vld [vmem:[#allocation9 + $0x90] sm:$0xff]
          %v5121 = vld [vmem:[#allocation9 + $0x98] sm:$0xff]
          %v5122 = vld [vmem:[#allocation9 + $0xa0] sm:$0xff]
          %v5123 = vld [vmem:[#allocation9 + $0xa8] sm:$0xff]
          %v5124 = vld [vmem:[#allocation9 + $0xb0] sm:$0xff]
          %v5125 = vld [vmem:[#allocation9 + $0xb8] sm:$0xff]
          %v5126 = vld [vmem:[#allocation9 + $0xc0] sm:$0xff]
          %v5127 = vld [vmem:[#allocation9 + $0xc8] sm:$0xff]
          %v5128 = vld [vmem:[#allocation9 + $0xd0] sm:$0xff]
          %v5129 = vld [vmem:[#allocation9 + $0xd8] sm:$0xff]
          %v5130 = vld [vmem:[#allocation9 + $0xe0] sm:$0xff]
          %v5131 = vld [vmem:[#allocation9 + $0xe8] sm:$0xff]
          %v5132 = vld [vmem:[#allocation9 + $0xf0] sm:$0xff]
          %v5133 = vld [vmem:[#allocation9 + $0xf8] sm:$0xff]
          %v5134 = vld [vmem:[#allocation9 + $0x100] sm:$0xff]
          %v5135 = vld [vmem:[#allocation9 + $0x108] sm:$0xff]
          %v5136 = vld [vmem:[#allocation9 + $0x110] sm:$0xff]
          %v5137 = vld [vmem:[#allocation9 + $0x118] sm:$0xff]
          %v5138 = vld [vmem:[#allocation9 + $0x120] sm:$0xff]
          %v5139 = vld [vmem:[#allocation9 + $0x128] sm:$0xff]
          %v5140 = vld [vmem:[#allocation9 + $0x130] sm:$0xff]
          %v5141 = vld [vmem:[#allocation9 + $0x138] sm:$0xff]
          %v5142 = vld [vmem:[#allocation9 + $0x140] sm:$0xff]
          %v5143 = vld [vmem:[#allocation9 + $0x148] sm:$0xff]
          %v5144 = vld [vmem:[#allocation9 + $0x150] sm:$0xff]
          %v5145 = vld [vmem:[#allocation9 + $0x158] sm:$0xff]
          %v5146 = vld [vmem:[#allocation9 + $0x160] sm:$0xff]
          %v5147 = vld [vmem:[#allocation9 + $0x168] sm:$0xff]
          %v5148 = vld [vmem:[#allocation9 + $0x170] sm:$0xff]
          %v5149 = vld [vmem:[#allocation9 + $0x178] sm:$0xff]
          %v5150 = vld [vmem:[#allocation9 + $0x180] sm:$0xff]
          %v5151 = vld [vmem:[#allocation9 + $0x188] sm:$0xff]
          %v5152 = vld [vmem:[#allocation9 + $0x190] sm:$0xff]
          %v5153 = vld [vmem:[#allocation9 + $0x198] sm:$0xff]
          %v5154 = vld [vmem:[#allocation9 + $0x1a0] sm:$0xff]
          %v5155 = vld [vmem:[#allocation9 + $0x1a8] sm:$0xff]
          %v5156 = vld [vmem:[#allocation9 + $0x1b0] sm:$0xff]
          %v5157 = vld [vmem:[#allocation9 + $0x1b8] sm:$0xff]
          %v5158 = vld [vmem:[#allocation9 + $0x1c0] sm:$0xff]
          %v5159 = vld [vmem:[#allocation9 + $0x1c8] sm:$0xff]
          %v5160 = vld [vmem:[#allocation9 + $0x1d0] sm:$0xff]
          %v5161 = vld [vmem:[#allocation9 + $0x1d8] sm:$0xff]
          %v5162 = vld [vmem:[#allocation9 + $0x1e0] sm:$0xff]
          %v5163 = vld [vmem:[#allocation9 + $0x1e8] sm:$0xff]
          %v5164 = vld [vmem:[#allocation9 + $0x1f0] sm:$0xff]
          %v5165 = vld [vmem:[#allocation9 + $0x1f8] sm:$0xff]
          %5166 = vmatprep.subr.mxu0 %v5163
          %5167 = vmatpush1.msra.mxu0 %v5162
          %5168 = vmatprep.subr.mxu0 %v5159
          %5169 = vmatpush1.msra.mxu0 %v5158
          %5170 = vmatprep.subr.mxu0 %v5155
          %5171 = vmatpush1.msra.mxu0 %v5154
          %5172 = vmatprep.subr.mxu0 %v5151
          %5173 = vmatpush1.msra.mxu0 %v5150
          %5174 = vmatprep.subr.mxu0 %v5147
          %5175 = vmatpush1.msra.mxu0 %v5146
          %5176 = vmatprep.subr.mxu0 %v5143
          %5177 = vmatpush1.msra.mxu0 %v5142
          %5178 = vmatprep.subr.mxu0 %v5139
          %5179 = vmatpush1.msra.mxu0 %v5138
          %5180 = vmatprep.subr.mxu0 %v5135
          %5181 = vmatpush1.msra.mxu0 %v5134
          %5182 = vmatprep.subr.mxu0 %v5131
          %5183 = vmatpush1.msra.mxu0 %v5130
          %5184 = vmatprep.subr.mxu0 %v5127
          %5185 = vmatpush1.msra.mxu0 %v5126
          %5186 = vmatprep.subr.mxu0 %v5123
          %5187 = vmatpush1.msra.mxu0 %v5122
          %5188 = vmatprep.subr.mxu0 %v5119
          %5189 = vmatpush1.msra.mxu0 %v5118
          %5190 = vmatprep.subr.mxu0 %v5115
          %5191 = vmatpush1.msra.mxu0 %v5114
          %5192 = vmatprep.subr.mxu0 %v5111
          %5193 = vmatpush1.msra.mxu0 %v5110
          %5194 = vmatprep.subr.mxu0 %v5107
          %5195 = vmatpush1.msra.mxu0 %v5106
          %5196 = vmatprep.subr.mxu0 %v5103
          %5197 = vmatpush1.msra.mxu0 %v5102
          %5198 = vmatprep.subr.mxu0 0.0
          %5199 = vmatpush2.msra.mxu0 0.0
          %5200 = vmatprep.subr.mxu0 0.0
          %5201 = vmatpush2.msra.mxu0 0.0
          %5202 = vmatprep.subr.mxu0 0.0
          %5203 = vmatpush2.msra.mxu0 0.0
          %5204 = vmatprep.subr.mxu0 0.0
          %5205 = vmatpush2.msra.mxu0 0.0
          %5206 = vmatprep.subr.mxu0 0.0
          %5207 = vmatpush2.msra.mxu0 0.0
          %5208 = vmatprep.subr.mxu0 0.0
          %5209 = vmatpush2.msra.mxu0 0.0
          %5210 = vmatprep.subr.mxu0 0.0
          %5211 = vmatpush2.msra.mxu0 0.0
          %5212 = vmatprep.subr.mxu0 0.0
          %5213 = vmatpush2.msra.mxu0 0.0
          %5214 = vmatprep.subr.mxu0 0.0
          %5215 = vmatpush2.msra.mxu0 0.0
          %5216 = vmatprep.subr.mxu0 0.0
          %5217 = vmatpush2.msra.mxu0 0.0
          %5218 = vmatprep.subr.mxu0 0.0
          %5219 = vmatpush2.msra.mxu0 0.0
          %5220 = vmatprep.subr.mxu0 0.0
          %5221 = vmatpush2.msra.mxu0 0.0
          %5222 = vmatprep.subr.mxu0 0.0
          %5223 = vmatpush2.msra.mxu0 0.0
          %5224 = vmatprep.subr.mxu0 0.0
          %5225 = vmatpush2.msra.mxu0 0.0
          %5226 = vmatprep.subr.mxu0 0.0
          %5227 = vmatpush2.msra.mxu0 0.0
          %5228 = vmatprep.subr.mxu0 0.0
          %5229 = vmatpush2.msra.mxu0 0.0
          %5230 = vmatprep.mubr.f32.mxu0 0.0
          %5231 = vmatmul.mubr.f32.gmra.mxu0 %v5089
          %v5232 = vpop.f32.mrf.mxu0
          %v5233 = vadd.f32 0.0, %v5232
          %v5234 = vpop.f32.mrf.mxu0
          %v5235 = vadd.f32 0.0, %v5234
          %5236 = vdwg.mxu0
          %5237 = vmatprep.subr.mxu0 %v5165
          %5238 = vmatpush1.msra.mxu0 %v5164
          %5239 = vmatprep.subr.mxu0 %v5161
          %5240 = vmatpush1.msra.mxu0 %v5160
          %5241 = vmatprep.subr.mxu0 %v5157
          %5242 = vmatpush1.msra.mxu0 %v5156
          %5243 = vmatprep.subr.mxu0 %v5153
          %5244 = vmatpush1.msra.mxu0 %v5152
          %5245 = vmatprep.subr.mxu0 %v5149
          %5246 = vmatpush1.msra.mxu0 %v5148
          %5247 = vmatprep.subr.mxu0 %v5145
          %5248 = vmatpush1.msra.mxu0 %v5144
          %5249 = vmatprep.subr.mxu0 %v5141
          %5250 = vmatpush1.msra.mxu0 %v5140
          %5251 = vmatprep.subr.mxu0 %v5137
          %5252 = vmatpush1.msra.mxu0 %v5136
          %5253 = vmatprep.subr.mxu0 %v5133
          %5254 = vmatpush1.msra.mxu0 %v5132
          %5255 = vmatprep.subr.mxu0 %v5129
          %5256 = vmatpush1.msra.mxu0 %v5128
          %5257 = vmatprep.subr.mxu0 %v5125
          %5258 = vmatpush1.msra.mxu0 %v5124
          %5259 = vmatprep.subr.mxu0 %v5121
          %5260 = vmatpush1.msra.mxu0 %v5120
          %5261 = vmatprep.subr.mxu0 %v5117
          %5262 = vmatpush1.msra.mxu0 %v5116
          %5263 = vmatprep.subr.mxu0 %v5113
          %5264 = vmatpush1.msra.mxu0 %v5112
          %5265 = vmatprep.subr.mxu0 %v5109
          %5266 = vmatpush1.msra.mxu0 %v5108
          %5267 = vmatprep.subr.mxu0 %v5105
          %5268 = vmatpush1.msra.mxu0 %v5104
          %5269 = vmatprep.subr.mxu0 0.0
          %5270 = vmatpush2.msra.mxu0 0.0
          %5271 = vmatprep.subr.mxu0 0.0
          %5272 = vmatpush2.msra.mxu0 0.0
          %5273 = vmatprep.subr.mxu0 0.0
          %5274 = vmatpush2.msra.mxu0 0.0
          %5275 = vmatprep.subr.mxu0 0.0
          %5276 = vmatpush2.msra.mxu0 0.0
          %5277 = vmatprep.subr.mxu0 0.0
          %5278 = vmatpush2.msra.mxu0 0.0
          %5279 = vmatprep.subr.mxu0 0.0
          %5280 = vmatpush2.msra.mxu0 0.0
          %5281 = vmatprep.subr.mxu0 0.0
          %5282 = vmatpush2.msra.mxu0 0.0
          %5283 = vmatprep.subr.mxu0 0.0
          %5284 = vmatpush2.msra.mxu0 0.0
          %5285 = vmatprep.subr.mxu0 0.0
          %5286 = vmatpush2.msra.mxu0 0.0
          %5287 = vmatprep.subr.mxu0 0.0
          %5288 = vmatpush2.msra.mxu0 0.0
          %5289 = vmatprep.subr.mxu0 0.0
          %5290 = vmatpush2.msra.mxu0 0.0
          %5291 = vmatprep.subr.mxu0 0.0
          %5292 = vmatpush2.msra.mxu0 0.0
          %5293 = vmatprep.subr.mxu0 0.0
          %5294 = vmatpush2.msra.mxu0 0.0
          %5295 = vmatprep.subr.mxu0 0.0
          %5296 = vmatpush2.msra.mxu0 0.0
          %5297 = vmatprep.subr.mxu0 0.0
          %5298 = vmatpush2.msra.mxu0 0.0
          %5299 = vmatprep.subr.mxu0 0.0
          %5300 = vmatpush2.msra.mxu0 0.0
          %5301 = vmatprep.mubr.f32.mxu0 0.0
          %5302 = vmatmul.mubr.f32.gmra.mxu0 %v5089
          %v5303 = vpop.f32.mrf.mxu0
          %v5304 = vadd.f32 0.0, %v5303
          %v5305 = vpop.f32.mrf.mxu0
          %v5306 = vadd.f32 0.0, %v5305
          %5307 = vdwg.mxu0
          %v5309 = vsel %vm3724, %v5093, 0
          %5311 = vmatprep.subr.mxu0 0.0
          %5312 = vmatpush1.msra.mxu0 0.0
          %5313 = vmatprep.subr.mxu0 0.0
          %5314 = vmatpush1.msra.mxu0 0.0
          %5315 = vmatprep.subr.mxu0 0.0
          %5316 = vmatpush1.msra.mxu0 0.0
          %5317 = vmatprep.subr.mxu0 0.0
          %5318 = vmatpush1.msra.mxu0 0.0
          %5319 = vmatprep.subr.mxu0 0.0
          %5320 = vmatpush1.msra.mxu0 0.0
          %5321 = vmatprep.subr.mxu0 0.0
          %5322 = vmatpush1.msra.mxu0 0.0
          %5323 = vmatprep.subr.mxu0 0.0
          %5324 = vmatpush1.msra.mxu0 0.0
          %5325 = vmatprep.subr.mxu0 0.0
          %5326 = vmatpush1.msra.mxu0 0.0
          %5327 = vmatprep.subr.mxu0 0.0
          %5328 = vmatpush1.msra.mxu0 0.0
          %5329 = vmatprep.subr.mxu0 0.0
          %5330 = vmatpush1.msra.mxu0 0.0
          %5331 = vmatprep.subr.mxu0 0.0
          %5332 = vmatpush1.msra.mxu0 0.0
          %5333 = vmatprep.subr.mxu0 0.0
          %5334 = vmatpush1.msra.mxu0 0.0
          %5335 = vmatprep.subr.mxu0 0.0
          %5336 = vmatpush1.msra.mxu0 0.0
          %5337 = vmatprep.subr.mxu0 0.0
          %5338 = vmatpush1.msra.mxu0 0.0
          %5339 = vmatprep.subr.mxu0 %v5099
          %5340 = vmatpush1.msra.mxu0 %v5098
          %5341 = vmatprep.subr.mxu0 %v5095
          %5342 = vmatpush1.msra.mxu0 %v5094
          %5343 = vmatprep.subr.mxu0 0.0
          %5344 = vmatpush2.msra.mxu0 0.0
          %5345 = vmatprep.subr.mxu0 0.0
          %5346 = vmatpush2.msra.mxu0 0.0
          %5347 = vmatprep.subr.mxu0 0.0
          %5348 = vmatpush2.msra.mxu0 0.0
          %5349 = vmatprep.subr.mxu0 0.0
          %5350 = vmatpush2.msra.mxu0 0.0
          %5351 = vmatprep.subr.mxu0 0.0
          %5352 = vmatpush2.msra.mxu0 0.0
          %5353 = vmatprep.subr.mxu0 0.0
          %5354 = vmatpush2.msra.mxu0 0.0
          %5355 = vmatprep.subr.mxu0 0.0
          %5356 = vmatpush2.msra.mxu0 0.0
          %5357 = vmatprep.subr.mxu0 0.0
          %5358 = vmatpush2.msra.mxu0 0.0
          %5359 = vmatprep.subr.mxu0 0.0
          %5360 = vmatpush2.msra.mxu0 0.0
          %5361 = vmatprep.subr.mxu0 0.0
          %5362 = vmatpush2.msra.mxu0 0.0
          %5363 = vmatprep.subr.mxu0 0.0
          %5364 = vmatpush2.msra.mxu0 0.0
          %5365 = vmatprep.subr.mxu0 0.0
          %5366 = vmatpush2.msra.mxu0 0.0
          %5367 = vmatprep.subr.mxu0 0.0
          %5368 = vmatpush2.msra.mxu0 0.0
          %5369 = vmatprep.subr.mxu0 0.0
          %5370 = vmatpush2.msra.mxu0 0.0
          %5371 = vmatprep.subr.mxu0 0.0
          %5372 = vmatpush2.msra.mxu0 0.0
          %5373 = vmatprep.subr.mxu0 0.0
          %5374 = vmatpush2.msra.mxu0 0.0
          %5375 = vmatprep.mubr.f32.mxu0 0.0
          %5376 = vmatmul.mubr.f32.gmra.mxu0 %v5309
          %v5377 = vpop.f32.mrf.mxu0
          %v5378 = vadd.f32 %v5233, %v5377
          %v5379 = vpop.f32.mrf.mxu0
          %v5380 = vadd.f32 %v5235, %v5379
          %5381 = vdwg.mxu0
          %5382 = vmatprep.subr.mxu0 0.0
          %5383 = vmatpush1.msra.mxu0 0.0
          %5384 = vmatprep.subr.mxu0 0.0
          %5385 = vmatpush1.msra.mxu0 0.0
          %5386 = vmatprep.subr.mxu0 0.0
          %5387 = vmatpush1.msra.mxu0 0.0
          %5388 = vmatprep.subr.mxu0 0.0
          %5389 = vmatpush1.msra.mxu0 0.0
          %5390 = vmatprep.subr.mxu0 0.0
          %5391 = vmatpush1.msra.mxu0 0.0
          %5392 = vmatprep.subr.mxu0 0.0
          %5393 = vmatpush1.msra.mxu0 0.0
          %5394 = vmatprep.subr.mxu0 0.0
          %5395 = vmatpush1.msra.mxu0 0.0
          %5396 = vmatprep.subr.mxu0 0.0
          %5397 = vmatpush1.msra.mxu0 0.0
          %5398 = vmatprep.subr.mxu0 0.0
          %5399 = vmatpush1.msra.mxu0 0.0
          %5400 = vmatprep.subr.mxu0 0.0
          %5401 = vmatpush1.msra.mxu0 0.0
          %5402 = vmatprep.subr.mxu0 0.0
          %5403 = vmatpush1.msra.mxu0 0.0
          %5404 = vmatprep.subr.mxu0 0.0
          %5405 = vmatpush1.msra.mxu0 0.0
          %5406 = vmatprep.subr.mxu0 0.0
          %5407 = vmatpush1.msra.mxu0 0.0
          %5408 = vmatprep.subr.mxu0 0.0
          %5409 = vmatpush1.msra.mxu0 0.0
          %5410 = vmatprep.subr.mxu0 %v5101
          %5411 = vmatpush1.msra.mxu0 %v5100
          %5412 = vmatprep.subr.mxu0 %v5097
          %5413 = vmatpush1.msra.mxu0 %v5096
          %5414 = vmatprep.subr.mxu0 0.0
          %5415 = vmatpush2.msra.mxu0 0.0
          %5416 = vmatprep.subr.mxu0 0.0
          %5417 = vmatpush2.msra.mxu0 0.0
          %5418 = vmatprep.subr.mxu0 0.0
          %5419 = vmatpush2.msra.mxu0 0.0
          %5420 = vmatprep.subr.mxu0 0.0
          %5421 = vmatpush2.msra.mxu0 0.0
          %5422 = vmatprep.subr.mxu0 0.0
          %5423 = vmatpush2.msra.mxu0 0.0
          %5424 = vmatprep.subr.mxu0 0.0
          %5425 = vmatpush2.msra.mxu0 0.0
          %5426 = vmatprep.subr.mxu0 0.0
          %5427 = vmatpush2.msra.mxu0 0.0
          %5428 = vmatprep.subr.mxu0 0.0
          %5429 = vmatpush2.msra.mxu0 0.0
          %5430 = vmatprep.subr.mxu0 0.0
          %5431 = vmatpush2.msra.mxu0 0.0
          %5432 = vmatprep.subr.mxu0 0.0
          %5433 = vmatpush2.msra.mxu0 0.0
          %5434 = vmatprep.subr.mxu0 0.0
          %5435 = vmatpush2.msra.mxu0 0.0
          %5436 = vmatprep.subr.mxu0 0.0
          %5437 = vmatpush2.msra.mxu0 0.0
          %5438 = vmatprep.subr.mxu0 0.0
          %5439 = vmatpush2.msra.mxu0 0.0
          %5440 = vmatprep.subr.mxu0 0.0
          %5441 = vmatpush2.msra.mxu0 0.0
          %5442 = vmatprep.subr.mxu0 0.0
          %5443 = vmatpush2.msra.mxu0 0.0
          %5444 = vmatprep.subr.mxu0 0.0
          %5445 = vmatpush2.msra.mxu0 0.0
          %5446 = vmatprep.mubr.f32.mxu0 0.0
          %5447 = vmatmul.mubr.f32.gmra.mxu0 %v5309
          %v5448 = vpop.f32.mrf.mxu0
          %v5449 = vadd.f32 %v5304, %v5448
          %v5450 = vpop.f32.mrf.mxu0
          %v5451 = vadd.f32 %v5306, %v5450
          %5452 = vdwg.mxu0
          %v5453 = vld [vmem:[#allocation10] sm:$0xff]
          %v5454 = vld [vmem:[#allocation10 + $0x8] sm:$0xff]
          %v5455 = vld [vmem:[#allocation10 + $0x10] sm:$0xff]
          %v5456 = vld [vmem:[#allocation10 + $0x18] sm:$0xff]
          %v5457 = vadd.f32 %v5378, %v5453
          %v5458 = vadd.f32 %v5380, %v5454
          %v5459 = vadd.f32 %v5449, %v5455
          %v5460 = vadd.f32 %v5451, %v5456
          %v5461 = vmul.f32 %v5457, 0.5
          %v5462 = vtanh.pop %v5461
          %v5463 = vmul.f32 %v5462, 0.5
          %v5464 = vadd.f32 %v5463, 0.5
          %v5465 = vmul.f32 %v5458, 0.5
          %v5466 = vtanh.pop %v5465
          %v5467 = vmul.f32 %v5466, 0.5
          %v5468 = vadd.f32 %v5467, 0.5
          %v5469 = vtanh.pop %v5459
          %v5470 = vmul.f32 %v5460, 0.5
          %v5471 = vtanh.pop %v5470
          %v5472 = vmul.f32 %v5471, 0.5
          %v5473 = vadd.f32 %v5472, 0.5
          %v5474 = vmul.f32 %v5468, %v5088
          %v5475 = vmul.f32 %v5464, %v5469
          %v5476 = vadd.f32 %v5474, %v5475
          %v5477 = vtanh.pop %v5476
          %v5478 = vmul.f32 %v5473, %v5477
          %s5479 = sadd.s32 %s3896, 4
          %p5480 = scmp.lt.s32.totalorder %s5479, 12
          %s5481 = scalar_select %p5480, 1, 0
          %v5482 = vstv %s5481
          %vm5483 = vcmp.eq.s32.totalorder %v5482, 1
          %v5484 = vsel %vm5483, %v5476, %v5088
          %v5485 = vsel %vm5483, %v5478, %v5089
          %s5486 = scalar_lea.vmem %s369, 32 [#allocation13]
          %5487 = vst [vmem:[%s5486] sm:$0xff] %v5485
          %s5488 = scalar_lea.vmem %s325, 40 [#allocation4]
          %v5489 = vld [vmem:[%s5488] sm:$0xff]
          %v5490 = vld [vmem:[#allocation7] sm:$0xff]
          %v5491 = vld [vmem:[#allocation7 + $0x8] sm:$0xff]
          %v5492 = vld [vmem:[#allocation7 + $0x10] sm:$0xff]
          %v5493 = vld [vmem:[#allocation7 + $0x18] sm:$0xff]
          %v5494 = vld [vmem:[#allocation7 + $0x20] sm:$0xff]
          %v5495 = vld [vmem:[#allocation7 + $0x28] sm:$0xff]
          %v5496 = vld [vmem:[#allocation7 + $0x30] sm:$0xff]
          %v5497 = vld [vmem:[#allocation7 + $0x38] sm:$0xff]
          %v5498 = vld [vmem:[#allocation9] sm:$0xff]
          %v5499 = vld [vmem:[#allocation9 + $0x8] sm:$0xff]
          %v5500 = vld [vmem:[#allocation9 + $0x10] sm:$0xff]
          %v5501 = vld [vmem:[#allocation9 + $0x18] sm:$0xff]
          %v5502 = vld [vmem:[#allocation9 + $0x20] sm:$0xff]
          %v5503 = vld [vmem:[#allocation9 + $0x28] sm:$0xff]
          %v5504 = vld [vmem:[#allocation9 + $0x30] sm:$0xff]
          %v5505 = vld [vmem:[#allocation9 + $0x38] sm:$0xff]
          %v5506 = vld [vmem:[#allocation9 + $0x40] sm:$0xff]
          %v5507 = vld [vmem:[#allocation9 + $0x48] sm:$0xff]
          %v5508 = vld [vmem:[#allocation9 + $0x50] sm:$0xff]
          %v5509 = vld [vmem:[#allocation9 + $0x58] sm:$0xff]
          %v5510 = vld [vmem:[#allocation9 + $0x60] sm:$0xff]
          %v5511 = vld [vmem:[#allocation9 + $0x68] sm:$0xff]
          %v5512 = vld [vmem:[#allocation9 + $0x70] sm:$0xff]
          %v5513 = vld [vmem:[#allocation9 + $0x78] sm:$0xff]
          %v5514 = vld [vmem:[#allocation9 + $0x80] sm:$0xff]
          %v5515 = vld [vmem:[#allocation9 + $0x88] sm:$0xff]
          %v5516 = vld [vmem:[#allocation9 + $0x90] sm:$0xff]
          %v5517 = vld [vmem:[#allocation9 + $0x98] sm:$0xff]
          %v5518 = vld [vmem:[#allocation9 + $0xa0] sm:$0xff]
          %v5519 = vld [vmem:[#allocation9 + $0xa8] sm:$0xff]
          %v5520 = vld [vmem:[#allocation9 + $0xb0] sm:$0xff]
          %v5521 = vld [vmem:[#allocation9 + $0xb8] sm:$0xff]
          %v5522 = vld [vmem:[#allocation9 + $0xc0] sm:$0xff]
          %v5523 = vld [vmem:[#allocation9 + $0xc8] sm:$0xff]
          %v5524 = vld [vmem:[#allocation9 + $0xd0] sm:$0xff]
          %v5525 = vld [vmem:[#allocation9 + $0xd8] sm:$0xff]
          %v5526 = vld [vmem:[#allocation9 + $0xe0] sm:$0xff]
          %v5527 = vld [vmem:[#allocation9 + $0xe8] sm:$0xff]
          %v5528 = vld [vmem:[#allocation9 + $0xf0] sm:$0xff]
          %v5529 = vld [vmem:[#allocation9 + $0xf8] sm:$0xff]
          %v5530 = vld [vmem:[#allocation9 + $0x100] sm:$0xff]
          %v5531 = vld [vmem:[#allocation9 + $0x108] sm:$0xff]
          %v5532 = vld [vmem:[#allocation9 + $0x110] sm:$0xff]
          %v5533 = vld [vmem:[#allocation9 + $0x118] sm:$0xff]
          %v5534 = vld [vmem:[#allocation9 + $0x120] sm:$0xff]
          %v5535 = vld [vmem:[#allocation9 + $0x128] sm:$0xff]
          %v5536 = vld [vmem:[#allocation9 + $0x130] sm:$0xff]
          %v5537 = vld [vmem:[#allocation9 + $0x138] sm:$0xff]
          %v5538 = vld [vmem:[#allocation9 + $0x140] sm:$0xff]
          %v5539 = vld [vmem:[#allocation9 + $0x148] sm:$0xff]
          %v5540 = vld [vmem:[#allocation9 + $0x150] sm:$0xff]
          %v5541 = vld [vmem:[#allocation9 + $0x158] sm:$0xff]
          %v5542 = vld [vmem:[#allocation9 + $0x160] sm:$0xff]
          %v5543 = vld [vmem:[#allocation9 + $0x168] sm:$0xff]
          %v5544 = vld [vmem:[#allocation9 + $0x170] sm:$0xff]
          %v5545 = vld [vmem:[#allocation9 + $0x178] sm:$0xff]
          %v5546 = vld [vmem:[#allocation9 + $0x180] sm:$0xff]
          %v5547 = vld [vmem:[#allocation9 + $0x188] sm:$0xff]
          %v5548 = vld [vmem:[#allocation9 + $0x190] sm:$0xff]
          %v5549 = vld [vmem:[#allocation9 + $0x198] sm:$0xff]
          %v5550 = vld [vmem:[#allocation9 + $0x1a0] sm:$0xff]
          %v5551 = vld [vmem:[#allocation9 + $0x1a8] sm:$0xff]
          %v5552 = vld [vmem:[#allocation9 + $0x1b0] sm:$0xff]
          %v5553 = vld [vmem:[#allocation9 + $0x1b8] sm:$0xff]
          %v5554 = vld [vmem:[#allocation9 + $0x1c0] sm:$0xff]
          %v5555 = vld [vmem:[#allocation9 + $0x1c8] sm:$0xff]
          %v5556 = vld [vmem:[#allocation9 + $0x1d0] sm:$0xff]
          %v5557 = vld [vmem:[#allocation9 + $0x1d8] sm:$0xff]
          %v5558 = vld [vmem:[#allocation9 + $0x1e0] sm:$0xff]
          %v5559 = vld [vmem:[#allocation9 + $0x1e8] sm:$0xff]
          %v5560 = vld [vmem:[#allocation9 + $0x1f0] sm:$0xff]
          %v5561 = vld [vmem:[#allocation9 + $0x1f8] sm:$0xff]
          %5562 = vmatprep.subr.mxu0 %v5559
          %5563 = vmatpush1.msra.mxu0 %v5558
          %5564 = vmatprep.subr.mxu0 %v5555
          %5565 = vmatpush1.msra.mxu0 %v5554
          %5566 = vmatprep.subr.mxu0 %v5551
          %5567 = vmatpush1.msra.mxu0 %v5550
          %5568 = vmatprep.subr.mxu0 %v5547
          %5569 = vmatpush1.msra.mxu0 %v5546
          %5570 = vmatprep.subr.mxu0 %v5543
          %5571 = vmatpush1.msra.mxu0 %v5542
          %5572 = vmatprep.subr.mxu0 %v5539
          %5573 = vmatpush1.msra.mxu0 %v5538
          %5574 = vmatprep.subr.mxu0 %v5535
          %5575 = vmatpush1.msra.mxu0 %v5534
          %5576 = vmatprep.subr.mxu0 %v5531
          %5577 = vmatpush1.msra.mxu0 %v5530
          %5578 = vmatprep.subr.mxu0 %v5527
          %5579 = vmatpush1.msra.mxu0 %v5526
          %5580 = vmatprep.subr.mxu0 %v5523
          %5581 = vmatpush1.msra.mxu0 %v5522
          %5582 = vmatprep.subr.mxu0 %v5519
          %5583 = vmatpush1.msra.mxu0 %v5518
          %5584 = vmatprep.subr.mxu0 %v5515
          %5585 = vmatpush1.msra.mxu0 %v5514
          %5586 = vmatprep.subr.mxu0 %v5511
          %5587 = vmatpush1.msra.mxu0 %v5510
          %5588 = vmatprep.subr.mxu0 %v5507
          %5589 = vmatpush1.msra.mxu0 %v5506
          %5590 = vmatprep.subr.mxu0 %v5503
          %5591 = vmatpush1.msra.mxu0 %v5502
          %5592 = vmatprep.subr.mxu0 %v5499
          %5593 = vmatpush1.msra.mxu0 %v5498
          %5594 = vmatprep.subr.mxu0 0.0
          %5595 = vmatpush2.msra.mxu0 0.0
          %5596 = vmatprep.subr.mxu0 0.0
          %5597 = vmatpush2.msra.mxu0 0.0
          %5598 = vmatprep.subr.mxu0 0.0
          %5599 = vmatpush2.msra.mxu0 0.0
          %5600 = vmatprep.subr.mxu0 0.0
          %5601 = vmatpush2.msra.mxu0 0.0
          %5602 = vmatprep.subr.mxu0 0.0
          %5603 = vmatpush2.msra.mxu0 0.0
          %5604 = vmatprep.subr.mxu0 0.0
          %5605 = vmatpush2.msra.mxu0 0.0
          %5606 = vmatprep.subr.mxu0 0.0
          %5607 = vmatpush2.msra.mxu0 0.0
          %5608 = vmatprep.subr.mxu0 0.0
          %5609 = vmatpush2.msra.mxu0 0.0
          %5610 = vmatprep.subr.mxu0 0.0
          %5611 = vmatpush2.msra.mxu0 0.0
          %5612 = vmatprep.subr.mxu0 0.0
          %5613 = vmatpush2.msra.mxu0 0.0
          %5614 = vmatprep.subr.mxu0 0.0
          %5615 = vmatpush2.msra.mxu0 0.0
          %5616 = vmatprep.subr.mxu0 0.0
          %5617 = vmatpush2.msra.mxu0 0.0
          %5618 = vmatprep.subr.mxu0 0.0
          %5619 = vmatpush2.msra.mxu0 0.0
          %5620 = vmatprep.subr.mxu0 0.0
          %5621 = vmatpush2.msra.mxu0 0.0
          %5622 = vmatprep.subr.mxu0 0.0
          %5623 = vmatpush2.msra.mxu0 0.0
          %5624 = vmatprep.subr.mxu0 0.0
          %5625 = vmatpush2.msra.mxu0 0.0
          %5626 = vmatprep.mubr.f32.mxu0 0.0
          %5627 = vmatmul.mubr.f32.gmra.mxu0 %v5485
          %v5628 = vpop.f32.mrf.mxu0
          %v5629 = vadd.f32 0.0, %v5628
          %v5630 = vpop.f32.mrf.mxu0
          %v5631 = vadd.f32 0.0, %v5630
          %5632 = vdwg.mxu0
          %5633 = vmatprep.subr.mxu0 %v5561
          %5634 = vmatpush1.msra.mxu0 %v5560
          %5635 = vmatprep.subr.mxu0 %v5557
          %5636 = vmatpush1.msra.mxu0 %v5556
          %5637 = vmatprep.subr.mxu0 %v5553
          %5638 = vmatpush1.msra.mxu0 %v5552
          %5639 = vmatprep.subr.mxu0 %v5549
          %5640 = vmatpush1.msra.mxu0 %v5548
          %5641 = vmatprep.subr.mxu0 %v5545
          %5642 = vmatpush1.msra.mxu0 %v5544
          %5643 = vmatprep.subr.mxu0 %v5541
          %5644 = vmatpush1.msra.mxu0 %v5540
          %5645 = vmatprep.subr.mxu0 %v5537
          %5646 = vmatpush1.msra.mxu0 %v5536
          %5647 = vmatprep.subr.mxu0 %v5533
          %5648 = vmatpush1.msra.mxu0 %v5532
          %5649 = vmatprep.subr.mxu0 %v5529
          %5650 = vmatpush1.msra.mxu0 %v5528
          %5651 = vmatprep.subr.mxu0 %v5525
          %5652 = vmatpush1.msra.mxu0 %v5524
          %5653 = vmatprep.subr.mxu0 %v5521
          %5654 = vmatpush1.msra.mxu0 %v5520
          %5655 = vmatprep.subr.mxu0 %v5517
          %5656 = vmatpush1.msra.mxu0 %v5516
          %5657 = vmatprep.subr.mxu0 %v5513
          %5658 = vmatpush1.msra.mxu0 %v5512
          %5659 = vmatprep.subr.mxu0 %v5509
          %5660 = vmatpush1.msra.mxu0 %v5508
          %5661 = vmatprep.subr.mxu0 %v5505
          %5662 = vmatpush1.msra.mxu0 %v5504
          %5663 = vmatprep.subr.mxu0 %v5501
          %5664 = vmatpush1.msra.mxu0 %v5500
          %5665 = vmatprep.subr.mxu0 0.0
          %5666 = vmatpush2.msra.mxu0 0.0
          %5667 = vmatprep.subr.mxu0 0.0
          %5668 = vmatpush2.msra.mxu0 0.0
          %5669 = vmatprep.subr.mxu0 0.0
          %5670 = vmatpush2.msra.mxu0 0.0
          %5671 = vmatprep.subr.mxu0 0.0
          %5672 = vmatpush2.msra.mxu0 0.0
          %5673 = vmatprep.subr.mxu0 0.0
          %5674 = vmatpush2.msra.mxu0 0.0
          %5675 = vmatprep.subr.mxu0 0.0
          %5676 = vmatpush2.msra.mxu0 0.0
          %5677 = vmatprep.subr.mxu0 0.0
          %5678 = vmatpush2.msra.mxu0 0.0
          %5679 = vmatprep.subr.mxu0 0.0
          %5680 = vmatpush2.msra.mxu0 0.0
          %5681 = vmatprep.subr.mxu0 0.0
          %5682 = vmatpush2.msra.mxu0 0.0
          %5683 = vmatprep.subr.mxu0 0.0
          %5684 = vmatpush2.msra.mxu0 0.0
          %5685 = vmatprep.subr.mxu0 0.0
          %5686 = vmatpush2.msra.mxu0 0.0
          %5687 = vmatprep.subr.mxu0 0.0
          %5688 = vmatpush2.msra.mxu0 0.0
          %5689 = vmatprep.subr.mxu0 0.0
          %5690 = vmatpush2.msra.mxu0 0.0
          %5691 = vmatprep.subr.mxu0 0.0
          %5692 = vmatpush2.msra.mxu0 0.0
          %5693 = vmatprep.subr.mxu0 0.0
          %5694 = vmatpush2.msra.mxu0 0.0
          %5695 = vmatprep.subr.mxu0 0.0
          %5696 = vmatpush2.msra.mxu0 0.0
          %5697 = vmatprep.mubr.f32.mxu0 0.0
          %5698 = vmatmul.mubr.f32.gmra.mxu0 %v5485
          %v5699 = vpop.f32.mrf.mxu0
          %v5700 = vadd.f32 0.0, %v5699
          %v5701 = vpop.f32.mrf.mxu0
          %v5702 = vadd.f32 0.0, %v5701
          %5703 = vdwg.mxu0
          %v5705 = vsel %vm3724, %v5489, 0
          %5707 = vmatprep.subr.mxu0 0.0
          %5708 = vmatpush1.msra.mxu0 0.0
          %5709 = vmatprep.subr.mxu0 0.0
          %5710 = vmatpush1.msra.mxu0 0.0
          %5711 = vmatprep.subr.mxu0 0.0
          %5712 = vmatpush1.msra.mxu0 0.0
          %5713 = vmatprep.subr.mxu0 0.0
          %5714 = vmatpush1.msra.mxu0 0.0
          %5715 = vmatprep.subr.mxu0 0.0
          %5716 = vmatpush1.msra.mxu0 0.0
          %5717 = vmatprep.subr.mxu0 0.0
          %5718 = vmatpush1.msra.mxu0 0.0
          %5719 = vmatprep.subr.mxu0 0.0
          %5720 = vmatpush1.msra.mxu0 0.0
          %5721 = vmatprep.subr.mxu0 0.0
          %5722 = vmatpush1.msra.mxu0 0.0
          %5723 = vmatprep.subr.mxu0 0.0
          %5724 = vmatpush1.msra.mxu0 0.0
          %5725 = vmatprep.subr.mxu0 0.0
          %5726 = vmatpush1.msra.mxu0 0.0
          %5727 = vmatprep.subr.mxu0 0.0
          %5728 = vmatpush1.msra.mxu0 0.0
          %5729 = vmatprep.subr.mxu0 0.0
          %5730 = vmatpush1.msra.mxu0 0.0
          %5731 = vmatprep.subr.mxu0 0.0
          %5732 = vmatpush1.msra.mxu0 0.0
          %5733 = vmatprep.subr.mxu0 0.0
          %5734 = vmatpush1.msra.mxu0 0.0
          %5735 = vmatprep.subr.mxu0 %v5495
          %5736 = vmatpush1.msra.mxu0 %v5494
          %5737 = vmatprep.subr.mxu0 %v5491
          %5738 = vmatpush1.msra.mxu0 %v5490
          %5739 = vmatprep.subr.mxu0 0.0
          %5740 = vmatpush2.msra.mxu0 0.0
          %5741 = vmatprep.subr.mxu0 0.0
          %5742 = vmatpush2.msra.mxu0 0.0
          %5743 = vmatprep.subr.mxu0 0.0
          %5744 = vmatpush2.msra.mxu0 0.0
          %5745 = vmatprep.subr.mxu0 0.0
          %5746 = vmatpush2.msra.mxu0 0.0
          %5747 = vmatprep.subr.mxu0 0.0
          %5748 = vmatpush2.msra.mxu0 0.0
          %5749 = vmatprep.subr.mxu0 0.0
          %5750 = vmatpush2.msra.mxu0 0.0
          %5751 = vmatprep.subr.mxu0 0.0
          %5752 = vmatpush2.msra.mxu0 0.0
          %5753 = vmatprep.subr.mxu0 0.0
          %5754 = vmatpush2.msra.mxu0 0.0
          %5755 = vmatprep.subr.mxu0 0.0
          %5756 = vmatpush2.msra.mxu0 0.0
          %5757 = vmatprep.subr.mxu0 0.0
          %5758 = vmatpush2.msra.mxu0 0.0
          %5759 = vmatprep.subr.mxu0 0.0
          %5760 = vmatpush2.msra.mxu0 0.0
          %5761 = vmatprep.subr.mxu0 0.0
          %5762 = vmatpush2.msra.mxu0 0.0
          %5763 = vmatprep.subr.mxu0 0.0
          %5764 = vmatpush2.msra.mxu0 0.0
          %5765 = vmatprep.subr.mxu0 0.0
          %5766 = vmatpush2.msra.mxu0 0.0
          %5767 = vmatprep.subr.mxu0 0.0
          %5768 = vmatpush2.msra.mxu0 0.0
          %5769 = vmatprep.subr.mxu0 0.0
          %5770 = vmatpush2.msra.mxu0 0.0
          %5771 = vmatprep.mubr.f32.mxu0 0.0
          %5772 = vmatmul.mubr.f32.gmra.mxu0 %v5705
          %v5773 = vpop.f32.mrf.mxu0
          %v5774 = vadd.f32 %v5629, %v5773
          %v5775 = vpop.f32.mrf.mxu0
          %v5776 = vadd.f32 %v5631, %v5775
          %5777 = vdwg.mxu0
          %5778 = vmatprep.subr.mxu0 0.0
          %5779 = vmatpush1.msra.mxu0 0.0
          %5780 = vmatprep.subr.mxu0 0.0
          %5781 = vmatpush1.msra.mxu0 0.0
          %5782 = vmatprep.subr.mxu0 0.0
          %5783 = vmatpush1.msra.mxu0 0.0
          %5784 = vmatprep.subr.mxu0 0.0
          %5785 = vmatpush1.msra.mxu0 0.0
          %5786 = vmatprep.subr.mxu0 0.0
          %5787 = vmatpush1.msra.mxu0 0.0
          %5788 = vmatprep.subr.mxu0 0.0
          %5789 = vmatpush1.msra.mxu0 0.0
          %5790 = vmatprep.subr.mxu0 0.0
          %5791 = vmatpush1.msra.mxu0 0.0
          %5792 = vmatprep.subr.mxu0 0.0
          %5793 = vmatpush1.msra.mxu0 0.0
          %5794 = vmatprep.subr.mxu0 0.0
          %5795 = vmatpush1.msra.mxu0 0.0
          %5796 = vmatprep.subr.mxu0 0.0
          %5797 = vmatpush1.msra.mxu0 0.0
          %5798 = vmatprep.subr.mxu0 0.0
          %5799 = vmatpush1.msra.mxu0 0.0
          %5800 = vmatprep.subr.mxu0 0.0
          %5801 = vmatpush1.msra.mxu0 0.0
          %5802 = vmatprep.subr.mxu0 0.0
          %5803 = vmatpush1.msra.mxu0 0.0
          %5804 = vmatprep.subr.mxu0 0.0
          %5805 = vmatpush1.msra.mxu0 0.0
          %5806 = vmatprep.subr.mxu0 %v5497
          %5807 = vmatpush1.msra.mxu0 %v5496
          %5808 = vmatprep.subr.mxu0 %v5493
          %5809 = vmatpush1.msra.mxu0 %v5492
          %5810 = vmatprep.subr.mxu0 0.0
          %5811 = vmatpush2.msra.mxu0 0.0
          %5812 = vmatprep.subr.mxu0 0.0
          %5813 = vmatpush2.msra.mxu0 0.0
          %5814 = vmatprep.subr.mxu0 0.0
          %5815 = vmatpush2.msra.mxu0 0.0
          %5816 = vmatprep.subr.mxu0 0.0
          %5817 = vmatpush2.msra.mxu0 0.0
          %5818 = vmatprep.subr.mxu0 0.0
          %5819 = vmatpush2.msra.mxu0 0.0
          %5820 = vmatprep.subr.mxu0 0.0
          %5821 = vmatpush2.msra.mxu0 0.0
          %5822 = vmatprep.subr.mxu0 0.0
          %5823 = vmatpush2.msra.mxu0 0.0
          %5824 = vmatprep.subr.mxu0 0.0
          %5825 = vmatpush2.msra.mxu0 0.0
          %5826 = vmatprep.subr.mxu0 0.0
          %5827 = vmatpush2.msra.mxu0 0.0
          %5828 = vmatprep.subr.mxu0 0.0
          %5829 = vmatpush2.msra.mxu0 0.0
          %5830 = vmatprep.subr.mxu0 0.0
          %5831 = vmatpush2.msra.mxu0 0.0
          %5832 = vmatprep.subr.mxu0 0.0
          %5833 = vmatpush2.msra.mxu0 0.0
          %5834 = vmatprep.subr.mxu0 0.0
          %5835 = vmatpush2.msra.mxu0 0.0
          %5836 = vmatprep.subr.mxu0 0.0
          %5837 = vmatpush2.msra.mxu0 0.0
          %5838 = vmatprep.subr.mxu0 0.0
          %5839 = vmatpush2.msra.mxu0 0.0
          %5840 = vmatprep.subr.mxu0 0.0
          %5841 = vmatpush2.msra.mxu0 0.0
          %5842 = vmatprep.mubr.f32.mxu0 0.0
          %5843 = vmatmul.mubr.f32.gmra.mxu0 %v5705
          %v5844 = vpop.f32.mrf.mxu0
          %v5845 = vadd.f32 %v5700, %v5844
          %v5846 = vpop.f32.mrf.mxu0
          %v5847 = vadd.f32 %v5702, %v5846
          %5848 = vdwg.mxu0
          %v5849 = vld [vmem:[#allocation10] sm:$0xff]
          %v5850 = vld [vmem:[#allocation10 + $0x8] sm:$0xff]
          %v5851 = vld [vmem:[#allocation10 + $0x10] sm:$0xff]
          %v5852 = vld [vmem:[#allocation10 + $0x18] sm:$0xff]
          %v5853 = vadd.f32 %v5774, %v5849
          %v5854 = vadd.f32 %v5776, %v5850
          %v5855 = vadd.f32 %v5845, %v5851
          %v5856 = vadd.f32 %v5847, %v5852
          %v5857 = vmul.f32 %v5853, 0.5
          %v5858 = vtanh.pop %v5857
          %v5859 = vmul.f32 %v5858, 0.5
          %v5860 = vadd.f32 %v5859, 0.5
          %v5861 = vmul.f32 %v5854, 0.5
          %v5862 = vtanh.pop %v5861
          %v5863 = vmul.f32 %v5862, 0.5
          %v5864 = vadd.f32 %v5863, 0.5
          %v5865 = vtanh.pop %v5855
          %v5866 = vmul.f32 %v5856, 0.5
          %v5867 = vtanh.pop %v5866
          %v5868 = vmul.f32 %v5867, 0.5
          %v5869 = vadd.f32 %v5868, 0.5
          %v5870 = vmul.f32 %v5864, %v5484
          %v5871 = vmul.f32 %v5860, %v5865
          %v5872 = vadd.f32 %v5870, %v5871
          %v5873 = vtanh.pop %v5872
          %v5874 = vmul.f32 %v5869, %v5873
          %s5875 = sadd.s32 %s3896, 5
          %p5876 = scmp.lt.s32.totalorder %s5875, 12
          %s5877 = scalar_select %p5876, 1, 0
          %v5878 = vstv %s5877
          %vm5879 = vcmp.eq.s32.totalorder %v5878, 1
          %v5880 = vsel %vm5879, %v5872, %v5484
          %v5881 = vsel %vm5879, %v5874, %v5485
          %s5882 = scalar_lea.vmem %s369, 40 [#allocation13]
          %5883 = vst [vmem:[%s5882] sm:$0xff] %v5881
          %s5884 = scalar_lea.vmem %s325, 48 [#allocation4]
          %v5885 = vld [vmem:[%s5884] sm:$0xff]
          %v5886 = vld [vmem:[#allocation7] sm:$0xff]
          %v5887 = vld [vmem:[#allocation7 + $0x8] sm:$0xff]
          %v5888 = vld [vmem:[#allocation7 + $0x10] sm:$0xff]
          %v5889 = vld [vmem:[#allocation7 + $0x18] sm:$0xff]
          %v5890 = vld [vmem:[#allocation7 + $0x20] sm:$0xff]
          %v5891 = vld [vmem:[#allocation7 + $0x28] sm:$0xff]
          %v5892 = vld [vmem:[#allocation7 + $0x30] sm:$0xff]
          %v5893 = vld [vmem:[#allocation7 + $0x38] sm:$0xff]
          %v5894 = vld [vmem:[#allocation9] sm:$0xff]
          %v5895 = vld [vmem:[#allocation9 + $0x8] sm:$0xff]
          %v5896 = vld [vmem:[#allocation9 + $0x10] sm:$0xff]
          %v5897 = vld [vmem:[#allocation9 + $0x18] sm:$0xff]
          %v5898 = vld [vmem:[#allocation9 + $0x20] sm:$0xff]
          %v5899 = vld [vmem:[#allocation9 + $0x28] sm:$0xff]
          %v5900 = vld [vmem:[#allocation9 + $0x30] sm:$0xff]
          %v5901 = vld [vmem:[#allocation9 + $0x38] sm:$0xff]
          %v5902 = vld [vmem:[#allocation9 + $0x40] sm:$0xff]
          %v5903 = vld [vmem:[#allocation9 + $0x48] sm:$0xff]
          %v5904 = vld [vmem:[#allocation9 + $0x50] sm:$0xff]
          %v5905 = vld [vmem:[#allocation9 + $0x58] sm:$0xff]
          %v5906 = vld [vmem:[#allocation9 + $0x60] sm:$0xff]
          %v5907 = vld [vmem:[#allocation9 + $0x68] sm:$0xff]
          %v5908 = vld [vmem:[#allocation9 + $0x70] sm:$0xff]
          %v5909 = vld [vmem:[#allocation9 + $0x78] sm:$0xff]
          %v5910 = vld [vmem:[#allocation9 + $0x80] sm:$0xff]
          %v5911 = vld [vmem:[#allocation9 + $0x88] sm:$0xff]
          %v5912 = vld [vmem:[#allocation9 + $0x90] sm:$0xff]
          %v5913 = vld [vmem:[#allocation9 + $0x98] sm:$0xff]
          %v5914 = vld [vmem:[#allocation9 + $0xa0] sm:$0xff]
          %v5915 = vld [vmem:[#allocation9 + $0xa8] sm:$0xff]
          %v5916 = vld [vmem:[#allocation9 + $0xb0] sm:$0xff]
          %v5917 = vld [vmem:[#allocation9 + $0xb8] sm:$0xff]
          %v5918 = vld [vmem:[#allocation9 + $0xc0] sm:$0xff]
          %v5919 = vld [vmem:[#allocation9 + $0xc8] sm:$0xff]
          %v5920 = vld [vmem:[#allocation9 + $0xd0] sm:$0xff]
          %v5921 = vld [vmem:[#allocation9 + $0xd8] sm:$0xff]
          %v5922 = vld [vmem:[#allocation9 + $0xe0] sm:$0xff]
          %v5923 = vld [vmem:[#allocation9 + $0xe8] sm:$0xff]
          %v5924 = vld [vmem:[#allocation9 + $0xf0] sm:$0xff]
          %v5925 = vld [vmem:[#allocation9 + $0xf8] sm:$0xff]
          %v5926 = vld [vmem:[#allocation9 + $0x100] sm:$0xff]
          %v5927 = vld [vmem:[#allocation9 + $0x108] sm:$0xff]
          %v5928 = vld [vmem:[#allocation9 + $0x110] sm:$0xff]
          %v5929 = vld [vmem:[#allocation9 + $0x118] sm:$0xff]
          %v5930 = vld [vmem:[#allocation9 + $0x120] sm:$0xff]
          %v5931 = vld [vmem:[#allocation9 + $0x128] sm:$0xff]
          %v5932 = vld [vmem:[#allocation9 + $0x130] sm:$0xff]
          %v5933 = vld [vmem:[#allocation9 + $0x138] sm:$0xff]
          %v5934 = vld [vmem:[#allocation9 + $0x140] sm:$0xff]
          %v5935 = vld [vmem:[#allocation9 + $0x148] sm:$0xff]
          %v5936 = vld [vmem:[#allocation9 + $0x150] sm:$0xff]
          %v5937 = vld [vmem:[#allocation9 + $0x158] sm:$0xff]
          %v5938 = vld [vmem:[#allocation9 + $0x160] sm:$0xff]
          %v5939 = vld [vmem:[#allocation9 + $0x168] sm:$0xff]
          %v5940 = vld [vmem:[#allocation9 + $0x170] sm:$0xff]
          %v5941 = vld [vmem:[#allocation9 + $0x178] sm:$0xff]
          %v5942 = vld [vmem:[#allocation9 + $0x180] sm:$0xff]
          %v5943 = vld [vmem:[#allocation9 + $0x188] sm:$0xff]
          %v5944 = vld [vmem:[#allocation9 + $0x190] sm:$0xff]
          %v5945 = vld [vmem:[#allocation9 + $0x198] sm:$0xff]
          %v5946 = vld [vmem:[#allocation9 + $0x1a0] sm:$0xff]
          %v5947 = vld [vmem:[#allocation9 + $0x1a8] sm:$0xff]
          %v5948 = vld [vmem:[#allocation9 + $0x1b0] sm:$0xff]
          %v5949 = vld [vmem:[#allocation9 + $0x1b8] sm:$0xff]
          %v5950 = vld [vmem:[#allocation9 + $0x1c0] sm:$0xff]
          %v5951 = vld [vmem:[#allocation9 + $0x1c8] sm:$0xff]
          %v5952 = vld [vmem:[#allocation9 + $0x1d0] sm:$0xff]
          %v5953 = vld [vmem:[#allocation9 + $0x1d8] sm:$0xff]
          %v5954 = vld [vmem:[#allocation9 + $0x1e0] sm:$0xff]
          %v5955 = vld [vmem:[#allocation9 + $0x1e8] sm:$0xff]
          %v5956 = vld [vmem:[#allocation9 + $0x1f0] sm:$0xff]
          %v5957 = vld [vmem:[#allocation9 + $0x1f8] sm:$0xff]
          %5958 = vmatprep.subr.mxu0 %v5955
          %5959 = vmatpush1.msra.mxu0 %v5954
          %5960 = vmatprep.subr.mxu0 %v5951
          %5961 = vmatpush1.msra.mxu0 %v5950
          %5962 = vmatprep.subr.mxu0 %v5947
          %5963 = vmatpush1.msra.mxu0 %v5946
          %5964 = vmatprep.subr.mxu0 %v5943
          %5965 = vmatpush1.msra.mxu0 %v5942
          %5966 = vmatprep.subr.mxu0 %v5939
          %5967 = vmatpush1.msra.mxu0 %v5938
          %5968 = vmatprep.subr.mxu0 %v5935
          %5969 = vmatpush1.msra.mxu0 %v5934
          %5970 = vmatprep.subr.mxu0 %v5931
          %5971 = vmatpush1.msra.mxu0 %v5930
          %5972 = vmatprep.subr.mxu0 %v5927
          %5973 = vmatpush1.msra.mxu0 %v5926
          %5974 = vmatprep.subr.mxu0 %v5923
          %5975 = vmatpush1.msra.mxu0 %v5922
          %5976 = vmatprep.subr.mxu0 %v5919
          %5977 = vmatpush1.msra.mxu0 %v5918
          %5978 = vmatprep.subr.mxu0 %v5915
          %5979 = vmatpush1.msra.mxu0 %v5914
          %5980 = vmatprep.subr.mxu0 %v5911
          %5981 = vmatpush1.msra.mxu0 %v5910
          %5982 = vmatprep.subr.mxu0 %v5907
          %5983 = vmatpush1.msra.mxu0 %v5906
          %5984 = vmatprep.subr.mxu0 %v5903
          %5985 = vmatpush1.msra.mxu0 %v5902
          %5986 = vmatprep.subr.mxu0 %v5899
          %5987 = vmatpush1.msra.mxu0 %v5898
          %5988 = vmatprep.subr.mxu0 %v5895
          %5989 = vmatpush1.msra.mxu0 %v5894
          %5990 = vmatprep.subr.mxu0 0.0
          %5991 = vmatpush2.msra.mxu0 0.0
          %5992 = vmatprep.subr.mxu0 0.0
          %5993 = vmatpush2.msra.mxu0 0.0
          %5994 = vmatprep.subr.mxu0 0.0
          %5995 = vmatpush2.msra.mxu0 0.0
          %5996 = vmatprep.subr.mxu0 0.0
          %5997 = vmatpush2.msra.mxu0 0.0
          %5998 = vmatprep.subr.mxu0 0.0
          %5999 = vmatpush2.msra.mxu0 0.0
          %6000 = vmatprep.subr.mxu0 0.0
          %6001 = vmatpush2.msra.mxu0 0.0
          %6002 = vmatprep.subr.mxu0 0.0
          %6003 = vmatpush2.msra.mxu0 0.0
          %6004 = vmatprep.subr.mxu0 0.0
          %6005 = vmatpush2.msra.mxu0 0.0
          %6006 = vmatprep.subr.mxu0 0.0
          %6007 = vmatpush2.msra.mxu0 0.0
          %6008 = vmatprep.subr.mxu0 0.0
          %6009 = vmatpush2.msra.mxu0 0.0
          %6010 = vmatprep.subr.mxu0 0.0
          %6011 = vmatpush2.msra.mxu0 0.0
          %6012 = vmatprep.subr.mxu0 0.0
          %6013 = vmatpush2.msra.mxu0 0.0
          %6014 = vmatprep.subr.mxu0 0.0
          %6015 = vmatpush2.msra.mxu0 0.0
          %6016 = vmatprep.subr.mxu0 0.0
          %6017 = vmatpush2.msra.mxu0 0.0
          %6018 = vmatprep.subr.mxu0 0.0
          %6019 = vmatpush2.msra.mxu0 0.0
          %6020 = vmatprep.subr.mxu0 0.0
          %6021 = vmatpush2.msra.mxu0 0.0
          %6022 = vmatprep.mubr.f32.mxu0 0.0
          %6023 = vmatmul.mubr.f32.gmra.mxu0 %v5881
          %v6024 = vpop.f32.mrf.mxu0
          %v6025 = vadd.f32 0.0, %v6024
          %v6026 = vpop.f32.mrf.mxu0
          %v6027 = vadd.f32 0.0, %v6026
          %6028 = vdwg.mxu0
          %6029 = vmatprep.subr.mxu0 %v5957
          %6030 = vmatpush1.msra.mxu0 %v5956
          %6031 = vmatprep.subr.mxu0 %v5953
          %6032 = vmatpush1.msra.mxu0 %v5952
          %6033 = vmatprep.subr.mxu0 %v5949
          %6034 = vmatpush1.msra.mxu0 %v5948
          %6035 = vmatprep.subr.mxu0 %v5945
          %6036 = vmatpush1.msra.mxu0 %v5944
          %6037 = vmatprep.subr.mxu0 %v5941
          %6038 = vmatpush1.msra.mxu0 %v5940
          %6039 = vmatprep.subr.mxu0 %v5937
          %6040 = vmatpush1.msra.mxu0 %v5936
          %6041 = vmatprep.subr.mxu0 %v5933
          %6042 = vmatpush1.msra.mxu0 %v5932
          %6043 = vmatprep.subr.mxu0 %v5929
          %6044 = vmatpush1.msra.mxu0 %v5928
          %6045 = vmatprep.subr.mxu0 %v5925
          %6046 = vmatpush1.msra.mxu0 %v5924
          %6047 = vmatprep.subr.mxu0 %v5921
          %6048 = vmatpush1.msra.mxu0 %v5920
          %6049 = vmatprep.subr.mxu0 %v5917
          %6050 = vmatpush1.msra.mxu0 %v5916
          %6051 = vmatprep.subr.mxu0 %v5913
          %6052 = vmatpush1.msra.mxu0 %v5912
          %6053 = vmatprep.subr.mxu0 %v5909
          %6054 = vmatpush1.msra.mxu0 %v5908
          %6055 = vmatprep.subr.mxu0 %v5905
          %6056 = vmatpush1.msra.mxu0 %v5904
          %6057 = vmatprep.subr.mxu0 %v5901
          %6058 = vmatpush1.msra.mxu0 %v5900
          %6059 = vmatprep.subr.mxu0 %v5897
          %6060 = vmatpush1.msra.mxu0 %v5896
          %6061 = vmatprep.subr.mxu0 0.0
          %6062 = vmatpush2.msra.mxu0 0.0
          %6063 = vmatprep.subr.mxu0 0.0
          %6064 = vmatpush2.msra.mxu0 0.0
          %6065 = vmatprep.subr.mxu0 0.0
          %6066 = vmatpush2.msra.mxu0 0.0
          %6067 = vmatprep.subr.mxu0 0.0
          %6068 = vmatpush2.msra.mxu0 0.0
          %6069 = vmatprep.subr.mxu0 0.0
          %6070 = vmatpush2.msra.mxu0 0.0
          %6071 = vmatprep.subr.mxu0 0.0
          %6072 = vmatpush2.msra.mxu0 0.0
          %6073 = vmatprep.subr.mxu0 0.0
          %6074 = vmatpush2.msra.mxu0 0.0
          %6075 = vmatprep.subr.mxu0 0.0
          %6076 = vmatpush2.msra.mxu0 0.0
          %6077 = vmatprep.subr.mxu0 0.0
          %6078 = vmatpush2.msra.mxu0 0.0
          %6079 = vmatprep.subr.mxu0 0.0
          %6080 = vmatpush2.msra.mxu0 0.0
          %6081 = vmatprep.subr.mxu0 0.0
          %6082 = vmatpush2.msra.mxu0 0.0
          %6083 = vmatprep.subr.mxu0 0.0
          %6084 = vmatpush2.msra.mxu0 0.0
          %6085 = vmatprep.subr.mxu0 0.0
          %6086 = vmatpush2.msra.mxu0 0.0
          %6087 = vmatprep.subr.mxu0 0.0
          %6088 = vmatpush2.msra.mxu0 0.0
          %6089 = vmatprep.subr.mxu0 0.0
          %6090 = vmatpush2.msra.mxu0 0.0
          %6091 = vmatprep.subr.mxu0 0.0
          %6092 = vmatpush2.msra.mxu0 0.0
          %6093 = vmatprep.mubr.f32.mxu0 0.0
          %6094 = vmatmul.mubr.f32.gmra.mxu0 %v5881
          %v6095 = vpop.f32.mrf.mxu0
          %v6096 = vadd.f32 0.0, %v6095
          %v6097 = vpop.f32.mrf.mxu0
          %v6098 = vadd.f32 0.0, %v6097
          %6099 = vdwg.mxu0
          %v6101 = vsel %vm3724, %v5885, 0
          %6103 = vmatprep.subr.mxu0 0.0
          %6104 = vmatpush1.msra.mxu0 0.0
          %6105 = vmatprep.subr.mxu0 0.0
          %6106 = vmatpush1.msra.mxu0 0.0
          %6107 = vmatprep.subr.mxu0 0.0
          %6108 = vmatpush1.msra.mxu0 0.0
          %6109 = vmatprep.subr.mxu0 0.0
          %6110 = vmatpush1.msra.mxu0 0.0
          %6111 = vmatprep.subr.mxu0 0.0
          %6112 = vmatpush1.msra.mxu0 0.0
          %6113 = vmatprep.subr.mxu0 0.0
          %6114 = vmatpush1.msra.mxu0 0.0
          %6115 = vmatprep.subr.mxu0 0.0
          %6116 = vmatpush1.msra.mxu0 0.0
          %6117 = vmatprep.subr.mxu0 0.0
          %6118 = vmatpush1.msra.mxu0 0.0
          %6119 = vmatprep.subr.mxu0 0.0
          %6120 = vmatpush1.msra.mxu0 0.0
          %6121 = vmatprep.subr.mxu0 0.0
          %6122 = vmatpush1.msra.mxu0 0.0
          %6123 = vmatprep.subr.mxu0 0.0
          %6124 = vmatpush1.msra.mxu0 0.0
          %6125 = vmatprep.subr.mxu0 0.0
          %6126 = vmatpush1.msra.mxu0 0.0
          %6127 = vmatprep.subr.mxu0 0.0
          %6128 = vmatpush1.msra.mxu0 0.0
          %6129 = vmatprep.subr.mxu0 0.0
          %6130 = vmatpush1.msra.mxu0 0.0
          %6131 = vmatprep.subr.mxu0 %v5891
          %6132 = vmatpush1.msra.mxu0 %v5890
          %6133 = vmatprep.subr.mxu0 %v5887
          %6134 = vmatpush1.msra.mxu0 %v5886
          %6135 = vmatprep.subr.mxu0 0.0
          %6136 = vmatpush2.msra.mxu0 0.0
          %6137 = vmatprep.subr.mxu0 0.0
          %6138 = vmatpush2.msra.mxu0 0.0
          %6139 = vmatprep.subr.mxu0 0.0
          %6140 = vmatpush2.msra.mxu0 0.0
          %6141 = vmatprep.subr.mxu0 0.0
          %6142 = vmatpush2.msra.mxu0 0.0
          %6143 = vmatprep.subr.mxu0 0.0
          %6144 = vmatpush2.msra.mxu0 0.0
          %6145 = vmatprep.subr.mxu0 0.0
          %6146 = vmatpush2.msra.mxu0 0.0
          %6147 = vmatprep.subr.mxu0 0.0
          %6148 = vmatpush2.msra.mxu0 0.0
          %6149 = vmatprep.subr.mxu0 0.0
          %6150 = vmatpush2.msra.mxu0 0.0
          %6151 = vmatprep.subr.mxu0 0.0
          %6152 = vmatpush2.msra.mxu0 0.0
          %6153 = vmatprep.subr.mxu0 0.0
          %6154 = vmatpush2.msra.mxu0 0.0
          %6155 = vmatprep.subr.mxu0 0.0
          %6156 = vmatpush2.msra.mxu0 0.0
          %6157 = vmatprep.subr.mxu0 0.0
          %6158 = vmatpush2.msra.mxu0 0.0
          %6159 = vmatprep.subr.mxu0 0.0
          %6160 = vmatpush2.msra.mxu0 0.0
          %6161 = vmatprep.subr.mxu0 0.0
          %6162 = vmatpush2.msra.mxu0 0.0
          %6163 = vmatprep.subr.mxu0 0.0
          %6164 = vmatpush2.msra.mxu0 0.0
          %6165 = vmatprep.subr.mxu0 0.0
          %6166 = vmatpush2.msra.mxu0 0.0
          %6167 = vmatprep.mubr.f32.mxu0 0.0
          %6168 = vmatmul.mubr.f32.gmra.mxu0 %v6101
          %v6169 = vpop.f32.mrf.mxu0
          %v6170 = vadd.f32 %v6025, %v6169
          %v6171 = vpop.f32.mrf.mxu0
          %v6172 = vadd.f32 %v6027, %v6171
          %6173 = vdwg.mxu0
          %6174 = vmatprep.subr.mxu0 0.0
          %6175 = vmatpush1.msra.mxu0 0.0
          %6176 = vmatprep.subr.mxu0 0.0
          %6177 = vmatpush1.msra.mxu0 0.0
          %6178 = vmatprep.subr.mxu0 0.0
          %6179 = vmatpush1.msra.mxu0 0.0
          %6180 = vmatprep.subr.mxu0 0.0
          %6181 = vmatpush1.msra.mxu0 0.0
          %6182 = vmatprep.subr.mxu0 0.0
          %6183 = vmatpush1.msra.mxu0 0.0
          %6184 = vmatprep.subr.mxu0 0.0
          %6185 = vmatpush1.msra.mxu0 0.0
          %6186 = vmatprep.subr.mxu0 0.0
          %6187 = vmatpush1.msra.mxu0 0.0
          %6188 = vmatprep.subr.mxu0 0.0
          %6189 = vmatpush1.msra.mxu0 0.0
          %6190 = vmatprep.subr.mxu0 0.0
          %6191 = vmatpush1.msra.mxu0 0.0
          %6192 = vmatprep.subr.mxu0 0.0
          %6193 = vmatpush1.msra.mxu0 0.0
          %6194 = vmatprep.subr.mxu0 0.0
          %6195 = vmatpush1.msra.mxu0 0.0
          %6196 = vmatprep.subr.mxu0 0.0
          %6197 = vmatpush1.msra.mxu0 0.0
          %6198 = vmatprep.subr.mxu0 0.0
          %6199 = vmatpush1.msra.mxu0 0.0
          %6200 = vmatprep.subr.mxu0 0.0
          %6201 = vmatpush1.msra.mxu0 0.0
          %6202 = vmatprep.subr.mxu0 %v5893
          %6203 = vmatpush1.msra.mxu0 %v5892
          %6204 = vmatprep.subr.mxu0 %v5889
          %6205 = vmatpush1.msra.mxu0 %v5888
          %6206 = vmatprep.subr.mxu0 0.0
          %6207 = vmatpush2.msra.mxu0 0.0
          %6208 = vmatprep.subr.mxu0 0.0
          %6209 = vmatpush2.msra.mxu0 0.0
          %6210 = vmatprep.subr.mxu0 0.0
          %6211 = vmatpush2.msra.mxu0 0.0
          %6212 = vmatprep.subr.mxu0 0.0
          %6213 = vmatpush2.msra.mxu0 0.0
          %6214 = vmatprep.subr.mxu0 0.0
          %6215 = vmatpush2.msra.mxu0 0.0
          %6216 = vmatprep.subr.mxu0 0.0
          %6217 = vmatpush2.msra.mxu0 0.0
          %6218 = vmatprep.subr.mxu0 0.0
          %6219 = vmatpush2.msra.mxu0 0.0
          %6220 = vmatprep.subr.mxu0 0.0
          %6221 = vmatpush2.msra.mxu0 0.0
          %6222 = vmatprep.subr.mxu0 0.0
          %6223 = vmatpush2.msra.mxu0 0.0
          %6224 = vmatprep.subr.mxu0 0.0
          %6225 = vmatpush2.msra.mxu0 0.0
          %6226 = vmatprep.subr.mxu0 0.0
          %6227 = vmatpush2.msra.mxu0 0.0
          %6228 = vmatprep.subr.mxu0 0.0
          %6229 = vmatpush2.msra.mxu0 0.0
          %6230 = vmatprep.subr.mxu0 0.0
          %6231 = vmatpush2.msra.mxu0 0.0
          %6232 = vmatprep.subr.mxu0 0.0
          %6233 = vmatpush2.msra.mxu0 0.0
          %6234 = vmatprep.subr.mxu0 0.0
          %6235 = vmatpush2.msra.mxu0 0.0
          %6236 = vmatprep.subr.mxu0 0.0
          %6237 = vmatpush2.msra.mxu0 0.0
          %6238 = vmatprep.mubr.f32.mxu0 0.0
          %6239 = vmatmul.mubr.f32.gmra.mxu0 %v6101
          %v6240 = vpop.f32.mrf.mxu0
          %v6241 = vadd.f32 %v6096, %v6240
          %v6242 = vpop.f32.mrf.mxu0
          %v6243 = vadd.f32 %v6098, %v6242
          %6244 = vdwg.mxu0
          %v6245 = vld [vmem:[#allocation10] sm:$0xff]
          %v6246 = vld [vmem:[#allocation10 + $0x8] sm:$0xff]
          %v6247 = vld [vmem:[#allocation10 + $0x10] sm:$0xff]
          %v6248 = vld [vmem:[#allocation10 + $0x18] sm:$0xff]
          %v6249 = vadd.f32 %v6170, %v6245
          %v6250 = vadd.f32 %v6172, %v6246
          %v6251 = vadd.f32 %v6241, %v6247
          %v6252 = vadd.f32 %v6243, %v6248
          %v6253 = vmul.f32 %v6249, 0.5
          %v6254 = vtanh.pop %v6253
          %v6255 = vmul.f32 %v6254, 0.5
          %v6256 = vadd.f32 %v6255, 0.5
          %v6257 = vmul.f32 %v6250, 0.5
          %v6258 = vtanh.pop %v6257
          %v6259 = vmul.f32 %v6258, 0.5
          %v6260 = vadd.f32 %v6259, 0.5
          %v6261 = vtanh.pop %v6251
          %v6262 = vmul.f32 %v6252, 0.5
          %v6263 = vtanh.pop %v6262
          %v6264 = vmul.f32 %v6263, 0.5
          %v6265 = vadd.f32 %v6264, 0.5
          %v6266 = vmul.f32 %v6260, %v5880
          %v6267 = vmul.f32 %v6256, %v6261
          %v6268 = vadd.f32 %v6266, %v6267
          %v6269 = vtanh.pop %v6268
          %v6270 = vmul.f32 %v6265, %v6269
          %s6271 = sadd.s32 %s3896, 6
          %p6272 = scmp.lt.s32.totalorder %s6271, 12
          %s6273 = scalar_select %p6272, 1, 0
          %v6274 = vstv %s6273
          %vm6275 = vcmp.eq.s32.totalorder %v6274, 1
          %v6276 = vsel %vm6275, %v6268, %v5880
          %v6277 = vsel %vm6275, %v6270, %v5881
          %s6278 = scalar_lea.vmem %s369, 48 [#allocation13]
          %6279 = vst [vmem:[%s6278] sm:$0xff] %v6277
          %s6280 = scalar_lea.vmem %s325, 56 [#allocation4]
          %v6281 = vld [vmem:[%s6280] sm:$0xff]
          %v6282 = vld [vmem:[#allocation7] sm:$0xff]
          %v6283 = vld [vmem:[#allocation7 + $0x8] sm:$0xff]
          %v6284 = vld [vmem:[#allocation7 + $0x10] sm:$0xff]
          %v6285 = vld [vmem:[#allocation7 + $0x18] sm:$0xff]
          %v6286 = vld [vmem:[#allocation7 + $0x20] sm:$0xff]
          %v6287 = vld [vmem:[#allocation7 + $0x28] sm:$0xff]
          %v6288 = vld [vmem:[#allocation7 + $0x30] sm:$0xff]
          %v6289 = vld [vmem:[#allocation7 + $0x38] sm:$0xff]
          %v6290 = vld [vmem:[#allocation9] sm:$0xff]
          %v6291 = vld [vmem:[#allocation9 + $0x8] sm:$0xff]
          %v6292 = vld [vmem:[#allocation9 + $0x10] sm:$0xff]
          %v6293 = vld [vmem:[#allocation9 + $0x18] sm:$0xff]
          %v6294 = vld [vmem:[#allocation9 + $0x20] sm:$0xff]
          %v6295 = vld [vmem:[#allocation9 + $0x28] sm:$0xff]
          %v6296 = vld [vmem:[#allocation9 + $0x30] sm:$0xff]
          %v6297 = vld [vmem:[#allocation9 + $0x38] sm:$0xff]
          %v6298 = vld [vmem:[#allocation9 + $0x40] sm:$0xff]
          %v6299 = vld [vmem:[#allocation9 + $0x48] sm:$0xff]
          %v6300 = vld [vmem:[#allocation9 + $0x50] sm:$0xff]
          %v6301 = vld [vmem:[#allocation9 + $0x58] sm:$0xff]
          %v6302 = vld [vmem:[#allocation9 + $0x60] sm:$0xff]
          %v6303 = vld [vmem:[#allocation9 + $0x68] sm:$0xff]
          %v6304 = vld [vmem:[#allocation9 + $0x70] sm:$0xff]
          %v6305 = vld [vmem:[#allocation9 + $0x78] sm:$0xff]
          %v6306 = vld [vmem:[#allocation9 + $0x80] sm:$0xff]
          %v6307 = vld [vmem:[#allocation9 + $0x88] sm:$0xff]
          %v6308 = vld [vmem:[#allocation9 + $0x90] sm:$0xff]
          %v6309 = vld [vmem:[#allocation9 + $0x98] sm:$0xff]
          %v6310 = vld [vmem:[#allocation9 + $0xa0] sm:$0xff]
          %v6311 = vld [vmem:[#allocation9 + $0xa8] sm:$0xff]
          %v6312 = vld [vmem:[#allocation9 + $0xb0] sm:$0xff]
          %v6313 = vld [vmem:[#allocation9 + $0xb8] sm:$0xff]
          %v6314 = vld [vmem:[#allocation9 + $0xc0] sm:$0xff]
          %v6315 = vld [vmem:[#allocation9 + $0xc8] sm:$0xff]
          %v6316 = vld [vmem:[#allocation9 + $0xd0] sm:$0xff]
          %v6317 = vld [vmem:[#allocation9 + $0xd8] sm:$0xff]
          %v6318 = vld [vmem:[#allocation9 + $0xe0] sm:$0xff]
          %v6319 = vld [vmem:[#allocation9 + $0xe8] sm:$0xff]
          %v6320 = vld [vmem:[#allocation9 + $0xf0] sm:$0xff]
          %v6321 = vld [vmem:[#allocation9 + $0xf8] sm:$0xff]
          %v6322 = vld [vmem:[#allocation9 + $0x100] sm:$0xff]
          %v6323 = vld [vmem:[#allocation9 + $0x108] sm:$0xff]
          %v6324 = vld [vmem:[#allocation9 + $0x110] sm:$0xff]
          %v6325 = vld [vmem:[#allocation9 + $0x118] sm:$0xff]
          %v6326 = vld [vmem:[#allocation9 + $0x120] sm:$0xff]
          %v6327 = vld [vmem:[#allocation9 + $0x128] sm:$0xff]
          %v6328 = vld [vmem:[#allocation9 + $0x130] sm:$0xff]
          %v6329 = vld [vmem:[#allocation9 + $0x138] sm:$0xff]
          %v6330 = vld [vmem:[#allocation9 + $0x140] sm:$0xff]
          %v6331 = vld [vmem:[#allocation9 + $0x148] sm:$0xff]
          %v6332 = vld [vmem:[#allocation9 + $0x150] sm:$0xff]
          %v6333 = vld [vmem:[#allocation9 + $0x158] sm:$0xff]
          %v6334 = vld [vmem:[#allocation9 + $0x160] sm:$0xff]
          %v6335 = vld [vmem:[#allocation9 + $0x168] sm:$0xff]
          %v6336 = vld [vmem:[#allocation9 + $0x170] sm:$0xff]
          %v6337 = vld [vmem:[#allocation9 + $0x178] sm:$0xff]
          %v6338 = vld [vmem:[#allocation9 + $0x180] sm:$0xff]
          %v6339 = vld [vmem:[#allocation9 + $0x188] sm:$0xff]
          %v6340 = vld [vmem:[#allocation9 + $0x190] sm:$0xff]
          %v6341 = vld [vmem:[#allocation9 + $0x198] sm:$0xff]
          %v6342 = vld [vmem:[#allocation9 + $0x1a0] sm:$0xff]
          %v6343 = vld [vmem:[#allocation9 + $0x1a8] sm:$0xff]
          %v6344 = vld [vmem:[#allocation9 + $0x1b0] sm:$0xff]
          %v6345 = vld [vmem:[#allocation9 + $0x1b8] sm:$0xff]
          %v6346 = vld [vmem:[#allocation9 + $0x1c0] sm:$0xff]
          %v6347 = vld [vmem:[#allocation9 + $0x1c8] sm:$0xff]
          %v6348 = vld [vmem:[#allocation9 + $0x1d0] sm:$0xff]
          %v6349 = vld [vmem:[#allocation9 + $0x1d8] sm:$0xff]
          %v6350 = vld [vmem:[#allocation9 + $0x1e0] sm:$0xff]
          %v6351 = vld [vmem:[#allocation9 + $0x1e8] sm:$0xff]
          %v6352 = vld [vmem:[#allocation9 + $0x1f0] sm:$0xff]
          %v6353 = vld [vmem:[#allocation9 + $0x1f8] sm:$0xff]
          %6354 = vmatprep.subr.mxu0 %v6351
          %6355 = vmatpush1.msra.mxu0 %v6350
          %6356 = vmatprep.subr.mxu0 %v6347
          %6357 = vmatpush1.msra.mxu0 %v6346
          %6358 = vmatprep.subr.mxu0 %v6343
          %6359 = vmatpush1.msra.mxu0 %v6342
          %6360 = vmatprep.subr.mxu0 %v6339
          %6361 = vmatpush1.msra.mxu0 %v6338
          %6362 = vmatprep.subr.mxu0 %v6335
          %6363 = vmatpush1.msra.mxu0 %v6334
          %6364 = vmatprep.subr.mxu0 %v6331
          %6365 = vmatpush1.msra.mxu0 %v6330
          %6366 = vmatprep.subr.mxu0 %v6327
          %6367 = vmatpush1.msra.mxu0 %v6326
          %6368 = vmatprep.subr.mxu0 %v6323
          %6369 = vmatpush1.msra.mxu0 %v6322
          %6370 = vmatprep.subr.mxu0 %v6319
          %6371 = vmatpush1.msra.mxu0 %v6318
          %6372 = vmatprep.subr.mxu0 %v6315
          %6373 = vmatpush1.msra.mxu0 %v6314
          %6374 = vmatprep.subr.mxu0 %v6311
          %6375 = vmatpush1.msra.mxu0 %v6310
          %6376 = vmatprep.subr.mxu0 %v6307
          %6377 = vmatpush1.msra.mxu0 %v6306
          %6378 = vmatprep.subr.mxu0 %v6303
          %6379 = vmatpush1.msra.mxu0 %v6302
          %6380 = vmatprep.subr.mxu0 %v6299
          %6381 = vmatpush1.msra.mxu0 %v6298
          %6382 = vmatprep.subr.mxu0 %v6295
          %6383 = vmatpush1.msra.mxu0 %v6294
          %6384 = vmatprep.subr.mxu0 %v6291
          %6385 = vmatpush1.msra.mxu0 %v6290
          %6386 = vmatprep.subr.mxu0 0.0
          %6387 = vmatpush2.msra.mxu0 0.0
          %6388 = vmatprep.subr.mxu0 0.0
          %6389 = vmatpush2.msra.mxu0 0.0
          %6390 = vmatprep.subr.mxu0 0.0
          %6391 = vmatpush2.msra.mxu0 0.0
          %6392 = vmatprep.subr.mxu0 0.0
          %6393 = vmatpush2.msra.mxu0 0.0
          %6394 = vmatprep.subr.mxu0 0.0
          %6395 = vmatpush2.msra.mxu0 0.0
          %6396 = vmatprep.subr.mxu0 0.0
          %6397 = vmatpush2.msra.mxu0 0.0
          %6398 = vmatprep.subr.mxu0 0.0
          %6399 = vmatpush2.msra.mxu0 0.0
          %6400 = vmatprep.subr.mxu0 0.0
          %6401 = vmatpush2.msra.mxu0 0.0
          %6402 = vmatprep.subr.mxu0 0.0
          %6403 = vmatpush2.msra.mxu0 0.0
          %6404 = vmatprep.subr.mxu0 0.0
          %6405 = vmatpush2.msra.mxu0 0.0
          %6406 = vmatprep.subr.mxu0 0.0
          %6407 = vmatpush2.msra.mxu0 0.0
          %6408 = vmatprep.subr.mxu0 0.0
          %6409 = vmatpush2.msra.mxu0 0.0
          %6410 = vmatprep.subr.mxu0 0.0
          %6411 = vmatpush2.msra.mxu0 0.0
          %6412 = vmatprep.subr.mxu0 0.0
          %6413 = vmatpush2.msra.mxu0 0.0
          %6414 = vmatprep.subr.mxu0 0.0
          %6415 = vmatpush2.msra.mxu0 0.0
          %6416 = vmatprep.subr.mxu0 0.0
          %6417 = vmatpush2.msra.mxu0 0.0
          %6418 = vmatprep.mubr.f32.mxu0 0.0
          %6419 = vmatmul.mubr.f32.gmra.mxu0 %v6277
          %v6420 = vpop.f32.mrf.mxu0
          %v6421 = vadd.f32 0.0, %v6420
          %v6422 = vpop.f32.mrf.mxu0
          %v6423 = vadd.f32 0.0, %v6422
          %6424 = vdwg.mxu0
          %6425 = vmatprep.subr.mxu0 %v6353
          %6426 = vmatpush1.msra.mxu0 %v6352
          %6427 = vmatprep.subr.mxu0 %v6349
          %6428 = vmatpush1.msra.mxu0 %v6348
          %6429 = vmatprep.subr.mxu0 %v6345
          %6430 = vmatpush1.msra.mxu0 %v6344
          %6431 = vmatprep.subr.mxu0 %v6341
          %6432 = vmatpush1.msra.mxu0 %v6340
          %6433 = vmatprep.subr.mxu0 %v6337
          %6434 = vmatpush1.msra.mxu0 %v6336
          %6435 = vmatprep.subr.mxu0 %v6333
          %6436 = vmatpush1.msra.mxu0 %v6332
          %6437 = vmatprep.subr.mxu0 %v6329
          %6438 = vmatpush1.msra.mxu0 %v6328
          %6439 = vmatprep.subr.mxu0 %v6325
          %6440 = vmatpush1.msra.mxu0 %v6324
          %6441 = vmatprep.subr.mxu0 %v6321
          %6442 = vmatpush1.msra.mxu0 %v6320
          %6443 = vmatprep.subr.mxu0 %v6317
          %6444 = vmatpush1.msra.mxu0 %v6316
          %6445 = vmatprep.subr.mxu0 %v6313
          %6446 = vmatpush1.msra.mxu0 %v6312
          %6447 = vmatprep.subr.mxu0 %v6309
          %6448 = vmatpush1.msra.mxu0 %v6308
          %6449 = vmatprep.subr.mxu0 %v6305
          %6450 = vmatpush1.msra.mxu0 %v6304
          %6451 = vmatprep.subr.mxu0 %v6301
          %6452 = vmatpush1.msra.mxu0 %v6300
          %6453 = vmatprep.subr.mxu0 %v6297
          %6454 = vmatpush1.msra.mxu0 %v6296
          %6455 = vmatprep.subr.mxu0 %v6293
          %6456 = vmatpush1.msra.mxu0 %v6292
          %6457 = vmatprep.subr.mxu0 0.0
          %6458 = vmatpush2.msra.mxu0 0.0
          %6459 = vmatprep.subr.mxu0 0.0
          %6460 = vmatpush2.msra.mxu0 0.0
          %6461 = vmatprep.subr.mxu0 0.0
          %6462 = vmatpush2.msra.mxu0 0.0
          %6463 = vmatprep.subr.mxu0 0.0
          %6464 = vmatpush2.msra.mxu0 0.0
          %6465 = vmatprep.subr.mxu0 0.0
          %6466 = vmatpush2.msra.mxu0 0.0
          %6467 = vmatprep.subr.mxu0 0.0
          %6468 = vmatpush2.msra.mxu0 0.0
          %6469 = vmatprep.subr.mxu0 0.0
          %6470 = vmatpush2.msra.mxu0 0.0
          %6471 = vmatprep.subr.mxu0 0.0
          %6472 = vmatpush2.msra.mxu0 0.0
          %6473 = vmatprep.subr.mxu0 0.0
          %6474 = vmatpush2.msra.mxu0 0.0
          %6475 = vmatprep.subr.mxu0 0.0
          %6476 = vmatpush2.msra.mxu0 0.0
          %6477 = vmatprep.subr.mxu0 0.0
          %6478 = vmatpush2.msra.mxu0 0.0
          %6479 = vmatprep.subr.mxu0 0.0
          %6480 = vmatpush2.msra.mxu0 0.0
          %6481 = vmatprep.subr.mxu0 0.0
          %6482 = vmatpush2.msra.mxu0 0.0
          %6483 = vmatprep.subr.mxu0 0.0
          %6484 = vmatpush2.msra.mxu0 0.0
          %6485 = vmatprep.subr.mxu0 0.0
          %6486 = vmatpush2.msra.mxu0 0.0
          %6487 = vmatprep.subr.mxu0 0.0
          %6488 = vmatpush2.msra.mxu0 0.0
          %6489 = vmatprep.mubr.f32.mxu0 0.0
          %6490 = vmatmul.mubr.f32.gmra.mxu0 %v6277
          %v6491 = vpop.f32.mrf.mxu0
          %v6492 = vadd.f32 0.0, %v6491
          %v6493 = vpop.f32.mrf.mxu0
          %v6494 = vadd.f32 0.0, %v6493
          %6495 = vdwg.mxu0
          %v6497 = vsel %vm3724, %v6281, 0
          %6499 = vmatprep.subr.mxu0 0.0
          %6500 = vmatpush1.msra.mxu0 0.0
          %6501 = vmatprep.subr.mxu0 0.0
          %6502 = vmatpush1.msra.mxu0 0.0
          %6503 = vmatprep.subr.mxu0 0.0
          %6504 = vmatpush1.msra.mxu0 0.0
          %6505 = vmatprep.subr.mxu0 0.0
          %6506 = vmatpush1.msra.mxu0 0.0
          %6507 = vmatprep.subr.mxu0 0.0
          %6508 = vmatpush1.msra.mxu0 0.0
          %6509 = vmatprep.subr.mxu0 0.0
          %6510 = vmatpush1.msra.mxu0 0.0
          %6511 = vmatprep.subr.mxu0 0.0
          %6512 = vmatpush1.msra.mxu0 0.0
          %6513 = vmatprep.subr.mxu0 0.0
          %6514 = vmatpush1.msra.mxu0 0.0
          %6515 = vmatprep.subr.mxu0 0.0
          %6516 = vmatpush1.msra.mxu0 0.0
          %6517 = vmatprep.subr.mxu0 0.0
          %6518 = vmatpush1.msra.mxu0 0.0
          %6519 = vmatprep.subr.mxu0 0.0
          %6520 = vmatpush1.msra.mxu0 0.0
          %6521 = vmatprep.subr.mxu0 0.0
          %6522 = vmatpush1.msra.mxu0 0.0
          %6523 = vmatprep.subr.mxu0 0.0
          %6524 = vmatpush1.msra.mxu0 0.0
          %6525 = vmatprep.subr.mxu0 0.0
          %6526 = vmatpush1.msra.mxu0 0.0
          %6527 = vmatprep.subr.mxu0 %v6287
          %6528 = vmatpush1.msra.mxu0 %v6286
          %6529 = vmatprep.subr.mxu0 %v6283
          %6530 = vmatpush1.msra.mxu0 %v6282
          %6531 = vmatprep.subr.mxu0 0.0
          %6532 = vmatpush2.msra.mxu0 0.0
          %6533 = vmatprep.subr.mxu0 0.0
          %6534 = vmatpush2.msra.mxu0 0.0
          %6535 = vmatprep.subr.mxu0 0.0
          %6536 = vmatpush2.msra.mxu0 0.0
          %6537 = vmatprep.subr.mxu0 0.0
          %6538 = vmatpush2.msra.mxu0 0.0
          %6539 = vmatprep.subr.mxu0 0.0
          %6540 = vmatpush2.msra.mxu0 0.0
          %6541 = vmatprep.subr.mxu0 0.0
          %6542 = vmatpush2.msra.mxu0 0.0
          %6543 = vmatprep.subr.mxu0 0.0
          %6544 = vmatpush2.msra.mxu0 0.0
          %6545 = vmatprep.subr.mxu0 0.0
          %6546 = vmatpush2.msra.mxu0 0.0
          %6547 = vmatprep.subr.mxu0 0.0
          %6548 = vmatpush2.msra.mxu0 0.0
          %6549 = vmatprep.subr.mxu0 0.0
          %6550 = vmatpush2.msra.mxu0 0.0
          %6551 = vmatprep.subr.mxu0 0.0
          %6552 = vmatpush2.msra.mxu0 0.0
          %6553 = vmatprep.subr.mxu0 0.0
          %6554 = vmatpush2.msra.mxu0 0.0
          %6555 = vmatprep.subr.mxu0 0.0
          %6556 = vmatpush2.msra.mxu0 0.0
          %6557 = vmatprep.subr.mxu0 0.0
          %6558 = vmatpush2.msra.mxu0 0.0
          %6559 = vmatprep.subr.mxu0 0.0
          %6560 = vmatpush2.msra.mxu0 0.0
          %6561 = vmatprep.subr.mxu0 0.0
          %6562 = vmatpush2.msra.mxu0 0.0
          %6563 = vmatprep.mubr.f32.mxu0 0.0
          %6564 = vmatmul.mubr.f32.gmra.mxu0 %v6497
          %v6565 = vpop.f32.mrf.mxu0
          %v6566 = vadd.f32 %v6421, %v6565
          %v6567 = vpop.f32.mrf.mxu0
          %v6568 = vadd.f32 %v6423, %v6567
          %6569 = vdwg.mxu0
          %6570 = vmatprep.subr.mxu0 0.0
          %6571 = vmatpush1.msra.mxu0 0.0
          %6572 = vmatprep.subr.mxu0 0.0
          %6573 = vmatpush1.msra.mxu0 0.0
          %6574 = vmatprep.subr.mxu0 0.0
          %6575 = vmatpush1.msra.mxu0 0.0
          %6576 = vmatprep.subr.mxu0 0.0
          %6577 = vmatpush1.msra.mxu0 0.0
          %6578 = vmatprep.subr.mxu0 0.0
          %6579 = vmatpush1.msra.mxu0 0.0
          %6580 = vmatprep.subr.mxu0 0.0
          %6581 = vmatpush1.msra.mxu0 0.0
          %6582 = vmatprep.subr.mxu0 0.0
          %6583 = vmatpush1.msra.mxu0 0.0
          %6584 = vmatprep.subr.mxu0 0.0
          %6585 = vmatpush1.msra.mxu0 0.0
          %6586 = vmatprep.subr.mxu0 0.0
          %6587 = vmatpush1.msra.mxu0 0.0
          %6588 = vmatprep.subr.mxu0 0.0
          %6589 = vmatpush1.msra.mxu0 0.0
          %6590 = vmatprep.subr.mxu0 0.0
          %6591 = vmatpush1.msra.mxu0 0.0
          %6592 = vmatprep.subr.mxu0 0.0
          %6593 = vmatpush1.msra.mxu0 0.0
          %6594 = vmatprep.subr.mxu0 0.0
          %6595 = vmatpush1.msra.mxu0 0.0
          %6596 = vmatprep.subr.mxu0 0.0
          %6597 = vmatpush1.msra.mxu0 0.0
          %6598 = vmatprep.subr.mxu0 %v6289
          %6599 = vmatpush1.msra.mxu0 %v6288
          %6600 = vmatprep.subr.mxu0 %v6285
          %6601 = vmatpush1.msra.mxu0 %v6284
          %6602 = vmatprep.subr.mxu0 0.0
          %6603 = vmatpush2.msra.mxu0 0.0
          %6604 = vmatprep.subr.mxu0 0.0
          %6605 = vmatpush2.msra.mxu0 0.0
          %6606 = vmatprep.subr.mxu0 0.0
          %6607 = vmatpush2.msra.mxu0 0.0
          %6608 = vmatprep.subr.mxu0 0.0
          %6609 = vmatpush2.msra.mxu0 0.0
          %6610 = vmatprep.subr.mxu0 0.0
          %6611 = vmatpush2.msra.mxu0 0.0
          %6612 = vmatprep.subr.mxu0 0.0
          %6613 = vmatpush2.msra.mxu0 0.0
          %6614 = vmatprep.subr.mxu0 0.0
          %6615 = vmatpush2.msra.mxu0 0.0
          %6616 = vmatprep.subr.mxu0 0.0
          %6617 = vmatpush2.msra.mxu0 0.0
          %6618 = vmatprep.subr.mxu0 0.0
          %6619 = vmatpush2.msra.mxu0 0.0
          %6620 = vmatprep.subr.mxu0 0.0
          %6621 = vmatpush2.msra.mxu0 0.0
          %6622 = vmatprep.subr.mxu0 0.0
          %6623 = vmatpush2.msra.mxu0 0.0
          %6624 = vmatprep.subr.mxu0 0.0
          %6625 = vmatpush2.msra.mxu0 0.0
          %6626 = vmatprep.subr.mxu0 0.0
          %6627 = vmatpush2.msra.mxu0 0.0
          %6628 = vmatprep.subr.mxu0 0.0
          %6629 = vmatpush2.msra.mxu0 0.0
          %6630 = vmatprep.subr.mxu0 0.0
          %6631 = vmatpush2.msra.mxu0 0.0
          %6632 = vmatprep.subr.mxu0 0.0
          %6633 = vmatpush2.msra.mxu0 0.0
          %6634 = vmatprep.mubr.f32.mxu0 0.0
          %6635 = vmatmul.mubr.f32.gmra.mxu0 %v6497
          %v6636 = vpop.f32.mrf.mxu0
          %v6637 = vadd.f32 %v6492, %v6636
          %v6638 = vpop.f32.mrf.mxu0
          %v6639 = vadd.f32 %v6494, %v6638
          %6640 = vdwg.mxu0
          %v6641 = vld [vmem:[#allocation10] sm:$0xff]
          %v6642 = vld [vmem:[#allocation10 + $0x8] sm:$0xff]
          %v6643 = vld [vmem:[#allocation10 + $0x10] sm:$0xff]
          %v6644 = vld [vmem:[#allocation10 + $0x18] sm:$0xff]
          %v6645 = vadd.f32 %v6566, %v6641
          %v6646 = vadd.f32 %v6568, %v6642
          %v6647 = vadd.f32 %v6637, %v6643
          %v6648 = vadd.f32 %v6639, %v6644
          %v6649 = vmul.f32 %v6645, 0.5
          %v6650 = vtanh.pop %v6649
          %v6651 = vmul.f32 %v6650, 0.5
          %v6652 = vadd.f32 %v6651, 0.5
          %v6653 = vmul.f32 %v6646, 0.5
          %v6654 = vtanh.pop %v6653
          %v6655 = vmul.f32 %v6654, 0.5
          %v6656 = vadd.f32 %v6655, 0.5
          %v6657 = vtanh.pop %v6647
          %v6658 = vmul.f32 %v6648, 0.5
          %v6659 = vtanh.pop %v6658
          %v6660 = vmul.f32 %v6659, 0.5
          %v6661 = vadd.f32 %v6660, 0.5
          %v6662 = vmul.f32 %v6656, %v6276
          %v6663 = vmul.f32 %v6652, %v6657
          %v6664 = vadd.f32 %v6662, %v6663
          %v6665 = vtanh.pop %v6664
          %v6666 = vmul.f32 %v6661, %v6665
          %s6667 = sadd.s32 %s3896, 7
          %p6668 = scmp.lt.s32.totalorder %s6667, 12
          %s6669 = scalar_select %p6668, 1, 0
          %v6670 = vstv %s6669
          %vm6671 = vcmp.eq.s32.totalorder %v6670, 1
          %v6672 = vsel %vm6671, %v6664, %v6276
          %v6673 = vsel %vm6671, %v6666, %v6277
          %s6674 = scalar_lea.vmem %s369, 56 [#allocation13]
          %6675 = vst [vmem:[%s6674] sm:$0xff] %v6673
          %6676 = vst [vmem:[#allocation2] sm:$0xff] %v6673
          %6677 = vst [vmem:[#allocation3] sm:$0xff] %v6672
          %v6678 = vld [vmem:[#allocation2] sm:$0xff]
          %6679 = vst [vmem:[#allocation14] sm:$0xff] %v6678
          %v6680 = vld [vmem:[#allocation3] sm:$0xff]
          %6681 = vst [vmem:[#allocation16] sm:$0xff] %v6680
        $region76: #{tpu_custom_call.1} parent=43 // pred_fallthru
          _
        %s6682 = sand.u32 %s168, 1
        %s6683 = scalar_lea.sflag [#allocation6], %s6682
        %s6684 = sand.u32 %s168, 1
        %s6685 = smul.addr %s6684, 64
        %s6686 = scalar_lea.vmem [#allocation13], %s6685
        // Predicated region
        $region77: #{tpu_custom_call.1} parent=43 // pred_check
          %p6687 = pneg %p178
        $region78: #{tpu_custom_call.1} parent=43 // pred_check_branch
          %6689 = sbr.rel (%p6687) target = $region80
        $region79: #{tpu_custom_call.1} parent=43 // pred_region
          %s6690 = smul.u32 8, %s29
          %s6692 = ssub.s32 1024, 1024
          %6693 = vsyncadd %s6683, %s6692
          %s6694 = smul.addr %s6690, 128
          %s6695 = scalar_lea.hbm %s6, %s6694
          %s6696 = sshll.u32 %s6686, 4
          %s6697 = int_to_ptr.vmem [resolvable:$true] %s6696
          %6702 = dma.vmem_to_hbm [thread:$0]  %s6697, 1024, %s6695, %s6683, 128, 128, 8
        $region80: #{tpu_custom_call.1} parent=43 // pred_fallthru
          _
        // Predicated region
        $region81: #{tpu_custom_call.1} parent=43 // pred_check
          %p6703 = pneg %p199
        $region82: #{tpu_custom_call.1} parent=43 // pred_check_branch
          %6705 = sbr.rel (%p6703) target = $region84
        $region83: #{tpu_custom_call.1} parent=43 // pred_region
          %s6707 = ssub.s32 128, 128
          %6708 = vsyncadd [#allocation15], %s6707
          %s6710 = sshll.u32 [#allocation14], 4
          %s6711 = int_to_ptr.vmem [resolvable:$true] %s6710
          %6713 = dma.vmem_to_hbm [thread:$0]  %s6711, 128, %s7, [#allocation15]
        $region84: #{tpu_custom_call.1} parent=43 // pred_fallthru
          _
        // Predicated region
        $region85: #{tpu_custom_call.1} parent=43 // pred_check
          %p6714 = pneg %p220
        $region86: #{tpu_custom_call.1} parent=43 // pred_check_branch
          %6716 = sbr.rel (%p6714) target = $region88
        $region87: #{tpu_custom_call.1} parent=43 // pred_region
          %s6718 = ssub.s32 128, 128
          %6719 = vsyncadd [#allocation15], %s6718
          %s6721 = sshll.u32 [#allocation16], 4
          %s6722 = int_to_ptr.vmem [resolvable:$true] %s6721
          %6724 = dma.vmem_to_hbm [thread:$0]  %s6722, 128, %s8, [#allocation15]
        $region88: #{tpu_custom_call.1} parent=43 // pred_fallthru
          _
        // Predicated region
        $region89: #{tpu_custom_call.1} parent=43 // pred_check
          %p6725 = pneg %p199
        $region90: #{tpu_custom_call.1} parent=43 // pred_check_branch
          %6727 = sbr.rel (%p6725) target = $region92
        $region91: #{tpu_custom_call.1} parent=43 // pred_region
          %6728 = dma.done [#allocation15], 128
        $region92: #{tpu_custom_call.1} parent=43 // pred_fallthru
          _
        // Predicated region
        $region93: #{tpu_custom_call.1} parent=43 // pred_check
          %p6729 = pneg %p220
        $region94: #{tpu_custom_call.1} parent=43 // pred_check_branch
          %6731 = sbr.rel (%p6729) target = $region96
        $region95: #{tpu_custom_call.1} parent=43 // pred_region
          %6732 = dma.done [#allocation15], 128
        $region96: #{tpu_custom_call.1} parent=43 // pred_fallthru
          _
      $region44: #{tpu_custom_call.1} parent=5 // pred_fallthru
        _
      %p6733 = scmp.le.s32.totalorder 2, %s24
      // Predicated region
      $region97: #{tpu_custom_call.1} parent=5 // pred_check
        %p6734 = pneg %p6733
      $region98: #{tpu_custom_call.1} parent=5 // pred_check_branch
        %6736 = sbr.rel (%p6734) target = $region100
      $region99: #{tpu_custom_call.1} parent=5 // pred_region
        %s6737 = ssub.s32 %s24, 2
        // Predicated region
        $region101: #{tpu_custom_call.1} parent=99 // pred_check
          %p6738 = pneg %p184
        $region102: #{tpu_custom_call.1} parent=99 // pred_check_branch
          %6740 = sbr.rel (%p6738) target = $region104
        $region103: #{tpu_custom_call.1} parent=99 // pred_region
          %s6741 = sand.u32 %s169, 1
          %s6742 = scalar_lea.sflag [#allocation6], %s6741
          %s6743 = sand.u32 %s169, 1
          %s6744 = smul.addr %s6743, 64
          %s6745 = scalar_lea.vmem [#allocation13], %s6744
          %6746 = dma.done %s6742, 1024
        $region104: #{tpu_custom_call.1} parent=99 // pred_fallthru
          _
      $region100: #{tpu_custom_call.1} parent=5 // pred_fallthru
        _
    $region6: #{tpu_custom_call.1} parent=1 // loop_footer
      %s28 = sadd.s32 1, %s24
    $region7: #{tpu_custom_call.1} parent=1 // loop_footer_branch
      %23 = sbr.rel target = $region3
    $region8: #{tpu_custom_call.1} parent=1 // loop_exit
      _
    %6747 = vsyncpa [#allocation5], 1
    %s6748 = scalar_lea.sflag [#allocation5], 1
    %6749 = vsyncpa %s6748, 1
    %6750 = vsyncpa [#allocation8], 1
    %6751 = vsyncpa [#allocation11], 1
    %6752 = vsyncpa [#allocation6], 1
    %s6753 = scalar_lea.sflag [#allocation6], 1
    %6754 = vsyncpa %s6753, 1
    %6755 = vsyncpa [#allocation15], 1

</llo_original>
